<compile_context>
chip_gen: v6e
topology: v6e:2x2x1
jax: 0.10.0
libtpu: 0.0.40
codegen_flags: <defaults>
</compile_context>

<pallas_src>
import jax
import jax.numpy as jnp
from jax import lax
from jax.experimental import pallas as pl
from jax.experimental.pallas import tpu as pltpu


def _cdiv(a, b):
    return -(-a // b)


def _round_up(a, m):
    return _cdiv(a, m) * m


def char_lm_kernel(lens_ref,                                   # SMEM [B_pad] int32 (scalar prefetch)
                   x_ref, wih_ref, whh_ref, b_ref, h0_ref, c0_ref,
                   wdec_ref, bdec_ref,
                   out_ref, hlast_ref, clast_ref, dec_ref,
                   h_sc, c_sc, lens_sc, xg_sc):
    """One (batch block, time chunk) step of the masked LSTM + decoder.

    x_ref:    [Tc, tb, E]  bf16 embedded chars (time-major chunk)
    wih_ref:  [E, 4H] bf16, whh_ref: [H, 4H] bf16, b_ref: [1, 4H] f32 (b_ih+b_hh)
    h0/c0:    [tb, H] f32 initial states
    wdec_ref: [H, V] bf16, bdec_ref: [1, V] f32
    out_ref:  [tb, Tc, H] f32 batch-major LSTM output (zeros past length)
    hlast/clast: [tb, H] f32 state at each sequence's last valid step
    dec_ref:  [tb, Tc, V] f32 decoder output
    h_sc/c_sc/lens_sc: carried state + broadcast lengths (persist across chunks)
    xg_sc:    [Tc, tb, 4H] bf16 hoisted x @ W_ih + b for this chunk
    """
    bi = pl.program_id(0)          # batch block ("parallel")
    ti = pl.program_id(1)          # time chunk  ("arbitrary", innermost)
    Tc, TB, E = x_ref.shape
    H = h0_ref.shape[1]
    G = 4 * H
    V = wdec_ref.shape[1]

    # ---- once per batch block: init carried state + broadcast the lengths ----
    @pl.when(ti == 0)
    def _init():
        h_sc[...] = h0_ref[...]
        c_sc[...] = c0_ref[...]
        for r in range(TB):        # static; TB <= 128, runs once per batch block
            lens_sc[r] = jnp.full((H,), lens_ref[bi * TB + r], dtype=jnp.int32)

    # ---- hoisted input projection for this chunk: one [Tc*tb,E]x[E,4H] matmul ----
    x2d = x_ref[...].reshape(Tc * TB, E)
    xg = jnp.dot(x2d, wih_ref[...], preferred_element_type=jnp.float32) + b_ref[...]
    xg_sc[...] = xg.astype(xg_sc.dtype).reshape(Tc, TB, G)

    whh = whh_ref[...]             # bf16 [H, 4H]
    lens = lens_sc[...]            # int32 [TB, H]
    t0 = ti * Tc

    # ---- serial recurrence over the chunk (Tc <= time_block, fully unrolled;
    #      static indices keep the strided batch-major stores simple) ----
    for tt in range(Tc):
        h_prev = h_sc[...]
        c_prev = c_sc[...]
        # gate accumulation in f32; only the recurrent matmul is on the chain
        gates = (xg_sc[tt].astype(jnp.float32)
                 + jnp.dot(h_prev.astype(whh.dtype), whh,
                           preferred_element_type=jnp.float32))
        i_g = jax.nn.sigmoid(gates[:, 0:H])
        f_g = jax.nn.sigmoid(gates[:, H:2 * H])
        g_g = jnp.tanh(gates[:, 2 * H:3 * H])
        o_g = jax.nn.sigmoid(gates[:, 3 * H:4 * H])
        c_new = f_g * c_prev + i_g * g_g
        h_new = o_g * jnp.tanh(c_new)

        m = lens > (t0 + tt)                       # packed-sequence mask [TB, H]
        c_sc[...] = jnp.where(m, c_new, c_prev)    # freeze state past length
        h_sc[...] = jnp.where(m, h_new, h_prev)
        # batch-major writeback: [tb,1,H] slab at time tt (no wrapper transpose)
        out_ref[:, tt:tt + 1, :] = jnp.where(m, h_new, 0.0)[:, None, :]

    hlast_ref[...] = h_sc[...]
    clast_ref[...] = c_sc[...]

    # ---- hoisted decoder for this chunk: one [tb*Tc,H]x[H,V] matmul ----
    out2d = out_ref[...].reshape(TB * Tc, H).astype(wdec_ref.dtype)
    dec = jnp.dot(out2d, wdec_ref[...], preferred_element_type=jnp.float32) + bdec_ref[...]
    dec_ref[...] = dec.reshape(TB, Tc, V)


def char_lm_forward(chars, charlens, params, hidden=None, *,
                    batch_block=128, time_block=16):
    """chars [B,T] int32, charlens [B] int. Returns (output [B,T,H],
    (h [1,B,H], c [1,B,H]), decoded [B,T,V]) with PyTorch batch_first layout."""
    emb_table = params["char_emb"]                       # [V, E]
    wih, whh, b = params["w_ih"], params["w_hh"], params["b"]
    wdec, bdec = params["w_dec"], params["b_dec"]
    h_init, c_init = params["h_init"], params["c_init"]  # [1, 1, H]

    B, T = chars.shape
    E = emb_table.shape[1]
    H = wih.shape[1] // 4
    V = wdec.shape[1]
    G = 4 * H
    assert H % 128 == 0 and V % 128 == 0, "pad char_hidden_dim / vocab to 128 multiples"
    # TODO(synk): for odd production H/V, zero-pad each of the 4 gate blocks of
    # W_ih/W_hh and the decoder columns up to 128 multiples instead of asserting.

    # ---- batch blocking: tb up to batch_block, and >= 2 blocks so both v7x
    #      TensorCores get work; B padded to a multiple of (8, tb). ----
    B8 = max(_round_up(B, 8), 16)
    nb = max(2, _cdiv(B8, batch_block))
    tb = _round_up(_cdiv(B8, nb), 8)
    B_pad = nb * tb

    # ---- time chunking: bounds VMEM (v7x 64 MiB) and the unrolled loop ----
    Tc = min(_round_up(time_block, 8), _round_up(T, 8))
    T_pad = _round_up(T, Tc)
    nt = T_pad // Tc

    # ---- glue (plain JAX; eval mode => all dropouts are identities) ----
    chars_p = jnp.pad(chars.astype(jnp.int32), ((0, B_pad - B), (0, T_pad - T)))
    lens_p = jnp.pad(charlens.astype(jnp.int32), (0, B_pad - B))   # padded rows: length 0
    # gather directly in time-major order (folds the transpose into the gather), bf16
    x_tm = jnp.take(emb_table.astype(jnp.bfloat16), chars_p.T, axis=0)   # [T_pad, B_pad, E]

    if hidden is None:
        h0 = jnp.broadcast_to(h_init[0], (B_pad, H)).astype(jnp.float32)
        c0 = jnp.broadcast_to(c_init[0], (B_pad, H)).astype(jnp.float32)
    else:
        h0 = jnp.pad(hidden[0][0].astype(jnp.float32), ((0, B_pad - B), (0, 0)))
        c0 = jnp.pad(hidden[1][0].astype(jnp.float32), ((0, B_pad - B), (0, 0)))

    wih_b = wih.astype(jnp.bfloat16)
    whh_b = whh.astype(jnp.bfloat16)
    wdec_b = wdec.astype(jnp.bfloat16)
    b_f = b.astype(jnp.float32).reshape(1, G)
    bdec_f = bdec.astype(jnp.float32).reshape(1, V)

    # VMEM budget per chip: ~75% of physical, capped (v7x 64MiB->48MiB, v5e/v6e->96MiB)
    try:
        phys = int(pltpu.get_tpu_info().vmem_capacity_bytes)
    except Exception:
        phys = 64 * 1024 * 1024
    vmem_limit = int(min(phys * 3 // 4, 100 * 1024 * 1024))

    out_shapes = (
        jax.ShapeDtypeStruct((B_pad, T_pad, H), jnp.float32),
        jax.ShapeDtypeStruct((B_pad, H), jnp.float32),
        jax.ShapeDtypeStruct((B_pad, H), jnp.float32),
        jax.ShapeDtypeStruct((B_pad, T_pad, V), jnp.float32),
    )

    def _weight_spec(shape, single_buffer):
        idx = lambda bi, ti, lens: (0,) * len(shape)
        if single_buffer:
            # constant block index across the whole grid -> no need to double-buffer
            return pl.BlockSpec(shape, idx, pipeline_mode=pl.Buffered(1))
        return pl.BlockSpec(shape, idx)

    def _call(single_buffer_weights):
        grid_spec = pltpu.PrefetchScalarGridSpec(
            num_scalar_prefetch=1,                     # charlens -> SMEM
            grid=(nb, nt),                             # (batch blocks, time chunks)
            in_specs=[
                pl.BlockSpec((Tc, tb, E), lambda bi, ti, lens: (ti, bi, 0)),   # x
                _weight_spec((E, G), single_buffer_weights),                    # W_ih
                _weight_spec((H, G), single_buffer_weights),                    # W_hh
                _weight_spec((1, G), single_buffer_weights),                    # bias
                pl.BlockSpec((tb, H), lambda bi, ti, lens: (bi, 0)),            # h0
                pl.BlockSpec((tb, H), lambda bi, ti, lens: (bi, 0)),            # c0
                _weight_spec((H, V), single_buffer_weights),                    # W_dec
                _weight_spec((1, V), single_buffer_weights),                    # b_dec
            ],
            out_specs=(
                pl.BlockSpec((tb, Tc, H), lambda bi, ti, lens: (bi, ti, 0)),    # out (batch-major)
                pl.BlockSpec((tb, H), lambda bi, ti, lens: (bi, 0)),            # h_last
                pl.BlockSpec((tb, H), lambda bi, ti, lens: (bi, 0)),            # c_last
                pl.BlockSpec((tb, Tc, V), lambda bi, ti, lens: (bi, ti, 0)),    # decoded
            ),
            scratch_shapes=[
                pltpu.VMEM((tb, H), jnp.float32),        # h state (carried over chunks)
                pltpu.VMEM((tb, H), jnp.float32),        # c state
                pltpu.VMEM((tb, H), jnp.int32),          # per-row lengths broadcast
                pltpu.VMEM((Tc, tb, G), jnp.bfloat16),   # chunk x@W_ih + b
            ],
        )
        return pl.pallas_call(
            char_lm_kernel,
            out_shape=out_shapes,
            grid_spec=grid_spec,
            compiler_params=pltpu.CompilerParams(
                dimension_semantics=("parallel", "arbitrary"),
                vmem_limit_bytes=vmem_limit),
        )(lens_p, x_tm, wih_b, whh_b, b_f, h0, c0, wdec_b, bdec_f)

    try:
        out_bm, h_last, c_last, dec_bm = _call(True)
    except Exception:
        # fall back if this JAX build rejects pipeline_mode on pallas_call specs
        out_bm, h_last, c_last, dec_bm = _call(False)

    output = out_bm[:B, :T]                      # [B, T, H], already batch-major
    decoded = dec_bm[:B, :T]                     # [B, T, V]
    hidden_out = (h_last[None, :B], c_last[None, :B])   # [num_layers=1, B, H]
    return output, hidden_out, decoded


def char_lm_reference(chars, charlens, params, matmul_dtype=jnp.float32):
    """Pure-JAX reference. With matmul_dtype=bf16 it mirrors the kernel's
    mixed-precision scheme (bf16 MXU operands + f32 accumulate/state)."""
    md = matmul_dtype
    emb = params["char_emb"]
    wih = params["w_ih"].astype(md)
    whh = params["w_hh"].astype(md)
    wdec = params["w_dec"].astype(md)
    b = params["b"].astype(jnp.float32)
    bdec = params["b_dec"].astype(jnp.float32)
    h_init, c_init = params["h_init"], params["c_init"]

    B, T = chars.shape
    H = params["w_hh"].shape[0]
    x = jnp.take(emb.astype(md), chars, axis=0)                       # [B, T, E]
    xg = jnp.dot(x.reshape(B * T, -1), wih,
                 preferred_element_type=jnp.float32) + b
    xg = xg.astype(md).reshape(B, T, 4 * H)                            # kernel stores xg in bf16
    mask = jnp.arange(T)[None, :] < charlens[:, None]                  # [B, T] bool
    h0 = jnp.broadcast_to(h_init[0], (B, H)).astype(jnp.float32)
    c0 = jnp.broadcast_to(c_init[0], (B, H)).astype(jnp.float32)

    def cell(carry, xs):
        h, c = carry
        xg_t, m_t = xs
        gates = xg_t.astype(jnp.float32) + jnp.dot(
            h.astype(md), whh, preferred_element_type=jnp.float32)
        i_g = jax.nn.sigmoid(gates[:, :H])
        f_g = jax.nn.sigmoid(gates[:, H:2 * H])
        g_g = jnp.tanh(gates[:, 2 * H:3 * H])
        o_g = jax.nn.sigmoid(gates[:, 3 * H:])
        c_new = f_g * c + i_g * g_g
        h_new = o_g * jnp.tanh(c_new)
        m = m_t[:, None]
        return ((jnp.where(m, h_new, h), jnp.where(m, c_new, c)),
                jnp.where(m, h_new, 0.0))

    (hT, cT), outs = lax.scan(cell, (h0, c0),
                              (jnp.transpose(xg, (1, 0, 2)), mask.T))
    out = jnp.transpose(outs, (1, 0, 2))                               # [B, T, H]
    dec = (jnp.dot(out.reshape(B * T, H).astype(md), wdec,
                   preferred_element_type=jnp.float32) + bdec).reshape(B, T, -1)
    return out, (hT[None], cT[None]), dec


if __name__ == "__main__":
    # Small shapes consistent with the module's args/vocab.
    V = 128    # len(vocab['char'])
    E = 64     # char_emb_dim
    H = 128    # char_hidden_dim
    B = 4      # batch
    T = 8      # max char sequence length (char_num_layers = 1)

    key = jax.random.PRNGKey(0)
    ks = jax.random.split(key, 8)
    scale = 0.1
    params = {
        "char_emb": jax.random.uniform(ks[0], (V, E), jnp.float32, -scale, scale),
        "w_ih":     jax.random.uniform(ks[1], (E, 4 * H), jnp.float32, -scale, scale),
        "w_hh":     jax.random.uniform(ks[2], (H, 4 * H), jnp.float32, -scale, scale),
        "b":        jax.random.uniform(ks[3], (1, 4 * H), jnp.float32, -scale, scale),
        "w_dec":    jax.random.uniform(ks[4], (H, V), jnp.float32, -scale, scale),
        "b_dec":    jax.random.uniform(ks[5], (1, V), jnp.float32, -scale, scale),
        # charlstm_h_init / charlstm_c_init are zero-initialized nn.Parameters
        "h_init":   jnp.zeros((1, 1, H), jnp.float32),
        "c_init":   jnp.zeros((1, 1, H), jnp.float32),
    }

    chars = jax.random.randint(ks[6], (B, T), 0, V, dtype=jnp.int32)
    charlens = jnp.array([8, 6, 5, 3], dtype=jnp.int32)  # sorted desc, like pack_padded_sequence

    output, (h, c), decoded = char_lm_forward(chars, charlens, params)
    jax.block_until_ready((output, h, c, decoded))

    # tight check vs a reference that uses the same bf16-MXU / f32-state scheme
    ro, (rh, rc), rd = char_lm_reference(chars, charlens, params, matmul_dtype=jnp.bfloat16)
    assert jnp.allclose(output, ro, atol=2e-4, rtol=2e-4)
    assert jnp.allclose(h, rh, atol=2e-4, rtol=2e-4)
    assert jnp.allclose(c, rc, atol=2e-4, rtol=2e-4)
    assert jnp.allclose(decoded, rd, atol=2e-4, rtol=2e-4)

    # sanity check vs the pure-f32 reference (difference = bf16 matmul rounding only)
    fo, _, fd = char_lm_reference(chars, charlens, params, matmul_dtype=jnp.float32)
    assert jnp.allclose(output, fo, atol=3e-2, rtol=3e-2)
    assert jnp.allclose(decoded, fd, atol=3e-2, rtol=3e-2)

    assert output.shape == (B, T, H) and decoded.shape == (B, T, V)
    assert h.shape == (1, B, H) and c.shape == (1, B, H)
    print("KERNEL_OK")
</pallas_src>

<mosaic_0001>
module attributes {stable_mosaic.version = 11 : i64} {
  func.func @char_lm_kernel(%arg0: i32, %arg1: i32, %arg2: memref<16xi32, #tpu.memory_space<smem>>, %arg3: memref<8x8x64xbf16, #tpu.memory_space<vmem>>, %arg4: memref<64x512xbf16, #tpu.memory_space<vmem>>, %arg5: memref<128x512xbf16, #tpu.memory_space<vmem>>, %arg6: memref<1x512xf32, #tpu.memory_space<vmem>>, %arg7: memref<8x128xf32, #tpu.memory_space<vmem>>, %arg8: memref<8x128xf32, #tpu.memory_space<vmem>>, %arg9: memref<128x128xbf16, #tpu.memory_space<vmem>>, %arg10: memref<1x128xf32, #tpu.memory_space<vmem>>, %arg11: memref<8x8x128xf32, #tpu.memory_space<vmem>>, %arg12: memref<8x128xf32, #tpu.memory_space<vmem>>, %arg13: memref<8x128xf32, #tpu.memory_space<vmem>>, %arg14: memref<8x8x128xf32, #tpu.memory_space<vmem>>, %arg15: memref<8x128xf32, #tpu.memory_space<vmem>>, %arg16: memref<8x128xf32, #tpu.memory_space<vmem>>, %arg17: memref<8x128xi32, #tpu.memory_space<vmem>>, %arg18: memref<8x8x512xbf16, #tpu.memory_space<vmem>>) attributes {dimension_semantics = [#tpu.dimension_semantics<parallel>, #tpu.dimension_semantics<arbitrary>], iteration_bounds = array<i64: 2, 1>, scalar_prefetch = 1 : i64, scratch_operands = 4 : i64, tpu.core_type = #tpu.core_type<tc>, window_params = [{transform_indices = @transform_0, window_bounds = array<i64: 8, 8, 64>}, {pipeline_mode = #tpu.pipeline_mode<synchronous>, transform_indices = @transform_1, window_bounds = array<i64: 64, 512>}, {pipeline_mode = #tpu.pipeline_mode<synchronous>, transform_indices = @transform_2, window_bounds = array<i64: 128, 512>}, {pipeline_mode = #tpu.pipeline_mode<synchronous>, transform_indices = @transform_3, window_bounds = array<i64: 1, 512>}, {transform_indices = @transform_4, window_bounds = array<i64: 8, 128>}, {transform_indices = @transform_5, window_bounds = array<i64: 8, 128>}, {pipeline_mode = #tpu.pipeline_mode<synchronous>, transform_indices = @transform_6, window_bounds = array<i64: 128, 128>}, {pipeline_mode = #tpu.pipeline_mode<synchronous>, transform_indices = @transform_7, window_bounds = array<i64: 1, 128>}, {transform_indices = @transform_8, window_bounds = array<i64: 8, 8, 128>}, {transform_indices = @transform_9, window_bounds = array<i64: 8, 128>}, {transform_indices = @transform_10, window_bounds = array<i64: 8, 128>}, {transform_indices = @transform_11, window_bounds = array<i64: 8, 8, 128>}]} {
    %c0_i32 = arith.constant 0 : i32
    %0 = arith.cmpi eq, %arg1, %c0_i32 : i32
    %1 = arith.extui %0 : i1 to i32
    %c0_i32_0 = arith.constant 0 : i32
    %2 = arith.cmpi ne, %1, %c0_i32_0 : i32
    scf.if %2 {
      %c0_179 = arith.constant 0 : index
      %c0_180 = arith.constant 0 : index
      %382 = vector.load %arg7[%c0_179, %c0_180] : memref<8x128xf32, #tpu.memory_space<vmem>>, vector<8x128xf32>
      %c0_181 = arith.constant 0 : index
      %c0_182 = arith.constant 0 : index
      %383 = vector.load %arg15[%c0_181, %c0_182] : memref<8x128xf32, #tpu.memory_space<vmem>>, vector<8x128xf32>
      tpu.vector_store %arg15[%c0_181, %c0_182], %382 {strides = array<i32>} : memref<8x128xf32, #tpu.memory_space<vmem>>, vector<8x128xf32>,
      %c0_183 = arith.constant 0 : index
      %c0_184 = arith.constant 0 : index
      %384 = vector.load %arg8[%c0_183, %c0_184] : memref<8x128xf32, #tpu.memory_space<vmem>>, vector<8x128xf32>
      %c0_185 = arith.constant 0 : index
      %c0_186 = arith.constant 0 : index
      %385 = vector.load %arg16[%c0_185, %c0_186] : memref<8x128xf32, #tpu.memory_space<vmem>>, vector<8x128xf32>
      tpu.vector_store %arg16[%c0_185, %c0_186], %384 {strides = array<i32>} : memref<8x128xf32, #tpu.memory_space<vmem>>, vector<8x128xf32>,
      %c8_i32_187 = arith.constant 8 : i32
      %386 = arith.muli %arg0, %c8_i32_187 : i32
      %c0_i32_188 = arith.constant 0 : i32
      %387 = arith.addi %386, %c0_i32_188 : i32
      %388 = arith.index_cast %387 : i32 to index
      %389 = memref.load %arg2[%388] : memref<16xi32, #tpu.memory_space<smem>>
      %390 = vector.broadcast %389 : i32 to vector<128xi32>
      %c0_189 = arith.constant 0 : index
      %c0_190 = arith.constant 0 : index
      %391 = vector.load %arg17[%c0_189, %c0_190] : memref<8x128xi32, #tpu.memory_space<vmem>>, vector<1x128xi32>
      %392 = vector.shape_cast %391 : vector<1x128xi32> to vector<128xi32>
      %393 = vector.shape_cast %390 : vector<128xi32> to vector<1x128xi32>
      tpu.vector_store %arg17[%c0_189, %c0_190], %393 {strides = array<i32>} : memref<8x128xi32, #tpu.memory_space<vmem>>, vector<1x128xi32>,
      %c8_i32_191 = arith.constant 8 : i32
      %394 = arith.muli %arg0, %c8_i32_191 : i32
      %c1_i32_192 = arith.constant 1 : i32
      %395 = arith.addi %394, %c1_i32_192 : i32
      %396 = arith.index_cast %395 : i32 to index
      %397 = memref.load %arg2[%396] : memref<16xi32, #tpu.memory_space<smem>>
      %398 = vector.broadcast %397 : i32 to vector<128xi32>
      %c1_193 = arith.constant 1 : index
      %c0_194 = arith.constant 0 : index
      %399 = vector.load %arg17[%c1_193, %c0_194] : memref<8x128xi32, #tpu.memory_space<vmem>>, vector<1x128xi32>
      %400 = vector.shape_cast %399 : vector<1x128xi32> to vector<128xi32>
      %401 = vector.shape_cast %398 : vector<128xi32> to vector<1x128xi32>
      tpu.vector_store %arg17[%c1_193, %c0_194], %401 {strides = array<i32>} : memref<8x128xi32, #tpu.memory_space<vmem>>, vector<1x128xi32>,
      %c8_i32_195 = arith.constant 8 : i32
      %402 = arith.muli %arg0, %c8_i32_195 : i32
      %c2_i32_196 = arith.constant 2 : i32
      %403 = arith.addi %402, %c2_i32_196 : i32
      %404 = arith.index_cast %403 : i32 to index
      %405 = memref.load %arg2[%404] : memref<16xi32, #tpu.memory_space<smem>>
      %406 = vector.broadcast %405 : i32 to vector<128xi32>
      %c2_197 = arith.constant 2 : index
      %c0_198 = arith.constant 0 : index
      %407 = vector.load %arg17[%c2_197, %c0_198] : memref<8x128xi32, #tpu.memory_space<vmem>>, vector<1x128xi32>
      %408 = vector.shape_cast %407 : vector<1x128xi32> to vector<128xi32>
      %409 = vector.shape_cast %406 : vector<128xi32> to vector<1x128xi32>
      tpu.vector_store %arg17[%c2_197, %c0_198], %409 {strides = array<i32>} : memref<8x128xi32, #tpu.memory_space<vmem>>, vector<1x128xi32>,
      %c8_i32_199 = arith.constant 8 : i32
      %410 = arith.muli %arg0, %c8_i32_199 : i32
      %c3_i32_200 = arith.constant 3 : i32
      %411 = arith.addi %410, %c3_i32_200 : i32
      %412 = arith.index_cast %411 : i32 to index
      %413 = memref.load %arg2[%412] : memref<16xi32, #tpu.memory_space<smem>>
      %414 = vector.broadcast %413 : i32 to vector<128xi32>
      %c3_201 = arith.constant 3 : index
      %c0_202 = arith.constant 0 : index
      %415 = vector.load %arg17[%c3_201, %c0_202] : memref<8x128xi32, #tpu.memory_space<vmem>>, vector<1x128xi32>
      %416 = vector.shape_cast %415 : vector<1x128xi32> to vector<128xi32>
      %417 = vector.shape_cast %414 : vector<128xi32> to vector<1x128xi32>
      tpu.vector_store %arg17[%c3_201, %c0_202], %417 {strides = array<i32>} : memref<8x128xi32, #tpu.memory_space<vmem>>, vector<1x128xi32>,
      %c8_i32_203 = arith.constant 8 : i32
      %418 = arith.muli %arg0, %c8_i32_203 : i32
      %c4_i32_204 = arith.constant 4 : i32
      %419 = arith.addi %418, %c4_i32_204 : i32
      %420 = arith.index_cast %419 : i32 to index
      %421 = memref.load %arg2[%420] : memref<16xi32, #tpu.memory_space<smem>>
      %422 = vector.broadcast %421 : i32 to vector<128xi32>
      %c4_205 = arith.constant 4 : index
      %c0_206 = arith.constant 0 : index
      %423 = vector.load %arg17[%c4_205, %c0_206] : memref<8x128xi32, #tpu.memory_space<vmem>>, vector<1x128xi32>
      %424 = vector.shape_cast %423 : vector<1x128xi32> to vector<128xi32>
      %425 = vector.shape_cast %422 : vector<128xi32> to vector<1x128xi32>
      tpu.vector_store %arg17[%c4_205, %c0_206], %425 {strides = array<i32>} : memref<8x128xi32, #tpu.memory_space<vmem>>, vector<1x128xi32>,
      %c8_i32_207 = arith.constant 8 : i32
      %426 = arith.muli %arg0, %c8_i32_207 : i32
      %c5_i32_208 = arith.constant 5 : i32
      %427 = arith.addi %426, %c5_i32_208 : i32
      %428 = arith.index_cast %427 : i32 to index
      %429 = memref.load %arg2[%428] : memref<16xi32, #tpu.memory_space<smem>>
      %430 = vector.broadcast %429 : i32 to vector<128xi32>
      %c5_209 = arith.constant 5 : index
      %c0_210 = arith.constant 0 : index
      %431 = vector.load %arg17[%c5_209, %c0_210] : memref<8x128xi32, #tpu.memory_space<vmem>>, vector<1x128xi32>
      %432 = vector.shape_cast %431 : vector<1x128xi32> to vector<128xi32>
      %433 = vector.shape_cast %430 : vector<128xi32> to vector<1x128xi32>
      tpu.vector_store %arg17[%c5_209, %c0_210], %433 {strides = array<i32>} : memref<8x128xi32, #tpu.memory_space<vmem>>, vector<1x128xi32>,
      %c8_i32_211 = arith.constant 8 : i32
      %434 = arith.muli %arg0, %c8_i32_211 : i32
      %c6_i32_212 = arith.constant 6 : i32
      %435 = arith.addi %434, %c6_i32_212 : i32
      %436 = arith.index_cast %435 : i32 to index
      %437 = memref.load %arg2[%436] : memref<16xi32, #tpu.memory_space<smem>>
      %438 = vector.broadcast %437 : i32 to vector<128xi32>
      %c6_213 = arith.constant 6 : index
      %c0_214 = arith.constant 0 : index
      %439 = vector.load %arg17[%c6_213, %c0_214] : memref<8x128xi32, #tpu.memory_space<vmem>>, vector<1x128xi32>
      %440 = vector.shape_cast %439 : vector<1x128xi32> to vector<128xi32>
      %441 = vector.shape_cast %438 : vector<128xi32> to vector<1x128xi32>
      tpu.vector_store %arg17[%c6_213, %c0_214], %441 {strides = array<i32>} : memref<8x128xi32, #tpu.memory_space<vmem>>, vector<1x128xi32>,
      %c8_i32_215 = arith.constant 8 : i32
      %442 = arith.muli %arg0, %c8_i32_215 : i32
      %c7_i32_216 = arith.constant 7 : i32
      %443 = arith.addi %442, %c7_i32_216 : i32
      %444 = arith.index_cast %443 : i32 to index
      %445 = memref.load %arg2[%444] : memref<16xi32, #tpu.memory_space<smem>>
      %446 = vector.broadcast %445 : i32 to vector<128xi32>
      %c7_217 = arith.constant 7 : index
      %c0_218 = arith.constant 0 : index
      %447 = vector.load %arg17[%c7_217, %c0_218] : memref<8x128xi32, #tpu.memory_space<vmem>>, vector<1x128xi32>
      %448 = vector.shape_cast %447 : vector<1x128xi32> to vector<128xi32>
      %449 = vector.shape_cast %446 : vector<128xi32> to vector<1x128xi32>
      tpu.vector_store %arg17[%c7_217, %c0_218], %449 {strides = array<i32>} : memref<8x128xi32, #tpu.memory_space<vmem>>, vector<1x128xi32>,
    } else {
    }
    %c0 = arith.constant 0 : index
    %c0_1 = arith.constant 0 : index
    %c0_2 = arith.constant 0 : index
    %3 = vector.load %arg3[%c0, %c0_1, %c0_2] : memref<8x8x64xbf16, #tpu.memory_space<vmem>>, vector<8x8x64xbf16>
    %4 = vector.shape_cast %3 : vector<8x8x64xbf16> to vector<64x64xbf16>
    %c0_3 = arith.constant 0 : index
    %c0_4 = arith.constant 0 : index
    %5 = vector.load %arg4[%c0_3, %c0_4] : memref<64x512xbf16, #tpu.memory_space<vmem>>, vector<64x512xbf16>
    %cst = arith.constant dense<0.000000e+00> : vector<64x512xf32>
    %6 = tpu.matmul %4, %5, %cst {dimension_numbers = #tpu.dot_dimension_numbers<[1], [0], [0], [1], [0, 0, 1, 1], [], []>} : vector<64x64xbf16>, vector<64x512xbf16>, vector<64x512xf32> -> vector<64x512xf32>
    %c0_5 = arith.constant 0 : index
    %c0_6 = arith.constant 0 : index
    %7 = vector.load %arg6[%c0_5, %c0_6] : memref<1x512xf32, #tpu.memory_space<vmem>>, vector<1x512xf32>
    %8 = vector.broadcast %7 : vector<1x512xf32> to vector<64x512xf32>
    %9 = arith.addf %6, %8 : vector<64x512xf32>
    %10 = arith.truncf %9 : vector<64x512xf32> to vector<64x512xbf16>
    %11 = vector.shape_cast %10 : vector<64x512xbf16> to vector<8x8x512xbf16>
    %c0_7 = arith.constant 0 : index
    %c0_8 = arith.constant 0 : index
    %c0_9 = arith.constant 0 : index
    %12 = vector.load %arg18[%c0_7, %c0_8, %c0_9] : memref<8x8x512xbf16, #tpu.memory_space<vmem>>, vector<8x8x512xbf16>
    tpu.vector_store %arg18[%c0_7, %c0_8, %c0_9], %11 {strides = array<i32>} : memref<8x8x512xbf16, #tpu.memory_space<vmem>>, vector<8x8x512xbf16>,
    %c0_10 = arith.constant 0 : index
    %c0_11 = arith.constant 0 : index
    %13 = vector.load %arg5[%c0_10, %c0_11] : memref<128x512xbf16, #tpu.memory_space<vmem>>, vector<128x512xbf16>
    %c0_12 = arith.constant 0 : index
    %c0_13 = arith.constant 0 : index
    %14 = vector.load %arg17[%c0_12, %c0_13] : memref<8x128xi32, #tpu.memory_space<vmem>>, vector<8x128xi32>
    %c8_i32 = arith.constant 8 : i32
    %15 = arith.muli %arg1, %c8_i32 : i32
    %c0_14 = arith.constant 0 : index
    %c0_15 = arith.constant 0 : index
    %16 = vector.load %arg15[%c0_14, %c0_15] : memref<8x128xf32, #tpu.memory_space<vmem>>, vector<8x128xf32>
    %c0_16 = arith.constant 0 : index
    %c0_17 = arith.constant 0 : index
    %17 = vector.load %arg16[%c0_16, %c0_17] : memref<8x128xf32, #tpu.memory_space<vmem>>, vector<8x128xf32>
    %c0_18 = arith.constant 0 : index
    %c0_19 = arith.constant 0 : index
    %c0_20 = arith.constant 0 : index
    %18 = vector.load %arg18[%c0_18, %c0_19, %c0_20] : memref<8x8x512xbf16, #tpu.memory_space<vmem>>, vector<1x8x512xbf16>
    %19 = vector.shape_cast %18 : vector<1x8x512xbf16> to vector<8x512xbf16>
    %20 = arith.extf %19 : vector<8x512xbf16> to vector<8x512xf32>
    %21 = arith.truncf %16 : vector<8x128xf32> to vector<8x128xbf16>
    %cst_21 = arith.constant dense<0.000000e+00> : vector<8x512xf32>
    %22 = tpu.matmul %21, %13, %cst_21 {dimension_numbers = #tpu.dot_dimension_numbers<[1], [0], [0], [1], [0, 0, 1, 1], [], []>} : vector<8x128xbf16>, vector<128x512xbf16>, vector<8x512xf32> -> vector<8x512xf32>
    %23 = arith.addf %20, %22 : vector<8x512xf32>
    %24 = vector.extract_strided_slice %23 {offsets = [0, 0], sizes = [8, 128], strides = [1, 1]} : vector<8x512xf32> to vector<8x128xf32>
    %25 = arith.negf %24 : vector<8x128xf32>
    %26 = math.exp %25 : vector<8x128xf32>
    %cst_22 = arith.constant 1.000000e+00 : f32
    %27 = vector.broadcast %cst_22 : f32 to vector<8x128xf32>
    %28 = arith.addf %27, %26 : vector<8x128xf32>
    %29 = arith.divf %27, %28 : vector<8x128xf32>
    %30 = vector.extract_strided_slice %23 {offsets = [0, 128], sizes = [8, 128], strides = [1, 1]} : vector<8x512xf32> to vector<8x128xf32>
    %31 = arith.negf %30 : vector<8x128xf32>
    %32 = math.exp %31 : vector<8x128xf32>
    %cst_23 = arith.constant 1.000000e+00 : f32
    %33 = vector.broadcast %cst_23 : f32 to vector<8x128xf32>
    %34 = arith.addf %33, %32 : vector<8x128xf32>
    %35 = arith.divf %33, %34 : vector<8x128xf32>
    %36 = vector.extract_strided_slice %23 {offsets = [0, 256], sizes = [8, 128], strides = [1, 1]} : vector<8x512xf32> to vector<8x128xf32>
    %37 = math.tanh %36 : vector<8x128xf32>
    %38 = vector.extract_strided_slice %23 {offsets = [0, 384], sizes = [8, 128], strides = [1, 1]} : vector<8x512xf32> to vector<8x128xf32>
    %39 = arith.negf %38 : vector<8x128xf32>
    %40 = math.exp %39 : vector<8x128xf32>
    %cst_24 = arith.constant 1.000000e+00 : f32
    %41 = vector.broadcast %cst_24 : f32 to vector<8x128xf32>
    %42 = arith.addf %41, %40 : vector<8x128xf32>
    %43 = arith.divf %41, %42 : vector<8x128xf32>
    %44 = arith.mulf %35, %17 : vector<8x128xf32>
    %45 = arith.mulf %29, %37 : vector<8x128xf32>
    %46 = arith.addf %44, %45 : vector<8x128xf32>
    %47 = math.tanh %46 : vector<8x128xf32>
    %48 = arith.mulf %43, %47 : vector<8x128xf32>
    %c0_i32_25 = arith.constant 0 : i32
    %49 = arith.addi %15, %c0_i32_25 : i32
    %50 = vector.broadcast %49 : i32 to vector<8x128xi32>
    %51 = arith.cmpi sgt, %14, %50 : vector<8x128xi32>
    %52 = arith.select %51, %46, %17 : vector<8x128xi1>, vector<8x128xf32>
    %c0_26 = arith.constant 0 : index
    %c0_27 = arith.constant 0 : index
    %53 = vector.load %arg16[%c0_26, %c0_27] : memref<8x128xf32, #tpu.memory_space<vmem>>, vector<8x128xf32>
    tpu.vector_store %arg16[%c0_26, %c0_27], %52 {strides = array<i32>} : memref<8x128xf32, #tpu.memory_space<vmem>>, vector<8x128xf32>,
    %54 = arith.select %51, %48, %16 : vector<8x128xi1>, vector<8x128xf32>
    %c0_28 = arith.constant 0 : index
    %c0_29 = arith.constant 0 : index
    %55 = vector.load %arg15[%c0_28, %c0_29] : memref<8x128xf32, #tpu.memory_space<vmem>>, vector<8x128xf32>
    tpu.vector_store %arg15[%c0_28, %c0_29], %54 {strides = array<i32>} : memref<8x128xf32, #tpu.memory_space<vmem>>, vector<8x128xf32>,
    %cst_30 = arith.constant 0.000000e+00 : f32
    %56 = vector.broadcast %cst_30 : f32 to vector<8x128xf32>
    %57 = arith.select %51, %48, %56 : vector<8x128xi1>, vector<8x128xf32>
    %58 = vector.shape_cast %57 : vector<8x128xf32> to vector<8x1x128xf32>
    %c0_31 = arith.constant 0 : index
    %c0_32 = arith.constant 0 : index
    %c0_33 = arith.constant 0 : index
    %59 = vector.load %arg11[%c0_31, %c0_32, %c0_33] : memref<8x8x128xf32, #tpu.memory_space<vmem>>, vector<8x1x128xf32>
    tpu.vector_store %arg11[%c0_31, %c0_32, %c0_33], %58 {strides = array<i32>} : memref<8x8x128xf32, #tpu.memory_space<vmem>>, vector<8x1x128xf32>,
    %c0_34 = arith.constant 0 : index
    %c0_35 = arith.constant 0 : index
    %60 = vector.load %arg15[%c0_34, %c0_35] : memref<8x128xf32, #tpu.memory_space<vmem>>, vector<8x128xf32>
    %c0_36 = arith.constant 0 : index
    %c0_37 = arith.constant 0 : index
    %61 = vector.load %arg16[%c0_36, %c0_37] : memref<8x128xf32, #tpu.memory_space<vmem>>, vector<8x128xf32>
    %c1 = arith.constant 1 : index
    %c0_38 = arith.constant 0 : index
    %c0_39 = arith.constant 0 : index
    %62 = vector.load %arg18[%c1, %c0_38, %c0_39] : memref<8x8x512xbf16, #tpu.memory_space<vmem>>, vector<1x8x512xbf16>
    %63 = vector.shape_cast %62 : vector<1x8x512xbf16> to vector<8x512xbf16>
    %64 = arith.extf %63 : vector<8x512xbf16> to vector<8x512xf32>
    %65 = arith.truncf %60 : vector<8x128xf32> to vector<8x128xbf16>
    %cst_40 = arith.constant dense<0.000000e+00> : vector<8x512xf32>
    %66 = tpu.matmul %65, %13, %cst_40 {dimension_numbers = #tpu.dot_dimension_numbers<[1], [0], [0], [1], [0, 0, 1, 1], [], []>} : vector<8x128xbf16>, vector<128x512xbf16>, vector<8x512xf32> -> vector<8x512xf32>
    %67 = arith.addf %64, %66 : vector<8x512xf32>
    %68 = vector.extract_strided_slice %67 {offsets = [0, 0], sizes = [8, 128], strides = [1, 1]} : vector<8x512xf32> to vector<8x128xf32>
    %69 = arith.negf %68 : vector<8x128xf32>
    %70 = math.exp %69 : vector<8x128xf32>
    %cst_41 = arith.constant 1.000000e+00 : f32
    %71 = vector.broadcast %cst_41 : f32 to vector<8x128xf32>
    %72 = arith.addf %71, %70 : vector<8x128xf32>
    %73 = arith.divf %71, %72 : vector<8x128xf32>
    %74 = vector.extract_strided_slice %67 {offsets = [0, 128], sizes = [8, 128], strides = [1, 1]} : vector<8x512xf32> to vector<8x128xf32>
    %75 = arith.negf %74 : vector<8x128xf32>
    %76 = math.exp %75 : vector<8x128xf32>
    %cst_42 = arith.constant 1.000000e+00 : f32
    %77 = vector.broadcast %cst_42 : f32 to vector<8x128xf32>
    %78 = arith.addf %77, %76 : vector<8x128xf32>
    %79 = arith.divf %77, %78 : vector<8x128xf32>
    %80 = vector.extract_strided_slice %67 {offsets = [0, 256], sizes = [8, 128], strides = [1, 1]} : vector<8x512xf32> to vector<8x128xf32>
    %81 = math.tanh %80 : vector<8x128xf32>
    %82 = vector.extract_strided_slice %67 {offsets = [0, 384], sizes = [8, 128], strides = [1, 1]} : vector<8x512xf32> to vector<8x128xf32>
    %83 = arith.negf %82 : vector<8x128xf32>
    %84 = math.exp %83 : vector<8x128xf32>
    %cst_43 = arith.constant 1.000000e+00 : f32
    %85 = vector.broadcast %cst_43 : f32 to vector<8x128xf32>
    %86 = arith.addf %85, %84 : vector<8x128xf32>
    %87 = arith.divf %85, %86 : vector<8x128xf32>
    %88 = arith.mulf %79, %61 : vector<8x128xf32>
    %89 = arith.mulf %73, %81 : vector<8x128xf32>
    %90 = arith.addf %88, %89 : vector<8x128xf32>
    %91 = math.tanh %90 : vector<8x128xf32>
    %92 = arith.mulf %87, %91 : vector<8x128xf32>
    %c1_i32 = arith.constant 1 : i32
    %93 = arith.addi %15, %c1_i32 : i32
    %94 = vector.broadcast %93 : i32 to vector<8x128xi32>
    %95 = arith.cmpi sgt, %14, %94 : vector<8x128xi32>
    %96 = arith.select %95, %90, %61 : vector<8x128xi1>, vector<8x128xf32>
    %c0_44 = arith.constant 0 : index
    %c0_45 = arith.constant 0 : index
    %97 = vector.load %arg16[%c0_44, %c0_45] : memref<8x128xf32, #tpu.memory_space<vmem>>, vector<8x128xf32>
    tpu.vector_store %arg16[%c0_44, %c0_45], %96 {strides = array<i32>} : memref<8x128xf32, #tpu.memory_space<vmem>>, vector<8x128xf32>,
    %98 = arith.select %95, %92, %60 : vector<8x128xi1>, vector<8x128xf32>
    %c0_46 = arith.constant 0 : index
    %c0_47 = arith.constant 0 : index
    %99 = vector.load %arg15[%c0_46, %c0_47] : memref<8x128xf32, #tpu.memory_space<vmem>>, vector<8x128xf32>
    tpu.vector_store %arg15[%c0_46, %c0_47], %98 {strides = array<i32>} : memref<8x128xf32, #tpu.memory_space<vmem>>, vector<8x128xf32>,
    %cst_48 = arith.constant 0.000000e+00 : f32
    %100 = vector.broadcast %cst_48 : f32 to vector<8x128xf32>
    %101 = arith.select %95, %92, %100 : vector<8x128xi1>, vector<8x128xf32>
    %102 = vector.shape_cast %101 : vector<8x128xf32> to vector<8x1x128xf32>
    %c0_49 = arith.constant 0 : index
    %c1_50 = arith.constant 1 : index
    %c0_51 = arith.constant 0 : index
    %103 = vector.load %arg11[%c0_49, %c1_50, %c0_51] : memref<8x8x128xf32, #tpu.memory_space<vmem>>, vector<8x1x128xf32>
    tpu.vector_store %arg11[%c0_49, %c1_50, %c0_51], %102 {strides = array<i32>} : memref<8x8x128xf32, #tpu.memory_space<vmem>>, vector<8x1x128xf32>,
    %c0_52 = arith.constant 0 : index
    %c0_53 = arith.constant 0 : index
    %104 = vector.load %arg15[%c0_52, %c0_53] : memref<8x128xf32, #tpu.memory_space<vmem>>, vector<8x128xf32>
    %c0_54 = arith.constant 0 : index
    %c0_55 = arith.constant 0 : index
    %105 = vector.load %arg16[%c0_54, %c0_55] : memref<8x128xf32, #tpu.memory_space<vmem>>, vector<8x128xf32>
    %c2 = arith.constant 2 : index
    %c0_56 = arith.constant 0 : index
    %c0_57 = arith.constant 0 : index
    %106 = vector.load %arg18[%c2, %c0_56, %c0_57] : memref<8x8x512xbf16, #tpu.memory_space<vmem>>, vector<1x8x512xbf16>
    %107 = vector.shape_cast %106 : vector<1x8x512xbf16> to vector<8x512xbf16>
    %108 = arith.extf %107 : vector<8x512xbf16> to vector<8x512xf32>
    %109 = arith.truncf %104 : vector<8x128xf32> to vector<8x128xbf16>
    %cst_58 = arith.constant dense<0.000000e+00> : vector<8x512xf32>
    %110 = tpu.matmul %109, %13, %cst_58 {dimension_numbers = #tpu.dot_dimension_numbers<[1], [0], [0], [1], [0, 0, 1, 1], [], []>} : vector<8x128xbf16>, vector<128x512xbf16>, vector<8x512xf32> -> vector<8x512xf32>
    %111 = arith.addf %108, %110 : vector<8x512xf32>
    %112 = vector.extract_strided_slice %111 {offsets = [0, 0], sizes = [8, 128], strides = [1, 1]} : vector<8x512xf32> to vector<8x128xf32>
    %113 = arith.negf %112 : vector<8x128xf32>
    %114 = math.exp %113 : vector<8x128xf32>
    %cst_59 = arith.constant 1.000000e+00 : f32
    %115 = vector.broadcast %cst_59 : f32 to vector<8x128xf32>
    %116 = arith.addf %115, %114 : vector<8x128xf32>
    %117 = arith.divf %115, %116 : vector<8x128xf32>
    %118 = vector.extract_strided_slice %111 {offsets = [0, 128], sizes = [8, 128], strides = [1, 1]} : vector<8x512xf32> to vector<8x128xf32>
    %119 = arith.negf %118 : vector<8x128xf32>
    %120 = math.exp %119 : vector<8x128xf32>
    %cst_60 = arith.constant 1.000000e+00 : f32
    %121 = vector.broadcast %cst_60 : f32 to vector<8x128xf32>
    %122 = arith.addf %121, %120 : vector<8x128xf32>
    %123 = arith.divf %121, %122 : vector<8x128xf32>
    %124 = vector.extract_strided_slice %111 {offsets = [0, 256], sizes = [8, 128], strides = [1, 1]} : vector<8x512xf32> to vector<8x128xf32>
    %125 = math.tanh %124 : vector<8x128xf32>
    %126 = vector.extract_strided_slice %111 {offsets = [0, 384], sizes = [8, 128], strides = [1, 1]} : vector<8x512xf32> to vector<8x128xf32>
    %127 = arith.negf %126 : vector<8x128xf32>
    %128 = math.exp %127 : vector<8x128xf32>
    %cst_61 = arith.constant 1.000000e+00 : f32
    %129 = vector.broadcast %cst_61 : f32 to vector<8x128xf32>
    %130 = arith.addf %129, %128 : vector<8x128xf32>
    %131 = arith.divf %129, %130 : vector<8x128xf32>
    %132 = arith.mulf %123, %105 : vector<8x128xf32>
    %133 = arith.mulf %117, %125 : vector<8x128xf32>
    %134 = arith.addf %132, %133 : vector<8x128xf32>
    %135 = math.tanh %134 : vector<8x128xf32>
    %136 = arith.mulf %131, %135 : vector<8x128xf32>
    %c2_i32 = arith.constant 2 : i32
    %137 = arith.addi %15, %c2_i32 : i32
    %138 = vector.broadcast %137 : i32 to vector<8x128xi32>
    %139 = arith.cmpi sgt, %14, %138 : vector<8x128xi32>
    %140 = arith.select %139, %134, %105 : vector<8x128xi1>, vector<8x128xf32>
    %c0_62 = arith.constant 0 : index
    %c0_63 = arith.constant 0 : index
    %141 = vector.load %arg16[%c0_62, %c0_63] : memref<8x128xf32, #tpu.memory_space<vmem>>, vector<8x128xf32>
    tpu.vector_store %arg16[%c0_62, %c0_63], %140 {strides = array<i32>} : memref<8x128xf32, #tpu.memory_space<vmem>>, vector<8x128xf32>,
    %142 = arith.select %139, %136, %104 : vector<8x128xi1>, vector<8x128xf32>
    %c0_64 = arith.constant 0 : index
    %c0_65 = arith.constant 0 : index
    %143 = vector.load %arg15[%c0_64, %c0_65] : memref<8x128xf32, #tpu.memory_space<vmem>>, vector<8x128xf32>
    tpu.vector_store %arg15[%c0_64, %c0_65], %142 {strides = array<i32>} : memref<8x128xf32, #tpu.memory_space<vmem>>, vector<8x128xf32>,
    %cst_66 = arith.constant 0.000000e+00 : f32
    %144 = vector.broadcast %cst_66 : f32 to vector<8x128xf32>
    %145 = arith.select %139, %136, %144 : vector<8x128xi1>, vector<8x128xf32>
    %146 = vector.shape_cast %145 : vector<8x128xf32> to vector<8x1x128xf32>
    %c0_67 = arith.constant 0 : index
    %c2_68 = arith.constant 2 : index
    %c0_69 = arith.constant 0 : index
    %147 = vector.load %arg11[%c0_67, %c2_68, %c0_69] : memref<8x8x128xf32, #tpu.memory_space<vmem>>, vector<8x1x128xf32>
    tpu.vector_store %arg11[%c0_67, %c2_68, %c0_69], %146 {strides = array<i32>} : memref<8x8x128xf32, #tpu.memory_space<vmem>>, vector<8x1x128xf32>,
    %c0_70 = arith.constant 0 : index
    %c0_71 = arith.constant 0 : index
    %148 = vector.load %arg15[%c0_70, %c0_71] : memref<8x128xf32, #tpu.memory_space<vmem>>, vector<8x128xf32>
    %c0_72 = arith.constant 0 : index
    %c0_73 = arith.constant 0 : index
    %149 = vector.load %arg16[%c0_72, %c0_73] : memref<8x128xf32, #tpu.memory_space<vmem>>, vector<8x128xf32>
    %c3 = arith.constant 3 : index
    %c0_74 = arith.constant 0 : index
    %c0_75 = arith.constant 0 : index
    %150 = vector.load %arg18[%c3, %c0_74, %c0_75] : memref<8x8x512xbf16, #tpu.memory_space<vmem>>, vector<1x8x512xbf16>
    %151 = vector.shape_cast %150 : vector<1x8x512xbf16> to vector<8x512xbf16>
    %152 = arith.extf %151 : vector<8x512xbf16> to vector<8x512xf32>
    %153 = arith.truncf %148 : vector<8x128xf32> to vector<8x128xbf16>
    %cst_76 = arith.constant dense<0.000000e+00> : vector<8x512xf32>
    %154 = tpu.matmul %153, %13, %cst_76 {dimension_numbers = #tpu.dot_dimension_numbers<[1], [0], [0], [1], [0, 0, 1, 1], [], []>} : vector<8x128xbf16>, vector<128x512xbf16>, vector<8x512xf32> -> vector<8x512xf32>
    %155 = arith.addf %152, %154 : vector<8x512xf32>
    %156 = vector.extract_strided_slice %155 {offsets = [0, 0], sizes = [8, 128], strides = [1, 1]} : vector<8x512xf32> to vector<8x128xf32>
    %157 = arith.negf %156 : vector<8x128xf32>
    %158 = math.exp %157 : vector<8x128xf32>
    %cst_77 = arith.constant 1.000000e+00 : f32
    %159 = vector.broadcast %cst_77 : f32 to vector<8x128xf32>
    %160 = arith.addf %159, %158 : vector<8x128xf32>
    %161 = arith.divf %159, %160 : vector<8x128xf32>
    %162 = vector.extract_strided_slice %155 {offsets = [0, 128], sizes = [8, 128], strides = [1, 1]} : vector<8x512xf32> to vector<8x128xf32>
    %163 = arith.negf %162 : vector<8x128xf32>
    %164 = math.exp %163 : vector<8x128xf32>
    %cst_78 = arith.constant 1.000000e+00 : f32
    %165 = vector.broadcast %cst_78 : f32 to vector<8x128xf32>
    %166 = arith.addf %165, %164 : vector<8x128xf32>
    %167 = arith.divf %165, %166 : vector<8x128xf32>
    %168 = vector.extract_strided_slice %155 {offsets = [0, 256], sizes = [8, 128], strides = [1, 1]} : vector<8x512xf32> to vector<8x128xf32>
    %169 = math.tanh %168 : vector<8x128xf32>
    %170 = vector.extract_strided_slice %155 {offsets = [0, 384], sizes = [8, 128], strides = [1, 1]} : vector<8x512xf32> to vector<8x128xf32>
    %171 = arith.negf %170 : vector<8x128xf32>
    %172 = math.exp %171 : vector<8x128xf32>
    %cst_79 = arith.constant 1.000000e+00 : f32
    %173 = vector.broadcast %cst_79 : f32 to vector<8x128xf32>
    %174 = arith.addf %173, %172 : vector<8x128xf32>
    %175 = arith.divf %173, %174 : vector<8x128xf32>
    %176 = arith.mulf %167, %149 : vector<8x128xf32>
    %177 = arith.mulf %161, %169 : vector<8x128xf32>
    %178 = arith.addf %176, %177 : vector<8x128xf32>
    %179 = math.tanh %178 : vector<8x128xf32>
    %180 = arith.mulf %175, %179 : vector<8x128xf32>
    %c3_i32 = arith.constant 3 : i32
    %181 = arith.addi %15, %c3_i32 : i32
    %182 = vector.broadcast %181 : i32 to vector<8x128xi32>
    %183 = arith.cmpi sgt, %14, %182 : vector<8x128xi32>
    %184 = arith.select %183, %178, %149 : vector<8x128xi1>, vector<8x128xf32>
    %c0_80 = arith.constant 0 : index
    %c0_81 = arith.constant 0 : index
    %185 = vector.load %arg16[%c0_80, %c0_81] : memref<8x128xf32, #tpu.memory_space<vmem>>, vector<8x128xf32>
    tpu.vector_store %arg16[%c0_80, %c0_81], %184 {strides = array<i32>} : memref<8x128xf32, #tpu.memory_space<vmem>>, vector<8x128xf32>,
    %186 = arith.select %183, %180, %148 : vector<8x128xi1>, vector<8x128xf32>
    %c0_82 = arith.constant 0 : index
    %c0_83 = arith.constant 0 : index
    %187 = vector.load %arg15[%c0_82, %c0_83] : memref<8x128xf32, #tpu.memory_space<vmem>>, vector<8x128xf32>
    tpu.vector_store %arg15[%c0_82, %c0_83], %186 {strides = array<i32>} : memref<8x128xf32, #tpu.memory_space<vmem>>, vector<8x128xf32>,
    %cst_84 = arith.constant 0.000000e+00 : f32
    %188 = vector.broadcast %cst_84 : f32 to vector<8x128xf32>
    %189 = arith.select %183, %180, %188 : vector<8x128xi1>, vector<8x128xf32>
    %190 = vector.shape_cast %189 : vector<8x128xf32> to vector<8x1x128xf32>
    %c0_85 = arith.constant 0 : index
    %c3_86 = arith.constant 3 : index
    %c0_87 = arith.constant 0 : index
    %191 = vector.load %arg11[%c0_85, %c3_86, %c0_87] : memref<8x8x128xf32, #tpu.memory_space<vmem>>, vector<8x1x128xf32>
    tpu.vector_store %arg11[%c0_85, %c3_86, %c0_87], %190 {strides = array<i32>} : memref<8x8x128xf32, #tpu.memory_space<vmem>>, vector<8x1x128xf32>,
    %c0_88 = arith.constant 0 : index
    %c0_89 = arith.constant 0 : index
    %192 = vector.load %arg15[%c0_88, %c0_89] : memref<8x128xf32, #tpu.memory_space<vmem>>, vector<8x128xf32>
    %c0_90 = arith.constant 0 : index
    %c0_91 = arith.constant 0 : index
    %193 = vector.load %arg16[%c0_90, %c0_91] : memref<8x128xf32, #tpu.memory_space<vmem>>, vector<8x128xf32>
    %c4 = arith.constant 4 : index
    %c0_92 = arith.constant 0 : index
    %c0_93 = arith.constant 0 : index
    %194 = vector.load %arg18[%c4, %c0_92, %c0_93] : memref<8x8x512xbf16, #tpu.memory_space<vmem>>, vector<1x8x512xbf16>
    %195 = vector.shape_cast %194 : vector<1x8x512xbf16> to vector<8x512xbf16>
    %196 = arith.extf %195 : vector<8x512xbf16> to vector<8x512xf32>
    %197 = arith.truncf %192 : vector<8x128xf32> to vector<8x128xbf16>
    %cst_94 = arith.constant dense<0.000000e+00> : vector<8x512xf32>
    %198 = tpu.matmul %197, %13, %cst_94 {dimension_numbers = #tpu.dot_dimension_numbers<[1], [0], [0], [1], [0, 0, 1, 1], [], []>} : vector<8x128xbf16>, vector<128x512xbf16>, vector<8x512xf32> -> vector<8x512xf32>
    %199 = arith.addf %196, %198 : vector<8x512xf32>
    %200 = vector.extract_strided_slice %199 {offsets = [0, 0], sizes = [8, 128], strides = [1, 1]} : vector<8x512xf32> to vector<8x128xf32>
    %201 = arith.negf %200 : vector<8x128xf32>
    %202 = math.exp %201 : vector<8x128xf32>
    %cst_95 = arith.constant 1.000000e+00 : f32
    %203 = vector.broadcast %cst_95 : f32 to vector<8x128xf32>
    %204 = arith.addf %203, %202 : vector<8x128xf32>
    %205 = arith.divf %203, %204 : vector<8x128xf32>
    %206 = vector.extract_strided_slice %199 {offsets = [0, 128], sizes = [8, 128], strides = [1, 1]} : vector<8x512xf32> to vector<8x128xf32>
    %207 = arith.negf %206 : vector<8x128xf32>
    %208 = math.exp %207 : vector<8x128xf32>
    %cst_96 = arith.constant 1.000000e+00 : f32
    %209 = vector.broadcast %cst_96 : f32 to vector<8x128xf32>
    %210 = arith.addf %209, %208 : vector<8x128xf32>
    %211 = arith.divf %209, %210 : vector<8x128xf32>
    %212 = vector.extract_strided_slice %199 {offsets = [0, 256], sizes = [8, 128], strides = [1, 1]} : vector<8x512xf32> to vector<8x128xf32>
    %213 = math.tanh %212 : vector<8x128xf32>
    %214 = vector.extract_strided_slice %199 {offsets = [0, 384], sizes = [8, 128], strides = [1, 1]} : vector<8x512xf32> to vector<8x128xf32>
    %215 = arith.negf %214 : vector<8x128xf32>
    %216 = math.exp %215 : vector<8x128xf32>
    %cst_97 = arith.constant 1.000000e+00 : f32
    %217 = vector.broadcast %cst_97 : f32 to vector<8x128xf32>
    %218 = arith.addf %217, %216 : vector<8x128xf32>
    %219 = arith.divf %217, %218 : vector<8x128xf32>
    %220 = arith.mulf %211, %193 : vector<8x128xf32>
    %221 = arith.mulf %205, %213 : vector<8x128xf32>
    %222 = arith.addf %220, %221 : vector<8x128xf32>
    %223 = math.tanh %222 : vector<8x128xf32>
    %224 = arith.mulf %219, %223 : vector<8x128xf32>
    %c4_i32 = arith.constant 4 : i32
    %225 = arith.addi %15, %c4_i32 : i32
    %226 = vector.broadcast %225 : i32 to vector<8x128xi32>
    %227 = arith.cmpi sgt, %14, %226 : vector<8x128xi32>
    %228 = arith.select %227, %222, %193 : vector<8x128xi1>, vector<8x128xf32>
    %c0_98 = arith.constant 0 : index
    %c0_99 = arith.constant 0 : index
    %229 = vector.load %arg16[%c0_98, %c0_99] : memref<8x128xf32, #tpu.memory_space<vmem>>, vector<8x128xf32>
    tpu.vector_store %arg16[%c0_98, %c0_99], %228 {strides = array<i32>} : memref<8x128xf32, #tpu.memory_space<vmem>>, vector<8x128xf32>,
    %230 = arith.select %227, %224, %192 : vector<8x128xi1>, vector<8x128xf32>
    %c0_100 = arith.constant 0 : index
    %c0_101 = arith.constant 0 : index
    %231 = vector.load %arg15[%c0_100, %c0_101] : memref<8x128xf32, #tpu.memory_space<vmem>>, vector<8x128xf32>
    tpu.vector_store %arg15[%c0_100, %c0_101], %230 {strides = array<i32>} : memref<8x128xf32, #tpu.memory_space<vmem>>, vector<8x128xf32>,
    %cst_102 = arith.constant 0.000000e+00 : f32
    %232 = vector.broadcast %cst_102 : f32 to vector<8x128xf32>
    %233 = arith.select %227, %224, %232 : vector<8x128xi1>, vector<8x128xf32>
    %234 = vector.shape_cast %233 : vector<8x128xf32> to vector<8x1x128xf32>
    %c0_103 = arith.constant 0 : index
    %c4_104 = arith.constant 4 : index
    %c0_105 = arith.constant 0 : index
    %235 = vector.load %arg11[%c0_103, %c4_104, %c0_105] : memref<8x8x128xf32, #tpu.memory_space<vmem>>, vector<8x1x128xf32>
    tpu.vector_store %arg11[%c0_103, %c4_104, %c0_105], %234 {strides = array<i32>} : memref<8x8x128xf32, #tpu.memory_space<vmem>>, vector<8x1x128xf32>,
    %c0_106 = arith.constant 0 : index
    %c0_107 = arith.constant 0 : index
    %236 = vector.load %arg15[%c0_106, %c0_107] : memref<8x128xf32, #tpu.memory_space<vmem>>, vector<8x128xf32>
    %c0_108 = arith.constant 0 : index
    %c0_109 = arith.constant 0 : index
    %237 = vector.load %arg16[%c0_108, %c0_109] : memref<8x128xf32, #tpu.memory_space<vmem>>, vector<8x128xf32>
    %c5 = arith.constant 5 : index
    %c0_110 = arith.constant 0 : index
    %c0_111 = arith.constant 0 : index
    %238 = vector.load %arg18[%c5, %c0_110, %c0_111] : memref<8x8x512xbf16, #tpu.memory_space<vmem>>, vector<1x8x512xbf16>
    %239 = vector.shape_cast %238 : vector<1x8x512xbf16> to vector<8x512xbf16>
    %240 = arith.extf %239 : vector<8x512xbf16> to vector<8x512xf32>
    %241 = arith.truncf %236 : vector<8x128xf32> to vector<8x128xbf16>
    %cst_112 = arith.constant dense<0.000000e+00> : vector<8x512xf32>
    %242 = tpu.matmul %241, %13, %cst_112 {dimension_numbers = #tpu.dot_dimension_numbers<[1], [0], [0], [1], [0, 0, 1, 1], [], []>} : vector<8x128xbf16>, vector<128x512xbf16>, vector<8x512xf32> -> vector<8x512xf32>
    %243 = arith.addf %240, %242 : vector<8x512xf32>
    %244 = vector.extract_strided_slice %243 {offsets = [0, 0], sizes = [8, 128], strides = [1, 1]} : vector<8x512xf32> to vector<8x128xf32>
    %245 = arith.negf %244 : vector<8x128xf32>
    %246 = math.exp %245 : vector<8x128xf32>
    %cst_113 = arith.constant 1.000000e+00 : f32
    %247 = vector.broadcast %cst_113 : f32 to vector<8x128xf32>
    %248 = arith.addf %247, %246 : vector<8x128xf32>
    %249 = arith.divf %247, %248 : vector<8x128xf32>
    %250 = vector.extract_strided_slice %243 {offsets = [0, 128], sizes = [8, 128], strides = [1, 1]} : vector<8x512xf32> to vector<8x128xf32>
    %251 = arith.negf %250 : vector<8x128xf32>
    %252 = math.exp %251 : vector<8x128xf32>
    %cst_114 = arith.constant 1.000000e+00 : f32
    %253 = vector.broadcast %cst_114 : f32 to vector<8x128xf32>
    %254 = arith.addf %253, %252 : vector<8x128xf32>
    %255 = arith.divf %253, %254 : vector<8x128xf32>
    %256 = vector.extract_strided_slice %243 {offsets = [0, 256], sizes = [8, 128], strides = [1, 1]} : vector<8x512xf32> to vector<8x128xf32>
    %257 = math.tanh %256 : vector<8x128xf32>
    %258 = vector.extract_strided_slice %243 {offsets = [0, 384], sizes = [8, 128], strides = [1, 1]} : vector<8x512xf32> to vector<8x128xf32>
    %259 = arith.negf %258 : vector<8x128xf32>
    %260 = math.exp %259 : vector<8x128xf32>
    %cst_115 = arith.constant 1.000000e+00 : f32
    %261 = vector.broadcast %cst_115 : f32 to vector<8x128xf32>
    %262 = arith.addf %261, %260 : vector<8x128xf32>
    %263 = arith.divf %261, %262 : vector<8x128xf32>
    %264 = arith.mulf %255, %237 : vector<8x128xf32>
    %265 = arith.mulf %249, %257 : vector<8x128xf32>
    %266 = arith.addf %264, %265 : vector<8x128xf32>
    %267 = math.tanh %266 : vector<8x128xf32>
    %268 = arith.mulf %263, %267 : vector<8x128xf32>
    %c5_i32 = arith.constant 5 : i32
    %269 = arith.addi %15, %c5_i32 : i32
    %270 = vector.broadcast %269 : i32 to vector<8x128xi32>
    %271 = arith.cmpi sgt, %14, %270 : vector<8x128xi32>
    %272 = arith.select %271, %266, %237 : vector<8x128xi1>, vector<8x128xf32>
    %c0_116 = arith.constant 0 : index
    %c0_117 = arith.constant 0 : index
    %273 = vector.load %arg16[%c0_116, %c0_117] : memref<8x128xf32, #tpu.memory_space<vmem>>, vector<8x128xf32>
    tpu.vector_store %arg16[%c0_116, %c0_117], %272 {strides = array<i32>} : memref<8x128xf32, #tpu.memory_space<vmem>>, vector<8x128xf32>,
    %274 = arith.select %271, %268, %236 : vector<8x128xi1>, vector<8x128xf32>
    %c0_118 = arith.constant 0 : index
    %c0_119 = arith.constant 0 : index
    %275 = vector.load %arg15[%c0_118, %c0_119] : memref<8x128xf32, #tpu.memory_space<vmem>>, vector<8x128xf32>
    tpu.vector_store %arg15[%c0_118, %c0_119], %274 {strides = array<i32>} : memref<8x128xf32, #tpu.memory_space<vmem>>, vector<8x128xf32>,
    %cst_120 = arith.constant 0.000000e+00 : f32
    %276 = vector.broadcast %cst_120 : f32 to vector<8x128xf32>
    %277 = arith.select %271, %268, %276 : vector<8x128xi1>, vector<8x128xf32>
    %278 = vector.shape_cast %277 : vector<8x128xf32> to vector<8x1x128xf32>
    %c0_121 = arith.constant 0 : index
    %c5_122 = arith.constant 5 : index
    %c0_123 = arith.constant 0 : index
    %279 = vector.load %arg11[%c0_121, %c5_122, %c0_123] : memref<8x8x128xf32, #tpu.memory_space<vmem>>, vector<8x1x128xf32>
    tpu.vector_store %arg11[%c0_121, %c5_122, %c0_123], %278 {strides = array<i32>} : memref<8x8x128xf32, #tpu.memory_space<vmem>>, vector<8x1x128xf32>,
    %c0_124 = arith.constant 0 : index
    %c0_125 = arith.constant 0 : index
    %280 = vector.load %arg15[%c0_124, %c0_125] : memref<8x128xf32, #tpu.memory_space<vmem>>, vector<8x128xf32>
    %c0_126 = arith.constant 0 : index
    %c0_127 = arith.constant 0 : index
    %281 = vector.load %arg16[%c0_126, %c0_127] : memref<8x128xf32, #tpu.memory_space<vmem>>, vector<8x128xf32>
    %c6 = arith.constant 6 : index
    %c0_128 = arith.constant 0 : index
    %c0_129 = arith.constant 0 : index
    %282 = vector.load %arg18[%c6, %c0_128, %c0_129] : memref<8x8x512xbf16, #tpu.memory_space<vmem>>, vector<1x8x512xbf16>
    %283 = vector.shape_cast %282 : vector<1x8x512xbf16> to vector<8x512xbf16>
    %284 = arith.extf %283 : vector<8x512xbf16> to vector<8x512xf32>
    %285 = arith.truncf %280 : vector<8x128xf32> to vector<8x128xbf16>
    %cst_130 = arith.constant dense<0.000000e+00> : vector<8x512xf32>
    %286 = tpu.matmul %285, %13, %cst_130 {dimension_numbers = #tpu.dot_dimension_numbers<[1], [0], [0], [1], [0, 0, 1, 1], [], []>} : vector<8x128xbf16>, vector<128x512xbf16>, vector<8x512xf32> -> vector<8x512xf32>
    %287 = arith.addf %284, %286 : vector<8x512xf32>
    %288 = vector.extract_strided_slice %287 {offsets = [0, 0], sizes = [8, 128], strides = [1, 1]} : vector<8x512xf32> to vector<8x128xf32>
    %289 = arith.negf %288 : vector<8x128xf32>
    %290 = math.exp %289 : vector<8x128xf32>
    %cst_131 = arith.constant 1.000000e+00 : f32
    %291 = vector.broadcast %cst_131 : f32 to vector<8x128xf32>
    %292 = arith.addf %291, %290 : vector<8x128xf32>
    %293 = arith.divf %291, %292 : vector<8x128xf32>
    %294 = vector.extract_strided_slice %287 {offsets = [0, 128], sizes = [8, 128], strides = [1, 1]} : vector<8x512xf32> to vector<8x128xf32>
    %295 = arith.negf %294 : vector<8x128xf32>
    %296 = math.exp %295 : vector<8x128xf32>
    %cst_132 = arith.constant 1.000000e+00 : f32
    %297 = vector.broadcast %cst_132 : f32 to vector<8x128xf32>
    %298 = arith.addf %297, %296 : vector<8x128xf32>
    %299 = arith.divf %297, %298 : vector<8x128xf32>
    %300 = vector.extract_strided_slice %287 {offsets = [0, 256], sizes = [8, 128], strides = [1, 1]} : vector<8x512xf32> to vector<8x128xf32>
    %301 = math.tanh %300 : vector<8x128xf32>
    %302 = vector.extract_strided_slice %287 {offsets = [0, 384], sizes = [8, 128], strides = [1, 1]} : vector<8x512xf32> to vector<8x128xf32>
    %303 = arith.negf %302 : vector<8x128xf32>
    %304 = math.exp %303 : vector<8x128xf32>
    %cst_133 = arith.constant 1.000000e+00 : f32
    %305 = vector.broadcast %cst_133 : f32 to vector<8x128xf32>
    %306 = arith.addf %305, %304 : vector<8x128xf32>
    %307 = arith.divf %305, %306 : vector<8x128xf32>
    %308 = arith.mulf %299, %281 : vector<8x128xf32>
    %309 = arith.mulf %293, %301 : vector<8x128xf32>
    %310 = arith.addf %308, %309 : vector<8x128xf32>
    %311 = math.tanh %310 : vector<8x128xf32>
    %312 = arith.mulf %307, %311 : vector<8x128xf32>
    %c6_i32 = arith.constant 6 : i32
    %313 = arith.addi %15, %c6_i32 : i32
    %314 = vector.broadcast %313 : i32 to vector<8x128xi32>
    %315 = arith.cmpi sgt, %14, %314 : vector<8x128xi32>
    %316 = arith.select %315, %310, %281 : vector<8x128xi1>, vector<8x128xf32>
    %c0_134 = arith.constant 0 : index
    %c0_135 = arith.constant 0 : index
    %317 = vector.load %arg16[%c0_134, %c0_135] : memref<8x128xf32, #tpu.memory_space<vmem>>, vector<8x128xf32>
    tpu.vector_store %arg16[%c0_134, %c0_135], %316 {strides = array<i32>} : memref<8x128xf32, #tpu.memory_space<vmem>>, vector<8x128xf32>,
    %318 = arith.select %315, %312, %280 : vector<8x128xi1>, vector<8x128xf32>
    %c0_136 = arith.constant 0 : index
    %c0_137 = arith.constant 0 : index
    %319 = vector.load %arg15[%c0_136, %c0_137] : memref<8x128xf32, #tpu.memory_space<vmem>>, vector<8x128xf32>
    tpu.vector_store %arg15[%c0_136, %c0_137], %318 {strides = array<i32>} : memref<8x128xf32, #tpu.memory_space<vmem>>, vector<8x128xf32>,
    %cst_138 = arith.constant 0.000000e+00 : f32
    %320 = vector.broadcast %cst_138 : f32 to vector<8x128xf32>
    %321 = arith.select %315, %312, %320 : vector<8x128xi1>, vector<8x128xf32>
    %322 = vector.shape_cast %321 : vector<8x128xf32> to vector<8x1x128xf32>
    %c0_139 = arith.constant 0 : index
    %c6_140 = arith.constant 6 : index
    %c0_141 = arith.constant 0 : index
    %323 = vector.load %arg11[%c0_139, %c6_140, %c0_141] : memref<8x8x128xf32, #tpu.memory_space<vmem>>, vector<8x1x128xf32>
    tpu.vector_store %arg11[%c0_139, %c6_140, %c0_141], %322 {strides = array<i32>} : memref<8x8x128xf32, #tpu.memory_space<vmem>>, vector<8x1x128xf32>,
    %c0_142 = arith.constant 0 : index
    %c0_143 = arith.constant 0 : index
    %324 = vector.load %arg15[%c0_142, %c0_143] : memref<8x128xf32, #tpu.memory_space<vmem>>, vector<8x128xf32>
    %c0_144 = arith.constant 0 : index
    %c0_145 = arith.constant 0 : index
    %325 = vector.load %arg16[%c0_144, %c0_145] : memref<8x128xf32, #tpu.memory_space<vmem>>, vector<8x128xf32>
    %c7 = arith.constant 7 : index
    %c0_146 = arith.constant 0 : index
    %c0_147 = arith.constant 0 : index
    %326 = vector.load %arg18[%c7, %c0_146, %c0_147] : memref<8x8x512xbf16, #tpu.memory_space<vmem>>, vector<1x8x512xbf16>
    %327 = vector.shape_cast %326 : vector<1x8x512xbf16> to vector<8x512xbf16>
    %328 = arith.extf %327 : vector<8x512xbf16> to vector<8x512xf32>
    %329 = arith.truncf %324 : vector<8x128xf32> to vector<8x128xbf16>
    %cst_148 = arith.constant dense<0.000000e+00> : vector<8x512xf32>
    %330 = tpu.matmul %329, %13, %cst_148 {dimension_numbers = #tpu.dot_dimension_numbers<[1], [0], [0], [1], [0, 0, 1, 1], [], []>} : vector<8x128xbf16>, vector<128x512xbf16>, vector<8x512xf32> -> vector<8x512xf32>
    %331 = arith.addf %328, %330 : vector<8x512xf32>
    %332 = vector.extract_strided_slice %331 {offsets = [0, 0], sizes = [8, 128], strides = [1, 1]} : vector<8x512xf32> to vector<8x128xf32>
    %333 = arith.negf %332 : vector<8x128xf32>
    %334 = math.exp %333 : vector<8x128xf32>
    %cst_149 = arith.constant 1.000000e+00 : f32
    %335 = vector.broadcast %cst_149 : f32 to vector<8x128xf32>
    %336 = arith.addf %335, %334 : vector<8x128xf32>
    %337 = arith.divf %335, %336 : vector<8x128xf32>
    %338 = vector.extract_strided_slice %331 {offsets = [0, 128], sizes = [8, 128], strides = [1, 1]} : vector<8x512xf32> to vector<8x128xf32>
    %339 = arith.negf %338 : vector<8x128xf32>
    %340 = math.exp %339 : vector<8x128xf32>
    %cst_150 = arith.constant 1.000000e+00 : f32
    %341 = vector.broadcast %cst_150 : f32 to vector<8x128xf32>
    %342 = arith.addf %341, %340 : vector<8x128xf32>
    %343 = arith.divf %341, %342 : vector<8x128xf32>
    %344 = vector.extract_strided_slice %331 {offsets = [0, 256], sizes = [8, 128], strides = [1, 1]} : vector<8x512xf32> to vector<8x128xf32>
    %345 = math.tanh %344 : vector<8x128xf32>
    %346 = vector.extract_strided_slice %331 {offsets = [0, 384], sizes = [8, 128], strides = [1, 1]} : vector<8x512xf32> to vector<8x128xf32>
    %347 = arith.negf %346 : vector<8x128xf32>
    %348 = math.exp %347 : vector<8x128xf32>
    %cst_151 = arith.constant 1.000000e+00 : f32
    %349 = vector.broadcast %cst_151 : f32 to vector<8x128xf32>
    %350 = arith.addf %349, %348 : vector<8x128xf32>
    %351 = arith.divf %349, %350 : vector<8x128xf32>
    %352 = arith.mulf %343, %325 : vector<8x128xf32>
    %353 = arith.mulf %337, %345 : vector<8x128xf32>
    %354 = arith.addf %352, %353 : vector<8x128xf32>
    %355 = math.tanh %354 : vector<8x128xf32>
    %356 = arith.mulf %351, %355 : vector<8x128xf32>
    %c7_i32 = arith.constant 7 : i32
    %357 = arith.addi %15, %c7_i32 : i32
    %358 = vector.broadcast %357 : i32 to vector<8x128xi32>
    %359 = arith.cmpi sgt, %14, %358 : vector<8x128xi32>
    %360 = arith.select %359, %354, %325 : vector<8x128xi1>, vector<8x128xf32>
    %c0_152 = arith.constant 0 : index
    %c0_153 = arith.constant 0 : index
    %361 = vector.load %arg16[%c0_152, %c0_153] : memref<8x128xf32, #tpu.memory_space<vmem>>, vector<8x128xf32>
    tpu.vector_store %arg16[%c0_152, %c0_153], %360 {strides = array<i32>} : memref<8x128xf32, #tpu.memory_space<vmem>>, vector<8x128xf32>,
    %362 = arith.select %359, %356, %324 : vector<8x128xi1>, vector<8x128xf32>
    %c0_154 = arith.constant 0 : index
    %c0_155 = arith.constant 0 : index
    %363 = vector.load %arg15[%c0_154, %c0_155] : memref<8x128xf32, #tpu.memory_space<vmem>>, vector<8x128xf32>
    tpu.vector_store %arg15[%c0_154, %c0_155], %362 {strides = array<i32>} : memref<8x128xf32, #tpu.memory_space<vmem>>, vector<8x128xf32>,
    %cst_156 = arith.constant 0.000000e+00 : f32
    %364 = vector.broadcast %cst_156 : f32 to vector<8x128xf32>
    %365 = arith.select %359, %356, %364 : vector<8x128xi1>, vector<8x128xf32>
    %366 = vector.shape_cast %365 : vector<8x128xf32> to vector<8x1x128xf32>
    %c0_157 = arith.constant 0 : index
    %c7_158 = arith.constant 7 : index
    %c0_159 = arith.constant 0 : index
    %367 = vector.load %arg11[%c0_157, %c7_158, %c0_159] : memref<8x8x128xf32, #tpu.memory_space<vmem>>, vector<8x1x128xf32>
    tpu.vector_store %arg11[%c0_157, %c7_158, %c0_159], %366 {strides = array<i32>} : memref<8x8x128xf32, #tpu.memory_space<vmem>>, vector<8x1x128xf32>,
    %c0_160 = arith.constant 0 : index
    %c0_161 = arith.constant 0 : index
    %368 = vector.load %arg15[%c0_160, %c0_161] : memref<8x128xf32, #tpu.memory_space<vmem>>, vector<8x128xf32>
    %c0_162 = arith.constant 0 : index
    %c0_163 = arith.constant 0 : index
    %369 = vector.load %arg12[%c0_162, %c0_163] : memref<8x128xf32, #tpu.memory_space<vmem>>, vector<8x128xf32>
    tpu.vector_store %arg12[%c0_162, %c0_163], %368 {strides = array<i32>} : memref<8x128xf32, #tpu.memory_space<vmem>>, vector<8x128xf32>,
    %c0_164 = arith.constant 0 : index
    %c0_165 = arith.constant 0 : index
    %370 = vector.load %arg16[%c0_164, %c0_165] : memref<8x128xf32, #tpu.memory_space<vmem>>, vector<8x128xf32>
    %c0_166 = arith.constant 0 : index
    %c0_167 = arith.constant 0 : index
    %371 = vector.load %arg13[%c0_166, %c0_167] : memref<8x128xf32, #tpu.memory_space<vmem>>, vector<8x128xf32>
    tpu.vector_store %arg13[%c0_166, %c0_167], %370 {strides = array<i32>} : memref<8x128xf32, #tpu.memory_space<vmem>>, vector<8x128xf32>,
    %c0_168 = arith.constant 0 : index
    %c0_169 = arith.constant 0 : index
    %c0_170 = arith.constant 0 : index
    %372 = vector.load %arg11[%c0_168, %c0_169, %c0_170] : memref<8x8x128xf32, #tpu.memory_space<vmem>>, vector<8x8x128xf32>
    %373 = vector.shape_cast %372 : vector<8x8x128xf32> to vector<64x128xf32>
    %374 = arith.truncf %373 : vector<64x128xf32> to vector<64x128xbf16>
    %c0_171 = arith.constant 0 : index
    %c0_172 = arith.constant 0 : index
    %375 = vector.load %arg9[%c0_171, %c0_172] : memref<128x128xbf16, #tpu.memory_space<vmem>>, vector<128x128xbf16>
    %cst_173 = arith.constant dense<0.000000e+00> : vector<64x128xf32>
    %376 = tpu.matmul %374, %375, %cst_173 {dimension_numbers = #tpu.dot_dimension_numbers<[1], [0], [0], [1], [0, 0, 1, 1], [], []>} : vector<64x128xbf16>, vector<128x128xbf16>, vector<64x128xf32> -> vector<64x128xf32>
    %c0_174 = arith.constant 0 : index
    %c0_175 = arith.constant 0 : index
    %377 = vector.load %arg10[%c0_174, %c0_175] : memref<1x128xf32, #tpu.memory_space<vmem>>, vector<1x128xf32>
    %378 = vector.broadcast %377 : vector<1x128xf32> to vector<64x128xf32>
    %379 = arith.addf %376, %378 : vector<64x128xf32>
    %380 = vector.shape_cast %379 : vector<64x128xf32> to vector<8x8x128xf32>
    %c0_176 = arith.constant 0 : index
    %c0_177 = arith.constant 0 : index
    %c0_178 = arith.constant 0 : index
    %381 = vector.load %arg14[%c0_176, %c0_177, %c0_178] : memref<8x8x128xf32, #tpu.memory_space<vmem>>, vector<8x8x128xf32>
    tpu.vector_store %arg14[%c0_176, %c0_177, %c0_178], %380 {strides = array<i32>} : memref<8x8x128xf32, #tpu.memory_space<vmem>>, vector<8x8x128xf32>,
    return
  }
  func.func @transform_0(%arg0: i32, %arg1: i32, %arg2: memref<16xi32, #tpu.memory_space<smem>>) -> (i32, i32, i32) {
    %c0_i32 = arith.constant 0 : i32
    %c0_i32_0 = arith.constant 0 : i32
    return %arg1, %arg0, %c0_i32 : i32, i32, i32
  }
  func.func @transform_1(%arg0: i32, %arg1: i32, %arg2: memref<16xi32, #tpu.memory_space<smem>>) -> (i32, i32) {
    %c0_i32 = arith.constant 0 : i32
    %c0_i32_0 = arith.constant 0 : i32
    %c0_i32_1 = arith.constant 0 : i32
    return %c0_i32, %c0_i32_0 : i32, i32
  }
  func.func @transform_2(%arg0: i32, %arg1: i32, %arg2: memref<16xi32, #tpu.memory_space<smem>>) -> (i32, i32) {
    %c0_i32 = arith.constant 0 : i32
    %c0_i32_0 = arith.constant 0 : i32
    %c0_i32_1 = arith.constant 0 : i32
    return %c0_i32, %c0_i32_0 : i32, i32
  }
  func.func @transform_3(%arg0: i32, %arg1: i32, %arg2: memref<16xi32, #tpu.memory_space<smem>>) -> (i32, i32) {
    %c0_i32 = arith.constant 0 : i32
    %c0_i32_0 = arith.constant 0 : i32
    %c0_i32_1 = arith.constant 0 : i32
    return %c0_i32, %c0_i32_0 : i32, i32
  }
  func.func @transform_4(%arg0: i32, %arg1: i32, %arg2: memref<16xi32, #tpu.memory_space<smem>>) -> (i32, i32) {
    %c0_i32 = arith.constant 0 : i32
    %c0_i32_0 = arith.constant 0 : i32
    return %arg0, %c0_i32 : i32, i32
  }
  func.func @transform_5(%arg0: i32, %arg1: i32, %arg2: memref<16xi32, #tpu.memory_space<smem>>) -> (i32, i32) {
    %c0_i32 = arith.constant 0 : i32
    %c0_i32_0 = arith.constant 0 : i32
    return %arg0, %c0_i32 : i32, i32
  }
  func.func @transform_6(%arg0: i32, %arg1: i32, %arg2: memref<16xi32, #tpu.memory_space<smem>>) -> (i32, i32) {
    %c0_i32 = arith.constant 0 : i32
    %c0_i32_0 = arith.constant 0 : i32
    %c0_i32_1 = arith.constant 0 : i32
    return %c0_i32, %c0_i32_0 : i32, i32
  }
  func.func @transform_7(%arg0: i32, %arg1: i32, %arg2: memref<16xi32, #tpu.memory_space<smem>>) -> (i32, i32) {
    %c0_i32 = arith.constant 0 : i32
    %c0_i32_0 = arith.constant 0 : i32
    %c0_i32_1 = arith.constant 0 : i32
    return %c0_i32, %c0_i32_0 : i32, i32
  }
  func.func @transform_8(%arg0: i32, %arg1: i32, %arg2: memref<16xi32, #tpu.memory_space<smem>>) -> (i32, i32, i32) {
    %c0_i32 = arith.constant 0 : i32
    %c0_i32_0 = arith.constant 0 : i32
    return %arg0, %arg1, %c0_i32 : i32, i32, i32
  }
  func.func @transform_9(%arg0: i32, %arg1: i32, %arg2: memref<16xi32, #tpu.memory_space<smem>>) -> (i32, i32) {
    %c0_i32 = arith.constant 0 : i32
    %c0_i32_0 = arith.constant 0 : i32
    return %arg0, %c0_i32 : i32, i32
  }
  func.func @transform_10(%arg0: i32, %arg1: i32, %arg2: memref<16xi32, #tpu.memory_space<smem>>) -> (i32, i32) {
    %c0_i32 = arith.constant 0 : i32
    %c0_i32_0 = arith.constant 0 : i32
    return %arg0, %c0_i32 : i32, i32
  }
  func.func @transform_11(%arg0: i32, %arg1: i32, %arg2: memref<16xi32, #tpu.memory_space<smem>>) -> (i32, i32, i32) {
    %c0_i32 = arith.constant 0 : i32
    %c0_i32_0 = arith.constant 0 : i32
    return %arg0, %arg1, %c0_i32 : i32, i32, i32
  }
}

module attributes {stable_mosaic.version = 11 : i64} {
  func.func @char_lm_kernel(%arg0: i32, %arg1: i32, %arg2: memref<16xi32, #tpu.memory_space<smem>>, %arg3: memref<8x8x64xbf16, #tpu.memory_space<vmem>>, %arg4: memref<64x512xbf16, #tpu.memory_space<vmem>>, %arg5: memref<128x512xbf16, #tpu.memory_space<vmem>>, %arg6: memref<1x512xf32, #tpu.memory_space<vmem>>, %arg7: memref<8x128xf32, #tpu.memory_space<vmem>>, %arg8: memref<8x128xf32, #tpu.memory_space<vmem>>, %arg9: memref<128x128xbf16, #tpu.memory_space<vmem>>, %arg10: memref<1x128xf32, #tpu.memory_space<vmem>>, %arg11: memref<8x8x128xf32, #tpu.memory_space<vmem>>, %arg12: memref<8x128xf32, #tpu.memory_space<vmem>>, %arg13: memref<8x128xf32, #tpu.memory_space<vmem>>, %arg14: memref<8x8x128xf32, #tpu.memory_space<vmem>>, %arg15: memref<8x128xf32, #tpu.memory_space<vmem>>, %arg16: memref<8x128xf32, #tpu.memory_space<vmem>>, %arg17: memref<8x128xi32, #tpu.memory_space<vmem>>, %arg18: memref<8x8x512xbf16, #tpu.memory_space<vmem>>) attributes {dimension_semantics = [#tpu.dimension_semantics<parallel>, #tpu.dimension_semantics<arbitrary>], iteration_bounds = array<i64: 2, 1>, scalar_prefetch = 1 : i64, scratch_operands = 4 : i64, tpu.core_type = #tpu.core_type<tc>, window_params = [{transform_indices = @transform_0, window_bounds = array<i64: 8, 8, 64>}, {pipeline_mode = #tpu.pipeline_mode<synchronous>, transform_indices = @transform_1, window_bounds = array<i64: 64, 512>}, {pipeline_mode = #tpu.pipeline_mode<synchronous>, transform_indices = @transform_2, window_bounds = array<i64: 128, 512>}, {pipeline_mode = #tpu.pipeline_mode<synchronous>, transform_indices = @transform_3, window_bounds = array<i64: 1, 512>}, {transform_indices = @transform_4, window_bounds = array<i64: 8, 128>}, {transform_indices = @transform_5, window_bounds = array<i64: 8, 128>}, {pipeline_mode = #tpu.pipeline_mode<synchronous>, transform_indices = @transform_6, window_bounds = array<i64: 128, 128>}, {pipeline_mode = #tpu.pipeline_mode<synchronous>, transform_indices = @transform_7, window_bounds = array<i64: 1, 128>}, {transform_indices = @transform_8, window_bounds = array<i64: 8, 8, 128>}, {transform_indices = @transform_9, window_bounds = array<i64: 8, 128>}, {transform_indices = @transform_10, window_bounds = array<i64: 8, 128>}, {transform_indices = @transform_11, window_bounds = array<i64: 8, 8, 128>}]} {
    %c0_i32 = arith.constant 0 : i32
    %0 = arith.cmpi eq, %arg1, %c0_i32 : i32
    %1 = arith.extui %0 : i1 to i32
    %c0_i32_0 = arith.constant 0 : i32
    %2 = arith.cmpi ne, %1, %c0_i32_0 : i32
    scf.if %2 {
      %c0_179 = arith.constant 0 : index
      %c0_180 = arith.constant 0 : index
      %382 = vector.load %arg7[%c0_179, %c0_180] : memref<8x128xf32, #tpu.memory_space<vmem>>, vector<8x128xf32>
      %c0_181 = arith.constant 0 : index
      %c0_182 = arith.constant 0 : index
      %383 = vector.load %arg15[%c0_181, %c0_182] : memref<8x128xf32, #tpu.memory_space<vmem>>, vector<8x128xf32>
      tpu.vector_store %arg15[%c0_181, %c0_182], %382 {strides = array<i32>} : memref<8x128xf32, #tpu.memory_space<vmem>>, vector<8x128xf32>,
      %c0_183 = arith.constant 0 : index
      %c0_184 = arith.constant 0 : index
      %384 = vector.load %arg8[%c0_183, %c0_184] : memref<8x128xf32, #tpu.memory_space<vmem>>, vector<8x128xf32>
      %c0_185 = arith.constant 0 : index
      %c0_186 = arith.constant 0 : index
      %385 = vector.load %arg16[%c0_185, %c0_186] : memref<8x128xf32, #tpu.memory_space<vmem>>, vector<8x128xf32>
      tpu.vector_store %arg16[%c0_185, %c0_186], %384 {strides = array<i32>} : memref<8x128xf32, #tpu.memory_space<vmem>>, vector<8x128xf32>,
      %c8_i32_187 = arith.constant 8 : i32
      %386 = arith.muli %arg0, %c8_i32_187 : i32
      %c0_i32_188 = arith.constant 0 : i32
      %387 = arith.addi %386, %c0_i32_188 : i32
      %388 = arith.index_cast %387 : i32 to index
      %389 = memref.load %arg2[%388] : memref<16xi32, #tpu.memory_space<smem>>
      %390 = vector.broadcast %389 : i32 to vector<128xi32>
      %c0_189 = arith.constant 0 : index
      %c0_190 = arith.constant 0 : index
      %391 = vector.load %arg17[%c0_189, %c0_190] : memref<8x128xi32, #tpu.memory_space<vmem>>, vector<1x128xi32>
      %392 = vector.shape_cast %391 : vector<1x128xi32> to vector<128xi32>
      %393 = vector.shape_cast %390 : vector<128xi32> to vector<1x128xi32>
      tpu.vector_store %arg17[%c0_189, %c0_190], %393 {strides = array<i32>} : memref<8x128xi32, #tpu.memory_space<vmem>>, vector<1x128xi32>,
      %c8_i32_191 = arith.constant 8 : i32
      %394 = arith.muli %arg0, %c8_i32_191 : i32
      %c1_i32_192 = arith.constant 1 : i32
      %395 = arith.addi %394, %c1_i32_192 : i32
      %396 = arith.index_cast %395 : i32 to index
      %397 = memref.load %arg2[%396] : memref<16xi32, #tpu.memory_space<smem>>
      %398 = vector.broadcast %397 : i32 to vector<128xi32>
      %c1_193 = arith.constant 1 : index
      %c0_194 = arith.constant 0 : index
      %399 = vector.load %arg17[%c1_193, %c0_194] : memref<8x128xi32, #tpu.memory_space<vmem>>, vector<1x128xi32>
      %400 = vector.shape_cast %399 : vector<1x128xi32> to vector<128xi32>
      %401 = vector.shape_cast %398 : vector<128xi32> to vector<1x128xi32>
      tpu.vector_store %arg17[%c1_193, %c0_194], %401 {strides = array<i32>} : memref<8x128xi32, #tpu.memory_space<vmem>>, vector<1x128xi32>,
      %c8_i32_195 = arith.constant 8 : i32
      %402 = arith.muli %arg0, %c8_i32_195 : i32
      %c2_i32_196 = arith.constant 2 : i32
      %403 = arith.addi %402, %c2_i32_196 : i32
      %404 = arith.index_cast %403 : i32 to index
      %405 = memref.load %arg2[%404] : memref<16xi32, #tpu.memory_space<smem>>
      %406 = vector.broadcast %405 : i32 to vector<128xi32>
      %c2_197 = arith.constant 2 : index
      %c0_198 = arith.constant 0 : index
      %407 = vector.load %arg17[%c2_197, %c0_198] : memref<8x128xi32, #tpu.memory_space<vmem>>, vector<1x128xi32>
      %408 = vector.shape_cast %407 : vector<1x128xi32> to vector<128xi32>
      %409 = vector.shape_cast %406 : vector<128xi32> to vector<1x128xi32>
      tpu.vector_store %arg17[%c2_197, %c0_198], %409 {strides = array<i32>} : memref<8x128xi32, #tpu.memory_space<vmem>>, vector<1x128xi32>,
      %c8_i32_199 = arith.constant 8 : i32
      %410 = arith.muli %arg0, %c8_i32_199 : i32
      %c3_i32_200 = arith.constant 3 : i32
      %411 = arith.addi %410, %c3_i32_200 : i32
      %412 = arith.index_cast %411 : i32 to index
      %413 = memref.load %arg2[%412] : memref<16xi32, #tpu.memory_space<smem>>
      %414 = vector.broadcast %413 : i32 to vector<128xi32>
      %c3_201 = arith.constant 3 : index
      %c0_202 = arith.constant 0 : index
      %415 = vector.load %arg17[%c3_201, %c0_202] : memref<8x128xi32, #tpu.memory_space<vmem>>, vector<1x128xi32>
      %416 = vector.shape_cast %415 : vector<1x128xi32> to vector<128xi32>
      %417 = vector.shape_cast %414 : vector<128xi32> to vector<1x128xi32>
      tpu.vector_store %arg17[%c3_201, %c0_202], %417 {strides = array<i32>} : memref<8x128xi32, #tpu.memory_space<vmem>>, vector<1x128xi32>,
      %c8_i32_203 = arith.constant 8 : i32
      %418 = arith.muli %arg0, %c8_i32_203 : i32
      %c4_i32_204 = arith.constant 4 : i32
      %419 = arith.addi %418, %c4_i32_204 : i32
      %420 = arith.index_cast %419 : i32 to index
      %421 = memref.load %arg2[%420] : memref<16xi32, #tpu.memory_space<smem>>
      %422 = vector.broadcast %421 : i32 to vector<128xi32>
      %c4_205 = arith.constant 4 : index
      %c0_206 = arith.constant 0 : index
      %423 = vector.load %arg17[%c4_205, %c0_206] : memref<8x128xi32, #tpu.memory_space<vmem>>, vector<1x128xi32>
      %424 = vector.shape_cast %423 : vector<1x128xi32> to vector<128xi32>
      %425 = vector.shape_cast %422 : vector<128xi32> to vector<1x128xi32>
      tpu.vector_store %arg17[%c4_205, %c0_206], %425 {strides = array<i32>} : memref<8x128xi32, #tpu.memory_space<vmem>>, vector<1x128xi32>,
      %c8_i32_207 = arith.constant 8 : i32
      %426 = arith.muli %arg0, %c8_i32_207 : i32
      %c5_i32_208 = arith.constant 5 : i32
      %427 = arith.addi %426, %c5_i32_208 : i32
      %428 = arith.index_cast %427 : i32 to index
      %429 = memref.load %arg2[%428] : memref<16xi32, #tpu.memory_space<smem>>
      %430 = vector.broadcast %429 : i32 to vector<128xi32>
      %c5_209 = arith.constant 5 : index
      %c0_210 = arith.constant 0 : index
      %431 = vector.load %arg17[%c5_209, %c0_210] : memref<8x128xi32, #tpu.memory_space<vmem>>, vector<1x128xi32>
      %432 = vector.shape_cast %431 : vector<1x128xi32> to vector<128xi32>
      %433 = vector.shape_cast %430 : vector<128xi32> to vector<1x128xi32>
      tpu.vector_store %arg17[%c5_209, %c0_210], %433 {strides = array<i32>} : memref<8x128xi32, #tpu.memory_space<vmem>>, vector<1x128xi32>,
      %c8_i32_211 = arith.constant 8 : i32
      %434 = arith.muli %arg0, %c8_i32_211 : i32
      %c6_i32_212 = arith.constant 6 : i32
      %435 = arith.addi %434, %c6_i32_212 : i32
      %436 = arith.index_cast %435 : i32 to index
      %437 = memref.load %arg2[%436] : memref<16xi32, #tpu.memory_space<smem>>
      %438 = vector.broadcast %437 : i32 to vector<128xi32>
      %c6_213 = arith.constant 6 : index
      %c0_214 = arith.constant 0 : index
      %439 = vector.load %arg17[%c6_213, %c0_214] : memref<8x128xi32, #tpu.memory_space<vmem>>, vector<1x128xi32>
      %440 = vector.shape_cast %439 : vector<1x128xi32> to vector<128xi32>
      %441 = vector.shape_cast %438 : vector<128xi32> to vector<1x128xi32>
      tpu.vector_store %arg17[%c6_213, %c0_214], %441 {strides = array<i32>} : memref<8x128xi32, #tpu.memory_space<vmem>>, vector<1x128xi32>,
      %c8_i32_215 = arith.constant 8 : i32
      %442 = arith.muli %arg0, %c8_i32_215 : i32
      %c7_i32_216 = arith.constant 7 : i32
      %443 = arith.addi %442, %c7_i32_216 : i32
      %444 = arith.index_cast %443 : i32 to index
      %445 = memref.load %arg2[%444] : memref<16xi32, #tpu.memory_space<smem>>
      %446 = vector.broadcast %445 : i32 to vector<128xi32>
      %c7_217 = arith.constant 7 : index
      %c0_218 = arith.constant 0 : index
      %447 = vector.load %arg17[%c7_217, %c0_218] : memref<8x128xi32, #tpu.memory_space<vmem>>, vector<1x128xi32>
      %448 = vector.shape_cast %447 : vector<1x128xi32> to vector<128xi32>
      %449 = vector.shape_cast %446 : vector<128xi32> to vector<1x128xi32>
      tpu.vector_store %arg17[%c7_217, %c0_218], %449 {strides = array<i32>} : memref<8x128xi32, #tpu.memory_space<vmem>>, vector<1x128xi32>,
    } else {
    }
    %c0 = arith.constant 0 : index
    %c0_1 = arith.constant 0 : index
    %c0_2 = arith.constant 0 : index
    %3 = vector.load %arg3[%c0, %c0_1, %c0_2] : memref<8x8x64xbf16, #tpu.memory_space<vmem>>, vector<8x8x64xbf16>
    %4 = vector.shape_cast %3 : vector<8x8x64xbf16> to vector<64x64xbf16>
    %c0_3 = arith.constant 0 : index
    %c0_4 = arith.constant 0 : index
    %5 = vector.load %arg4[%c0_3, %c0_4] : memref<64x512xbf16, #tpu.memory_space<vmem>>, vector<64x512xbf16>
    %cst = arith.constant dense<0.000000e+00> : vector<64x512xf32>
    %6 = tpu.matmul %4, %5, %cst {dimension_numbers = #tpu.dot_dimension_numbers<[1], [0], [0], [1], [0, 0, 1, 1], [], []>} : vector<64x64xbf16>, vector<64x512xbf16>, vector<64x512xf32> -> vector<64x512xf32>
    %c0_5 = arith.constant 0 : index
    %c0_6 = arith.constant 0 : index
    %7 = vector.load %arg6[%c0_5, %c0_6] : memref<1x512xf32, #tpu.memory_space<vmem>>, vector<1x512xf32>
    %8 = vector.broadcast %7 : vector<1x512xf32> to vector<64x512xf32>
    %9 = arith.addf %6, %8 : vector<64x512xf32>
    %10 = arith.truncf %9 : vector<64x512xf32> to vector<64x512xbf16>
    %11 = vector.shape_cast %10 : vector<64x512xbf16> to vector<8x8x512xbf16>
    %c0_7 = arith.constant 0 : index
    %c0_8 = arith.constant 0 : index
    %c0_9 = arith.constant 0 : index
    %12 = vector.load %arg18[%c0_7, %c0_8, %c0_9] : memref<8x8x512xbf16, #tpu.memory_space<vmem>>, vector<8x8x512xbf16>
    tpu.vector_store %arg18[%c0_7, %c0_8, %c0_9], %11 {strides = array<i32>} : memref<8x8x512xbf16, #tpu.memory_space<vmem>>, vector<8x8x512xbf16>,
    %c0_10 = arith.constant 0 : index
    %c0_11 = arith.constant 0 : index
    %13 = vector.load %arg5[%c0_10, %c0_11] : memref<128x512xbf16, #tpu.memory_space<vmem>>, vector<128x512xbf16>
    %c0_12 = arith.constant 0 : index
    %c0_13 = arith.constant 0 : index
    %14 = vector.load %arg17[%c0_12, %c0_13] : memref<8x128xi32, #tpu.memory_space<vmem>>, vector<8x128xi32>
    %c8_i32 = arith.constant 8 : i32
    %15 = arith.muli %arg1, %c8_i32 : i32
    %c0_14 = arith.constant 0 : index
    %c0_15 = arith.constant 0 : index
    %16 = vector.load %arg15[%c0_14, %c0_15] : memref<8x128xf32, #tpu.memory_space<vmem>>, vector<8x128xf32>
    %c0_16 = arith.constant 0 : index
    %c0_17 = arith.constant 0 : index
    %17 = vector.load %arg16[%c0_16, %c0_17] : memref<8x128xf32, #tpu.memory_space<vmem>>, vector<8x128xf32>
    %c0_18 = arith.constant 0 : index
    %c0_19 = arith.constant 0 : index
    %c0_20 = arith.constant 0 : index
    %18 = vector.load %arg18[%c0_18, %c0_19, %c0_20] : memref<8x8x512xbf16, #tpu.memory_space<vmem>>, vector<1x8x512xbf16>
    %19 = vector.shape_cast %18 : vector<1x8x512xbf16> to vector<8x512xbf16>
    %20 = arith.extf %19 : vector<8x512xbf16> to vector<8x512xf32>
    %21 = arith.truncf %16 : vector<8x128xf32> to vector<8x128xbf16>
    %cst_21 = arith.constant dense<0.000000e+00> : vector<8x512xf32>
    %22 = tpu.matmul %21, %13, %cst_21 {dimension_numbers = #tpu.dot_dimension_numbers<[1], [0], [0], [1], [0, 0, 1, 1], [], []>} : vector<8x128xbf16>, vector<128x512xbf16>, vector<8x512xf32> -> vector<8x512xf32>
    %23 = arith.addf %20, %22 : vector<8x512xf32>
    %24 = vector.extract_strided_slice %23 {offsets = [0, 0], sizes = [8, 128], strides = [1, 1]} : vector<8x512xf32> to vector<8x128xf32>
    %25 = arith.negf %24 : vector<8x128xf32>
    %26 = math.exp %25 : vector<8x128xf32>
    %cst_22 = arith.constant 1.000000e+00 : f32
    %27 = vector.broadcast %cst_22 : f32 to vector<8x128xf32>
    %28 = arith.addf %27, %26 : vector<8x128xf32>
    %29 = arith.divf %27, %28 : vector<8x128xf32>
    %30 = vector.extract_strided_slice %23 {offsets = [0, 128], sizes = [8, 128], strides = [1, 1]} : vector<8x512xf32> to vector<8x128xf32>
    %31 = arith.negf %30 : vector<8x128xf32>
    %32 = math.exp %31 : vector<8x128xf32>
    %cst_23 = arith.constant 1.000000e+00 : f32
    %33 = vector.broadcast %cst_23 : f32 to vector<8x128xf32>
    %34 = arith.addf %33, %32 : vector<8x128xf32>
    %35 = arith.divf %33, %34 : vector<8x128xf32>
    %36 = vector.extract_strided_slice %23 {offsets = [0, 256], sizes = [8, 128], strides = [1, 1]} : vector<8x512xf32> to vector<8x128xf32>
    %37 = math.tanh %36 : vector<8x128xf32>
    %38 = vector.extract_strided_slice %23 {offsets = [0, 384], sizes = [8, 128], strides = [1, 1]} : vector<8x512xf32> to vector<8x128xf32>
    %39 = arith.negf %38 : vector<8x128xf32>
    %40 = math.exp %39 : vector<8x128xf32>
    %cst_24 = arith.constant 1.000000e+00 : f32
    %41 = vector.broadcast %cst_24 : f32 to vector<8x128xf32>
    %42 = arith.addf %41, %40 : vector<8x128xf32>
    %43 = arith.divf %41, %42 : vector<8x128xf32>
    %44 = arith.mulf %35, %17 : vector<8x128xf32>
    %45 = arith.mulf %29, %37 : vector<8x128xf32>
    %46 = arith.addf %44, %45 : vector<8x128xf32>
    %47 = math.tanh %46 : vector<8x128xf32>
    %48 = arith.mulf %43, %47 : vector<8x128xf32>
    %c0_i32_25 = arith.constant 0 : i32
    %49 = arith.addi %15, %c0_i32_25 : i32
    %50 = vector.broadcast %49 : i32 to vector<8x128xi32>
    %51 = arith.cmpi sgt, %14, %50 : vector<8x128xi32>
    %52 = arith.select %51, %46, %17 : vector<8x128xi1>, vector<8x128xf32>
    %c0_26 = arith.constant 0 : index
    %c0_27 = arith.constant 0 : index
    %53 = vector.load %arg16[%c0_26, %c0_27] : memref<8x128xf32, #tpu.memory_space<vmem>>, vector<8x128xf32>
    tpu.vector_store %arg16[%c0_26, %c0_27], %52 {strides = array<i32>} : memref<8x128xf32, #tpu.memory_space<vmem>>, vector<8x128xf32>,
    %54 = arith.select %51, %48, %16 : vector<8x128xi1>, vector<8x128xf32>
    %c0_28 = arith.constant 0 : index
    %c0_29 = arith.constant 0 : index
    %55 = vector.load %arg15[%c0_28, %c0_29] : memref<8x128xf32, #tpu.memory_space<vmem>>, vector<8x128xf32>
    tpu.vector_store %arg15[%c0_28, %c0_29], %54 {strides = array<i32>} : memref<8x128xf32, #tpu.memory_space<vmem>>, vector<8x128xf32>,
    %cst_30 = arith.constant 0.000000e+00 : f32
    %56 = vector.broadcast %cst_30 : f32 to vector<8x128xf32>
    %57 = arith.select %51, %48, %56 : vector<8x128xi1>, vector<8x128xf32>
    %58 = vector.shape_cast %57 : vector<8x128xf32> to vector<8x1x128xf32>
    %c0_31 = arith.constant 0 : index
    %c0_32 = arith.constant 0 : index
    %c0_33 = arith.constant 0 : index
    %59 = vector.load %arg11[%c0_31, %c0_32, %c0_33] : memref<8x8x128xf32, #tpu.memory_space<vmem>>, vector<8x1x128xf32>
    tpu.vector_store %arg11[%c0_31, %c0_32, %c0_33], %58 {strides = array<i32>} : memref<8x8x128xf32, #tpu.memory_space<vmem>>, vector<8x1x128xf32>,
    %c0_34 = arith.constant 0 : index
    %c0_35 = arith.constant 0 : index
    %60 = vector.load %arg15[%c0_34, %c0_35] : memref<8x128xf32, #tpu.memory_space<vmem>>, vector<8x128xf32>
    %c0_36 = arith.constant 0 : index
    %c0_37 = arith.constant 0 : index
    %61 = vector.load %arg16[%c0_36, %c0_37] : memref<8x128xf32, #tpu.memory_space<vmem>>, vector<8x128xf32>
    %c1 = arith.constant 1 : index
    %c0_38 = arith.constant 0 : index
    %c0_39 = arith.constant 0 : index
    %62 = vector.load %arg18[%c1, %c0_38, %c0_39] : memref<8x8x512xbf16, #tpu.memory_space<vmem>>, vector<1x8x512xbf16>
    %63 = vector.shape_cast %62 : vector<1x8x512xbf16> to vector<8x512xbf16>
    %64 = arith.extf %63 : vector<8x512xbf16> to vector<8x512xf32>
    %65 = arith.truncf %60 : vector<8x128xf32> to vector<8x128xbf16>
    %cst_40 = arith.constant dense<0.000000e+00> : vector<8x512xf32>
    %66 = tpu.matmul %65, %13, %cst_40 {dimension_numbers = #tpu.dot_dimension_numbers<[1], [0], [0], [1], [0, 0, 1, 1], [], []>} : vector<8x128xbf16>, vector<128x512xbf16>, vector<8x512xf32> -> vector<8x512xf32>
    %67 = arith.addf %64, %66 : vector<8x512xf32>
    %68 = vector.extract_strided_slice %67 {offsets = [0, 0], sizes = [8, 128], strides = [1, 1]} : vector<8x512xf32> to vector<8x128xf32>
    %69 = arith.negf %68 : vector<8x128xf32>
    %70 = math.exp %69 : vector<8x128xf32>
    %cst_41 = arith.constant 1.000000e+00 : f32
    %71 = vector.broadcast %cst_41 : f32 to vector<8x128xf32>
    %72 = arith.addf %71, %70 : vector<8x128xf32>
    %73 = arith.divf %71, %72 : vector<8x128xf32>
    %74 = vector.extract_strided_slice %67 {offsets = [0, 128], sizes = [8, 128], strides = [1, 1]} : vector<8x512xf32> to vector<8x128xf32>
    %75 = arith.negf %74 : vector<8x128xf32>
    %76 = math.exp %75 : vector<8x128xf32>
    %cst_42 = arith.constant 1.000000e+00 : f32
    %77 = vector.broadcast %cst_42 : f32 to vector<8x128xf32>
    %78 = arith.addf %77, %76 : vector<8x128xf32>
    %79 = arith.divf %77, %78 : vector<8x128xf32>
    %80 = vector.extract_strided_slice %67 {offsets = [0, 256], sizes = [8, 128], strides = [1, 1]} : vector<8x512xf32> to vector<8x128xf32>
    %81 = math.tanh %80 : vector<8x128xf32>
    %82 = vector.extract_strided_slice %67 {offsets = [0, 384], sizes = [8, 128], strides = [1, 1]} : vector<8x512xf32> to vector<8x128xf32>
    %83 = arith.negf %82 : vector<8x128xf32>
    %84 = math.exp %83 : vector<8x128xf32>
    %cst_43 = arith.constant 1.000000e+00 : f32
    %85 = vector.broadcast %cst_43 : f32 to vector<8x128xf32>
    %86 = arith.addf %85, %84 : vector<8x128xf32>
    %87 = arith.divf %85, %86 : vector<8x128xf32>
    %88 = arith.mulf %79, %61 : vector<8x128xf32>
    %89 = arith.mulf %73, %81 : vector<8x128xf32>
    %90 = arith.addf %88, %89 : vector<8x128xf32>
    %91 = math.tanh %90 : vector<8x128xf32>
    %92 = arith.mulf %87, %91 : vector<8x128xf32>
    %c1_i32 = arith.constant 1 : i32
    %93 = arith.addi %15, %c1_i32 : i32
    %94 = vector.broadcast %93 : i32 to vector<8x128xi32>
    %95 = arith.cmpi sgt, %14, %94 : vector<8x128xi32>
    %96 = arith.select %95, %90, %61 : vector<8x128xi1>, vector<8x128xf32>
    %c0_44 = arith.constant 0 : index
    %c0_45 = arith.constant 0 : index
    %97 = vector.load %arg16[%c0_44, %c0_45] : memref<8x128xf32, #tpu.memory_space<vmem>>, vector<8x128xf32>
    tpu.vector_store %arg16[%c0_44, %c0_45], %96 {strides = array<i32>} : memref<8x128xf32, #tpu.memory_space<vmem>>, vector<8x128xf32>,
    %98 = arith.select %95, %92, %60 : vector<8x128xi1>, vector<8x128xf32>
    %c0_46 = arith.constant 0 : index
    %c0_47 = arith.constant 0 : index
    %99 = vector.load %arg15[%c0_46, %c0_47] : memref<8x128xf32, #tpu.memory_space<vmem>>, vector<8x128xf32>
    tpu.vector_store %arg15[%c0_46, %c0_47], %98 {strides = array<i32>} : memref<8x128xf32, #tpu.memory_space<vmem>>, vector<8x128xf32>,
    %cst_48 = arith.constant 0.000000e+00 : f32
    %100 = vector.broadcast %cst_48 : f32 to vector<8x128xf32>
    %101 = arith.select %95, %92, %100 : vector<8x128xi1>, vector<8x128xf32>
    %102 = vector.shape_cast %101 : vector<8x128xf32> to vector<8x1x128xf32>
    %c0_49 = arith.constant 0 : index
    %c1_50 = arith.constant 1 : index
    %c0_51 = arith.constant 0 : index
    %103 = vector.load %arg11[%c0_49, %c1_50, %c0_51] : memref<8x8x128xf32, #tpu.memory_space<vmem>>, vector<8x1x128xf32>
    tpu.vector_store %arg11[%c0_49, %c1_50, %c0_51], %102 {strides = array<i32>} : memref<8x8x128xf32, #tpu.memory_space<vmem>>, vector<8x1x128xf32>,
    %c0_52 = arith.constant 0 : index
    %c0_53 = arith.constant 0 : index
    %104 = vector.load %arg15[%c0_52, %c0_53] : memref<8x128xf32, #tpu.memory_space<vmem>>, vector<8x128xf32>
    %c0_54 = arith.constant 0 : index
    %c0_55 = arith.constant 0 : index
    %105 = vector.load %arg16[%c0_54, %c0_55] : memref<8x128xf32, #tpu.memory_space<vmem>>, vector<8x128xf32>
    %c2 = arith.constant 2 : index
    %c0_56 = arith.constant 0 : index
    %c0_57 = arith.constant 0 : index
    %106 = vector.load %arg18[%c2, %c0_56, %c0_57] : memref<8x8x512xbf16, #tpu.memory_space<vmem>>, vector<1x8x512xbf16>
    %107 = vector.shape_cast %106 : vector<1x8x512xbf16> to vector<8x512xbf16>
    %108 = arith.extf %107 : vector<8x512xbf16> to vector<8x512xf32>
    %109 = arith.truncf %104 : vector<8x128xf32> to vector<8x128xbf16>
    %cst_58 = arith.constant dense<0.000000e+00> : vector<8x512xf32>
    %110 = tpu.matmul %109, %13, %cst_58 {dimension_numbers = #tpu.dot_dimension_numbers<[1], [0], [0], [1], [0, 0, 1, 1], [], []>} : vector<8x128xbf16>, vector<128x512xbf16>, vector<8x512xf32> -> vector<8x512xf32>
    %111 = arith.addf %108, %110 : vector<8x512xf32>
    %112 = vector.extract_strided_slice %111 {offsets = [0, 0], sizes = [8, 128], strides = [1, 1]} : vector<8x512xf32> to vector<8x128xf32>
    %113 = arith.negf %112 : vector<8x128xf32>
    %114 = math.exp %113 : vector<8x128xf32>
    %cst_59 = arith.constant 1.000000e+00 : f32
    %115 = vector.broadcast %cst_59 : f32 to vector<8x128xf32>
    %116 = arith.addf %115, %114 : vector<8x128xf32>
    %117 = arith.divf %115, %116 : vector<8x128xf32>
    %118 = vector.extract_strided_slice %111 {offsets = [0, 128], sizes = [8, 128], strides = [1, 1]} : vector<8x512xf32> to vector<8x128xf32>
    %119 = arith.negf %118 : vector<8x128xf32>
    %120 = math.exp %119 : vector<8x128xf32>
    %cst_60 = arith.constant 1.000000e+00 : f32
    %121 = vector.broadcast %cst_60 : f32 to vector<8x128xf32>
    %122 = arith.addf %121, %120 : vector<8x128xf32>
    %123 = arith.divf %121, %122 : vector<8x128xf32>
    %124 = vector.extract_strided_slice %111 {offsets = [0, 256], sizes = [8, 128], strides = [1, 1]} : vector<8x512xf32> to vector<8x128xf32>
    %125 = math.tanh %124 : vector<8x128xf32>
    %126 = vector.extract_strided_slice %111 {offsets = [0, 384], sizes = [8, 128], strides = [1, 1]} : vector<8x512xf32> to vector<8x128xf32>
    %127 = arith.negf %126 : vector<8x128xf32>
    %128 = math.exp %127 : vector<8x128xf32>
    %cst_61 = arith.constant 1.000000e+00 : f32
    %129 = vector.broadcast %cst_61 : f32 to vector<8x128xf32>
    %130 = arith.addf %129, %128 : vector<8x128xf32>
    %131 = arith.divf %129, %130 : vector<8x128xf32>
    %132 = arith.mulf %123, %105 : vector<8x128xf32>
    %133 = arith.mulf %117, %125 : vector<8x128xf32>
    %134 = arith.addf %132, %133 : vector<8x128xf32>
    %135 = math.tanh %134 : vector<8x128xf32>
    %136 = arith.mulf %131, %135 : vector<8x128xf32>
    %c2_i32 = arith.constant 2 : i32
    %137 = arith.addi %15, %c2_i32 : i32
    %138 = vector.broadcast %137 : i32 to vector<8x128xi32>
    %139 = arith.cmpi sgt, %14, %138 : vector<8x128xi32>
    %140 = arith.select %139, %134, %105 : vector<8x128xi1>, vector<8x128xf32>
    %c0_62 = arith.constant 0 : index
    %c0_63 = arith.constant 0 : index
    %141 = vector.load %arg16[%c0_62, %c0_63] : memref<8x128xf32, #tpu.memory_space<vmem>>, vector<8x128xf32>
    tpu.vector_store %arg16[%c0_62, %c0_63], %140 {strides = array<i32>} : memref<8x128xf32, #tpu.memory_space<vmem>>, vector<8x128xf32>,
    %142 = arith.select %139, %136, %104 : vector<8x128xi1>, vector<8x128xf32>
    %c0_64 = arith.constant 0 : index
    %c0_65 = arith.constant 0 : index
    %143 = vector.load %arg15[%c0_64, %c0_65] : memref<8x128xf32, #tpu.memory_space<vmem>>, vector<8x128xf32>
    tpu.vector_store %arg15[%c0_64, %c0_65], %142 {strides = array<i32>} : memref<8x128xf32, #tpu.memory_space<vmem>>, vector<8x128xf32>,
    %cst_66 = arith.constant 0.000000e+00 : f32
    %144 = vector.broadcast %cst_66 : f32 to vector<8x128xf32>
    %145 = arith.select %139, %136, %144 : vector<8x128xi1>, vector<8x128xf32>
    %146 = vector.shape_cast %145 : vector<8x128xf32> to vector<8x1x128xf32>
    %c0_67 = arith.constant 0 : index
    %c2_68 = arith.constant 2 : index
    %c0_69 = arith.constant 0 : index
    %147 = vector.load %arg11[%c0_67, %c2_68, %c0_69] : memref<8x8x128xf32, #tpu.memory_space<vmem>>, vector<8x1x128xf32>
    tpu.vector_store %arg11[%c0_67, %c2_68, %c0_69], %146 {strides = array<i32>} : memref<8x8x128xf32, #tpu.memory_space<vmem>>, vector<8x1x128xf32>,
    %c0_70 = arith.constant 0 : index
    %c0_71 = arith.constant 0 : index
    %148 = vector.load %arg15[%c0_70, %c0_71] : memref<8x128xf32, #tpu.memory_space<vmem>>, vector<8x128xf32>
    %c0_72 = arith.constant 0 : index
    %c0_73 = arith.constant 0 : index
    %149 = vector.load %arg16[%c0_72, %c0_73] : memref<8x128xf32, #tpu.memory_space<vmem>>, vector<8x128xf32>
    %c3 = arith.constant 3 : index
    %c0_74 = arith.constant 0 : index
    %c0_75 = arith.constant 0 : index
    %150 = vector.load %arg18[%c3, %c0_74, %c0_75] : memref<8x8x512xbf16, #tpu.memory_space<vmem>>, vector<1x8x512xbf16>
    %151 = vector.shape_cast %150 : vector<1x8x512xbf16> to vector<8x512xbf16>
    %152 = arith.extf %151 : vector<8x512xbf16> to vector<8x512xf32>
    %153 = arith.truncf %148 : vector<8x128xf32> to vector<8x128xbf16>
    %cst_76 = arith.constant dense<0.000000e+00> : vector<8x512xf32>
    %154 = tpu.matmul %153, %13, %cst_76 {dimension_numbers = #tpu.dot_dimension_numbers<[1], [0], [0], [1], [0, 0, 1, 1], [], []>} : vector<8x128xbf16>, vector<128x512xbf16>, vector<8x512xf32> -> vector<8x512xf32>
    %155 = arith.addf %152, %154 : vector<8x512xf32>
    %156 = vector.extract_strided_slice %155 {offsets = [0, 0], sizes = [8, 128], strides = [1, 1]} : vector<8x512xf32> to vector<8x128xf32>
    %157 = arith.negf %156 : vector<8x128xf32>
    %158 = math.exp %157 : vector<8x128xf32>
    %cst_77 = arith.constant 1.000000e+00 : f32
    %159 = vector.broadcast %cst_77 : f32 to vector<8x128xf32>
    %160 = arith.addf %159, %158 : vector<8x128xf32>
    %161 = arith.divf %159, %160 : vector<8x128xf32>
    %162 = vector.extract_strided_slice %155 {offsets = [0, 128], sizes = [8, 128], strides = [1, 1]} : vector<8x512xf32> to vector<8x128xf32>
    %163 = arith.negf %162 : vector<8x128xf32>
    %164 = math.exp %163 : vector<8x128xf32>
    %cst_78 = arith.constant 1.000000e+00 : f32
    %165 = vector.broadcast %cst_78 : f32 to vector<8x128xf32>
    %166 = arith.addf %165, %164 : vector<8x128xf32>
    %167 = arith.divf %165, %166 : vector<8x128xf32>
    %168 = vector.extract_strided_slice %155 {offsets = [0, 256], sizes = [8, 128], strides = [1, 1]} : vector<8x512xf32> to vector<8x128xf32>
    %169 = math.tanh %168 : vector<8x128xf32>
    %170 = vector.extract_strided_slice %155 {offsets = [0, 384], sizes = [8, 128], strides = [1, 1]} : vector<8x512xf32> to vector<8x128xf32>
    %171 = arith.negf %170 : vector<8x128xf32>
    %172 = math.exp %171 : vector<8x128xf32>
    %cst_79 = arith.constant 1.000000e+00 : f32
    %173 = vector.broadcast %cst_79 : f32 to vector<8x128xf32>
    %174 = arith.addf %173, %172 : vector<8x128xf32>
    %175 = arith.divf %173, %174 : vector<8x128xf32>
    %176 = arith.mulf %167, %149 : vector<8x128xf32>
    %177 = arith.mulf %161, %169 : vector<8x128xf32>
    %178 = arith.addf %176, %177 : vector<8x128xf32>
    %179 = math.tanh %178 : vector<8x128xf32>
    %180 = arith.mulf %175, %179 : vector<8x128xf32>
    %c3_i32 = arith.constant 3 : i32
    %181 = arith.addi %15, %c3_i32 : i32
    %182 = vector.broadcast %181 : i32 to vector<8x128xi32>
    %183 = arith.cmpi sgt, %14, %182 : vector<8x128xi32>
    %184 = arith.select %183, %178, %149 : vector<8x128xi1>, vector<8x128xf32>
    %c0_80 = arith.constant 0 : index
    %c0_81 = arith.constant 0 : index
    %185 = vector.load %arg16[%c0_80, %c0_81] : memref<8x128xf32, #tpu.memory_space<vmem>>, vector<8x128xf32>
    tpu.vector_store %arg16[%c0_80, %c0_81], %184 {strides = array<i32>} : memref<8x128xf32, #tpu.memory_space<vmem>>, vector<8x128xf32>,
    %186 = arith.select %183, %180, %148 : vector<8x128xi1>, vector<8x128xf32>
    %c0_82 = arith.constant 0 : index
    %c0_83 = arith.constant 0 : index
    %187 = vector.load %arg15[%c0_82, %c0_83] : memref<8x128xf32, #tpu.memory_space<vmem>>, vector<8x128xf32>
    tpu.vector_store %arg15[%c0_82, %c0_83], %186 {strides = array<i32>} : memref<8x128xf32, #tpu.memory_space<vmem>>, vector<8x128xf32>,
    %cst_84 = arith.constant 0.000000e+00 : f32
    %188 = vector.broadcast %cst_84 : f32 to vector<8x128xf32>
    %189 = arith.select %183, %180, %188 : vector<8x128xi1>, vector<8x128xf32>
    %190 = vector.shape_cast %189 : vector<8x128xf32> to vector<8x1x128xf32>
    %c0_85 = arith.constant 0 : index
    %c3_86 = arith.constant 3 : index
    %c0_87 = arith.constant 0 : index
    %191 = vector.load %arg11[%c0_85, %c3_86, %c0_87] : memref<8x8x128xf32, #tpu.memory_space<vmem>>, vector<8x1x128xf32>
    tpu.vector_store %arg11[%c0_85, %c3_86, %c0_87], %190 {strides = array<i32>} : memref<8x8x128xf32, #tpu.memory_space<vmem>>, vector<8x1x128xf32>,
    %c0_88 = arith.constant 0 : index
    %c0_89 = arith.constant 0 : index
    %192 = vector.load %arg15[%c0_88, %c0_89] : memref<8x128xf32, #tpu.memory_space<vmem>>, vector<8x128xf32>
    %c0_90 = arith.constant 0 : index
    %c0_91 = arith.constant 0 : index
    %193 = vector.load %arg16[%c0_90, %c0_91] : memref<8x128xf32, #tpu.memory_space<vmem>>, vector<8x128xf32>
    %c4 = arith.constant 4 : index
    %c0_92 = arith.constant 0 : index
    %c0_93 = arith.constant 0 : index
    %194 = vector.load %arg18[%c4, %c0_92, %c0_93] : memref<8x8x512xbf16, #tpu.memory_space<vmem>>, vector<1x8x512xbf16>
    %195 = vector.shape_cast %194 : vector<1x8x512xbf16> to vector<8x512xbf16>
    %196 = arith.extf %195 : vector<8x512xbf16> to vector<8x512xf32>
    %197 = arith.truncf %192 : vector<8x128xf32> to vector<8x128xbf16>
    %cst_94 = arith.constant dense<0.000000e+00> : vector<8x512xf32>
    %198 = tpu.matmul %197, %13, %cst_94 {dimension_numbers = #tpu.dot_dimension_numbers<[1], [0], [0], [1], [0, 0, 1, 1], [], []>} : vector<8x128xbf16>, vector<128x512xbf16>, vector<8x512xf32> -> vector<8x512xf32>
    %199 = arith.addf %196, %198 : vector<8x512xf32>
    %200 = vector.extract_strided_slice %199 {offsets = [0, 0], sizes = [8, 128], strides = [1, 1]} : vector<8x512xf32> to vector<8x128xf32>
    %201 = arith.negf %200 : vector<8x128xf32>
    %202 = math.exp %201 : vector<8x128xf32>
    %cst_95 = arith.constant 1.000000e+00 : f32
    %203 = vector.broadcast %cst_95 : f32 to vector<8x128xf32>
    %204 = arith.addf %203, %202 : vector<8x128xf32>
    %205 = arith.divf %203, %204 : vector<8x128xf32>
    %206 = vector.extract_strided_slice %199 {offsets = [0, 128], sizes = [8, 128], strides = [1, 1]} : vector<8x512xf32> to vector<8x128xf32>
    %207 = arith.negf %206 : vector<8x128xf32>
    %208 = math.exp %207 : vector<8x128xf32>
    %cst_96 = arith.constant 1.000000e+00 : f32
    %209 = vector.broadcast %cst_96 : f32 to vector<8x128xf32>
    %210 = arith.addf %209, %208 : vector<8x128xf32>
    %211 = arith.divf %209, %210 : vector<8x128xf32>
    %212 = vector.extract_strided_slice %199 {offsets = [0, 256], sizes = [8, 128], strides = [1, 1]} : vector<8x512xf32> to vector<8x128xf32>
    %213 = math.tanh %212 : vector<8x128xf32>
    %214 = vector.extract_strided_slice %199 {offsets = [0, 384], sizes = [8, 128], strides = [1, 1]} : vector<8x512xf32> to vector<8x128xf32>
    %215 = arith.negf %214 : vector<8x128xf32>
    %216 = math.exp %215 : vector<8x128xf32>
    %cst_97 = arith.constant 1.000000e+00 : f32
    %217 = vector.broadcast %cst_97 : f32 to vector<8x128xf32>
    %218 = arith.addf %217, %216 : vector<8x128xf32>
    %219 = arith.divf %217, %218 : vector<8x128xf32>
    %220 = arith.mulf %211, %193 : vector<8x128xf32>
    %221 = arith.mulf %205, %213 : vector<8x128xf32>
    %222 = arith.addf %220, %221 : vector<8x128xf32>
    %223 = math.tanh %222 : vector<8x128xf32>
    %224 = arith.mulf %219, %223 : vector<8x128xf32>
    %c4_i32 = arith.constant 4 : i32
    %225 = arith.addi %15, %c4_i32 : i32
    %226 = vector.broadcast %225 : i32 to vector<8x128xi32>
    %227 = arith.cmpi sgt, %14, %226 : vector<8x128xi32>
    %228 = arith.select %227, %222, %193 : vector<8x128xi1>, vector<8x128xf32>
    %c0_98 = arith.constant 0 : index
    %c0_99 = arith.constant 0 : index
    %229 = vector.load %arg16[%c0_98, %c0_99] : memref<8x128xf32, #tpu.memory_space<vmem>>, vector<8x128xf32>
    tpu.vector_store %arg16[%c0_98, %c0_99], %228 {strides = array<i32>} : memref<8x128xf32, #tpu.memory_space<vmem>>, vector<8x128xf32>,
    %230 = arith.select %227, %224, %192 : vector<8x128xi1>, vector<8x128xf32>
    %c0_100 = arith.constant 0 : index
    %c0_101 = arith.constant 0 : index
    %231 = vector.load %arg15[%c0_100, %c0_101] : memref<8x128xf32, #tpu.memory_space<vmem>>, vector<8x128xf32>
    tpu.vector_store %arg15[%c0_100, %c0_101], %230 {strides = array<i32>} : memref<8x128xf32, #tpu.memory_space<vmem>>, vector<8x128xf32>,
    %cst_102 = arith.constant 0.000000e+00 : f32
    %232 = vector.broadcast %cst_102 : f32 to vector<8x128xf32>
    %233 = arith.select %227, %224, %232 : vector<8x128xi1>, vector<8x128xf32>
    %234 = vector.shape_cast %233 : vector<8x128xf32> to vector<8x1x128xf32>
    %c0_103 = arith.constant 0 : index
    %c4_104 = arith.constant 4 : index
    %c0_105 = arith.constant 0 : index
    %235 = vector.load %arg11[%c0_103, %c4_104, %c0_105] : memref<8x8x128xf32, #tpu.memory_space<vmem>>, vector<8x1x128xf32>
    tpu.vector_store %arg11[%c0_103, %c4_104, %c0_105], %234 {strides = array<i32>} : memref<8x8x128xf32, #tpu.memory_space<vmem>>, vector<8x1x128xf32>,
    %c0_106 = arith.constant 0 : index
    %c0_107 = arith.constant 0 : index
    %236 = vector.load %arg15[%c0_106, %c0_107] : memref<8x128xf32, #tpu.memory_space<vmem>>, vector<8x128xf32>
    %c0_108 = arith.constant 0 : index
    %c0_109 = arith.constant 0 : index
    %237 = vector.load %arg16[%c0_108, %c0_109] : memref<8x128xf32, #tpu.memory_space<vmem>>, vector<8x128xf32>
    %c5 = arith.constant 5 : index
    %c0_110 = arith.constant 0 : index
    %c0_111 = arith.constant 0 : index
    %238 = vector.load %arg18[%c5, %c0_110, %c0_111] : memref<8x8x512xbf16, #tpu.memory_space<vmem>>, vector<1x8x512xbf16>
    %239 = vector.shape_cast %238 : vector<1x8x512xbf16> to vector<8x512xbf16>
    %240 = arith.extf %239 : vector<8x512xbf16> to vector<8x512xf32>
    %241 = arith.truncf %236 : vector<8x128xf32> to vector<8x128xbf16>
    %cst_112 = arith.constant dense<0.000000e+00> : vector<8x512xf32>
    %242 = tpu.matmul %241, %13, %cst_112 {dimension_numbers = #tpu.dot_dimension_numbers<[1], [0], [0], [1], [0, 0, 1, 1], [], []>} : vector<8x128xbf16>, vector<128x512xbf16>, vector<8x512xf32> -> vector<8x512xf32>
    %243 = arith.addf %240, %242 : vector<8x512xf32>
    %244 = vector.extract_strided_slice %243 {offsets = [0, 0], sizes = [8, 128], strides = [1, 1]} : vector<8x512xf32> to vector<8x128xf32>
    %245 = arith.negf %244 : vector<8x128xf32>
    %246 = math.exp %245 : vector<8x128xf32>
    %cst_113 = arith.constant 1.000000e+00 : f32
    %247 = vector.broadcast %cst_113 : f32 to vector<8x128xf32>
    %248 = arith.addf %247, %246 : vector<8x128xf32>
    %249 = arith.divf %247, %248 : vector<8x128xf32>
    %250 = vector.extract_strided_slice %243 {offsets = [0, 128], sizes = [8, 128], strides = [1, 1]} : vector<8x512xf32> to vector<8x128xf32>
    %251 = arith.negf %250 : vector<8x128xf32>
    %252 = math.exp %251 : vector<8x128xf32>
    %cst_114 = arith.constant 1.000000e+00 : f32
    %253 = vector.broadcast %cst_114 : f32 to vector<8x128xf32>
    %254 = arith.addf %253, %252 : vector<8x128xf32>
    %255 = arith.divf %253, %254 : vector<8x128xf32>
    %256 = vector.extract_strided_slice %243 {offsets = [0, 256], sizes = [8, 128], strides = [1, 1]} : vector<8x512xf32> to vector<8x128xf32>
    %257 = math.tanh %256 : vector<8x128xf32>
    %258 = vector.extract_strided_slice %243 {offsets = [0, 384], sizes = [8, 128], strides = [1, 1]} : vector<8x512xf32> to vector<8x128xf32>
    %259 = arith.negf %258 : vector<8x128xf32>
    %260 = math.exp %259 : vector<8x128xf32>
    %cst_115 = arith.constant 1.000000e+00 : f32
    %261 = vector.broadcast %cst_115 : f32 to vector<8x128xf32>
    %262 = arith.addf %261, %260 : vector<8x128xf32>
    %263 = arith.divf %261, %262 : vector<8x128xf32>
    %264 = arith.mulf %255, %237 : vector<8x128xf32>
    %265 = arith.mulf %249, %257 : vector<8x128xf32>
    %266 = arith.addf %264, %265 : vector<8x128xf32>
    %267 = math.tanh %266 : vector<8x128xf32>
    %268 = arith.mulf %263, %267 : vector<8x128xf32>
    %c5_i32 = arith.constant 5 : i32
    %269 = arith.addi %15, %c5_i32 : i32
    %270 = vector.broadcast %269 : i32 to vector<8x128xi32>
    %271 = arith.cmpi sgt, %14, %270 : vector<8x128xi32>
    %272 = arith.select %271, %266, %237 : vector<8x128xi1>, vector<8x128xf32>
    %c0_116 = arith.constant 0 : index
    %c0_117 = arith.constant 0 : index
    %273 = vector.load %arg16[%c0_116, %c0_117] : memref<8x128xf32, #tpu.memory_space<vmem>>, vector<8x128xf32>
    tpu.vector_store %arg16[%c0_116, %c0_117], %272 {strides = array<i32>} : memref<8x128xf32, #tpu.memory_space<vmem>>, vector<8x128xf32>,
    %274 = arith.select %271, %268, %236 : vector<8x128xi1>, vector<8x128xf32>
    %c0_118 = arith.constant 0 : index
    %c0_119 = arith.constant 0 : index
    %275 = vector.load %arg15[%c0_118, %c0_119] : memref<8x128xf32, #tpu.memory_space<vmem>>, vector<8x128xf32>
    tpu.vector_store %arg15[%c0_118, %c0_119], %274 {strides = array<i32>} : memref<8x128xf32, #tpu.memory_space<vmem>>, vector<8x128xf32>,
    %cst_120 = arith.constant 0.000000e+00 : f32
    %276 = vector.broadcast %cst_120 : f32 to vector<8x128xf32>
    %277 = arith.select %271, %268, %276 : vector<8x128xi1>, vector<8x128xf32>
    %278 = vector.shape_cast %277 : vector<8x128xf32> to vector<8x1x128xf32>
    %c0_121 = arith.constant 0 : index
    %c5_122 = arith.constant 5 : index
    %c0_123 = arith.constant 0 : index
    %279 = vector.load %arg11[%c0_121, %c5_122, %c0_123] : memref<8x8x128xf32, #tpu.memory_space<vmem>>, vector<8x1x128xf32>
    tpu.vector_store %arg11[%c0_121, %c5_122, %c0_123], %278 {strides = array<i32>} : memref<8x8x128xf32, #tpu.memory_space<vmem>>, vector<8x1x128xf32>,
    %c0_124 = arith.constant 0 : index
    %c0_125 = arith.constant 0 : index
    %280 = vector.load %arg15[%c0_124, %c0_125] : memref<8x128xf32, #tpu.memory_space<vmem>>, vector<8x128xf32>
    %c0_126 = arith.constant 0 : index
    %c0_127 = arith.constant 0 : index
    %281 = vector.load %arg16[%c0_126, %c0_127] : memref<8x128xf32, #tpu.memory_space<vmem>>, vector<8x128xf32>
    %c6 = arith.constant 6 : index
    %c0_128 = arith.constant 0 : index
    %c0_129 = arith.constant 0 : index
    %282 = vector.load %arg18[%c6, %c0_128, %c0_129] : memref<8x8x512xbf16, #tpu.memory_space<vmem>>, vector<1x8x512xbf16>
    %283 = vector.shape_cast %282 : vector<1x8x512xbf16> to vector<8x512xbf16>
    %284 = arith.extf %283 : vector<8x512xbf16> to vector<8x512xf32>
    %285 = arith.truncf %280 : vector<8x128xf32> to vector<8x128xbf16>
    %cst_130 = arith.constant dense<0.000000e+00> : vector<8x512xf32>
    %286 = tpu.matmul %285, %13, %cst_130 {dimension_numbers = #tpu.dot_dimension_numbers<[1], [0], [0], [1], [0, 0, 1, 1], [], []>} : vector<8x128xbf16>, vector<128x512xbf16>, vector<8x512xf32> -> vector<8x512xf32>
    %287 = arith.addf %284, %286 : vector<8x512xf32>
    %288 = vector.extract_strided_slice %287 {offsets = [0, 0], sizes = [8, 128], strides = [1, 1]} : vector<8x512xf32> to vector<8x128xf32>
    %289 = arith.negf %288 : vector<8x128xf32>
    %290 = math.exp %289 : vector<8x128xf32>
    %cst_131 = arith.constant 1.000000e+00 : f32
    %291 = vector.broadcast %cst_131 : f32 to vector<8x128xf32>
    %292 = arith.addf %291, %290 : vector<8x128xf32>
    %293 = arith.divf %291, %292 : vector<8x128xf32>
    %294 = vector.extract_strided_slice %287 {offsets = [0, 128], sizes = [8, 128], strides = [1, 1]} : vector<8x512xf32> to vector<8x128xf32>
    %295 = arith.negf %294 : vector<8x128xf32>
    %296 = math.exp %295 : vector<8x128xf32>
    %cst_132 = arith.constant 1.000000e+00 : f32
    %297 = vector.broadcast %cst_132 : f32 to vector<8x128xf32>
    %298 = arith.addf %297, %296 : vector<8x128xf32>
    %299 = arith.divf %297, %298 : vector<8x128xf32>
    %300 = vector.extract_strided_slice %287 {offsets = [0, 256], sizes = [8, 128], strides = [1, 1]} : vector<8x512xf32> to vector<8x128xf32>
    %301 = math.tanh %300 : vector<8x128xf32>
    %302 = vector.extract_strided_slice %287 {offsets = [0, 384], sizes = [8, 128], strides = [1, 1]} : vector<8x512xf32> to vector<8x128xf32>
    %303 = arith.negf %302 : vector<8x128xf32>
    %304 = math.exp %303 : vector<8x128xf32>
    %cst_133 = arith.constant 1.000000e+00 : f32
    %305 = vector.broadcast %cst_133 : f32 to vector<8x128xf32>
    %306 = arith.addf %305, %304 : vector<8x128xf32>
    %307 = arith.divf %305, %306 : vector<8x128xf32>
    %308 = arith.mulf %299, %281 : vector<8x128xf32>
    %309 = arith.mulf %293, %301 : vector<8x128xf32>
    %310 = arith.addf %308, %309 : vector<8x128xf32>
    %311 = math.tanh %310 : vector<8x128xf32>
    %312 = arith.mulf %307, %311 : vector<8x128xf32>
    %c6_i32 = arith.constant 6 : i32
    %313 = arith.addi %15, %c6_i32 : i32
    %314 = vector.broadcast %313 : i32 to vector<8x128xi32>
    %315 = arith.cmpi sgt, %14, %314 : vector<8x128xi32>
    %316 = arith.select %315, %310, %281 : vector<8x128xi1>, vector<8x128xf32>
    %c0_134 = arith.constant 0 : index
    %c0_135 = arith.constant 0 : index
    %317 = vector.load %arg16[%c0_134, %c0_135] : memref<8x128xf32, #tpu.memory_space<vmem>>, vector<8x128xf32>
    tpu.vector_store %arg16[%c0_134, %c0_135], %316 {strides = array<i32>} : memref<8x128xf32, #tpu.memory_space<vmem>>, vector<8x128xf32>,
    %318 = arith.select %315, %312, %280 : vector<8x128xi1>, vector<8x128xf32>
    %c0_136 = arith.constant 0 : index
    %c0_137 = arith.constant 0 : index
    %319 = vector.load %arg15[%c0_136, %c0_137] : memref<8x128xf32, #tpu.memory_space<vmem>>, vector<8x128xf32>
    tpu.vector_store %arg15[%c0_136, %c0_137], %318 {strides = array<i32>} : memref<8x128xf32, #tpu.memory_space<vmem>>, vector<8x128xf32>,
    %cst_138 = arith.constant 0.000000e+00 : f32
    %320 = vector.broadcast %cst_138 : f32 to vector<8x128xf32>
    %321 = arith.select %315, %312, %320 : vector<8x128xi1>, vector<8x128xf32>
    %322 = vector.shape_cast %321 : vector<8x128xf32> to vector<8x1x128xf32>
    %c0_139 = arith.constant 0 : index
    %c6_140 = arith.constant 6 : index
    %c0_141 = arith.constant 0 : index
    %323 = vector.load %arg11[%c0_139, %c6_140, %c0_141] : memref<8x8x128xf32, #tpu.memory_space<vmem>>, vector<8x1x128xf32>
    tpu.vector_store %arg11[%c0_139, %c6_140, %c0_141], %322 {strides = array<i32>} : memref<8x8x128xf32, #tpu.memory_space<vmem>>, vector<8x1x128xf32>,
    %c0_142 = arith.constant 0 : index
    %c0_143 = arith.constant 0 : index
    %324 = vector.load %arg15[%c0_142, %c0_143] : memref<8x128xf32, #tpu.memory_space<vmem>>, vector<8x128xf32>
    %c0_144 = arith.constant 0 : index
    %c0_145 = arith.constant 0 : index
    %325 = vector.load %arg16[%c0_144, %c0_145] : memref<8x128xf32, #tpu.memory_space<vmem>>, vector<8x128xf32>
    %c7 = arith.constant 7 : index
    %c0_146 = arith.constant 0 : index
    %c0_147 = arith.constant 0 : index
    %326 = vector.load %arg18[%c7, %c0_146, %c0_147] : memref<8x8x512xbf16, #tpu.memory_space<vmem>>, vector<1x8x512xbf16>
    %327 = vector.shape_cast %326 : vector<1x8x512xbf16> to vector<8x512xbf16>
    %328 = arith.extf %327 : vector<8x512xbf16> to vector<8x512xf32>
    %329 = arith.truncf %324 : vector<8x128xf32> to vector<8x128xbf16>
    %cst_148 = arith.constant dense<0.000000e+00> : vector<8x512xf32>
    %330 = tpu.matmul %329, %13, %cst_148 {dimension_numbers = #tpu.dot_dimension_numbers<[1], [0], [0], [1], [0, 0, 1, 1], [], []>} : vector<8x128xbf16>, vector<128x512xbf16>, vector<8x512xf32> -> vector<8x512xf32>
    %331 = arith.addf %328, %330 : vector<8x512xf32>
    %332 = vector.extract_strided_slice %331 {offsets = [0, 0], sizes = [8, 128], strides = [1, 1]} : vector<8x512xf32> to vector<8x128xf32>
    %333 = arith.negf %332 : vector<8x128xf32>
    %334 = math.exp %333 : vector<8x128xf32>
    %cst_149 = arith.constant 1.000000e+00 : f32
    %335 = vector.broadcast %cst_149 : f32 to vector<8x128xf32>
    %336 = arith.addf %335, %334 : vector<8x128xf32>
    %337 = arith.divf %335, %336 : vector<8x128xf32>
    %338 = vector.extract_strided_slice %331 {offsets = [0, 128], sizes = [8, 128], strides = [1, 1]} : vector<8x512xf32> to vector<8x128xf32>
    %339 = arith.negf %338 : vector<8x128xf32>
    %340 = math.exp %339 : vector<8x128xf32>
    %cst_150 = arith.constant 1.000000e+00 : f32
    %341 = vector.broadcast %cst_150 : f32 to vector<8x128xf32>
    %342 = arith.addf %341, %340 : vector<8x128xf32>
    %343 = arith.divf %341, %342 : vector<8x128xf32>
    %344 = vector.extract_strided_slice %331 {offsets = [0, 256], sizes = [8, 128], strides = [1, 1]} : vector<8x512xf32> to vector<8x128xf32>
    %345 = math.tanh %344 : vector<8x128xf32>
    %346 = vector.extract_strided_slice %331 {offsets = [0, 384], sizes = [8, 128], strides = [1, 1]} : vector<8x512xf32> to vector<8x128xf32>
    %347 = arith.negf %346 : vector<8x128xf32>
    %348 = math.exp %347 : vector<8x128xf32>
    %cst_151 = arith.constant 1.000000e+00 : f32
    %349 = vector.broadcast %cst_151 : f32 to vector<8x128xf32>
    %350 = arith.addf %349, %348 : vector<8x128xf32>
    %351 = arith.divf %349, %350 : vector<8x128xf32>
    %352 = arith.mulf %343, %325 : vector<8x128xf32>
    %353 = arith.mulf %337, %345 : vector<8x128xf32>
    %354 = arith.addf %352, %353 : vector<8x128xf32>
    %355 = math.tanh %354 : vector<8x128xf32>
    %356 = arith.mulf %351, %355 : vector<8x128xf32>
    %c7_i32 = arith.constant 7 : i32
    %357 = arith.addi %15, %c7_i32 : i32
    %358 = vector.broadcast %357 : i32 to vector<8x128xi32>
    %359 = arith.cmpi sgt, %14, %358 : vector<8x128xi32>
    %360 = arith.select %359, %354, %325 : vector<8x128xi1>, vector<8x128xf32>
    %c0_152 = arith.constant 0 : index
    %c0_153 = arith.constant 0 : index
    %361 = vector.load %arg16[%c0_152, %c0_153] : memref<8x128xf32, #tpu.memory_space<vmem>>, vector<8x128xf32>
    tpu.vector_store %arg16[%c0_152, %c0_153], %360 {strides = array<i32>} : memref<8x128xf32, #tpu.memory_space<vmem>>, vector<8x128xf32>,
    %362 = arith.select %359, %356, %324 : vector<8x128xi1>, vector<8x128xf32>
    %c0_154 = arith.constant 0 : index
    %c0_155 = arith.constant 0 : index
    %363 = vector.load %arg15[%c0_154, %c0_155] : memref<8x128xf32, #tpu.memory_space<vmem>>, vector<8x128xf32>
    tpu.vector_store %arg15[%c0_154, %c0_155], %362 {strides = array<i32>} : memref<8x128xf32, #tpu.memory_space<vmem>>, vector<8x128xf32>,
    %cst_156 = arith.constant 0.000000e+00 : f32
    %364 = vector.broadcast %cst_156 : f32 to vector<8x128xf32>
    %365 = arith.select %359, %356, %364 : vector<8x128xi1>, vector<8x128xf32>
    %366 = vector.shape_cast %365 : vector<8x128xf32> to vector<8x1x128xf32>
    %c0_157 = arith.constant 0 : index
    %c7_158 = arith.constant 7 : index
    %c0_159 = arith.constant 0 : index
    %367 = vector.load %arg11[%c0_157, %c7_158, %c0_159] : memref<8x8x128xf32, #tpu.memory_space<vmem>>, vector<8x1x128xf32>
    tpu.vector_store %arg11[%c0_157, %c7_158, %c0_159], %366 {strides = array<i32>} : memref<8x8x128xf32, #tpu.memory_space<vmem>>, vector<8x1x128xf32>,
    %c0_160 = arith.constant 0 : index
    %c0_161 = arith.constant 0 : index
    %368 = vector.load %arg15[%c0_160, %c0_161] : memref<8x128xf32, #tpu.memory_space<vmem>>, vector<8x128xf32>
    %c0_162 = arith.constant 0 : index
    %c0_163 = arith.constant 0 : index
    %369 = vector.load %arg12[%c0_162, %c0_163] : memref<8x128xf32, #tpu.memory_space<vmem>>, vector<8x128xf32>
    tpu.vector_store %arg12[%c0_162, %c0_163], %368 {strides = array<i32>} : memref<8x128xf32, #tpu.memory_space<vmem>>, vector<8x128xf32>,
    %c0_164 = arith.constant 0 : index
    %c0_165 = arith.constant 0 : index
    %370 = vector.load %arg16[%c0_164, %c0_165] : memref<8x128xf32, #tpu.memory_space<vmem>>, vector<8x128xf32>
    %c0_166 = arith.constant 0 : index
    %c0_167 = arith.constant 0 : index
    %371 = vector.load %arg13[%c0_166, %c0_167] : memref<8x128xf32, #tpu.memory_space<vmem>>, vector<8x128xf32>
    tpu.vector_store %arg13[%c0_166, %c0_167], %370 {strides = array<i32>} : memref<8x128xf32, #tpu.memory_space<vmem>>, vector<8x128xf32>,
    %c0_168 = arith.constant 0 : index
    %c0_169 = arith.constant 0 : index
    %c0_170 = arith.constant 0 : index
    %372 = vector.load %arg11[%c0_168, %c0_169, %c0_170] : memref<8x8x128xf32, #tpu.memory_space<vmem>>, vector<8x8x128xf32>
    %373 = vector.shape_cast %372 : vector<8x8x128xf32> to vector<64x128xf32>
    %374 = arith.truncf %373 : vector<64x128xf32> to vector<64x128xbf16>
    %c0_171 = arith.constant 0 : index
    %c0_172 = arith.constant 0 : index
    %375 = vector.load %arg9[%c0_171, %c0_172] : memref<128x128xbf16, #tpu.memory_space<vmem>>, vector<128x128xbf16>
    %cst_173 = arith.constant dense<0.000000e+00> : vector<64x128xf32>
    %376 = tpu.matmul %374, %375, %cst_173 {dimension_numbers = #tpu.dot_dimension_numbers<[1], [0], [0], [1], [0, 0, 1, 1], [], []>} : vector<64x128xbf16>, vector<128x128xbf16>, vector<64x128xf32> -> vector<64x128xf32>
    %c0_174 = arith.constant 0 : index
    %c0_175 = arith.constant 0 : index
    %377 = vector.load %arg10[%c0_174, %c0_175] : memref<1x128xf32, #tpu.memory_space<vmem>>, vector<1x128xf32>
    %378 = vector.broadcast %377 : vector<1x128xf32> to vector<64x128xf32>
    %379 = arith.addf %376, %378 : vector<64x128xf32>
    %380 = vector.shape_cast %379 : vector<64x128xf32> to vector<8x8x128xf32>
    %c0_176 = arith.constant 0 : index
    %c0_177 = arith.constant 0 : index
    %c0_178 = arith.constant 0 : index
    %381 = vector.load %arg14[%c0_176, %c0_177, %c0_178] : memref<8x8x128xf32, #tpu.memory_space<vmem>>, vector<8x8x128xf32>
    tpu.vector_store %arg14[%c0_176, %c0_177, %c0_178], %380 {strides = array<i32>} : memref<8x8x128xf32, #tpu.memory_space<vmem>>, vector<8x8x128xf32>,
    return
  }
  func.func @transform_0(%arg0: i32, %arg1: i32, %arg2: memref<16xi32, #tpu.memory_space<smem>>) -> (i32, i32, i32) {
    %c0_i32 = arith.constant 0 : i32
    %c0_i32_0 = arith.constant 0 : i32
    return %arg1, %arg0, %c0_i32 : i32, i32, i32
  }
  func.func @transform_1(%arg0: i32, %arg1: i32, %arg2: memref<16xi32, #tpu.memory_space<smem>>) -> (i32, i32) {
    %c0_i32 = arith.constant 0 : i32
    %c0_i32_0 = arith.constant 0 : i32
    %c0_i32_1 = arith.constant 0 : i32
    return %c0_i32, %c0_i32_0 : i32, i32
  }
  func.func @transform_2(%arg0: i32, %arg1: i32, %arg2: memref<16xi32, #tpu.memory_space<smem>>) -> (i32, i32) {
    %c0_i32 = arith.constant 0 : i32
    %c0_i32_0 = arith.constant 0 : i32
    %c0_i32_1 = arith.constant 0 : i32
    return %c0_i32, %c0_i32_0 : i32, i32
  }
  func.func @transform_3(%arg0: i32, %arg1: i32, %arg2: memref<16xi32, #tpu.memory_space<smem>>) -> (i32, i32) {
    %c0_i32 = arith.constant 0 : i32
    %c0_i32_0 = arith.constant 0 : i32
    %c0_i32_1 = arith.constant 0 : i32
    return %c0_i32, %c0_i32_0 : i32, i32
  }
  func.func @transform_4(%arg0: i32, %arg1: i32, %arg2: memref<16xi32, #tpu.memory_space<smem>>) -> (i32, i32) {
    %c0_i32 = arith.constant 0 : i32
    %c0_i32_0 = arith.constant 0 : i32
    return %arg0, %c0_i32 : i32, i32
  }
  func.func @transform_5(%arg0: i32, %arg1: i32, %arg2: memref<16xi32, #tpu.memory_space<smem>>) -> (i32, i32) {
    %c0_i32 = arith.constant 0 : i32
    %c0_i32_0 = arith.constant 0 : i32
    return %arg0, %c0_i32 : i32, i32
  }
  func.func @transform_6(%arg0: i32, %arg1: i32, %arg2: memref<16xi32, #tpu.memory_space<smem>>) -> (i32, i32) {
    %c0_i32 = arith.constant 0 : i32
    %c0_i32_0 = arith.constant 0 : i32
    %c0_i32_1 = arith.constant 0 : i32
    return %c0_i32, %c0_i32_0 : i32, i32
  }
  func.func @transform_7(%arg0: i32, %arg1: i32, %arg2: memref<16xi32, #tpu.memory_space<smem>>) -> (i32, i32) {
    %c0_i32 = arith.constant 0 : i32
    %c0_i32_0 = arith.constant 0 : i32
    %c0_i32_1 = arith.constant 0 : i32
    return %c0_i32, %c0_i32_0 : i32, i32
  }
  func.func @transform_8(%arg0: i32, %arg1: i32, %arg2: memref<16xi32, #tpu.memory_space<smem>>) -> (i32, i32, i32) {
    %c0_i32 = arith.constant 0 : i32
    %c0_i32_0 = arith.constant 0 : i32
    return %arg0, %arg1, %c0_i32 : i32, i32, i32
  }
  func.func @transform_9(%arg0: i32, %arg1: i32, %arg2: memref<16xi32, #tpu.memory_space<smem>>) -> (i32, i32) {
    %c0_i32 = arith.constant 0 : i32
    %c0_i32_0 = arith.constant 0 : i32
    return %arg0, %c0_i32 : i32, i32
  }
  func.func @transform_10(%arg0: i32, %arg1: i32, %arg2: memref<16xi32, #tpu.memory_space<smem>>) -> (i32, i32) {
    %c0_i32 = arith.constant 0 : i32
    %c0_i32_0 = arith.constant 0 : i32
    return %arg0, %c0_i32 : i32, i32
  }
  func.func @transform_11(%arg0: i32, %arg1: i32, %arg2: memref<16xi32, #tpu.memory_space<smem>>) -> (i32, i32, i32) {
    %c0_i32 = arith.constant 0 : i32
    %c0_i32_0 = arith.constant 0 : i32
    return %arg0, %arg1, %c0_i32 : i32, i32, i32
  }
}

</mosaic_0001>

<llo_original>
// kernel: tpu_custom_call.1
$region0: #{tpu_custom_call.1}
  #allocation0 [shape = 'u32[]', space=smem, size = 0x4, offset = 0x4, fixed_abs, tag = 'smem constant byte address 0x4 - core index']
  #allocation1 [shape = 'u32[144,128]{1,0:T(1,128)}', space=vmem, size = 0x12000, scoped, tag = 'internal scratch']
  #allocation2 [shape = 'f32[8,128]{1,0:T(8,128)}', space=vmem, size = 0x1000, scoped, tag = 'scratch operand']
  #allocation3 [shape = 'f32[8,128]{1,0:T(8,128)}', space=vmem, size = 0x1000, scoped, tag = 'scratch operand']
  #allocation4 [shape = 's32[8,128]{1,0:T(8,128)}', space=vmem, size = 0x1000, scoped, tag = 'scratch operand']
  #allocation5 [shape = 'bf16[8,8,512]{2,1,0:T(8,128)(2,1)}', space=vmem, size = 0x10000, scoped, tag = 'scratch operand']
  #allocation6 [shape = 's32[1]{0}', space=sflag, size = 0x4, scoped, tag = 'scoped memory for tpu_custom_call.1']
  #allocation7 [shape = 'u8[512]{0}', space=smem, size = 0x200, scoped, tag = 'prefetched SMEM operand 0']
  %s0 = inlined_call_operand.hbm [shape: s32[16], index: 0, kind: input, shape index: {}]
  %s1 = inlined_call_operand.hbm [shape: bf16[8,16,64], index: 1, kind: input, shape index: {}]
  %s2 = inlined_call_operand.hbm [shape: bf16[64,512], index: 2, kind: input, shape index: {}]
  %s3 = inlined_call_operand.hbm [shape: bf16[128,512], index: 3, kind: input, shape index: {}]
  %s4 = inlined_call_operand.vmem [shape: f32[1,512], index: 4, kind: input, shape index: {}]
  %s5 = inlined_call_operand.hbm [shape: f32[16,128], index: 5, kind: input, shape index: {}]
  %s6 = inlined_call_operand.hbm [shape: f32[16,128], index: 6, kind: input, shape index: {}]
  %s7 = inlined_call_operand.hbm [shape: bf16[128,128], index: 7, kind: input, shape index: {}]
  %s8 = inlined_call_operand.vmem [shape: f32[1,128], index: 8, kind: input, shape index: {}]
  %s9 = inlined_call_operand.hbm [shape: f32[16,8,128], index: 9, kind: output, shape index: {0}]
  %s10 = inlined_call_operand.hbm [shape: f32[16,128], index: 10, kind: output, shape index: {1}]
  %s11 = inlined_call_operand.hbm [shape: f32[16,128], index: 11, kind: output, shape index: {2}]
  %s12 = inlined_call_operand.hbm [shape: f32[16,8,128], index: 12, kind: output, shape index: {3}]
  %13 = xla_tuple %s9, %s10, %s11, %s12
  %s14 = sld [smem:[#allocation0]]
  $region117: #{tpu_custom_call.1} parent=0
    _
  %s16 = ssub.s32 1, %s14
  %s17 = scalar_select 0, %s16, %s14
  %19 = dma.hbm_to_smem %s0, 16, [#allocation7], [#allocation6]
  %20 = dma.done [#allocation6], 16
  %21 = sfence
  $region1: #{tpu_custom_call.1} parent=0
    #allocation8 [shape = 'u8[32768]{0}', space=vmem, size = 0x8000, scoped, tag = 'input window, operand 1']
    #allocation9 [shape = 's32[2]{0}', space=sflag, size = 0x8, scoped, tag = 'scoped memory for tpu_custom_call.1']
    #allocation10 [shape = 's32[2]{0}', space=sflag, size = 0x8, scoped, tag = 'scoped memory for tpu_custom_call.1']
    #allocation11 [shape = 'u8[65536]{0}', space=vmem, size = 0x10000, scoped, tag = 'input window, operand 2, single buffered']
    #allocation12 [shape = 's32[1]{0}', space=sflag, size = 0x4, scoped, tag = 'scoped memory for tpu_custom_call.1']
    #allocation13 [shape = 'u8[131072]{0}', space=vmem, size = 0x20000, scoped, tag = 'input window, operand 3, single buffered']
    #allocation14 [shape = 'u8[8192]{0}', space=vmem, size = 0x2000, scoped, tag = 'input window, operand 5']
    #allocation15 [shape = 's32[2]{0}', space=sflag, size = 0x8, scoped, tag = 'scoped memory for tpu_custom_call.1']
    #allocation16 [shape = 'u8[8192]{0}', space=vmem, size = 0x2000, scoped, tag = 'input window, operand 6']
    #allocation17 [shape = 'u8[32768]{0}', space=vmem, size = 0x8000, scoped, tag = 'input window, operand 7, single buffered']
    #allocation18 [shape = 's32[1]{0}', space=sflag, size = 0x4, scoped, tag = 'scoped memory for tpu_custom_call.1']
    #allocation19 [shape = 'u8[65536]{0}', space=vmem, size = 0x10000, scoped, tag = 'output window, operand 0']
    #allocation20 [shape = 'u8[8192]{0}', space=vmem, size = 0x2000, scoped, tag = 'output window, operand 1']
    #allocation21 [shape = 's32[2]{0}', space=sflag, size = 0x8, scoped, tag = 'scoped memory for tpu_custom_call.1']
    #allocation22 [shape = 'u8[8192]{0}', space=vmem, size = 0x2000, scoped, tag = 'output window, operand 2']
    #allocation23 [shape = 'u8[65536]{0}', space=vmem, size = 0x10000, scoped, tag = 'output window, operand 3']
    #allocation24 [shape = 's32[2]{0}', space=sflag, size = 0x8, scoped, tag = 'scoped memory for tpu_custom_call.1']
    %22 = vsyncpa [#allocation9], 0
    %s23 = scalar_lea.sflag [#allocation9], 1
    %24 = vsyncpa %s23, 0
    %25 = vsyncpa [#allocation12], 0
    %26 = vsyncpa [#allocation15], 0
    %s27 = scalar_lea.sflag [#allocation15], 1
    %28 = vsyncpa %s27, 0
    %29 = vsyncpa [#allocation18], 0
    %30 = vsyncpa [#allocation10], 0
    %s31 = scalar_lea.sflag [#allocation10], 1
    %32 = vsyncpa %s31, 0
    %33 = vsyncpa [#allocation21], 0
    %s34 = scalar_lea.sflag [#allocation21], 1
    %35 = vsyncpa %s34, 0
    %36 = vsyncpa [#allocation24], 0
    %s37 = scalar_lea.sflag [#allocation24], 1
    %38 = vsyncpa %s37, 0
    loop: start=0, step=1, limit=4
    $region2: #{tpu_custom_call.1} parent=1 // loop_pre_header
      _
    $region3: #{tpu_custom_call.1} parent=1 // loop_header
      %s40 = sphi 0, %s44
      %p41 = scmp.ge.s32.totalorder %s40, 4
      %s47 = sphi 0, %s59
      %s48 = sphi 0, %s55
      %s49 = sphi 0, %s47
      %s50 = sphi 0, %s48
      %s51 = sphi 0, %s49
      %s52 = sphi 0, %s50
      %s64 = sphi 0, %s66
      %s67 = sphi 0, %s64
      %s68 = sphi 0, %s67
      %s84 = sphi 0, %s68
      %s88 = sphi 0, %s88
      %s90 = sphi 0, %s88
      %s91 = sphi 0, %s90
      %s105 = sphi 0, %s91
      %s109 = sphi 0, %s109
      %s111 = sphi 0, %s109
      %s112 = sphi 0, %s111
      %s126 = sphi 0, %s112
      %s130 = sphi 0, %s130
      %s132 = sphi 0, %s130
      %s133 = sphi 0, %s132
      %s147 = sphi 0, %s133
      %s153 = sphi 0, %s155
      %s156 = sphi 0, %s153
      %s157 = sphi 0, %s156
      %s173 = sphi 0, %s157
      %s179 = sphi 0, %s181
      %s182 = sphi 0, %s179
      %s183 = sphi 0, %s182
      %s199 = sphi 0, %s183
      %s203 = sphi 0, %s203
      %s205 = sphi 0, %s203
      %s206 = sphi 0, %s205
      %s220 = sphi 0, %s206
      %s224 = sphi 0, %s224
      %s226 = sphi 0, %s224
      %s227 = sphi 0, %s226
      %s241 = sphi 0, %s227
      %s249 = sphi 0, %s251
      %s252 = sphi 0, %s249
      %s253 = sphi 0, %s252
      %s269 = sphi 0, %s253
      %s275 = sphi 0, %s277
      %s278 = sphi 0, %s275
      %s279 = sphi 0, %s278
      %s295 = sphi 0, %s279
      %s301 = sphi 0, %s303
      %s304 = sphi 0, %s301
      %s305 = sphi 0, %s304
      %s321 = sphi 0, %s305
      %s329 = sphi 0, %s331
      %s332 = sphi 0, %s329
      %s333 = sphi 0, %s332
      %s349 = sphi 0, %s333
    $region4: #{tpu_custom_call.1} parent=1 // loop_header_branch
      %43 = sbr.rel (%p41) target = $region8
    $region5: #{tpu_custom_call.1} parent=1 // loop_body
      %s45 = ssub.s32 %s40, 1
      %s46 = ssub.s32 %s40, 2
      %s53 = sadd.s32 1, %s48
      %p54 = scmp.ge.s32.totalorder %s53, 1
      %s55 = scalar_select %p54, 0, %s53
      %s56 = sadd.s32 1, %s47
      %s57 = scalar_select %p54, %s56, %s47
      %p58 = scmp.ge.s32.totalorder %s57, 2
      %s59 = scalar_select %p58, 0, %s57
      %s60 = ssub.s32 %s48, %s55
      %s61 = ssub.s32 %s47, %s59
      %s62 = sor.u32 %s60, %s61
      %p63 = scmp.eq.s32.totalorder %s62, 0
      %s65 = sadd.s32 %s64, 1
      %s66 = scalar_select %p63, %s64, %s65
      %p69 = pneg %p63
      %p70 = scmp.eq.s32.totalorder %s40, 1
      %p71 = por %p69, %p70
      %p72 = scmp.ne.s32.totalorder %s64, %s67
      %p73 = scmp.eq.s32.totalorder %s40, 0
      %p74 = por %p72, %p73
      %p75 = scmp.ne.s32.totalorder %s64, %s67
      %p76 = scmp.eq.s32.totalorder %s45, 1
      %p77 = por %p75, %p76
      %p78 = scmp.ne.s32.totalorder %s67, %s68
      %p79 = scmp.eq.s32.totalorder %s45, 0
      %p80 = por %p78, %p79
      %p81 = scmp.ne.s32.totalorder %s67, %s68
      %p82 = scmp.eq.s32.totalorder %s46, 1
      %p83 = por %p81, %p82
      %p85 = scmp.ne.s32.totalorder %s68, %s84
      %p86 = scmp.eq.s32.totalorder %s46, 0
      %p87 = por %p85, %p86
      %s89 = sadd.s32 %s88, 1
      %p92 = scmp.eq.s32.totalorder %s40, 1
      %p93 = scmp.ne.s32.totalorder %s88, %s90
      %p94 = scmp.eq.s32.totalorder %s40, 0
      %p95 = por %p93, %p94
      %p96 = scmp.ne.s32.totalorder %s88, %s90
      %p97 = scmp.eq.s32.totalorder %s45, 1
      %p98 = por %p96, %p97
      %p99 = scmp.ne.s32.totalorder %s90, %s91
      %p100 = scmp.eq.s32.totalorder %s45, 0
      %p101 = por %p99, %p100
      %p102 = scmp.ne.s32.totalorder %s90, %s91
      %p103 = scmp.eq.s32.totalorder %s46, 1
      %p104 = por %p102, %p103
      %p106 = scmp.ne.s32.totalorder %s91, %s105
      %p107 = scmp.eq.s32.totalorder %s46, 0
      %p108 = por %p106, %p107
      %s110 = sadd.s32 %s109, 1
      %p113 = scmp.eq.s32.totalorder %s40, 1
      %p114 = scmp.ne.s32.totalorder %s109, %s111
      %p115 = scmp.eq.s32.totalorder %s40, 0
      %p116 = por %p114, %p115
      %p117 = scmp.ne.s32.totalorder %s109, %s111
      %p118 = scmp.eq.s32.totalorder %s45, 1
      %p119 = por %p117, %p118
      %p120 = scmp.ne.s32.totalorder %s111, %s112
      %p121 = scmp.eq.s32.totalorder %s45, 0
      %p122 = por %p120, %p121
      %p123 = scmp.ne.s32.totalorder %s111, %s112
      %p124 = scmp.eq.s32.totalorder %s46, 1
      %p125 = por %p123, %p124
      %p127 = scmp.ne.s32.totalorder %s112, %s126
      %p128 = scmp.eq.s32.totalorder %s46, 0
      %p129 = por %p127, %p128
      %s131 = sadd.s32 %s130, 1
      %p134 = scmp.eq.s32.totalorder %s40, 1
      %p135 = scmp.ne.s32.totalorder %s130, %s132
      %p136 = scmp.eq.s32.totalorder %s40, 0
      %p137 = por %p135, %p136
      %p138 = scmp.ne.s32.totalorder %s130, %s132
      %p139 = scmp.eq.s32.totalorder %s45, 1
      %p140 = por %p138, %p139
      %p141 = scmp.ne.s32.totalorder %s132, %s133
      %p142 = scmp.eq.s32.totalorder %s45, 0
      %p143 = por %p141, %p142
      %p144 = scmp.ne.s32.totalorder %s132, %s133
      %p145 = scmp.eq.s32.totalorder %s46, 1
      %p146 = por %p144, %p145
      %p148 = scmp.ne.s32.totalorder %s133, %s147
      %p149 = scmp.eq.s32.totalorder %s46, 0
      %p150 = por %p148, %p149
      %s151 = ssub.s32 %s47, %s59
      %p152 = scmp.eq.s32.totalorder %s151, 0
      %s154 = sadd.s32 %s153, 1
      %s155 = scalar_select %p152, %s153, %s154
      %p158 = pneg %p152
      %p159 = scmp.eq.s32.totalorder %s40, 1
      %p160 = por %p158, %p159
      %p161 = scmp.ne.s32.totalorder %s153, %s156
      %p162 = scmp.eq.s32.totalorder %s40, 0
      %p163 = por %p161, %p162
      %p164 = scmp.ne.s32.totalorder %s153, %s156
      %p165 = scmp.eq.s32.totalorder %s45, 1
      %p166 = por %p164, %p165
      %p167 = scmp.ne.s32.totalorder %s156, %s157
      %p168 = scmp.eq.s32.totalorder %s45, 0
      %p169 = por %p167, %p168
      %p170 = scmp.ne.s32.totalorder %s156, %s157
      %p171 = scmp.eq.s32.totalorder %s46, 1
      %p172 = por %p170, %p171
      %p174 = scmp.ne.s32.totalorder %s157, %s173
      %p175 = scmp.eq.s32.totalorder %s46, 0
      %p176 = por %p174, %p175
      %s177 = ssub.s32 %s47, %s59
      %p178 = scmp.eq.s32.totalorder %s177, 0
      %s180 = sadd.s32 %s179, 1
      %s181 = scalar_select %p178, %s179, %s180
      %p184 = pneg %p178
      %p185 = scmp.eq.s32.totalorder %s40, 1
      %p186 = por %p184, %p185
      %p187 = scmp.ne.s32.totalorder %s179, %s182
      %p188 = scmp.eq.s32.totalorder %s40, 0
      %p189 = por %p187, %p188
      %p190 = scmp.ne.s32.totalorder %s179, %s182
      %p191 = scmp.eq.s32.totalorder %s45, 1
      %p192 = por %p190, %p191
      %p193 = scmp.ne.s32.totalorder %s182, %s183
      %p194 = scmp.eq.s32.totalorder %s45, 0
      %p195 = por %p193, %p194
      %p196 = scmp.ne.s32.totalorder %s182, %s183
      %p197 = scmp.eq.s32.totalorder %s46, 1
      %p198 = por %p196, %p197
      %p200 = scmp.ne.s32.totalorder %s183, %s199
      %p201 = scmp.eq.s32.totalorder %s46, 0
      %p202 = por %p200, %p201
      %s204 = sadd.s32 %s203, 1
      %p207 = scmp.eq.s32.totalorder %s40, 1
      %p208 = scmp.ne.s32.totalorder %s203, %s205
      %p209 = scmp.eq.s32.totalorder %s40, 0
      %p210 = por %p208, %p209
      %p211 = scmp.ne.s32.totalorder %s203, %s205
      %p212 = scmp.eq.s32.totalorder %s45, 1
      %p213 = por %p211, %p212
      %p214 = scmp.ne.s32.totalorder %s205, %s206
      %p215 = scmp.eq.s32.totalorder %s45, 0
      %p216 = por %p214, %p215
      %p217 = scmp.ne.s32.totalorder %s205, %s206
      %p218 = scmp.eq.s32.totalorder %s46, 1
      %p219 = por %p217, %p218
      %p221 = scmp.ne.s32.totalorder %s206, %s220
      %p222 = scmp.eq.s32.totalorder %s46, 0
      %p223 = por %p221, %p222
      %s225 = sadd.s32 %s224, 1
      %p228 = scmp.eq.s32.totalorder %s40, 1
      %p229 = scmp.ne.s32.totalorder %s224, %s226
      %p230 = scmp.eq.s32.totalorder %s40, 0
      %p231 = por %p229, %p230
      %p232 = scmp.ne.s32.totalorder %s224, %s226
      %p233 = scmp.eq.s32.totalorder %s45, 1
      %p234 = por %p232, %p233
      %p235 = scmp.ne.s32.totalorder %s226, %s227
      %p236 = scmp.eq.s32.totalorder %s45, 0
      %p237 = por %p235, %p236
      %p238 = scmp.ne.s32.totalorder %s226, %s227
      %p239 = scmp.eq.s32.totalorder %s46, 1
      %p240 = por %p238, %p239
      %p242 = scmp.ne.s32.totalorder %s227, %s241
      %p243 = scmp.eq.s32.totalorder %s46, 0
      %p244 = por %p242, %p243
      %s245 = ssub.s32 %s47, %s59
      %s246 = ssub.s32 %s48, %s55
      %s247 = sor.u32 %s245, %s246
      %p248 = scmp.eq.s32.totalorder %s247, 0
      %s250 = sadd.s32 %s249, 1
      %s251 = scalar_select %p248, %s249, %s250
      %p254 = pneg %p248
      %p255 = scmp.eq.s32.totalorder %s40, 1
      %p256 = por %p254, %p255
      %p257 = scmp.ne.s32.totalorder %s249, %s252
      %p258 = scmp.eq.s32.totalorder %s40, 0
      %p259 = por %p257, %p258
      %p260 = scmp.ne.s32.totalorder %s249, %s252
      %p261 = scmp.eq.s32.totalorder %s45, 1
      %p262 = por %p260, %p261
      %p263 = scmp.ne.s32.totalorder %s252, %s253
      %p264 = scmp.eq.s32.totalorder %s45, 0
      %p265 = por %p263, %p264
      %p266 = scmp.ne.s32.totalorder %s252, %s253
      %p267 = scmp.eq.s32.totalorder %s46, 1
      %p268 = por %p266, %p267
      %p270 = scmp.ne.s32.totalorder %s253, %s269
      %p271 = scmp.eq.s32.totalorder %s46, 0
      %p272 = por %p270, %p271
      %s273 = ssub.s32 %s47, %s59
      %p274 = scmp.eq.s32.totalorder %s273, 0
      %s276 = sadd.s32 %s275, 1
      %s277 = scalar_select %p274, %s275, %s276
      %p280 = pneg %p274
      %p281 = scmp.eq.s32.totalorder %s40, 1
      %p282 = por %p280, %p281
      %p283 = scmp.ne.s32.totalorder %s275, %s278
      %p284 = scmp.eq.s32.totalorder %s40, 0
      %p285 = por %p283, %p284
      %p286 = scmp.ne.s32.totalorder %s275, %s278
      %p287 = scmp.eq.s32.totalorder %s45, 1
      %p288 = por %p286, %p287
      %p289 = scmp.ne.s32.totalorder %s278, %s279
      %p290 = scmp.eq.s32.totalorder %s45, 0
      %p291 = por %p289, %p290
      %p292 = scmp.ne.s32.totalorder %s278, %s279
      %p293 = scmp.eq.s32.totalorder %s46, 1
      %p294 = por %p292, %p293
      %p296 = scmp.ne.s32.totalorder %s279, %s295
      %p297 = scmp.eq.s32.totalorder %s46, 0
      %p298 = por %p296, %p297
      %s299 = ssub.s32 %s47, %s59
      %p300 = scmp.eq.s32.totalorder %s299, 0
      %s302 = sadd.s32 %s301, 1
      %s303 = scalar_select %p300, %s301, %s302
      %p306 = pneg %p300
      %p307 = scmp.eq.s32.totalorder %s40, 1
      %p308 = por %p306, %p307
      %p309 = scmp.ne.s32.totalorder %s301, %s304
      %p310 = scmp.eq.s32.totalorder %s40, 0
      %p311 = por %p309, %p310
      %p312 = scmp.ne.s32.totalorder %s301, %s304
      %p313 = scmp.eq.s32.totalorder %s45, 1
      %p314 = por %p312, %p313
      %p315 = scmp.ne.s32.totalorder %s304, %s305
      %p316 = scmp.eq.s32.totalorder %s45, 0
      %p317 = por %p315, %p316
      %p318 = scmp.ne.s32.totalorder %s304, %s305
      %p319 = scmp.eq.s32.totalorder %s46, 1
      %p320 = por %p318, %p319
      %p322 = scmp.ne.s32.totalorder %s305, %s321
      %p323 = scmp.eq.s32.totalorder %s46, 0
      %p324 = por %p322, %p323
      %s325 = ssub.s32 %s47, %s59
      %s326 = ssub.s32 %s48, %s55
      %s327 = sor.u32 %s325, %s326
      %p328 = scmp.eq.s32.totalorder %s327, 0
      %s330 = sadd.s32 %s329, 1
      %s331 = scalar_select %p328, %s329, %s330
      %p334 = pneg %p328
      %p335 = scmp.eq.s32.totalorder %s40, 1
      %p336 = por %p334, %p335
      %p337 = scmp.ne.s32.totalorder %s329, %s332
      %p338 = scmp.eq.s32.totalorder %s40, 0
      %p339 = por %p337, %p338
      %p340 = scmp.ne.s32.totalorder %s329, %s332
      %p341 = scmp.eq.s32.totalorder %s45, 1
      %p342 = por %p340, %p341
      %p343 = scmp.ne.s32.totalorder %s332, %s333
      %p344 = scmp.eq.s32.totalorder %s45, 0
      %p345 = por %p343, %p344
      %p346 = scmp.ne.s32.totalorder %s332, %s333
      %p347 = scmp.eq.s32.totalorder %s46, 1
      %p348 = por %p346, %p347
      %p350 = scmp.ne.s32.totalorder %s333, %s349
      %p351 = scmp.eq.s32.totalorder %s46, 0
      %p352 = por %p350, %p351
      %p353 = scmp.le.s32.totalorder 1, %s40
      %p354 = scmp.lt.s32.totalorder %s40, 3
      %p355 = pnand %p353, %p354
      %p356 = pneg %p355
      // Predicated region
      $region9: #{tpu_custom_call.1} parent=5 // pred_check
        _
      $region10: #{tpu_custom_call.1} parent=5 // pred_check_branch
        %358 = sbr.rel (%p355) target = $region12
      $region11: #{tpu_custom_call.1} parent=5 // pred_region
        %s359 = ssub.s32 %s40, 1
        // Predicated region
        $region13: #{tpu_custom_call.1} parent=11 // pred_check
          %p360 = pneg %p101
        $region14: #{tpu_custom_call.1} parent=11 // pred_check_branch
          %362 = sbr.rel (%p360) target = $region16
        $region15: #{tpu_custom_call.1} parent=11 // pred_region
          %s364 = ssub.s32 2048, 2048
          %365 = vsyncadd [#allocation12], %s364
          %s366 = sshll.u32 [#allocation11], 4
          %s367 = int_to_ptr.vmem [resolvable:$true] %s366
          %372 = dma.hbm_to_vmem [thread:$0]  %s2, 2048, %s367, [#allocation12], 256, 256, 16
        $region16: #{tpu_custom_call.1} parent=11 // pred_fallthru
          _
        // Predicated region
        $region17: #{tpu_custom_call.1} parent=11 // pred_check
          %p373 = pneg %p122
        $region18: #{tpu_custom_call.1} parent=11 // pred_check_branch
          %375 = sbr.rel (%p373) target = $region20
        $region19: #{tpu_custom_call.1} parent=11 // pred_region
          %s377 = ssub.s32 4096, 4096
          %378 = vsyncadd [#allocation12], %s377
          %s379 = sshll.u32 [#allocation13], 4
          %s380 = int_to_ptr.vmem [resolvable:$true] %s379
          %385 = dma.hbm_to_vmem [thread:$0]  %s3, 4096, %s380, [#allocation12], 256, 256, 16
        $region20: #{tpu_custom_call.1} parent=11 // pred_fallthru
          _
        // Predicated region
        $region21: #{tpu_custom_call.1} parent=11 // pred_check
          %p386 = pneg %p143
        $region22: #{tpu_custom_call.1} parent=11 // pred_check_branch
          %388 = sbr.rel (%p386) target = $region24
        $region23: #{tpu_custom_call.1} parent=11 // pred_region
          _
        $region24: #{tpu_custom_call.1} parent=11 // pred_fallthru
          _
        // Predicated region
        $region25: #{tpu_custom_call.1} parent=11 // pred_check
          %p389 = pneg %p216
        $region26: #{tpu_custom_call.1} parent=11 // pred_check_branch
          %391 = sbr.rel (%p389) target = $region28
        $region27: #{tpu_custom_call.1} parent=11 // pred_region
          %s393 = ssub.s32 1024, 1024
          %394 = vsyncadd [#allocation18], %s393
          %s395 = sshll.u32 [#allocation17], 4
          %s396 = int_to_ptr.vmem [resolvable:$true] %s395
          %401 = dma.hbm_to_vmem [thread:$0]  %s7, 1024, %s396, [#allocation18], 64, 64, 4
        $region28: #{tpu_custom_call.1} parent=11 // pred_fallthru
          _
        // Predicated region
        $region29: #{tpu_custom_call.1} parent=11 // pred_check
          %p402 = pneg %p237
        $region30: #{tpu_custom_call.1} parent=11 // pred_check_branch
          %404 = sbr.rel (%p402) target = $region32
        $region31: #{tpu_custom_call.1} parent=11 // pred_region
          _
        $region32: #{tpu_custom_call.1} parent=11 // pred_fallthru
          _
      $region12: #{tpu_custom_call.1} parent=5 // pred_fallthru
        _
      %p405 = scmp.lt.s32.totalorder %s40, 2
      // Predicated region
      $region33: #{tpu_custom_call.1} parent=5 // pred_check
        %p406 = pneg %p405
      $region34: #{tpu_custom_call.1} parent=5 // pred_check_branch
        %408 = sbr.rel (%p406) target = $region36
      $region35: #{tpu_custom_call.1} parent=5 // pred_region
        // Predicated region
        $region37: #{tpu_custom_call.1} parent=35 // pred_check
          %p409 = pneg %p74
        $region38: #{tpu_custom_call.1} parent=35 // pred_check_branch
          %411 = sbr.rel (%p409) target = $region40
        $region39: #{tpu_custom_call.1} parent=35 // pred_region
          %s412 = sand.u32 %s64, 1
          %s413 = scalar_lea.sflag [#allocation9], %s412
          %s414 = sand.u32 %s64, 1
          %s415 = smul.addr %s414, 32
          %s416 = scalar_lea.vmem [#allocation8], %s415
          %s417 = smul.u32 8, %s48
          %s419 = ssub.s32 512, 512
          %420 = vsyncadd %s413, %s419
          %s421 = smul.addr %s417, 2
          %s422 = sadd.s32 %s47, %s421
          %s423 = smul.addr %s422, 64
          %s424 = scalar_lea.hbm %s1, %s423
          %s425 = sshll.u32 %s416, 4
          %s426 = int_to_ptr.vmem [resolvable:$true] %s425
          %431 = dma.hbm_to_vmem [thread:$0]  %s424, 512, %s426, %s413, 128, 64, 4
        $region40: #{tpu_custom_call.1} parent=35 // pred_fallthru
          _
        // Predicated region
        $region41: #{tpu_custom_call.1} parent=35 // pred_check
          %p432 = pneg %p163
        $region42: #{tpu_custom_call.1} parent=35 // pred_check_branch
          %434 = sbr.rel (%p432) target = $region44
        $region43: #{tpu_custom_call.1} parent=35 // pred_region
          %s435 = sand.u32 %s40, 1
          %s436 = scalar_lea.sflag [#allocation15], %s435
          %s437 = sand.u32 %s153, 1
          %s438 = smul.addr %s437, 8
          %s439 = scalar_lea.vmem [#allocation14], %s438
          %s441 = ssub.s32 128, 128
          %442 = vsyncadd %s436, %s441
          %s443 = smul.addr %s47, 128
          %s444 = scalar_lea.hbm %s5, %s443
          %s446 = sshll.u32 %s439, 4
          %s447 = int_to_ptr.vmem [resolvable:$true] %s446
          %449 = dma.hbm_to_vmem [thread:$0]  %s444, 128, %s447, %s436
        $region44: #{tpu_custom_call.1} parent=35 // pred_fallthru
          _
        // Predicated region
        $region45: #{tpu_custom_call.1} parent=35 // pred_check
          %p450 = pneg %p189
        $region46: #{tpu_custom_call.1} parent=35 // pred_check_branch
          %452 = sbr.rel (%p450) target = $region48
        $region47: #{tpu_custom_call.1} parent=35 // pred_region
          %s453 = sand.u32 %s40, 1
          %s454 = scalar_lea.sflag [#allocation15], %s453
          %s455 = sand.u32 %s179, 1
          %s456 = smul.addr %s455, 8
          %s457 = scalar_lea.vmem [#allocation16], %s456
          %s459 = ssub.s32 128, 128
          %460 = vsyncadd %s454, %s459
          %s461 = smul.addr %s47, 128
          %s462 = scalar_lea.hbm %s6, %s461
          %s464 = sshll.u32 %s457, 4
          %s465 = int_to_ptr.vmem [resolvable:$true] %s464
          %467 = dma.hbm_to_vmem [thread:$0]  %s462, 128, %s465, %s454
        $region48: #{tpu_custom_call.1} parent=35 // pred_fallthru
          _
      $region36: #{tpu_custom_call.1} parent=5 // pred_fallthru
        _
      %p468 = scmp.le.s32.totalorder 1, %s40
      %p469 = scmp.lt.s32.totalorder %s40, 3
      %p470 = pnand %p468, %p469
      %p471 = pneg %p470
      // Predicated region
      $region49: #{tpu_custom_call.1} parent=5 // pred_check
        _
      $region50: #{tpu_custom_call.1} parent=5 // pred_check_branch
        %473 = sbr.rel (%p470) target = $region52
      $region51: #{tpu_custom_call.1} parent=5 // pred_region
        %s474 = ssub.s32 %s40, 1
        %s475 = sand.u32 %s67, 1
        %s476 = scalar_lea.sflag [#allocation9], %s475
        %s477 = sand.u32 %s67, 1
        %s478 = smul.addr %s477, 32
        %s479 = scalar_lea.vmem [#allocation8], %s478
        // Predicated region
        $region53: #{tpu_custom_call.1} parent=51 // pred_check
          %p480 = pneg %p80
        $region54: #{tpu_custom_call.1} parent=51 // pred_check_branch
          %482 = sbr.rel (%p480) target = $region56
        $region55: #{tpu_custom_call.1} parent=51 // pred_region
          %483 = dma.done %s476, 512
        $region56: #{tpu_custom_call.1} parent=51 // pred_fallthru
          _
        // Predicated region
        $region57: #{tpu_custom_call.1} parent=51 // pred_check
          %p484 = pneg %p101
        $region58: #{tpu_custom_call.1} parent=51 // pred_check_branch
          %486 = sbr.rel (%p484) target = $region60
        $region59: #{tpu_custom_call.1} parent=51 // pred_region
          %487 = dma.done [#allocation12], 2048
        $region60: #{tpu_custom_call.1} parent=51 // pred_fallthru
          _
        // Predicated region
        $region61: #{tpu_custom_call.1} parent=51 // pred_check
          %p488 = pneg %p122
        $region62: #{tpu_custom_call.1} parent=51 // pred_check_branch
          %490 = sbr.rel (%p488) target = $region64
        $region63: #{tpu_custom_call.1} parent=51 // pred_region
          %491 = dma.done [#allocation12], 4096
        $region64: #{tpu_custom_call.1} parent=51 // pred_fallthru
          _
        %s492 = sand.u32 %s45, 1
        %s493 = scalar_lea.sflag [#allocation15], %s492
        %s494 = sand.u32 %s156, 1
        %s495 = smul.addr %s494, 8
        %s496 = scalar_lea.vmem [#allocation14], %s495
        // Predicated region
        $region65: #{tpu_custom_call.1} parent=51 // pred_check
          %p497 = pneg %p169
        $region66: #{tpu_custom_call.1} parent=51 // pred_check_branch
          %499 = sbr.rel (%p497) target = $region68
        $region67: #{tpu_custom_call.1} parent=51 // pred_region
          %500 = dma.done %s493, 128
        $region68: #{tpu_custom_call.1} parent=51 // pred_fallthru
          _
        %s501 = sand.u32 %s45, 1
        %s502 = scalar_lea.sflag [#allocation15], %s501
        %s503 = sand.u32 %s182, 1
        %s504 = smul.addr %s503, 8
        %s505 = scalar_lea.vmem [#allocation16], %s504
        // Predicated region
        $region69: #{tpu_custom_call.1} parent=51 // pred_check
          %p506 = pneg %p195
        $region70: #{tpu_custom_call.1} parent=51 // pred_check_branch
          %508 = sbr.rel (%p506) target = $region72
        $region71: #{tpu_custom_call.1} parent=51 // pred_region
          %509 = dma.done %s502, 128
        $region72: #{tpu_custom_call.1} parent=51 // pred_fallthru
          _
        // Predicated region
        $region73: #{tpu_custom_call.1} parent=51 // pred_check
          %p510 = pneg %p216
        $region74: #{tpu_custom_call.1} parent=51 // pred_check_branch
          %512 = sbr.rel (%p510) target = $region76
        $region75: #{tpu_custom_call.1} parent=51 // pred_region
          %513 = dma.done [#allocation18], 1024
        $region76: #{tpu_custom_call.1} parent=51 // pred_fallthru
          _
        %s514 = sand.u32 %s67, 1
        %s515 = scalar_lea.sflag [#allocation9], %s514
        %s516 = sand.u32 %s67, 1
        %s517 = smul.addr %s516, 32
        %s518 = scalar_lea.vmem [#allocation8], %s517
        %p519 = pneg %p80
        %p520 = pneg %p77
        %p521 = pneg %p101
        %p522 = pneg %p98
        %p523 = pneg %p122
        %p524 = pneg %p119
        %p525 = pneg %p143
        %p526 = pneg %p140
        %s527 = sand.u32 %s45, 1
        %s528 = scalar_lea.sflag [#allocation15], %s527
        %s529 = sand.u32 %s156, 1
        %s530 = smul.addr %s529, 8
        %s531 = scalar_lea.vmem [#allocation14], %s530
        %p532 = pneg %p169
        %p533 = pneg %p166
        %s534 = sand.u32 %s45, 1
        %s535 = scalar_lea.sflag [#allocation15], %s534
        %s536 = sand.u32 %s182, 1
        %s537 = smul.addr %s536, 8
        %s538 = scalar_lea.vmem [#allocation16], %s537
        %p539 = pneg %p195
        %p540 = pneg %p192
        %p541 = pneg %p216
        %p542 = pneg %p213
        %p543 = pneg %p237
        %p544 = pneg %p234
        %p545 = pneg %p265
        %p546 = pneg %p262
        %s547 = sand.u32 %s252, 1
        %s548 = scalar_lea.sflag [#allocation10], %s547
        %s549 = sand.u32 %s252, 1
        %s550 = smul.addr %s549, 64
        %s551 = scalar_lea.vmem [#allocation19], %s550
        %p552 = pneg %p291
        %p553 = pneg %p288
        %s554 = sand.u32 %s45, 1
        %s555 = scalar_lea.sflag [#allocation21], %s554
        %s556 = sand.u32 %s278, 1
        %s557 = smul.addr %s556, 8
        %s558 = scalar_lea.vmem [#allocation20], %s557
        %p559 = pneg %p317
        %p560 = pneg %p314
        %s561 = sand.u32 %s45, 1
        %s562 = scalar_lea.sflag [#allocation21], %s561
        %s563 = sand.u32 %s304, 1
        %s564 = smul.addr %s563, 8
        %s565 = scalar_lea.vmem [#allocation22], %s564
        %p566 = pneg %p345
        %p567 = pneg %p342
        %s568 = sand.u32 %s332, 1
        %s569 = scalar_lea.sflag [#allocation24], %s568
        %s570 = sand.u32 %s332, 1
        %s571 = smul.addr %s570, 64
        %s572 = scalar_lea.vmem [#allocation23], %s571
        %s573 = smul.u32 8, %s50
        %s574 = smul.u32 8, %s49
        %s575 = smul.u32 8, %s49
        %p577 = scmp.eq.s32.totalorder %s50, 0
        // Predicated region
        $region77: #{tpu_custom_call.1} parent=51 // pred_check
          %p578 = pneg %p577
        $region78: #{tpu_custom_call.1} parent=51 // pred_check_branch
          %580 = sbr.rel (%p578) target = $region80
        $region79: #{tpu_custom_call.1} parent=51 // pred_region
          %v581 = vld [vmem:[%s496] sm:$0xff]
          %582 = vst [vmem:[#allocation2] sm:$0xff] %v581
          %v583 = vld [vmem:[%s505] sm:$0xff]
          %584 = vst [vmem:[#allocation3] sm:$0xff] %v583
          %s585 = smul.u32 %s49, 8
          %s586 = sld [smem:[#allocation7 + %s585]]
          %v587 = vstv %s586
          %588 = vst [vmem:[#allocation4] sm:$0x1] %v587
          %s589 = sadd.s32 %s585, 1
          %s590 = sld [smem:[#allocation7 + %s589]]
          %v591 = vstv %s590
          %592 = vst [vmem:[#allocation4 + $0x1] sm:$0x1] %v591
          %s593 = sadd.s32 %s585, 2
          %s594 = sld [smem:[#allocation7 + %s593]]
          %v595 = vstv %s594
          %596 = vst [vmem:[#allocation4 + $0x2] sm:$0x1] %v595
          %s597 = sadd.s32 %s585, 3
          %s598 = sld [smem:[#allocation7 + %s597]]
          %v599 = vstv %s598
          %600 = vst [vmem:[#allocation4 + $0x3] sm:$0x1] %v599
          %s601 = sadd.s32 %s585, 4
          %s602 = sld [smem:[#allocation7 + %s601]]
          %v603 = vstv %s602
          %604 = vst [vmem:[#allocation4 + $0x4] sm:$0x1] %v603
          %s605 = sadd.s32 %s585, 5
          %s606 = sld [smem:[#allocation7 + %s605]]
          %v607 = vstv %s606
          %608 = vst [vmem:[#allocation4 + $0x5] sm:$0x1] %v607
          %s609 = sadd.s32 %s585, 6
          %s610 = sld [smem:[#allocation7 + %s609]]
          %v611 = vstv %s610
          %612 = vst [vmem:[#allocation4 + $0x6] sm:$0x1] %v611
          %s613 = sadd.s32 %s585, 7
          %s614 = sld [smem:[#allocation7 + %s613]]
          %v615 = vstv %s614
          %616 = vst [vmem:[#allocation4 + $0x7] sm:$0x1] %v615
        $region80: #{tpu_custom_call.1} parent=51 // pred_fallthru
          _
        %v617 = vld [vmem:[%s479] sm:$0xf]
        %v618 = vld [vmem:[%s479 + $0x4] sm:$0xf]
        %v619 = vld [vmem:[%s479 + $0x8] sm:$0xf]
        %v620 = vld [vmem:[%s479 + $0xc] sm:$0xf]
        %v621 = vld [vmem:[%s479 + $0x10] sm:$0xf]
        %v622 = vld [vmem:[%s479 + $0x14] sm:$0xf]
        %v623 = vld [vmem:[%s479 + $0x18] sm:$0xf]
        %v624 = vld [vmem:[%s479 + $0x1c] sm:$0xf]
        %v625 = vld [vmem:[#allocation11] sm:$0xff]
        %v626 = vld [vmem:[#allocation11 + $0x8] sm:$0xff]
        %v627 = vld [vmem:[#allocation11 + $0x10] sm:$0xff]
        %v628 = vld [vmem:[#allocation11 + $0x18] sm:$0xff]
        %v629 = vld [vmem:[#allocation11 + $0x20] sm:$0xff]
        %v630 = vld [vmem:[#allocation11 + $0x28] sm:$0xff]
        %v631 = vld [vmem:[#allocation11 + $0x30] sm:$0xff]
        %v632 = vld [vmem:[#allocation11 + $0x38] sm:$0xff]
        %v633 = vld [vmem:[#allocation11 + $0x40] sm:$0xff]
        %v634 = vld [vmem:[#allocation11 + $0x48] sm:$0xff]
        %v635 = vld [vmem:[#allocation11 + $0x50] sm:$0xff]
        %v636 = vld [vmem:[#allocation11 + $0x58] sm:$0xff]
        %v637 = vld [vmem:[#allocation11 + $0x60] sm:$0xff]
        %v638 = vld [vmem:[#allocation11 + $0x68] sm:$0xff]
        %v639 = vld [vmem:[#allocation11 + $0x70] sm:$0xff]
        %v640 = vld [vmem:[#allocation11 + $0x78] sm:$0xff]
        %v641 = vld [vmem:[%s4] sm:$0xf]
        %v643 = vlaneseq
        %v644 = vshrl.u32 %v643, 7
        %v645 = vsub.s32 0, %v644
        %v646 = vrot.slane %v641, %v645
        %v647 = vlaneseq
        %v648 = vshrl.u32 %v647, 7
        %v649 = vsub.s32 1, %v648
        %v650 = vrot.slane %v641, %v649
        %v651 = vlaneseq
        %v652 = vshrl.u32 %v651, 7
        %v653 = vsub.s32 2, %v652
        %v654 = vrot.slane %v641, %v653
        %v655 = vlaneseq
        %v656 = vshrl.u32 %v655, 7
        %v657 = vsub.s32 3, %v656
        %v658 = vrot.slane %v641, %v657
        %v671 = vunpack.c.l.b16 %v617
        %v672 = vunpack.c.l.b16 %v618
        %v673 = vunpack.c.l.b16 %v619
        %v674 = vunpack.c.l.b16 %v620
        %v675 = vunpack.c.l.b16 %v621
        %v676 = vunpack.c.l.b16 %v622
        %v677 = vunpack.c.l.b16 %v623
        %v678 = vunpack.c.l.b16 %v624
        %v679 = vpack.c.b16 %v672, %v671
        %v680 = vpack.c.b16 %v674, %v673
        %v681 = vpack.c.b16 %v676, %v675
        %v682 = vpack.c.b16 %v678, %v677
        %v699 = vunpack.c.l.b16 %v625
        %v700 = vunpack.c.h.b16 %v625
        %v701 = vunpack.c.l.b16 %v626
        %v702 = vunpack.c.h.b16 %v626
        %v703 = vunpack.c.l.b16 %v627
        %v704 = vunpack.c.h.b16 %v627
        %v705 = vunpack.c.l.b16 %v628
        %v706 = vunpack.c.h.b16 %v628
        %v707 = vunpack.c.l.b16 %v629
        %v708 = vunpack.c.h.b16 %v629
        %v709 = vunpack.c.l.b16 %v630
        %v710 = vunpack.c.h.b16 %v630
        %v711 = vunpack.c.l.b16 %v631
        %v712 = vunpack.c.h.b16 %v631
        %v713 = vunpack.c.l.b16 %v632
        %v714 = vunpack.c.h.b16 %v632
        %v715 = vunpack.c.l.b16 %v633
        %v716 = vunpack.c.h.b16 %v633
        %v717 = vunpack.c.l.b16 %v634
        %v718 = vunpack.c.h.b16 %v634
        %v719 = vunpack.c.l.b16 %v635
        %v720 = vunpack.c.h.b16 %v635
        %v721 = vunpack.c.l.b16 %v636
        %v722 = vunpack.c.h.b16 %v636
        %v723 = vunpack.c.l.b16 %v637
        %v724 = vunpack.c.h.b16 %v637
        %v725 = vunpack.c.l.b16 %v638
        %v726 = vunpack.c.h.b16 %v638
        %v727 = vunpack.c.l.b16 %v639
        %v728 = vunpack.c.h.b16 %v639
        %v729 = vunpack.c.l.b16 %v640
        %v730 = vunpack.c.h.b16 %v640
        %v731 = vpack.c.b16 %v703, %v699
        %v732 = vpack.c.b16 %v704, %v700
        %v733 = vpack.c.b16 %v705, %v701
        %v734 = vpack.c.b16 %v706, %v702
        %v735 = vpack.c.b16 %v711, %v707
        %v736 = vpack.c.b16 %v712, %v708
        %v737 = vpack.c.b16 %v713, %v709
        %v738 = vpack.c.b16 %v714, %v710
        %v739 = vpack.c.b16 %v719, %v715
        %v740 = vpack.c.b16 %v720, %v716
        %v741 = vpack.c.b16 %v721, %v717
        %v742 = vpack.c.b16 %v722, %v718
        %v743 = vpack.c.b16 %v727, %v723
        %v744 = vpack.c.b16 %v728, %v724
        %v745 = vpack.c.b16 %v729, %v725
        %v746 = vpack.c.b16 %v730, %v726
        %vm763 = vcmask 523264
        %v765 = vsel %vm763, %v679, 0
        %v768 = vsel %vm763, %v680, 0
        %v771 = vsel %vm763, %v681, 0
        %v774 = vsel %vm763, %v682, 0
        %776 = vmatprep.subr.bf16.mxu0 0
        %777 = vmatpush1.bf16.msra.mxu0 0
        %778 = vmatprep.subr.bf16.mxu0 0
        %779 = vmatpush1.bf16.msra.mxu0 0
        %780 = vmatprep.subr.bf16.mxu0 0
        %781 = vmatpush1.bf16.msra.mxu0 0
        %782 = vmatprep.subr.bf16.mxu0 0
        %783 = vmatpush1.bf16.msra.mxu0 0
        %784 = vmatprep.subr.bf16.mxu0 %v744
        %785 = vmatpush1.bf16.msra.mxu0 %v743
        %786 = vmatprep.subr.bf16.mxu0 %v740
        %787 = vmatpush1.bf16.msra.mxu0 %v739
        %788 = vmatprep.subr.bf16.mxu0 %v736
        %789 = vmatpush1.bf16.msra.mxu0 %v735
        %790 = vmatprep.subr.bf16.mxu0 %v732
        %791 = vmatpush1.bf16.msra.mxu0 %v731
        %792 = vmatprep.subr.bf16.mxu0 0
        %793 = vmatpush2.bf16.msra.mxu0 0
        %794 = vmatprep.subr.bf16.mxu0 0
        %795 = vmatpush2.bf16.msra.mxu0 0
        %796 = vmatprep.subr.bf16.mxu0 0
        %797 = vmatpush2.bf16.msra.mxu0 0
        %798 = vmatprep.subr.bf16.mxu0 0
        %799 = vmatpush2.bf16.msra.mxu0 0
        %800 = vmatprep.subr.bf16.mxu0 0
        %801 = vmatpush2.bf16.msra.mxu0 0
        %802 = vmatprep.subr.bf16.mxu0 0
        %803 = vmatpush2.bf16.msra.mxu0 0
        %804 = vmatprep.subr.bf16.mxu0 0
        %805 = vmatpush2.bf16.msra.mxu0 0
        %806 = vmatprep.subr.bf16.mxu0 0
        %807 = vmatpush2.bf16.msra.mxu0 0
        %808 = vmatprep.mubr.bf16.mxu0 0
        %809 = vmatmul.mubr.bf16.gmra.mxu0 %v765
        %v810 = vpop.f32.mrf.mxu0
        %v811 = vadd.f32 %v646, %v810
        %v812 = vpop.f32.mrf.mxu0
        %v813 = vadd.f32 %v650, %v812
        %v814 = vpop.f32.mrf.mxu0
        %v815 = vadd.f32 %v646, %v814
        %v816 = vpop.f32.mrf.mxu0
        %v817 = vadd.f32 %v650, %v816
        %818 = vmatprep.mubr.bf16.mxu0 0
        %819 = vmatmul.mubr.bf16.gmra.mxu0 %v768
        %v820 = vpop.f32.mrf.mxu0
        %v821 = vadd.f32 %v646, %v820
        %v822 = vpop.f32.mrf.mxu0
        %v823 = vadd.f32 %v650, %v822
        %v824 = vpop.f32.mrf.mxu0
        %v825 = vadd.f32 %v646, %v824
        %v826 = vpop.f32.mrf.mxu0
        %v827 = vadd.f32 %v650, %v826
        %828 = vmatprep.mubr.bf16.mxu0 0
        %829 = vmatmul.mubr.bf16.gmra.mxu0 %v771
        %v830 = vpop.f32.mrf.mxu0
        %v831 = vadd.f32 %v646, %v830
        %v832 = vpop.f32.mrf.mxu0
        %v833 = vadd.f32 %v650, %v832
        %v834 = vpop.f32.mrf.mxu0
        %v835 = vadd.f32 %v646, %v834
        %v836 = vpop.f32.mrf.mxu0
        %v837 = vadd.f32 %v650, %v836
        %838 = vmatprep.mubr.bf16.mxu0 0
        %839 = vmatmul.mubr.bf16.gmra.mxu0 %v774
        %v840 = vpop.f32.mrf.mxu0
        %v841 = vadd.f32 %v646, %v840
        %v842 = vpop.f32.mrf.mxu0
        %v843 = vadd.f32 %v650, %v842
        %v844 = vpop.f32.mrf.mxu0
        %v845 = vadd.f32 %v646, %v844
        %v846 = vpop.f32.mrf.mxu0
        %v847 = vadd.f32 %v650, %v846
        %848 = vdwg.mxu0
        %849 = vmatprep.subr.bf16.mxu0 0
        %850 = vmatpush1.bf16.msra.mxu0 0
        %851 = vmatprep.subr.bf16.mxu0 0
        %852 = vmatpush1.bf16.msra.mxu0 0
        %853 = vmatprep.subr.bf16.mxu0 0
        %854 = vmatpush1.bf16.msra.mxu0 0
        %855 = vmatprep.subr.bf16.mxu0 0
        %856 = vmatpush1.bf16.msra.mxu0 0
        %857 = vmatprep.subr.bf16.mxu0 %v746
        %858 = vmatpush1.bf16.msra.mxu0 %v745
        %859 = vmatprep.subr.bf16.mxu0 %v742
        %860 = vmatpush1.bf16.msra.mxu0 %v741
        %861 = vmatprep.subr.bf16.mxu0 %v738
        %862 = vmatpush1.bf16.msra.mxu0 %v737
        %863 = vmatprep.subr.bf16.mxu0 %v734
        %864 = vmatpush1.bf16.msra.mxu0 %v733
        %865 = vmatprep.subr.bf16.mxu0 0
        %866 = vmatpush2.bf16.msra.mxu0 0
        %867 = vmatprep.subr.bf16.mxu0 0
        %868 = vmatpush2.bf16.msra.mxu0 0
        %869 = vmatprep.subr.bf16.mxu0 0
        %870 = vmatpush2.bf16.msra.mxu0 0
        %871 = vmatprep.subr.bf16.mxu0 0
        %872 = vmatpush2.bf16.msra.mxu0 0
        %873 = vmatprep.subr.bf16.mxu0 0
        %874 = vmatpush2.bf16.msra.mxu0 0
        %875 = vmatprep.subr.bf16.mxu0 0
        %876 = vmatpush2.bf16.msra.mxu0 0
        %877 = vmatprep.subr.bf16.mxu0 0
        %878 = vmatpush2.bf16.msra.mxu0 0
        %879 = vmatprep.subr.bf16.mxu0 0
        %880 = vmatpush2.bf16.msra.mxu0 0
        %881 = vmatprep.mubr.bf16.mxu0 0
        %882 = vmatmul.mubr.bf16.gmra.mxu0 %v765
        %v883 = vpop.f32.mrf.mxu0
        %v884 = vadd.f32 %v654, %v883
        %v885 = vpop.f32.mrf.mxu0
        %v886 = vadd.f32 %v658, %v885
        %v887 = vpop.f32.mrf.mxu0
        %v888 = vadd.f32 %v654, %v887
        %v889 = vpop.f32.mrf.mxu0
        %v890 = vadd.f32 %v658, %v889
        %891 = vmatprep.mubr.bf16.mxu0 0
        %892 = vmatmul.mubr.bf16.gmra.mxu0 %v768
        %v893 = vpop.f32.mrf.mxu0
        %v894 = vadd.f32 %v654, %v893
        %v895 = vpop.f32.mrf.mxu0
        %v896 = vadd.f32 %v658, %v895
        %v897 = vpop.f32.mrf.mxu0
        %v898 = vadd.f32 %v654, %v897
        %v899 = vpop.f32.mrf.mxu0
        %v900 = vadd.f32 %v658, %v899
        %901 = vmatprep.mubr.bf16.mxu0 0
        %902 = vmatmul.mubr.bf16.gmra.mxu0 %v771
        %v903 = vpop.f32.mrf.mxu0
        %v904 = vadd.f32 %v654, %v903
        %v905 = vpop.f32.mrf.mxu0
        %v906 = vadd.f32 %v658, %v905
        %v907 = vpop.f32.mrf.mxu0
        %v908 = vadd.f32 %v654, %v907
        %v909 = vpop.f32.mrf.mxu0
        %v910 = vadd.f32 %v658, %v909
        %911 = vmatprep.mubr.bf16.mxu0 0
        %912 = vmatmul.mubr.bf16.gmra.mxu0 %v774
        %v913 = vpop.f32.mrf.mxu0
        %v914 = vadd.f32 %v654, %v913
        %v915 = vpop.f32.mrf.mxu0
        %v916 = vadd.f32 %v658, %v915
        %v917 = vpop.f32.mrf.mxu0
        %v918 = vadd.f32 %v654, %v917
        %v919 = vpop.f32.mrf.mxu0
        %v920 = vadd.f32 %v658, %v919
        %921 = vdwg.mxu0
        %v922 = vpack.c.bf16 %v815, %v811
        %v923 = vpack.c.bf16 %v817, %v813
        %v924 = vpack.c.bf16 %v888, %v884
        %v925 = vpack.c.bf16 %v890, %v886
        %v926 = vpack.c.bf16 %v825, %v821
        %v927 = vpack.c.bf16 %v827, %v823
        %v928 = vpack.c.bf16 %v898, %v894
        %v929 = vpack.c.bf16 %v900, %v896
        %v930 = vpack.c.bf16 %v835, %v831
        %v931 = vpack.c.bf16 %v837, %v833
        %v932 = vpack.c.bf16 %v908, %v904
        %v933 = vpack.c.bf16 %v910, %v906
        %v934 = vpack.c.bf16 %v845, %v841
        %v935 = vpack.c.bf16 %v847, %v843
        %v936 = vpack.c.bf16 %v918, %v914
        %v937 = vpack.c.bf16 %v920, %v916
        %v954 = vunpack.c.l.b16 %v922
        %v955 = vunpack.c.l.b16 %v923
        %v956 = vunpack.c.l.b16 %v924
        %v957 = vunpack.c.l.b16 %v925
        %v958 = vunpack.c.h.b16 %v922
        %v959 = vunpack.c.h.b16 %v923
        %v960 = vunpack.c.h.b16 %v924
        %v961 = vunpack.c.h.b16 %v925
        %v962 = vunpack.c.l.b16 %v926
        %v963 = vunpack.c.l.b16 %v927
        %v964 = vunpack.c.l.b16 %v928
        %v965 = vunpack.c.l.b16 %v929
        %v966 = vunpack.c.h.b16 %v926
        %v967 = vunpack.c.h.b16 %v927
        %v968 = vunpack.c.h.b16 %v928
        %v969 = vunpack.c.h.b16 %v929
        %v970 = vunpack.c.l.b16 %v930
        %v971 = vunpack.c.l.b16 %v931
        %v972 = vunpack.c.l.b16 %v932
        %v973 = vunpack.c.l.b16 %v933
        %v974 = vunpack.c.h.b16 %v930
        %v975 = vunpack.c.h.b16 %v931
        %v976 = vunpack.c.h.b16 %v932
        %v977 = vunpack.c.h.b16 %v933
        %v978 = vunpack.c.l.b16 %v934
        %v979 = vunpack.c.l.b16 %v935
        %v980 = vunpack.c.l.b16 %v936
        %v981 = vunpack.c.l.b16 %v937
        %v982 = vunpack.c.h.b16 %v934
        %v983 = vunpack.c.h.b16 %v935
        %v984 = vunpack.c.h.b16 %v936
        %v985 = vunpack.c.h.b16 %v937
        %v986 = vpack.c.b16 %v955, %v954
        %v987 = vpack.c.b16 %v957, %v956
        %v988 = vpack.c.b16 %v959, %v958
        %v989 = vpack.c.b16 %v961, %v960
        %v990 = vpack.c.b16 %v963, %v962
        %v991 = vpack.c.b16 %v965, %v964
        %v992 = vpack.c.b16 %v967, %v966
        %v993 = vpack.c.b16 %v969, %v968
        %v994 = vpack.c.b16 %v971, %v970
        %v995 = vpack.c.b16 %v973, %v972
        %v996 = vpack.c.b16 %v975, %v974
        %v997 = vpack.c.b16 %v977, %v976
        %v998 = vpack.c.b16 %v979, %v978
        %v999 = vpack.c.b16 %v981, %v980
        %v1000 = vpack.c.b16 %v983, %v982
        %v1001 = vpack.c.b16 %v985, %v984
        %1018 = vst [vmem:[#allocation5] sm:$0xff] %v986
        %1019 = vst [vmem:[#allocation5 + $0x8] sm:$0xff] %v987
        %1020 = vst [vmem:[#allocation5 + $0x10] sm:$0xff] %v988
        %1021 = vst [vmem:[#allocation5 + $0x18] sm:$0xff] %v989
        %1022 = vst [vmem:[#allocation5 + $0x20] sm:$0xff] %v990
        %1023 = vst [vmem:[#allocation5 + $0x28] sm:$0xff] %v991
        %1024 = vst [vmem:[#allocation5 + $0x30] sm:$0xff] %v992
        %1025 = vst [vmem:[#allocation5 + $0x38] sm:$0xff] %v993
        %1026 = vst [vmem:[#allocation5 + $0x40] sm:$0xff] %v994
        %1027 = vst [vmem:[#allocation5 + $0x48] sm:$0xff] %v995
        %1028 = vst [vmem:[#allocation5 + $0x50] sm:$0xff] %v996
        %1029 = vst [vmem:[#allocation5 + $0x58] sm:$0xff] %v997
        %1030 = vst [vmem:[#allocation5 + $0x60] sm:$0xff] %v998
        %1031 = vst [vmem:[#allocation5 + $0x68] sm:$0xff] %v999
        %1032 = vst [vmem:[#allocation5 + $0x70] sm:$0xff] %v1000
        %1033 = vst [vmem:[#allocation5 + $0x78] sm:$0xff] %v1001
        %v1034 = vld [vmem:[#allocation13] sm:$0xff]
        %v1035 = vld [vmem:[#allocation13 + $0x8] sm:$0xff]
        %v1036 = vld [vmem:[#allocation13 + $0x10] sm:$0xff]
        %v1037 = vld [vmem:[#allocation13 + $0x18] sm:$0xff]
        %v1038 = vld [vmem:[#allocation13 + $0x20] sm:$0xff]
        %v1039 = vld [vmem:[#allocation13 + $0x28] sm:$0xff]
        %v1040 = vld [vmem:[#allocation13 + $0x30] sm:$0xff]
        %v1041 = vld [vmem:[#allocation13 + $0x38] sm:$0xff]
        %v1042 = vld [vmem:[#allocation13 + $0x40] sm:$0xff]
        %v1043 = vld [vmem:[#allocation13 + $0x48] sm:$0xff]
        %v1044 = vld [vmem:[#allocation13 + $0x50] sm:$0xff]
        %v1045 = vld [vmem:[#allocation13 + $0x58] sm:$0xff]
        %v1046 = vld [vmem:[#allocation13 + $0x60] sm:$0xff]
        %v1047 = vld [vmem:[#allocation13 + $0x68] sm:$0xff]
        %v1048 = vld [vmem:[#allocation13 + $0x70] sm:$0xff]
        %v1049 = vld [vmem:[#allocation13 + $0x78] sm:$0xff]
        %v1050 = vld [vmem:[#allocation13 + $0x80] sm:$0xff]
        %v1051 = vld [vmem:[#allocation13 + $0x88] sm:$0xff]
        %v1052 = vld [vmem:[#allocation13 + $0x90] sm:$0xff]
        %v1053 = vld [vmem:[#allocation13 + $0x98] sm:$0xff]
        %v1054 = vld [vmem:[#allocation13 + $0xa0] sm:$0xff]
        %v1055 = vld [vmem:[#allocation13 + $0xa8] sm:$0xff]
        %v1056 = vld [vmem:[#allocation13 + $0xb0] sm:$0xff]
        %v1057 = vld [vmem:[#allocation13 + $0xb8] sm:$0xff]
        %v1058 = vld [vmem:[#allocation13 + $0xc0] sm:$0xff]
        %v1059 = vld [vmem:[#allocation13 + $0xc8] sm:$0xff]
        %v1060 = vld [vmem:[#allocation13 + $0xd0] sm:$0xff]
        %v1061 = vld [vmem:[#allocation13 + $0xd8] sm:$0xff]
        %v1062 = vld [vmem:[#allocation13 + $0xe0] sm:$0xff]
        %v1063 = vld [vmem:[#allocation13 + $0xe8] sm:$0xff]
        %v1064 = vld [vmem:[#allocation13 + $0xf0] sm:$0xff]
        %v1065 = vld [vmem:[#allocation13 + $0xf8] sm:$0xff]
        %v1066 = vld [vmem:[#allocation4] sm:$0xff]
        %s1067 = smul.u32 %s50, 8
        %v1068 = vld [vmem:[#allocation2] sm:$0xff]
        %v1069 = vld [vmem:[#allocation3] sm:$0xff]
        %v1070 = vld [vmem:[#allocation5] sm:$0xff]
        %v1071 = vld [vmem:[#allocation5 + $0x8] sm:$0xff]
        %v1072 = vunpack.c.l.bf16 %v1070
        %v1073 = vunpack.c.h.bf16 %v1070
        %v1074 = vunpack.c.l.bf16 %v1071
        %v1075 = vunpack.c.h.bf16 %v1071
        %v1076 = vpack.c.bf16 %v1068, %v1068
        %v1109 = vunpack.c.l.b16 %v1034
        %v1110 = vunpack.c.h.b16 %v1034
        %v1111 = vunpack.c.l.b16 %v1035
        %v1112 = vunpack.c.h.b16 %v1035
        %v1113 = vunpack.c.l.b16 %v1036
        %v1114 = vunpack.c.h.b16 %v1036
        %v1115 = vunpack.c.l.b16 %v1037
        %v1116 = vunpack.c.h.b16 %v1037
        %v1117 = vunpack.c.l.b16 %v1038
        %v1118 = vunpack.c.h.b16 %v1038
        %v1119 = vunpack.c.l.b16 %v1039
        %v1120 = vunpack.c.h.b16 %v1039
        %v1121 = vunpack.c.l.b16 %v1040
        %v1122 = vunpack.c.h.b16 %v1040
        %v1123 = vunpack.c.l.b16 %v1041
        %v1124 = vunpack.c.h.b16 %v1041
        %v1125 = vunpack.c.l.b16 %v1042
        %v1126 = vunpack.c.h.b16 %v1042
        %v1127 = vunpack.c.l.b16 %v1043
        %v1128 = vunpack.c.h.b16 %v1043
        %v1129 = vunpack.c.l.b16 %v1044
        %v1130 = vunpack.c.h.b16 %v1044
        %v1131 = vunpack.c.l.b16 %v1045
        %v1132 = vunpack.c.h.b16 %v1045
        %v1133 = vunpack.c.l.b16 %v1046
        %v1134 = vunpack.c.h.b16 %v1046
        %v1135 = vunpack.c.l.b16 %v1047
        %v1136 = vunpack.c.h.b16 %v1047
        %v1137 = vunpack.c.l.b16 %v1048
        %v1138 = vunpack.c.h.b16 %v1048
        %v1139 = vunpack.c.l.b16 %v1049
        %v1140 = vunpack.c.h.b16 %v1049
        %v1141 = vunpack.c.l.b16 %v1050
        %v1142 = vunpack.c.h.b16 %v1050
        %v1143 = vunpack.c.l.b16 %v1051
        %v1144 = vunpack.c.h.b16 %v1051
        %v1145 = vunpack.c.l.b16 %v1052
        %v1146 = vunpack.c.h.b16 %v1052
        %v1147 = vunpack.c.l.b16 %v1053
        %v1148 = vunpack.c.h.b16 %v1053
        %v1149 = vunpack.c.l.b16 %v1054
        %v1150 = vunpack.c.h.b16 %v1054
        %v1151 = vunpack.c.l.b16 %v1055
        %v1152 = vunpack.c.h.b16 %v1055
        %v1153 = vunpack.c.l.b16 %v1056
        %v1154 = vunpack.c.h.b16 %v1056
        %v1155 = vunpack.c.l.b16 %v1057
        %v1156 = vunpack.c.h.b16 %v1057
        %v1157 = vunpack.c.l.b16 %v1058
        %v1158 = vunpack.c.h.b16 %v1058
        %v1159 = vunpack.c.l.b16 %v1059
        %v1160 = vunpack.c.h.b16 %v1059
        %v1161 = vunpack.c.l.b16 %v1060
        %v1162 = vunpack.c.h.b16 %v1060
        %v1163 = vunpack.c.l.b16 %v1061
        %v1164 = vunpack.c.h.b16 %v1061
        %v1165 = vunpack.c.l.b16 %v1062
        %v1166 = vunpack.c.h.b16 %v1062
        %v1167 = vunpack.c.l.b16 %v1063
        %v1168 = vunpack.c.h.b16 %v1063
        %v1169 = vunpack.c.l.b16 %v1064
        %v1170 = vunpack.c.h.b16 %v1064
        %v1171 = vunpack.c.l.b16 %v1065
        %v1172 = vunpack.c.h.b16 %v1065
        %v1173 = vpack.c.b16 %v1113, %v1109
        %v1174 = vpack.c.b16 %v1114, %v1110
        %v1175 = vpack.c.b16 %v1115, %v1111
        %v1176 = vpack.c.b16 %v1116, %v1112
        %v1177 = vpack.c.b16 %v1121, %v1117
        %v1178 = vpack.c.b16 %v1122, %v1118
        %v1179 = vpack.c.b16 %v1123, %v1119
        %v1180 = vpack.c.b16 %v1124, %v1120
        %v1181 = vpack.c.b16 %v1129, %v1125
        %v1182 = vpack.c.b16 %v1130, %v1126
        %v1183 = vpack.c.b16 %v1131, %v1127
        %v1184 = vpack.c.b16 %v1132, %v1128
        %v1185 = vpack.c.b16 %v1137, %v1133
        %v1186 = vpack.c.b16 %v1138, %v1134
        %v1187 = vpack.c.b16 %v1139, %v1135
        %v1188 = vpack.c.b16 %v1140, %v1136
        %v1189 = vpack.c.b16 %v1145, %v1141
        %v1190 = vpack.c.b16 %v1146, %v1142
        %v1191 = vpack.c.b16 %v1147, %v1143
        %v1192 = vpack.c.b16 %v1148, %v1144
        %v1193 = vpack.c.b16 %v1153, %v1149
        %v1194 = vpack.c.b16 %v1154, %v1150
        %v1195 = vpack.c.b16 %v1155, %v1151
        %v1196 = vpack.c.b16 %v1156, %v1152
        %v1197 = vpack.c.b16 %v1161, %v1157
        %v1198 = vpack.c.b16 %v1162, %v1158
        %v1199 = vpack.c.b16 %v1163, %v1159
        %v1200 = vpack.c.b16 %v1164, %v1160
        %v1201 = vpack.c.b16 %v1169, %v1165
        %v1202 = vpack.c.b16 %v1170, %v1166
        %v1203 = vpack.c.b16 %v1171, %v1167
        %v1204 = vpack.c.b16 %v1172, %v1168
        %1237 = vmatprep.subr.bf16.mxu0 %v1202
        %1238 = vmatpush1.bf16.msra.mxu0 %v1201
        %1239 = vmatprep.subr.bf16.mxu0 %v1198
        %1240 = vmatpush1.bf16.msra.mxu0 %v1197
        %1241 = vmatprep.subr.bf16.mxu0 %v1194
        %1242 = vmatpush1.bf16.msra.mxu0 %v1193
        %1243 = vmatprep.subr.bf16.mxu0 %v1190
        %1244 = vmatpush1.bf16.msra.mxu0 %v1189
        %1245 = vmatprep.subr.bf16.mxu0 %v1186
        %1246 = vmatpush1.bf16.msra.mxu0 %v1185
        %1247 = vmatprep.subr.bf16.mxu0 %v1182
        %1248 = vmatpush1.bf16.msra.mxu0 %v1181
        %1249 = vmatprep.subr.bf16.mxu0 %v1178
        %1250 = vmatpush1.bf16.msra.mxu0 %v1177
        %1251 = vmatprep.subr.bf16.mxu0 %v1174
        %1252 = vmatpush1.bf16.msra.mxu0 %v1173
        %1253 = vmatprep.subr.bf16.mxu0 0
        %1254 = vmatpush2.bf16.msra.mxu0 0
        %1255 = vmatprep.subr.bf16.mxu0 0
        %1256 = vmatpush2.bf16.msra.mxu0 0
        %1257 = vmatprep.subr.bf16.mxu0 0
        %1258 = vmatpush2.bf16.msra.mxu0 0
        %1259 = vmatprep.subr.bf16.mxu0 0
        %1260 = vmatpush2.bf16.msra.mxu0 0
        %1261 = vmatprep.subr.bf16.mxu0 0
        %1262 = vmatpush2.bf16.msra.mxu0 0
        %1263 = vmatprep.subr.bf16.mxu0 0
        %1264 = vmatpush2.bf16.msra.mxu0 0
        %1265 = vmatprep.subr.bf16.mxu0 0
        %1266 = vmatpush2.bf16.msra.mxu0 0
        %1267 = vmatprep.subr.bf16.mxu0 0
        %1268 = vmatpush2.bf16.msra.mxu0 0
        %1269 = vmatprep.mubr.bf16.mxu0 0
        %1270 = vmatmul.mubr.bf16.gmra.mxu0 %v1076
        %v1271 = vpop.f32.mrf.mxu0
        %v1272 = vadd.f32 0.0, %v1271
        %v1273 = vpop.f32.mrf.mxu0
        %v1274 = vadd.f32 0.0, %v1273
        %v1275 = vpop.f32.mrf.mxu0
        %v1276 = vpop.f32.mrf.mxu0
        %1277 = vdwg.mxu0
        %1278 = vmatprep.subr.bf16.mxu0 %v1204
        %1279 = vmatpush1.bf16.msra.mxu0 %v1203
        %1280 = vmatprep.subr.bf16.mxu0 %v1200
        %1281 = vmatpush1.bf16.msra.mxu0 %v1199
        %1282 = vmatprep.subr.bf16.mxu0 %v1196
        %1283 = vmatpush1.bf16.msra.mxu0 %v1195
        %1284 = vmatprep.subr.bf16.mxu0 %v1192
        %1285 = vmatpush1.bf16.msra.mxu0 %v1191
        %1286 = vmatprep.subr.bf16.mxu0 %v1188
        %1287 = vmatpush1.bf16.msra.mxu0 %v1187
        %1288 = vmatprep.subr.bf16.mxu0 %v1184
        %1289 = vmatpush1.bf16.msra.mxu0 %v1183
        %1290 = vmatprep.subr.bf16.mxu0 %v1180
        %1291 = vmatpush1.bf16.msra.mxu0 %v1179
        %1292 = vmatprep.subr.bf16.mxu0 %v1176
        %1293 = vmatpush1.bf16.msra.mxu0 %v1175
        %1294 = vmatprep.subr.bf16.mxu0 0
        %1295 = vmatpush2.bf16.msra.mxu0 0
        %1296 = vmatprep.subr.bf16.mxu0 0
        %1297 = vmatpush2.bf16.msra.mxu0 0
        %1298 = vmatprep.subr.bf16.mxu0 0
        %1299 = vmatpush2.bf16.msra.mxu0 0
        %1300 = vmatprep.subr.bf16.mxu0 0
        %1301 = vmatpush2.bf16.msra.mxu0 0
        %1302 = vmatprep.subr.bf16.mxu0 0
        %1303 = vmatpush2.bf16.msra.mxu0 0
        %1304 = vmatprep.subr.bf16.mxu0 0
        %1305 = vmatpush2.bf16.msra.mxu0 0
        %1306 = vmatprep.subr.bf16.mxu0 0
        %1307 = vmatpush2.bf16.msra.mxu0 0
        %1308 = vmatprep.subr.bf16.mxu0 0
        %1309 = vmatpush2.bf16.msra.mxu0 0
        %1310 = vmatprep.mubr.bf16.mxu0 0
        %1311 = vmatmul.mubr.bf16.gmra.mxu0 %v1076
        %v1312 = vpop.f32.mrf.mxu0
        %v1313 = vadd.f32 0.0, %v1312
        %v1314 = vpop.f32.mrf.mxu0
        %v1315 = vadd.f32 0.0, %v1314
        %v1316 = vpop.f32.mrf.mxu0
        %v1317 = vpop.f32.mrf.mxu0
        %1318 = vdwg.mxu0
        %v1319 = vadd.f32 %v1072, %v1272
        %v1320 = vadd.f32 %v1073, %v1274
        %v1321 = vadd.f32 %v1074, %v1313
        %v1322 = vadd.f32 %v1075, %v1315
        %v1323 = vxor.u32 %v1319, 2147483648
        %v1324 = vmul.f32 %v1323, 1.442695
        %v1325 = vpow.pop %v1324
        %v1326 = vadd.f32 %v1325, 1.0
        %v1327 = vrcp.pop %v1326
        %v1328 = vmul.f32 1.0, %v1327
        %v1329 = vxor.u32 %v1320, 2147483648
        %v1330 = vmul.f32 %v1329, 1.442695
        %v1331 = vpow.pop %v1330
        %v1332 = vadd.f32 %v1331, 1.0
        %v1333 = vrcp.pop %v1332
        %v1334 = vmul.f32 1.0, %v1333
        %v1335 = vtanh.pop %v1321
        %v1336 = vxor.u32 %v1322, 2147483648
        %v1337 = vmul.f32 %v1336, 1.442695
        %v1338 = vpow.pop %v1337
        %v1339 = vadd.f32 %v1338, 1.0
        %v1340 = vrcp.pop %v1339
        %v1341 = vmul.f32 1.0, %v1340
        %v1342 = vmul.f32 %v1334, %v1069
        %v1343 = vmul.f32 %v1328, %v1335
        %v1344 = vadd.f32 %v1342, %v1343
        %v1345 = vtanh.pop %v1344
        %v1346 = vmul.f32 %v1341, %v1345
        %v1347 = vstv %s1067
        %vm1348 = vcmp.gt.s32.totalorder %v1066, %v1347
        %v1349 = vsel %vm1348, %v1344, %v1069
        %1350 = vst [vmem:[#allocation3] sm:$0xff] %v1349
        %v1351 = vsel %vm1348, %v1346, %v1068
        %1352 = vst [vmem:[#allocation2] sm:$0xff] %v1351
        %v1353 = vsel %vm1348, %v1346, 0.0
        %v1355 = vcombine.high %v1353, %v1353
        %v1357 = vunpack.c.l.s4 1966171168
        %v1358 = vunpack.c.0.s8 %v1357
        %v1359 = vlaneseq
        %v1360 = vshrl.u32 %v1359, 7
        %v1361 = vsub.s32 %v1358, %v1360
        %v1362 = vrot.slane %v1353, %v1361
        %v1364 = vunpack.c.l.s4 1966171168
        %v1365 = vunpack.c.0.s8 %v1364
        %v1366 = vlaneseq
        %v1367 = vshrl.u32 %v1366, 7
        %v1368 = vsub.s32 %v1365, %v1367
        %v1369 = vrot.slane %v1355, %v1368
        %v1370 = vcombine.high %v1362, %v1362
        %v1371 = vcombine.high %v1369, %v1369
        %v1373 = vunpack.c.l.s4 1966171168
        %v1374 = vunpack.c.0.s8 %v1373
        %v1375 = vlaneseq
        %v1376 = vshrl.u32 %v1375, 7
        %v1377 = vsub.s32 %v1374, %v1376
        %v1378 = vrot.slane %v1362, %v1377
        %v1380 = vunpack.c.l.s4 1966171168
        %v1381 = vunpack.c.0.s8 %v1380
        %v1382 = vlaneseq
        %v1383 = vshrl.u32 %v1382, 7
        %v1384 = vsub.s32 %v1381, %v1383
        %v1385 = vrot.slane %v1369, %v1384
        %v1387 = vunpack.c.l.s4 1966171168
        %v1388 = vunpack.c.0.s8 %v1387
        %v1389 = vlaneseq
        %v1390 = vshrl.u32 %v1389, 7
        %v1391 = vsub.s32 %v1388, %v1390
        %v1392 = vrot.slane %v1370, %v1391
        %v1394 = vunpack.c.l.s4 1966171168
        %v1395 = vunpack.c.0.s8 %v1394
        %v1396 = vlaneseq
        %v1397 = vshrl.u32 %v1396, 7
        %v1398 = vsub.s32 %v1395, %v1397
        %v1399 = vrot.slane %v1371, %v1398
        %v1400 = vcombine.high %v1378, %v1378
        %v1401 = vcombine.high %v1385, %v1385
        %v1402 = vcombine.high %v1392, %v1392
        %v1403 = vcombine.high %v1399, %v1399
        %1412 = vst [vmem:[%s551] sm:$0x1] %v1378
        %1413 = vst [vmem:[%s551 + $0x8] sm:$0x1] %v1392
        %1414 = vst [vmem:[%s551 + $0x10] sm:$0x1] %v1400
        %1415 = vst [vmem:[%s551 + $0x18] sm:$0x1] %v1402
        %1416 = vst [vmem:[%s551 + $0x20] sm:$0x1] %v1385
        %1417 = vst [vmem:[%s551 + $0x28] sm:$0x1] %v1399
        %1418 = vst [vmem:[%s551 + $0x30] sm:$0x1] %v1401
        %1419 = vst [vmem:[%s551 + $0x38] sm:$0x1] %v1403
        %v1420 = vld [vmem:[#allocation2] sm:$0xff]
        %v1421 = vld [vmem:[#allocation3] sm:$0xff]
        %s1422 = scalar_lea.vmem [#allocation5], 16
        %v1423 = vld [vmem:[%s1422] sm:$0xff]
        %v1424 = vld [vmem:[%s1422 + $0x8] sm:$0xff]
        %v1425 = vunpack.c.l.bf16 %v1423
        %v1426 = vunpack.c.h.bf16 %v1423
        %v1427 = vunpack.c.l.bf16 %v1424
        %v1428 = vunpack.c.h.bf16 %v1424
        %v1429 = vpack.c.bf16 %v1420, %v1420
        %1430 = vmatprep.subr.bf16.mxu0 %v1202
        %1431 = vmatpush1.bf16.msra.mxu0 %v1201
        %1432 = vmatprep.subr.bf16.mxu0 %v1198
        %1433 = vmatpush1.bf16.msra.mxu0 %v1197
        %1434 = vmatprep.subr.bf16.mxu0 %v1194
        %1435 = vmatpush1.bf16.msra.mxu0 %v1193
        %1436 = vmatprep.subr.bf16.mxu0 %v1190
        %1437 = vmatpush1.bf16.msra.mxu0 %v1189
        %1438 = vmatprep.subr.bf16.mxu0 %v1186
        %1439 = vmatpush1.bf16.msra.mxu0 %v1185
        %1440 = vmatprep.subr.bf16.mxu0 %v1182
        %1441 = vmatpush1.bf16.msra.mxu0 %v1181
        %1442 = vmatprep.subr.bf16.mxu0 %v1178
        %1443 = vmatpush1.bf16.msra.mxu0 %v1177
        %1444 = vmatprep.subr.bf16.mxu0 %v1174
        %1445 = vmatpush1.bf16.msra.mxu0 %v1173
        %1446 = vmatprep.subr.bf16.mxu0 0
        %1447 = vmatpush2.bf16.msra.mxu0 0
        %1448 = vmatprep.subr.bf16.mxu0 0
        %1449 = vmatpush2.bf16.msra.mxu0 0
        %1450 = vmatprep.subr.bf16.mxu0 0
        %1451 = vmatpush2.bf16.msra.mxu0 0
        %1452 = vmatprep.subr.bf16.mxu0 0
        %1453 = vmatpush2.bf16.msra.mxu0 0
        %1454 = vmatprep.subr.bf16.mxu0 0
        %1455 = vmatpush2.bf16.msra.mxu0 0
        %1456 = vmatprep.subr.bf16.mxu0 0
        %1457 = vmatpush2.bf16.msra.mxu0 0
        %1458 = vmatprep.subr.bf16.mxu0 0
        %1459 = vmatpush2.bf16.msra.mxu0 0
        %1460 = vmatprep.subr.bf16.mxu0 0
        %1461 = vmatpush2.bf16.msra.mxu0 0
        %1462 = vmatprep.mubr.bf16.mxu0 0
        %1463 = vmatmul.mubr.bf16.gmra.mxu0 %v1429
        %v1464 = vpop.f32.mrf.mxu0
        %v1465 = vadd.f32 0.0, %v1464
        %v1466 = vpop.f32.mrf.mxu0
        %v1467 = vadd.f32 0.0, %v1466
        %v1468 = vpop.f32.mrf.mxu0
        %v1469 = vpop.f32.mrf.mxu0
        %1470 = vdwg.mxu0
        %1471 = vmatprep.subr.bf16.mxu0 %v1204
        %1472 = vmatpush1.bf16.msra.mxu0 %v1203
        %1473 = vmatprep.subr.bf16.mxu0 %v1200
        %1474 = vmatpush1.bf16.msra.mxu0 %v1199
        %1475 = vmatprep.subr.bf16.mxu0 %v1196
        %1476 = vmatpush1.bf16.msra.mxu0 %v1195
        %1477 = vmatprep.subr.bf16.mxu0 %v1192
        %1478 = vmatpush1.bf16.msra.mxu0 %v1191
        %1479 = vmatprep.subr.bf16.mxu0 %v1188
        %1480 = vmatpush1.bf16.msra.mxu0 %v1187
        %1481 = vmatprep.subr.bf16.mxu0 %v1184
        %1482 = vmatpush1.bf16.msra.mxu0 %v1183
        %1483 = vmatprep.subr.bf16.mxu0 %v1180
        %1484 = vmatpush1.bf16.msra.mxu0 %v1179
        %1485 = vmatprep.subr.bf16.mxu0 %v1176
        %1486 = vmatpush1.bf16.msra.mxu0 %v1175
        %1487 = vmatprep.subr.bf16.mxu0 0
        %1488 = vmatpush2.bf16.msra.mxu0 0
        %1489 = vmatprep.subr.bf16.mxu0 0
        %1490 = vmatpush2.bf16.msra.mxu0 0
        %1491 = vmatprep.subr.bf16.mxu0 0
        %1492 = vmatpush2.bf16.msra.mxu0 0
        %1493 = vmatprep.subr.bf16.mxu0 0
        %1494 = vmatpush2.bf16.msra.mxu0 0
        %1495 = vmatprep.subr.bf16.mxu0 0
        %1496 = vmatpush2.bf16.msra.mxu0 0
        %1497 = vmatprep.subr.bf16.mxu0 0
        %1498 = vmatpush2.bf16.msra.mxu0 0
        %1499 = vmatprep.subr.bf16.mxu0 0
        %1500 = vmatpush2.bf16.msra.mxu0 0
        %1501 = vmatprep.subr.bf16.mxu0 0
        %1502 = vmatpush2.bf16.msra.mxu0 0
        %1503 = vmatprep.mubr.bf16.mxu0 0
        %1504 = vmatmul.mubr.bf16.gmra.mxu0 %v1429
        %v1505 = vpop.f32.mrf.mxu0
        %v1506 = vadd.f32 0.0, %v1505
        %v1507 = vpop.f32.mrf.mxu0
        %v1508 = vadd.f32 0.0, %v1507
        %v1509 = vpop.f32.mrf.mxu0
        %v1510 = vpop.f32.mrf.mxu0
        %1511 = vdwg.mxu0
        %v1512 = vadd.f32 %v1425, %v1465
        %v1513 = vadd.f32 %v1426, %v1467
        %v1514 = vadd.f32 %v1427, %v1506
        %v1515 = vadd.f32 %v1428, %v1508
        %v1516 = vxor.u32 %v1512, 2147483648
        %v1517 = vmul.f32 %v1516, 1.442695
        %v1518 = vpow.pop %v1517
        %v1519 = vadd.f32 %v1518, 1.0
        %v1520 = vrcp.pop %v1519
        %v1521 = vmul.f32 1.0, %v1520
        %v1522 = vxor.u32 %v1513, 2147483648
        %v1523 = vmul.f32 %v1522, 1.442695
        %v1524 = vpow.pop %v1523
        %v1525 = vadd.f32 %v1524, 1.0
        %v1526 = vrcp.pop %v1525
        %v1527 = vmul.f32 1.0, %v1526
        %v1528 = vtanh.pop %v1514
        %v1529 = vxor.u32 %v1515, 2147483648
        %v1530 = vmul.f32 %v1529, 1.442695
        %v1531 = vpow.pop %v1530
        %v1532 = vadd.f32 %v1531, 1.0
        %v1533 = vrcp.pop %v1532
        %v1534 = vmul.f32 1.0, %v1533
        %v1535 = vmul.f32 %v1527, %v1421
        %v1536 = vmul.f32 %v1521, %v1528
        %v1537 = vadd.f32 %v1535, %v1536
        %v1538 = vtanh.pop %v1537
        %v1539 = vmul.f32 %v1534, %v1538
        %s1540 = sadd.s32 %s1067, 1
        %v1541 = vstv %s1540
        %vm1542 = vcmp.gt.s32.totalorder %v1066, %v1541
        %v1543 = vsel %vm1542, %v1537, %v1421
        %1544 = vst [vmem:[#allocation3] sm:$0xff] %v1543
        %v1545 = vsel %vm1542, %v1539, %v1420
        %1546 = vst [vmem:[#allocation2] sm:$0xff] %v1545
        %v1547 = vsel %vm1542, %v1539, 0.0
        %v1549 = vcombine.high %v1547, %v1547
        %v1551 = vunpack.c.l.s4 1966171168
        %v1552 = vunpack.c.0.s8 %v1551
        %v1553 = vlaneseq
        %v1554 = vshrl.u32 %v1553, 7
        %v1555 = vsub.s32 %v1552, %v1554
        %v1556 = vrot.slane %v1547, %v1555
        %v1558 = vunpack.c.l.s4 1966171168
        %v1559 = vunpack.c.0.s8 %v1558
        %v1560 = vlaneseq
        %v1561 = vshrl.u32 %v1560, 7
        %v1562 = vsub.s32 %v1559, %v1561
        %v1563 = vrot.slane %v1549, %v1562
        %v1564 = vcombine.high %v1556, %v1556
        %v1565 = vcombine.high %v1563, %v1563
        %v1567 = vunpack.c.l.s4 1966171168
        %v1568 = vunpack.c.0.s8 %v1567
        %v1569 = vlaneseq
        %v1570 = vshrl.u32 %v1569, 7
        %v1571 = vsub.s32 %v1568, %v1570
        %v1572 = vrot.slane %v1556, %v1571
        %v1574 = vunpack.c.l.s4 1966171168
        %v1575 = vunpack.c.0.s8 %v1574
        %v1576 = vlaneseq
        %v1577 = vshrl.u32 %v1576, 7
        %v1578 = vsub.s32 %v1575, %v1577
        %v1579 = vrot.slane %v1563, %v1578
        %v1581 = vunpack.c.l.s4 1966171168
        %v1582 = vunpack.c.0.s8 %v1581
        %v1583 = vlaneseq
        %v1584 = vshrl.u32 %v1583, 7
        %v1585 = vsub.s32 %v1582, %v1584
        %v1586 = vrot.slane %v1564, %v1585
        %v1588 = vunpack.c.l.s4 1966171168
        %v1589 = vunpack.c.0.s8 %v1588
        %v1590 = vlaneseq
        %v1591 = vshrl.u32 %v1590, 7
        %v1592 = vsub.s32 %v1589, %v1591
        %v1593 = vrot.slane %v1565, %v1592
        %v1594 = vcombine.high %v1572, %v1572
        %v1595 = vcombine.high %v1579, %v1579
        %v1596 = vcombine.high %v1586, %v1586
        %v1597 = vcombine.high %v1593, %v1593
        %1606 = vst [vmem:[%s551 + $0x1] sm:$0x1] %v1572
        %1607 = vst [vmem:[%s551 + $0x9] sm:$0x1] %v1586
        %1608 = vst [vmem:[%s551 + $0x11] sm:$0x1] %v1594
        %1609 = vst [vmem:[%s551 + $0x19] sm:$0x1] %v1596
        %1610 = vst [vmem:[%s551 + $0x21] sm:$0x1] %v1579
        %1611 = vst [vmem:[%s551 + $0x29] sm:$0x1] %v1593
        %1612 = vst [vmem:[%s551 + $0x31] sm:$0x1] %v1595
        %1613 = vst [vmem:[%s551 + $0x39] sm:$0x1] %v1597
        %v1614 = vld [vmem:[#allocation2] sm:$0xff]
        %v1615 = vld [vmem:[#allocation3] sm:$0xff]
        %s1616 = scalar_lea.vmem [#allocation5], 32
        %v1617 = vld [vmem:[%s1616] sm:$0xff]
        %v1618 = vld [vmem:[%s1616 + $0x8] sm:$0xff]
        %v1619 = vunpack.c.l.bf16 %v1617
        %v1620 = vunpack.c.h.bf16 %v1617
        %v1621 = vunpack.c.l.bf16 %v1618
        %v1622 = vunpack.c.h.bf16 %v1618
        %v1623 = vpack.c.bf16 %v1614, %v1614
        %1624 = vmatprep.subr.bf16.mxu0 %v1202
        %1625 = vmatpush1.bf16.msra.mxu0 %v1201
        %1626 = vmatprep.subr.bf16.mxu0 %v1198
        %1627 = vmatpush1.bf16.msra.mxu0 %v1197
        %1628 = vmatprep.subr.bf16.mxu0 %v1194
        %1629 = vmatpush1.bf16.msra.mxu0 %v1193
        %1630 = vmatprep.subr.bf16.mxu0 %v1190
        %1631 = vmatpush1.bf16.msra.mxu0 %v1189
        %1632 = vmatprep.subr.bf16.mxu0 %v1186
        %1633 = vmatpush1.bf16.msra.mxu0 %v1185
        %1634 = vmatprep.subr.bf16.mxu0 %v1182
        %1635 = vmatpush1.bf16.msra.mxu0 %v1181
        %1636 = vmatprep.subr.bf16.mxu0 %v1178
        %1637 = vmatpush1.bf16.msra.mxu0 %v1177
        %1638 = vmatprep.subr.bf16.mxu0 %v1174
        %1639 = vmatpush1.bf16.msra.mxu0 %v1173
        %1640 = vmatprep.subr.bf16.mxu0 0
        %1641 = vmatpush2.bf16.msra.mxu0 0
        %1642 = vmatprep.subr.bf16.mxu0 0
        %1643 = vmatpush2.bf16.msra.mxu0 0
        %1644 = vmatprep.subr.bf16.mxu0 0
        %1645 = vmatpush2.bf16.msra.mxu0 0
        %1646 = vmatprep.subr.bf16.mxu0 0
        %1647 = vmatpush2.bf16.msra.mxu0 0
        %1648 = vmatprep.subr.bf16.mxu0 0
        %1649 = vmatpush2.bf16.msra.mxu0 0
        %1650 = vmatprep.subr.bf16.mxu0 0
        %1651 = vmatpush2.bf16.msra.mxu0 0
        %1652 = vmatprep.subr.bf16.mxu0 0
        %1653 = vmatpush2.bf16.msra.mxu0 0
        %1654 = vmatprep.subr.bf16.mxu0 0
        %1655 = vmatpush2.bf16.msra.mxu0 0
        %1656 = vmatprep.mubr.bf16.mxu0 0
        %1657 = vmatmul.mubr.bf16.gmra.mxu0 %v1623
        %v1658 = vpop.f32.mrf.mxu0
        %v1659 = vadd.f32 0.0, %v1658
        %v1660 = vpop.f32.mrf.mxu0
        %v1661 = vadd.f32 0.0, %v1660
        %v1662 = vpop.f32.mrf.mxu0
        %v1663 = vpop.f32.mrf.mxu0
        %1664 = vdwg.mxu0
        %1665 = vmatprep.subr.bf16.mxu0 %v1204
        %1666 = vmatpush1.bf16.msra.mxu0 %v1203
        %1667 = vmatprep.subr.bf16.mxu0 %v1200
        %1668 = vmatpush1.bf16.msra.mxu0 %v1199
        %1669 = vmatprep.subr.bf16.mxu0 %v1196
        %1670 = vmatpush1.bf16.msra.mxu0 %v1195
        %1671 = vmatprep.subr.bf16.mxu0 %v1192
        %1672 = vmatpush1.bf16.msra.mxu0 %v1191
        %1673 = vmatprep.subr.bf16.mxu0 %v1188
        %1674 = vmatpush1.bf16.msra.mxu0 %v1187
        %1675 = vmatprep.subr.bf16.mxu0 %v1184
        %1676 = vmatpush1.bf16.msra.mxu0 %v1183
        %1677 = vmatprep.subr.bf16.mxu0 %v1180
        %1678 = vmatpush1.bf16.msra.mxu0 %v1179
        %1679 = vmatprep.subr.bf16.mxu0 %v1176
        %1680 = vmatpush1.bf16.msra.mxu0 %v1175
        %1681 = vmatprep.subr.bf16.mxu0 0
        %1682 = vmatpush2.bf16.msra.mxu0 0
        %1683 = vmatprep.subr.bf16.mxu0 0
        %1684 = vmatpush2.bf16.msra.mxu0 0
        %1685 = vmatprep.subr.bf16.mxu0 0
        %1686 = vmatpush2.bf16.msra.mxu0 0
        %1687 = vmatprep.subr.bf16.mxu0 0
        %1688 = vmatpush2.bf16.msra.mxu0 0
        %1689 = vmatprep.subr.bf16.mxu0 0
        %1690 = vmatpush2.bf16.msra.mxu0 0
        %1691 = vmatprep.subr.bf16.mxu0 0
        %1692 = vmatpush2.bf16.msra.mxu0 0
        %1693 = vmatprep.subr.bf16.mxu0 0
        %1694 = vmatpush2.bf16.msra.mxu0 0
        %1695 = vmatprep.subr.bf16.mxu0 0
        %1696 = vmatpush2.bf16.msra.mxu0 0
        %1697 = vmatprep.mubr.bf16.mxu0 0
        %1698 = vmatmul.mubr.bf16.gmra.mxu0 %v1623
        %v1699 = vpop.f32.mrf.mxu0
        %v1700 = vadd.f32 0.0, %v1699
        %v1701 = vpop.f32.mrf.mxu0
        %v1702 = vadd.f32 0.0, %v1701
        %v1703 = vpop.f32.mrf.mxu0
        %v1704 = vpop.f32.mrf.mxu0
        %1705 = vdwg.mxu0
        %v1706 = vadd.f32 %v1619, %v1659
        %v1707 = vadd.f32 %v1620, %v1661
        %v1708 = vadd.f32 %v1621, %v1700
        %v1709 = vadd.f32 %v1622, %v1702
        %v1710 = vxor.u32 %v1706, 2147483648
        %v1711 = vmul.f32 %v1710, 1.442695
        %v1712 = vpow.pop %v1711
        %v1713 = vadd.f32 %v1712, 1.0
        %v1714 = vrcp.pop %v1713
        %v1715 = vmul.f32 1.0, %v1714
        %v1716 = vxor.u32 %v1707, 2147483648
        %v1717 = vmul.f32 %v1716, 1.442695
        %v1718 = vpow.pop %v1717
        %v1719 = vadd.f32 %v1718, 1.0
        %v1720 = vrcp.pop %v1719
        %v1721 = vmul.f32 1.0, %v1720
        %v1722 = vtanh.pop %v1708
        %v1723 = vxor.u32 %v1709, 2147483648
        %v1724 = vmul.f32 %v1723, 1.442695
        %v1725 = vpow.pop %v1724
        %v1726 = vadd.f32 %v1725, 1.0
        %v1727 = vrcp.pop %v1726
        %v1728 = vmul.f32 1.0, %v1727
        %v1729 = vmul.f32 %v1721, %v1615
        %v1730 = vmul.f32 %v1715, %v1722
        %v1731 = vadd.f32 %v1729, %v1730
        %v1732 = vtanh.pop %v1731
        %v1733 = vmul.f32 %v1728, %v1732
        %s1734 = sadd.s32 %s1067, 2
        %v1735 = vstv %s1734
        %vm1736 = vcmp.gt.s32.totalorder %v1066, %v1735
        %v1737 = vsel %vm1736, %v1731, %v1615
        %1738 = vst [vmem:[#allocation3] sm:$0xff] %v1737
        %v1739 = vsel %vm1736, %v1733, %v1614
        %1740 = vst [vmem:[#allocation2] sm:$0xff] %v1739
        %v1741 = vsel %vm1736, %v1733, 0.0
        %v1743 = vcombine.high %v1741, %v1741
        %v1745 = vunpack.c.l.s4 1966171168
        %v1746 = vunpack.c.0.s8 %v1745
        %v1747 = vlaneseq
        %v1748 = vshrl.u32 %v1747, 7
        %v1749 = vsub.s32 %v1746, %v1748
        %v1750 = vrot.slane %v1741, %v1749
        %v1752 = vunpack.c.l.s4 1966171168
        %v1753 = vunpack.c.0.s8 %v1752
        %v1754 = vlaneseq
        %v1755 = vshrl.u32 %v1754, 7
        %v1756 = vsub.s32 %v1753, %v1755
        %v1757 = vrot.slane %v1743, %v1756
        %v1758 = vcombine.high %v1750, %v1750
        %v1759 = vcombine.high %v1757, %v1757
        %v1761 = vunpack.c.l.s4 1966171168
        %v1762 = vunpack.c.0.s8 %v1761
        %v1763 = vlaneseq
        %v1764 = vshrl.u32 %v1763, 7
        %v1765 = vsub.s32 %v1762, %v1764
        %v1766 = vrot.slane %v1750, %v1765
        %v1768 = vunpack.c.l.s4 1966171168
        %v1769 = vunpack.c.0.s8 %v1768
        %v1770 = vlaneseq
        %v1771 = vshrl.u32 %v1770, 7
        %v1772 = vsub.s32 %v1769, %v1771
        %v1773 = vrot.slane %v1757, %v1772
        %v1775 = vunpack.c.l.s4 1966171168
        %v1776 = vunpack.c.0.s8 %v1775
        %v1777 = vlaneseq
        %v1778 = vshrl.u32 %v1777, 7
        %v1779 = vsub.s32 %v1776, %v1778
        %v1780 = vrot.slane %v1758, %v1779
        %v1782 = vunpack.c.l.s4 1966171168
        %v1783 = vunpack.c.0.s8 %v1782
        %v1784 = vlaneseq
        %v1785 = vshrl.u32 %v1784, 7
        %v1786 = vsub.s32 %v1783, %v1785
        %v1787 = vrot.slane %v1759, %v1786
        %v1788 = vcombine.high %v1766, %v1766
        %v1789 = vcombine.high %v1773, %v1773
        %v1790 = vcombine.high %v1780, %v1780
        %v1791 = vcombine.high %v1787, %v1787
        %1800 = vst [vmem:[%s551 + $0x2] sm:$0x1] %v1766
        %1801 = vst [vmem:[%s551 + $0xa] sm:$0x1] %v1780
        %1802 = vst [vmem:[%s551 + $0x12] sm:$0x1] %v1788
        %1803 = vst [vmem:[%s551 + $0x1a] sm:$0x1] %v1790
        %1804 = vst [vmem:[%s551 + $0x22] sm:$0x1] %v1773
        %1805 = vst [vmem:[%s551 + $0x2a] sm:$0x1] %v1787
        %1806 = vst [vmem:[%s551 + $0x32] sm:$0x1] %v1789
        %1807 = vst [vmem:[%s551 + $0x3a] sm:$0x1] %v1791
        %v1808 = vld [vmem:[#allocation2] sm:$0xff]
        %v1809 = vld [vmem:[#allocation3] sm:$0xff]
        %s1810 = scalar_lea.vmem [#allocation5], 48
        %v1811 = vld [vmem:[%s1810] sm:$0xff]
        %v1812 = vld [vmem:[%s1810 + $0x8] sm:$0xff]
        %v1813 = vunpack.c.l.bf16 %v1811
        %v1814 = vunpack.c.h.bf16 %v1811
        %v1815 = vunpack.c.l.bf16 %v1812
        %v1816 = vunpack.c.h.bf16 %v1812
        %v1817 = vpack.c.bf16 %v1808, %v1808
        %1818 = vmatprep.subr.bf16.mxu0 %v1202
        %1819 = vmatpush1.bf16.msra.mxu0 %v1201
        %1820 = vmatprep.subr.bf16.mxu0 %v1198
        %1821 = vmatpush1.bf16.msra.mxu0 %v1197
        %1822 = vmatprep.subr.bf16.mxu0 %v1194
        %1823 = vmatpush1.bf16.msra.mxu0 %v1193
        %1824 = vmatprep.subr.bf16.mxu0 %v1190
        %1825 = vmatpush1.bf16.msra.mxu0 %v1189
        %1826 = vmatprep.subr.bf16.mxu0 %v1186
        %1827 = vmatpush1.bf16.msra.mxu0 %v1185
        %1828 = vmatprep.subr.bf16.mxu0 %v1182
        %1829 = vmatpush1.bf16.msra.mxu0 %v1181
        %1830 = vmatprep.subr.bf16.mxu0 %v1178
        %1831 = vmatpush1.bf16.msra.mxu0 %v1177
        %1832 = vmatprep.subr.bf16.mxu0 %v1174
        %1833 = vmatpush1.bf16.msra.mxu0 %v1173
        %1834 = vmatprep.subr.bf16.mxu0 0
        %1835 = vmatpush2.bf16.msra.mxu0 0
        %1836 = vmatprep.subr.bf16.mxu0 0
        %1837 = vmatpush2.bf16.msra.mxu0 0
        %1838 = vmatprep.subr.bf16.mxu0 0
        %1839 = vmatpush2.bf16.msra.mxu0 0
        %1840 = vmatprep.subr.bf16.mxu0 0
        %1841 = vmatpush2.bf16.msra.mxu0 0
        %1842 = vmatprep.subr.bf16.mxu0 0
        %1843 = vmatpush2.bf16.msra.mxu0 0
        %1844 = vmatprep.subr.bf16.mxu0 0
        %1845 = vmatpush2.bf16.msra.mxu0 0
        %1846 = vmatprep.subr.bf16.mxu0 0
        %1847 = vmatpush2.bf16.msra.mxu0 0
        %1848 = vmatprep.subr.bf16.mxu0 0
        %1849 = vmatpush2.bf16.msra.mxu0 0
        %1850 = vmatprep.mubr.bf16.mxu0 0
        %1851 = vmatmul.mubr.bf16.gmra.mxu0 %v1817
        %v1852 = vpop.f32.mrf.mxu0
        %v1853 = vadd.f32 0.0, %v1852
        %v1854 = vpop.f32.mrf.mxu0
        %v1855 = vadd.f32 0.0, %v1854
        %v1856 = vpop.f32.mrf.mxu0
        %v1857 = vpop.f32.mrf.mxu0
        %1858 = vdwg.mxu0
        %1859 = vmatprep.subr.bf16.mxu0 %v1204
        %1860 = vmatpush1.bf16.msra.mxu0 %v1203
        %1861 = vmatprep.subr.bf16.mxu0 %v1200
        %1862 = vmatpush1.bf16.msra.mxu0 %v1199
        %1863 = vmatprep.subr.bf16.mxu0 %v1196
        %1864 = vmatpush1.bf16.msra.mxu0 %v1195
        %1865 = vmatprep.subr.bf16.mxu0 %v1192
        %1866 = vmatpush1.bf16.msra.mxu0 %v1191
        %1867 = vmatprep.subr.bf16.mxu0 %v1188
        %1868 = vmatpush1.bf16.msra.mxu0 %v1187
        %1869 = vmatprep.subr.bf16.mxu0 %v1184
        %1870 = vmatpush1.bf16.msra.mxu0 %v1183
        %1871 = vmatprep.subr.bf16.mxu0 %v1180
        %1872 = vmatpush1.bf16.msra.mxu0 %v1179
        %1873 = vmatprep.subr.bf16.mxu0 %v1176
        %1874 = vmatpush1.bf16.msra.mxu0 %v1175
        %1875 = vmatprep.subr.bf16.mxu0 0
        %1876 = vmatpush2.bf16.msra.mxu0 0
        %1877 = vmatprep.subr.bf16.mxu0 0
        %1878 = vmatpush2.bf16.msra.mxu0 0
        %1879 = vmatprep.subr.bf16.mxu0 0
        %1880 = vmatpush2.bf16.msra.mxu0 0
        %1881 = vmatprep.subr.bf16.mxu0 0
        %1882 = vmatpush2.bf16.msra.mxu0 0
        %1883 = vmatprep.subr.bf16.mxu0 0
        %1884 = vmatpush2.bf16.msra.mxu0 0
        %1885 = vmatprep.subr.bf16.mxu0 0
        %1886 = vmatpush2.bf16.msra.mxu0 0
        %1887 = vmatprep.subr.bf16.mxu0 0
        %1888 = vmatpush2.bf16.msra.mxu0 0
        %1889 = vmatprep.subr.bf16.mxu0 0
        %1890 = vmatpush2.bf16.msra.mxu0 0
        %1891 = vmatprep.mubr.bf16.mxu0 0
        %1892 = vmatmul.mubr.bf16.gmra.mxu0 %v1817
        %v1893 = vpop.f32.mrf.mxu0
        %v1894 = vadd.f32 0.0, %v1893
        %v1895 = vpop.f32.mrf.mxu0
        %v1896 = vadd.f32 0.0, %v1895
        %v1897 = vpop.f32.mrf.mxu0
        %v1898 = vpop.f32.mrf.mxu0
        %1899 = vdwg.mxu0
        %v1900 = vadd.f32 %v1813, %v1853
        %v1901 = vadd.f32 %v1814, %v1855
        %v1902 = vadd.f32 %v1815, %v1894
        %v1903 = vadd.f32 %v1816, %v1896
        %v1904 = vxor.u32 %v1900, 2147483648
        %v1905 = vmul.f32 %v1904, 1.442695
        %v1906 = vpow.pop %v1905
        %v1907 = vadd.f32 %v1906, 1.0
        %v1908 = vrcp.pop %v1907
        %v1909 = vmul.f32 1.0, %v1908
        %v1910 = vxor.u32 %v1901, 2147483648
        %v1911 = vmul.f32 %v1910, 1.442695
        %v1912 = vpow.pop %v1911
        %v1913 = vadd.f32 %v1912, 1.0
        %v1914 = vrcp.pop %v1913
        %v1915 = vmul.f32 1.0, %v1914
        %v1916 = vtanh.pop %v1902
        %v1917 = vxor.u32 %v1903, 2147483648
        %v1918 = vmul.f32 %v1917, 1.442695
        %v1919 = vpow.pop %v1918
        %v1920 = vadd.f32 %v1919, 1.0
        %v1921 = vrcp.pop %v1920
        %v1922 = vmul.f32 1.0, %v1921
        %v1923 = vmul.f32 %v1915, %v1809
        %v1924 = vmul.f32 %v1909, %v1916
        %v1925 = vadd.f32 %v1923, %v1924
        %v1926 = vtanh.pop %v1925
        %v1927 = vmul.f32 %v1922, %v1926
        %s1928 = sadd.s32 %s1067, 3
        %v1929 = vstv %s1928
        %vm1930 = vcmp.gt.s32.totalorder %v1066, %v1929
        %v1931 = vsel %vm1930, %v1925, %v1809
        %1932 = vst [vmem:[#allocation3] sm:$0xff] %v1931
        %v1933 = vsel %vm1930, %v1927, %v1808
        %1934 = vst [vmem:[#allocation2] sm:$0xff] %v1933
        %v1935 = vsel %vm1930, %v1927, 0.0
        %v1937 = vcombine.high %v1935, %v1935
        %v1939 = vunpack.c.l.s4 1966171168
        %v1940 = vunpack.c.0.s8 %v1939
        %v1941 = vlaneseq
        %v1942 = vshrl.u32 %v1941, 7
        %v1943 = vsub.s32 %v1940, %v1942
        %v1944 = vrot.slane %v1935, %v1943
        %v1946 = vunpack.c.l.s4 1966171168
        %v1947 = vunpack.c.0.s8 %v1946
        %v1948 = vlaneseq
        %v1949 = vshrl.u32 %v1948, 7
        %v1950 = vsub.s32 %v1947, %v1949
        %v1951 = vrot.slane %v1937, %v1950
        %v1952 = vcombine.high %v1944, %v1944
        %v1953 = vcombine.high %v1951, %v1951
        %v1955 = vunpack.c.l.s4 1966171168
        %v1956 = vunpack.c.0.s8 %v1955
        %v1957 = vlaneseq
        %v1958 = vshrl.u32 %v1957, 7
        %v1959 = vsub.s32 %v1956, %v1958
        %v1960 = vrot.slane %v1944, %v1959
        %v1962 = vunpack.c.l.s4 1966171168
        %v1963 = vunpack.c.0.s8 %v1962
        %v1964 = vlaneseq
        %v1965 = vshrl.u32 %v1964, 7
        %v1966 = vsub.s32 %v1963, %v1965
        %v1967 = vrot.slane %v1951, %v1966
        %v1969 = vunpack.c.l.s4 1966171168
        %v1970 = vunpack.c.0.s8 %v1969
        %v1971 = vlaneseq
        %v1972 = vshrl.u32 %v1971, 7
        %v1973 = vsub.s32 %v1970, %v1972
        %v1974 = vrot.slane %v1952, %v1973
        %v1976 = vunpack.c.l.s4 1966171168
        %v1977 = vunpack.c.0.s8 %v1976
        %v1978 = vlaneseq
        %v1979 = vshrl.u32 %v1978, 7
        %v1980 = vsub.s32 %v1977, %v1979
        %v1981 = vrot.slane %v1953, %v1980
        %v1982 = vcombine.high %v1960, %v1960
        %v1983 = vcombine.high %v1967, %v1967
        %v1984 = vcombine.high %v1974, %v1974
        %v1985 = vcombine.high %v1981, %v1981
        %1994 = vst [vmem:[%s551 + $0x3] sm:$0x1] %v1960
        %1995 = vst [vmem:[%s551 + $0xb] sm:$0x1] %v1974
        %1996 = vst [vmem:[%s551 + $0x13] sm:$0x1] %v1982
        %1997 = vst [vmem:[%s551 + $0x1b] sm:$0x1] %v1984
        %1998 = vst [vmem:[%s551 + $0x23] sm:$0x1] %v1967
        %1999 = vst [vmem:[%s551 + $0x2b] sm:$0x1] %v1981
        %2000 = vst [vmem:[%s551 + $0x33] sm:$0x1] %v1983
        %2001 = vst [vmem:[%s551 + $0x3b] sm:$0x1] %v1985
        %v2002 = vld [vmem:[#allocation2] sm:$0xff]
        %v2003 = vld [vmem:[#allocation3] sm:$0xff]
        %s2004 = scalar_lea.vmem [#allocation5], 64
        %v2005 = vld [vmem:[%s2004] sm:$0xff]
        %v2006 = vld [vmem:[%s2004 + $0x8] sm:$0xff]
        %v2007 = vunpack.c.l.bf16 %v2005
        %v2008 = vunpack.c.h.bf16 %v2005
        %v2009 = vunpack.c.l.bf16 %v2006
        %v2010 = vunpack.c.h.bf16 %v2006
        %v2011 = vpack.c.bf16 %v2002, %v2002
        %2012 = vmatprep.subr.bf16.mxu0 %v1202
        %2013 = vmatpush1.bf16.msra.mxu0 %v1201
        %2014 = vmatprep.subr.bf16.mxu0 %v1198
        %2015 = vmatpush1.bf16.msra.mxu0 %v1197
        %2016 = vmatprep.subr.bf16.mxu0 %v1194
        %2017 = vmatpush1.bf16.msra.mxu0 %v1193
        %2018 = vmatprep.subr.bf16.mxu0 %v1190
        %2019 = vmatpush1.bf16.msra.mxu0 %v1189
        %2020 = vmatprep.subr.bf16.mxu0 %v1186
        %2021 = vmatpush1.bf16.msra.mxu0 %v1185
        %2022 = vmatprep.subr.bf16.mxu0 %v1182
        %2023 = vmatpush1.bf16.msra.mxu0 %v1181
        %2024 = vmatprep.subr.bf16.mxu0 %v1178
        %2025 = vmatpush1.bf16.msra.mxu0 %v1177
        %2026 = vmatprep.subr.bf16.mxu0 %v1174
        %2027 = vmatpush1.bf16.msra.mxu0 %v1173
        %2028 = vmatprep.subr.bf16.mxu0 0
        %2029 = vmatpush2.bf16.msra.mxu0 0
        %2030 = vmatprep.subr.bf16.mxu0 0
        %2031 = vmatpush2.bf16.msra.mxu0 0
        %2032 = vmatprep.subr.bf16.mxu0 0
        %2033 = vmatpush2.bf16.msra.mxu0 0
        %2034 = vmatprep.subr.bf16.mxu0 0
        %2035 = vmatpush2.bf16.msra.mxu0 0
        %2036 = vmatprep.subr.bf16.mxu0 0
        %2037 = vmatpush2.bf16.msra.mxu0 0
        %2038 = vmatprep.subr.bf16.mxu0 0
        %2039 = vmatpush2.bf16.msra.mxu0 0
        %2040 = vmatprep.subr.bf16.mxu0 0
        %2041 = vmatpush2.bf16.msra.mxu0 0
        %2042 = vmatprep.subr.bf16.mxu0 0
        %2043 = vmatpush2.bf16.msra.mxu0 0
        %2044 = vmatprep.mubr.bf16.mxu0 0
        %2045 = vmatmul.mubr.bf16.gmra.mxu0 %v2011
        %v2046 = vpop.f32.mrf.mxu0
        %v2047 = vadd.f32 0.0, %v2046
        %v2048 = vpop.f32.mrf.mxu0
        %v2049 = vadd.f32 0.0, %v2048
        %v2050 = vpop.f32.mrf.mxu0
        %v2051 = vpop.f32.mrf.mxu0
        %2052 = vdwg.mxu0
        %2053 = vmatprep.subr.bf16.mxu0 %v1204
        %2054 = vmatpush1.bf16.msra.mxu0 %v1203
        %2055 = vmatprep.subr.bf16.mxu0 %v1200
        %2056 = vmatpush1.bf16.msra.mxu0 %v1199
        %2057 = vmatprep.subr.bf16.mxu0 %v1196
        %2058 = vmatpush1.bf16.msra.mxu0 %v1195
        %2059 = vmatprep.subr.bf16.mxu0 %v1192
        %2060 = vmatpush1.bf16.msra.mxu0 %v1191
        %2061 = vmatprep.subr.bf16.mxu0 %v1188
        %2062 = vmatpush1.bf16.msra.mxu0 %v1187
        %2063 = vmatprep.subr.bf16.mxu0 %v1184
        %2064 = vmatpush1.bf16.msra.mxu0 %v1183
        %2065 = vmatprep.subr.bf16.mxu0 %v1180
        %2066 = vmatpush1.bf16.msra.mxu0 %v1179
        %2067 = vmatprep.subr.bf16.mxu0 %v1176
        %2068 = vmatpush1.bf16.msra.mxu0 %v1175
        %2069 = vmatprep.subr.bf16.mxu0 0
        %2070 = vmatpush2.bf16.msra.mxu0 0
        %2071 = vmatprep.subr.bf16.mxu0 0
        %2072 = vmatpush2.bf16.msra.mxu0 0
        %2073 = vmatprep.subr.bf16.mxu0 0
        %2074 = vmatpush2.bf16.msra.mxu0 0
        %2075 = vmatprep.subr.bf16.mxu0 0
        %2076 = vmatpush2.bf16.msra.mxu0 0
        %2077 = vmatprep.subr.bf16.mxu0 0
        %2078 = vmatpush2.bf16.msra.mxu0 0
        %2079 = vmatprep.subr.bf16.mxu0 0
        %2080 = vmatpush2.bf16.msra.mxu0 0
        %2081 = vmatprep.subr.bf16.mxu0 0
        %2082 = vmatpush2.bf16.msra.mxu0 0
        %2083 = vmatprep.subr.bf16.mxu0 0
        %2084 = vmatpush2.bf16.msra.mxu0 0
        %2085 = vmatprep.mubr.bf16.mxu0 0
        %2086 = vmatmul.mubr.bf16.gmra.mxu0 %v2011
        %v2087 = vpop.f32.mrf.mxu0
        %v2088 = vadd.f32 0.0, %v2087
        %v2089 = vpop.f32.mrf.mxu0
        %v2090 = vadd.f32 0.0, %v2089
        %v2091 = vpop.f32.mrf.mxu0
        %v2092 = vpop.f32.mrf.mxu0
        %2093 = vdwg.mxu0
        %v2094 = vadd.f32 %v2007, %v2047
        %v2095 = vadd.f32 %v2008, %v2049
        %v2096 = vadd.f32 %v2009, %v2088
        %v2097 = vadd.f32 %v2010, %v2090
        %v2098 = vxor.u32 %v2094, 2147483648
        %v2099 = vmul.f32 %v2098, 1.442695
        %v2100 = vpow.pop %v2099
        %v2101 = vadd.f32 %v2100, 1.0
        %v2102 = vrcp.pop %v2101
        %v2103 = vmul.f32 1.0, %v2102
        %v2104 = vxor.u32 %v2095, 2147483648
        %v2105 = vmul.f32 %v2104, 1.442695
        %v2106 = vpow.pop %v2105
        %v2107 = vadd.f32 %v2106, 1.0
        %v2108 = vrcp.pop %v2107
        %v2109 = vmul.f32 1.0, %v2108
        %v2110 = vtanh.pop %v2096
        %v2111 = vxor.u32 %v2097, 2147483648
        %v2112 = vmul.f32 %v2111, 1.442695
        %v2113 = vpow.pop %v2112
        %v2114 = vadd.f32 %v2113, 1.0
        %v2115 = vrcp.pop %v2114
        %v2116 = vmul.f32 1.0, %v2115
        %v2117 = vmul.f32 %v2109, %v2003
        %v2118 = vmul.f32 %v2103, %v2110
        %v2119 = vadd.f32 %v2117, %v2118
        %v2120 = vtanh.pop %v2119
        %v2121 = vmul.f32 %v2116, %v2120
        %s2122 = sadd.s32 %s1067, 4
        %v2123 = vstv %s2122
        %vm2124 = vcmp.gt.s32.totalorder %v1066, %v2123
        %v2125 = vsel %vm2124, %v2119, %v2003
        %2126 = vst [vmem:[#allocation3] sm:$0xff] %v2125
        %v2127 = vsel %vm2124, %v2121, %v2002
        %2128 = vst [vmem:[#allocation2] sm:$0xff] %v2127
        %v2129 = vsel %vm2124, %v2121, 0.0
        %v2131 = vcombine.high %v2129, %v2129
        %v2133 = vunpack.c.l.s4 1966171168
        %v2134 = vunpack.c.0.s8 %v2133
        %v2135 = vlaneseq
        %v2136 = vshrl.u32 %v2135, 7
        %v2137 = vsub.s32 %v2134, %v2136
        %v2138 = vrot.slane %v2129, %v2137
        %v2140 = vunpack.c.l.s4 1966171168
        %v2141 = vunpack.c.0.s8 %v2140
        %v2142 = vlaneseq
        %v2143 = vshrl.u32 %v2142, 7
        %v2144 = vsub.s32 %v2141, %v2143
        %v2145 = vrot.slane %v2131, %v2144
        %v2146 = vcombine.high %v2138, %v2138
        %v2147 = vcombine.high %v2145, %v2145
        %v2149 = vunpack.c.l.s4 1966171168
        %v2150 = vunpack.c.0.s8 %v2149
        %v2151 = vlaneseq
        %v2152 = vshrl.u32 %v2151, 7
        %v2153 = vsub.s32 %v2150, %v2152
        %v2154 = vrot.slane %v2138, %v2153
        %v2156 = vunpack.c.l.s4 1966171168
        %v2157 = vunpack.c.0.s8 %v2156
        %v2158 = vlaneseq
        %v2159 = vshrl.u32 %v2158, 7
        %v2160 = vsub.s32 %v2157, %v2159
        %v2161 = vrot.slane %v2145, %v2160
        %v2163 = vunpack.c.l.s4 1966171168
        %v2164 = vunpack.c.0.s8 %v2163
        %v2165 = vlaneseq
        %v2166 = vshrl.u32 %v2165, 7
        %v2167 = vsub.s32 %v2164, %v2166
        %v2168 = vrot.slane %v2146, %v2167
        %v2170 = vunpack.c.l.s4 1966171168
        %v2171 = vunpack.c.0.s8 %v2170
        %v2172 = vlaneseq
        %v2173 = vshrl.u32 %v2172, 7
        %v2174 = vsub.s32 %v2171, %v2173
        %v2175 = vrot.slane %v2147, %v2174
        %v2176 = vcombine.high %v2154, %v2154
        %v2177 = vcombine.high %v2161, %v2161
        %v2178 = vcombine.high %v2168, %v2168
        %v2179 = vcombine.high %v2175, %v2175
        %2188 = vst [vmem:[%s551 + $0x4] sm:$0x1] %v2154
        %2189 = vst [vmem:[%s551 + $0xc] sm:$0x1] %v2168
        %2190 = vst [vmem:[%s551 + $0x14] sm:$0x1] %v2176
        %2191 = vst [vmem:[%s551 + $0x1c] sm:$0x1] %v2178
        %2192 = vst [vmem:[%s551 + $0x24] sm:$0x1] %v2161
        %2193 = vst [vmem:[%s551 + $0x2c] sm:$0x1] %v2175
        %2194 = vst [vmem:[%s551 + $0x34] sm:$0x1] %v2177
        %2195 = vst [vmem:[%s551 + $0x3c] sm:$0x1] %v2179
        %v2196 = vld [vmem:[#allocation2] sm:$0xff]
        %v2197 = vld [vmem:[#allocation3] sm:$0xff]
        %s2198 = scalar_lea.vmem [#allocation5], 80
        %v2199 = vld [vmem:[%s2198] sm:$0xff]
        %v2200 = vld [vmem:[%s2198 + $0x8] sm:$0xff]
        %v2201 = vunpack.c.l.bf16 %v2199
        %v2202 = vunpack.c.h.bf16 %v2199
        %v2203 = vunpack.c.l.bf16 %v2200
        %v2204 = vunpack.c.h.bf16 %v2200
        %v2205 = vpack.c.bf16 %v2196, %v2196
        %2206 = vmatprep.subr.bf16.mxu0 %v1202
        %2207 = vmatpush1.bf16.msra.mxu0 %v1201
        %2208 = vmatprep.subr.bf16.mxu0 %v1198
        %2209 = vmatpush1.bf16.msra.mxu0 %v1197
        %2210 = vmatprep.subr.bf16.mxu0 %v1194
        %2211 = vmatpush1.bf16.msra.mxu0 %v1193
        %2212 = vmatprep.subr.bf16.mxu0 %v1190
        %2213 = vmatpush1.bf16.msra.mxu0 %v1189
        %2214 = vmatprep.subr.bf16.mxu0 %v1186
        %2215 = vmatpush1.bf16.msra.mxu0 %v1185
        %2216 = vmatprep.subr.bf16.mxu0 %v1182
        %2217 = vmatpush1.bf16.msra.mxu0 %v1181
        %2218 = vmatprep.subr.bf16.mxu0 %v1178
        %2219 = vmatpush1.bf16.msra.mxu0 %v1177
        %2220 = vmatprep.subr.bf16.mxu0 %v1174
        %2221 = vmatpush1.bf16.msra.mxu0 %v1173
        %2222 = vmatprep.subr.bf16.mxu0 0
        %2223 = vmatpush2.bf16.msra.mxu0 0
        %2224 = vmatprep.subr.bf16.mxu0 0
        %2225 = vmatpush2.bf16.msra.mxu0 0
        %2226 = vmatprep.subr.bf16.mxu0 0
        %2227 = vmatpush2.bf16.msra.mxu0 0
        %2228 = vmatprep.subr.bf16.mxu0 0
        %2229 = vmatpush2.bf16.msra.mxu0 0
        %2230 = vmatprep.subr.bf16.mxu0 0
        %2231 = vmatpush2.bf16.msra.mxu0 0
        %2232 = vmatprep.subr.bf16.mxu0 0
        %2233 = vmatpush2.bf16.msra.mxu0 0
        %2234 = vmatprep.subr.bf16.mxu0 0
        %2235 = vmatpush2.bf16.msra.mxu0 0
        %2236 = vmatprep.subr.bf16.mxu0 0
        %2237 = vmatpush2.bf16.msra.mxu0 0
        %2238 = vmatprep.mubr.bf16.mxu0 0
        %2239 = vmatmul.mubr.bf16.gmra.mxu0 %v2205
        %v2240 = vpop.f32.mrf.mxu0
        %v2241 = vadd.f32 0.0, %v2240
        %v2242 = vpop.f32.mrf.mxu0
        %v2243 = vadd.f32 0.0, %v2242
        %v2244 = vpop.f32.mrf.mxu0
        %v2245 = vpop.f32.mrf.mxu0
        %2246 = vdwg.mxu0
        %2247 = vmatprep.subr.bf16.mxu0 %v1204
        %2248 = vmatpush1.bf16.msra.mxu0 %v1203
        %2249 = vmatprep.subr.bf16.mxu0 %v1200
        %2250 = vmatpush1.bf16.msra.mxu0 %v1199
        %2251 = vmatprep.subr.bf16.mxu0 %v1196
        %2252 = vmatpush1.bf16.msra.mxu0 %v1195
        %2253 = vmatprep.subr.bf16.mxu0 %v1192
        %2254 = vmatpush1.bf16.msra.mxu0 %v1191
        %2255 = vmatprep.subr.bf16.mxu0 %v1188
        %2256 = vmatpush1.bf16.msra.mxu0 %v1187
        %2257 = vmatprep.subr.bf16.mxu0 %v1184
        %2258 = vmatpush1.bf16.msra.mxu0 %v1183
        %2259 = vmatprep.subr.bf16.mxu0 %v1180
        %2260 = vmatpush1.bf16.msra.mxu0 %v1179
        %2261 = vmatprep.subr.bf16.mxu0 %v1176
        %2262 = vmatpush1.bf16.msra.mxu0 %v1175
        %2263 = vmatprep.subr.bf16.mxu0 0
        %2264 = vmatpush2.bf16.msra.mxu0 0
        %2265 = vmatprep.subr.bf16.mxu0 0
        %2266 = vmatpush2.bf16.msra.mxu0 0
        %2267 = vmatprep.subr.bf16.mxu0 0
        %2268 = vmatpush2.bf16.msra.mxu0 0
        %2269 = vmatprep.subr.bf16.mxu0 0
        %2270 = vmatpush2.bf16.msra.mxu0 0
        %2271 = vmatprep.subr.bf16.mxu0 0
        %2272 = vmatpush2.bf16.msra.mxu0 0
        %2273 = vmatprep.subr.bf16.mxu0 0
        %2274 = vmatpush2.bf16.msra.mxu0 0
        %2275 = vmatprep.subr.bf16.mxu0 0
        %2276 = vmatpush2.bf16.msra.mxu0 0
        %2277 = vmatprep.subr.bf16.mxu0 0
        %2278 = vmatpush2.bf16.msra.mxu0 0
        %2279 = vmatprep.mubr.bf16.mxu0 0
        %2280 = vmatmul.mubr.bf16.gmra.mxu0 %v2205
        %v2281 = vpop.f32.mrf.mxu0
        %v2282 = vadd.f32 0.0, %v2281
        %v2283 = vpop.f32.mrf.mxu0
        %v2284 = vadd.f32 0.0, %v2283
        %v2285 = vpop.f32.mrf.mxu0
        %v2286 = vpop.f32.mrf.mxu0
        %2287 = vdwg.mxu0
        %v2288 = vadd.f32 %v2201, %v2241
        %v2289 = vadd.f32 %v2202, %v2243
        %v2290 = vadd.f32 %v2203, %v2282
        %v2291 = vadd.f32 %v2204, %v2284
        %v2292 = vxor.u32 %v2288, 2147483648
        %v2293 = vmul.f32 %v2292, 1.442695
        %v2294 = vpow.pop %v2293
        %v2295 = vadd.f32 %v2294, 1.0
        %v2296 = vrcp.pop %v2295
        %v2297 = vmul.f32 1.0, %v2296
        %v2298 = vxor.u32 %v2289, 2147483648
        %v2299 = vmul.f32 %v2298, 1.442695
        %v2300 = vpow.pop %v2299
        %v2301 = vadd.f32 %v2300, 1.0
        %v2302 = vrcp.pop %v2301
        %v2303 = vmul.f32 1.0, %v2302
        %v2304 = vtanh.pop %v2290
        %v2305 = vxor.u32 %v2291, 2147483648
        %v2306 = vmul.f32 %v2305, 1.442695
        %v2307 = vpow.pop %v2306
        %v2308 = vadd.f32 %v2307, 1.0
        %v2309 = vrcp.pop %v2308
        %v2310 = vmul.f32 1.0, %v2309
        %v2311 = vmul.f32 %v2303, %v2197
        %v2312 = vmul.f32 %v2297, %v2304
        %v2313 = vadd.f32 %v2311, %v2312
        %v2314 = vtanh.pop %v2313
        %v2315 = vmul.f32 %v2310, %v2314
        %s2316 = sadd.s32 %s1067, 5
        %v2317 = vstv %s2316
        %vm2318 = vcmp.gt.s32.totalorder %v1066, %v2317
        %v2319 = vsel %vm2318, %v2313, %v2197
        %2320 = vst [vmem:[#allocation3] sm:$0xff] %v2319
        %v2321 = vsel %vm2318, %v2315, %v2196
        %2322 = vst [vmem:[#allocation2] sm:$0xff] %v2321
        %v2323 = vsel %vm2318, %v2315, 0.0
        %v2325 = vcombine.high %v2323, %v2323
        %v2327 = vunpack.c.l.s4 1966171168
        %v2328 = vunpack.c.0.s8 %v2327
        %v2329 = vlaneseq
        %v2330 = vshrl.u32 %v2329, 7
        %v2331 = vsub.s32 %v2328, %v2330
        %v2332 = vrot.slane %v2323, %v2331
        %v2334 = vunpack.c.l.s4 1966171168
        %v2335 = vunpack.c.0.s8 %v2334
        %v2336 = vlaneseq
        %v2337 = vshrl.u32 %v2336, 7
        %v2338 = vsub.s32 %v2335, %v2337
        %v2339 = vrot.slane %v2325, %v2338
        %v2340 = vcombine.high %v2332, %v2332
        %v2341 = vcombine.high %v2339, %v2339
        %v2343 = vunpack.c.l.s4 1966171168
        %v2344 = vunpack.c.0.s8 %v2343
        %v2345 = vlaneseq
        %v2346 = vshrl.u32 %v2345, 7
        %v2347 = vsub.s32 %v2344, %v2346
        %v2348 = vrot.slane %v2332, %v2347
        %v2350 = vunpack.c.l.s4 1966171168
        %v2351 = vunpack.c.0.s8 %v2350
        %v2352 = vlaneseq
        %v2353 = vshrl.u32 %v2352, 7
        %v2354 = vsub.s32 %v2351, %v2353
        %v2355 = vrot.slane %v2339, %v2354
        %v2357 = vunpack.c.l.s4 1966171168
        %v2358 = vunpack.c.0.s8 %v2357
        %v2359 = vlaneseq
        %v2360 = vshrl.u32 %v2359, 7
        %v2361 = vsub.s32 %v2358, %v2360
        %v2362 = vrot.slane %v2340, %v2361
        %v2364 = vunpack.c.l.s4 1966171168
        %v2365 = vunpack.c.0.s8 %v2364
        %v2366 = vlaneseq
        %v2367 = vshrl.u32 %v2366, 7
        %v2368 = vsub.s32 %v2365, %v2367
        %v2369 = vrot.slane %v2341, %v2368
        %v2370 = vcombine.high %v2348, %v2348
        %v2371 = vcombine.high %v2355, %v2355
        %v2372 = vcombine.high %v2362, %v2362
        %v2373 = vcombine.high %v2369, %v2369
        %2382 = vst [vmem:[%s551 + $0x5] sm:$0x1] %v2348
        %2383 = vst [vmem:[%s551 + $0xd] sm:$0x1] %v2362
        %2384 = vst [vmem:[%s551 + $0x15] sm:$0x1] %v2370
        %2385 = vst [vmem:[%s551 + $0x1d] sm:$0x1] %v2372
        %2386 = vst [vmem:[%s551 + $0x25] sm:$0x1] %v2355
        %2387 = vst [vmem:[%s551 + $0x2d] sm:$0x1] %v2369
        %2388 = vst [vmem:[%s551 + $0x35] sm:$0x1] %v2371
        %2389 = vst [vmem:[%s551 + $0x3d] sm:$0x1] %v2373
        %v2390 = vld [vmem:[#allocation2] sm:$0xff]
        %v2391 = vld [vmem:[#allocation3] sm:$0xff]
        %s2392 = scalar_lea.vmem [#allocation5], 96
        %v2393 = vld [vmem:[%s2392] sm:$0xff]
        %v2394 = vld [vmem:[%s2392 + $0x8] sm:$0xff]
        %v2395 = vunpack.c.l.bf16 %v2393
        %v2396 = vunpack.c.h.bf16 %v2393
        %v2397 = vunpack.c.l.bf16 %v2394
        %v2398 = vunpack.c.h.bf16 %v2394
        %v2399 = vpack.c.bf16 %v2390, %v2390
        %2400 = vmatprep.subr.bf16.mxu0 %v1202
        %2401 = vmatpush1.bf16.msra.mxu0 %v1201
        %2402 = vmatprep.subr.bf16.mxu0 %v1198
        %2403 = vmatpush1.bf16.msra.mxu0 %v1197
        %2404 = vmatprep.subr.bf16.mxu0 %v1194
        %2405 = vmatpush1.bf16.msra.mxu0 %v1193
        %2406 = vmatprep.subr.bf16.mxu0 %v1190
        %2407 = vmatpush1.bf16.msra.mxu0 %v1189
        %2408 = vmatprep.subr.bf16.mxu0 %v1186
        %2409 = vmatpush1.bf16.msra.mxu0 %v1185
        %2410 = vmatprep.subr.bf16.mxu0 %v1182
        %2411 = vmatpush1.bf16.msra.mxu0 %v1181
        %2412 = vmatprep.subr.bf16.mxu0 %v1178
        %2413 = vmatpush1.bf16.msra.mxu0 %v1177
        %2414 = vmatprep.subr.bf16.mxu0 %v1174
        %2415 = vmatpush1.bf16.msra.mxu0 %v1173
        %2416 = vmatprep.subr.bf16.mxu0 0
        %2417 = vmatpush2.bf16.msra.mxu0 0
        %2418 = vmatprep.subr.bf16.mxu0 0
        %2419 = vmatpush2.bf16.msra.mxu0 0
        %2420 = vmatprep.subr.bf16.mxu0 0
        %2421 = vmatpush2.bf16.msra.mxu0 0
        %2422 = vmatprep.subr.bf16.mxu0 0
        %2423 = vmatpush2.bf16.msra.mxu0 0
        %2424 = vmatprep.subr.bf16.mxu0 0
        %2425 = vmatpush2.bf16.msra.mxu0 0
        %2426 = vmatprep.subr.bf16.mxu0 0
        %2427 = vmatpush2.bf16.msra.mxu0 0
        %2428 = vmatprep.subr.bf16.mxu0 0
        %2429 = vmatpush2.bf16.msra.mxu0 0
        %2430 = vmatprep.subr.bf16.mxu0 0
        %2431 = vmatpush2.bf16.msra.mxu0 0
        %2432 = vmatprep.mubr.bf16.mxu0 0
        %2433 = vmatmul.mubr.bf16.gmra.mxu0 %v2399
        %v2434 = vpop.f32.mrf.mxu0
        %v2435 = vadd.f32 0.0, %v2434
        %v2436 = vpop.f32.mrf.mxu0
        %v2437 = vadd.f32 0.0, %v2436
        %v2438 = vpop.f32.mrf.mxu0
        %v2439 = vpop.f32.mrf.mxu0
        %2440 = vdwg.mxu0
        %2441 = vmatprep.subr.bf16.mxu0 %v1204
        %2442 = vmatpush1.bf16.msra.mxu0 %v1203
        %2443 = vmatprep.subr.bf16.mxu0 %v1200
        %2444 = vmatpush1.bf16.msra.mxu0 %v1199
        %2445 = vmatprep.subr.bf16.mxu0 %v1196
        %2446 = vmatpush1.bf16.msra.mxu0 %v1195
        %2447 = vmatprep.subr.bf16.mxu0 %v1192
        %2448 = vmatpush1.bf16.msra.mxu0 %v1191
        %2449 = vmatprep.subr.bf16.mxu0 %v1188
        %2450 = vmatpush1.bf16.msra.mxu0 %v1187
        %2451 = vmatprep.subr.bf16.mxu0 %v1184
        %2452 = vmatpush1.bf16.msra.mxu0 %v1183
        %2453 = vmatprep.subr.bf16.mxu0 %v1180
        %2454 = vmatpush1.bf16.msra.mxu0 %v1179
        %2455 = vmatprep.subr.bf16.mxu0 %v1176
        %2456 = vmatpush1.bf16.msra.mxu0 %v1175
        %2457 = vmatprep.subr.bf16.mxu0 0
        %2458 = vmatpush2.bf16.msra.mxu0 0
        %2459 = vmatprep.subr.bf16.mxu0 0
        %2460 = vmatpush2.bf16.msra.mxu0 0
        %2461 = vmatprep.subr.bf16.mxu0 0
        %2462 = vmatpush2.bf16.msra.mxu0 0
        %2463 = vmatprep.subr.bf16.mxu0 0
        %2464 = vmatpush2.bf16.msra.mxu0 0
        %2465 = vmatprep.subr.bf16.mxu0 0
        %2466 = vmatpush2.bf16.msra.mxu0 0
        %2467 = vmatprep.subr.bf16.mxu0 0
        %2468 = vmatpush2.bf16.msra.mxu0 0
        %2469 = vmatprep.subr.bf16.mxu0 0
        %2470 = vmatpush2.bf16.msra.mxu0 0
        %2471 = vmatprep.subr.bf16.mxu0 0
        %2472 = vmatpush2.bf16.msra.mxu0 0
        %2473 = vmatprep.mubr.bf16.mxu0 0
        %2474 = vmatmul.mubr.bf16.gmra.mxu0 %v2399
        %v2475 = vpop.f32.mrf.mxu0
        %v2476 = vadd.f32 0.0, %v2475
        %v2477 = vpop.f32.mrf.mxu0
        %v2478 = vadd.f32 0.0, %v2477
        %v2479 = vpop.f32.mrf.mxu0
        %v2480 = vpop.f32.mrf.mxu0
        %2481 = vdwg.mxu0
        %v2482 = vadd.f32 %v2395, %v2435
        %v2483 = vadd.f32 %v2396, %v2437
        %v2484 = vadd.f32 %v2397, %v2476
        %v2485 = vadd.f32 %v2398, %v2478
        %v2486 = vxor.u32 %v2482, 2147483648
        %v2487 = vmul.f32 %v2486, 1.442695
        %v2488 = vpow.pop %v2487
        %v2489 = vadd.f32 %v2488, 1.0
        %v2490 = vrcp.pop %v2489
        %v2491 = vmul.f32 1.0, %v2490
        %v2492 = vxor.u32 %v2483, 2147483648
        %v2493 = vmul.f32 %v2492, 1.442695
        %v2494 = vpow.pop %v2493
        %v2495 = vadd.f32 %v2494, 1.0
        %v2496 = vrcp.pop %v2495
        %v2497 = vmul.f32 1.0, %v2496
        %v2498 = vtanh.pop %v2484
        %v2499 = vxor.u32 %v2485, 2147483648
        %v2500 = vmul.f32 %v2499, 1.442695
        %v2501 = vpow.pop %v2500
        %v2502 = vadd.f32 %v2501, 1.0
        %v2503 = vrcp.pop %v2502
        %v2504 = vmul.f32 1.0, %v2503
        %v2505 = vmul.f32 %v2497, %v2391
        %v2506 = vmul.f32 %v2491, %v2498
        %v2507 = vadd.f32 %v2505, %v2506
        %v2508 = vtanh.pop %v2507
        %v2509 = vmul.f32 %v2504, %v2508
        %s2510 = sadd.s32 %s1067, 6
        %v2511 = vstv %s2510
        %vm2512 = vcmp.gt.s32.totalorder %v1066, %v2511
        %v2513 = vsel %vm2512, %v2507, %v2391
        %2514 = vst [vmem:[#allocation3] sm:$0xff] %v2513
        %v2515 = vsel %vm2512, %v2509, %v2390
        %2516 = vst [vmem:[#allocation2] sm:$0xff] %v2515
        %v2517 = vsel %vm2512, %v2509, 0.0
        %v2519 = vcombine.high %v2517, %v2517
        %v2521 = vunpack.c.l.s4 1966171168
        %v2522 = vunpack.c.0.s8 %v2521
        %v2523 = vlaneseq
        %v2524 = vshrl.u32 %v2523, 7
        %v2525 = vsub.s32 %v2522, %v2524
        %v2526 = vrot.slane %v2517, %v2525
        %v2528 = vunpack.c.l.s4 1966171168
        %v2529 = vunpack.c.0.s8 %v2528
        %v2530 = vlaneseq
        %v2531 = vshrl.u32 %v2530, 7
        %v2532 = vsub.s32 %v2529, %v2531
        %v2533 = vrot.slane %v2519, %v2532
        %v2534 = vcombine.high %v2526, %v2526
        %v2535 = vcombine.high %v2533, %v2533
        %v2537 = vunpack.c.l.s4 1966171168
        %v2538 = vunpack.c.0.s8 %v2537
        %v2539 = vlaneseq
        %v2540 = vshrl.u32 %v2539, 7
        %v2541 = vsub.s32 %v2538, %v2540
        %v2542 = vrot.slane %v2526, %v2541
        %v2544 = vunpack.c.l.s4 1966171168
        %v2545 = vunpack.c.0.s8 %v2544
        %v2546 = vlaneseq
        %v2547 = vshrl.u32 %v2546, 7
        %v2548 = vsub.s32 %v2545, %v2547
        %v2549 = vrot.slane %v2533, %v2548
        %v2551 = vunpack.c.l.s4 1966171168
        %v2552 = vunpack.c.0.s8 %v2551
        %v2553 = vlaneseq
        %v2554 = vshrl.u32 %v2553, 7
        %v2555 = vsub.s32 %v2552, %v2554
        %v2556 = vrot.slane %v2534, %v2555
        %v2558 = vunpack.c.l.s4 1966171168
        %v2559 = vunpack.c.0.s8 %v2558
        %v2560 = vlaneseq
        %v2561 = vshrl.u32 %v2560, 7
        %v2562 = vsub.s32 %v2559, %v2561
        %v2563 = vrot.slane %v2535, %v2562
        %v2564 = vcombine.high %v2542, %v2542
        %v2565 = vcombine.high %v2549, %v2549
        %v2566 = vcombine.high %v2556, %v2556
        %v2567 = vcombine.high %v2563, %v2563
        %2576 = vst [vmem:[%s551 + $0x6] sm:$0x1] %v2542
        %2577 = vst [vmem:[%s551 + $0xe] sm:$0x1] %v2556
        %2578 = vst [vmem:[%s551 + $0x16] sm:$0x1] %v2564
        %2579 = vst [vmem:[%s551 + $0x1e] sm:$0x1] %v2566
        %2580 = vst [vmem:[%s551 + $0x26] sm:$0x1] %v2549
        %2581 = vst [vmem:[%s551 + $0x2e] sm:$0x1] %v2563
        %2582 = vst [vmem:[%s551 + $0x36] sm:$0x1] %v2565
        %2583 = vst [vmem:[%s551 + $0x3e] sm:$0x1] %v2567
        %v2584 = vld [vmem:[#allocation2] sm:$0xff]
        %v2585 = vld [vmem:[#allocation3] sm:$0xff]
        %s2586 = scalar_lea.vmem [#allocation5], 112
        %v2587 = vld [vmem:[%s2586] sm:$0xff]
        %v2588 = vld [vmem:[%s2586 + $0x8] sm:$0xff]
        %v2589 = vunpack.c.l.bf16 %v2587
        %v2590 = vunpack.c.h.bf16 %v2587
        %v2591 = vunpack.c.l.bf16 %v2588
        %v2592 = vunpack.c.h.bf16 %v2588
        %v2593 = vpack.c.bf16 %v2584, %v2584
        %2594 = vmatprep.subr.bf16.mxu0 %v1202
        %2595 = vmatpush1.bf16.msra.mxu0 %v1201
        %2596 = vmatprep.subr.bf16.mxu0 %v1198
        %2597 = vmatpush1.bf16.msra.mxu0 %v1197
        %2598 = vmatprep.subr.bf16.mxu0 %v1194
        %2599 = vmatpush1.bf16.msra.mxu0 %v1193
        %2600 = vmatprep.subr.bf16.mxu0 %v1190
        %2601 = vmatpush1.bf16.msra.mxu0 %v1189
        %2602 = vmatprep.subr.bf16.mxu0 %v1186
        %2603 = vmatpush1.bf16.msra.mxu0 %v1185
        %2604 = vmatprep.subr.bf16.mxu0 %v1182
        %2605 = vmatpush1.bf16.msra.mxu0 %v1181
        %2606 = vmatprep.subr.bf16.mxu0 %v1178
        %2607 = vmatpush1.bf16.msra.mxu0 %v1177
        %2608 = vmatprep.subr.bf16.mxu0 %v1174
        %2609 = vmatpush1.bf16.msra.mxu0 %v1173
        %2610 = vmatprep.subr.bf16.mxu0 0
        %2611 = vmatpush2.bf16.msra.mxu0 0
        %2612 = vmatprep.subr.bf16.mxu0 0
        %2613 = vmatpush2.bf16.msra.mxu0 0
        %2614 = vmatprep.subr.bf16.mxu0 0
        %2615 = vmatpush2.bf16.msra.mxu0 0
        %2616 = vmatprep.subr.bf16.mxu0 0
        %2617 = vmatpush2.bf16.msra.mxu0 0
        %2618 = vmatprep.subr.bf16.mxu0 0
        %2619 = vmatpush2.bf16.msra.mxu0 0
        %2620 = vmatprep.subr.bf16.mxu0 0
        %2621 = vmatpush2.bf16.msra.mxu0 0
        %2622 = vmatprep.subr.bf16.mxu0 0
        %2623 = vmatpush2.bf16.msra.mxu0 0
        %2624 = vmatprep.subr.bf16.mxu0 0
        %2625 = vmatpush2.bf16.msra.mxu0 0
        %2626 = vmatprep.mubr.bf16.mxu0 0
        %2627 = vmatmul.mubr.bf16.gmra.mxu0 %v2593
        %v2628 = vpop.f32.mrf.mxu0
        %v2629 = vadd.f32 0.0, %v2628
        %v2630 = vpop.f32.mrf.mxu0
        %v2631 = vadd.f32 0.0, %v2630
        %v2632 = vpop.f32.mrf.mxu0
        %v2633 = vpop.f32.mrf.mxu0
        %2634 = vdwg.mxu0
        %2635 = vmatprep.subr.bf16.mxu0 %v1204
        %2636 = vmatpush1.bf16.msra.mxu0 %v1203
        %2637 = vmatprep.subr.bf16.mxu0 %v1200
        %2638 = vmatpush1.bf16.msra.mxu0 %v1199
        %2639 = vmatprep.subr.bf16.mxu0 %v1196
        %2640 = vmatpush1.bf16.msra.mxu0 %v1195
        %2641 = vmatprep.subr.bf16.mxu0 %v1192
        %2642 = vmatpush1.bf16.msra.mxu0 %v1191
        %2643 = vmatprep.subr.bf16.mxu0 %v1188
        %2644 = vmatpush1.bf16.msra.mxu0 %v1187
        %2645 = vmatprep.subr.bf16.mxu0 %v1184
        %2646 = vmatpush1.bf16.msra.mxu0 %v1183
        %2647 = vmatprep.subr.bf16.mxu0 %v1180
        %2648 = vmatpush1.bf16.msra.mxu0 %v1179
        %2649 = vmatprep.subr.bf16.mxu0 %v1176
        %2650 = vmatpush1.bf16.msra.mxu0 %v1175
        %2651 = vmatprep.subr.bf16.mxu0 0
        %2652 = vmatpush2.bf16.msra.mxu0 0
        %2653 = vmatprep.subr.bf16.mxu0 0
        %2654 = vmatpush2.bf16.msra.mxu0 0
        %2655 = vmatprep.subr.bf16.mxu0 0
        %2656 = vmatpush2.bf16.msra.mxu0 0
        %2657 = vmatprep.subr.bf16.mxu0 0
        %2658 = vmatpush2.bf16.msra.mxu0 0
        %2659 = vmatprep.subr.bf16.mxu0 0
        %2660 = vmatpush2.bf16.msra.mxu0 0
        %2661 = vmatprep.subr.bf16.mxu0 0
        %2662 = vmatpush2.bf16.msra.mxu0 0
        %2663 = vmatprep.subr.bf16.mxu0 0
        %2664 = vmatpush2.bf16.msra.mxu0 0
        %2665 = vmatprep.subr.bf16.mxu0 0
        %2666 = vmatpush2.bf16.msra.mxu0 0
        %2667 = vmatprep.mubr.bf16.mxu0 0
        %2668 = vmatmul.mubr.bf16.gmra.mxu0 %v2593
        %v2669 = vpop.f32.mrf.mxu0
        %v2670 = vadd.f32 0.0, %v2669
        %v2671 = vpop.f32.mrf.mxu0
        %v2672 = vadd.f32 0.0, %v2671
        %v2673 = vpop.f32.mrf.mxu0
        %v2674 = vpop.f32.mrf.mxu0
        %2675 = vdwg.mxu0
        %v2676 = vadd.f32 %v2589, %v2629
        %v2677 = vadd.f32 %v2590, %v2631
        %v2678 = vadd.f32 %v2591, %v2670
        %v2679 = vadd.f32 %v2592, %v2672
        %v2680 = vxor.u32 %v2676, 2147483648
        %v2681 = vmul.f32 %v2680, 1.442695
        %v2682 = vpow.pop %v2681
        %v2683 = vadd.f32 %v2682, 1.0
        %v2684 = vrcp.pop %v2683
        %v2685 = vmul.f32 1.0, %v2684
        %v2686 = vxor.u32 %v2677, 2147483648
        %v2687 = vmul.f32 %v2686, 1.442695
        %v2688 = vpow.pop %v2687
        %v2689 = vadd.f32 %v2688, 1.0
        %v2690 = vrcp.pop %v2689
        %v2691 = vmul.f32 1.0, %v2690
        %v2692 = vtanh.pop %v2678
        %v2693 = vxor.u32 %v2679, 2147483648
        %v2694 = vmul.f32 %v2693, 1.442695
        %v2695 = vpow.pop %v2694
        %v2696 = vadd.f32 %v2695, 1.0
        %v2697 = vrcp.pop %v2696
        %v2698 = vmul.f32 1.0, %v2697
        %v2699 = vmul.f32 %v2691, %v2585
        %v2700 = vmul.f32 %v2685, %v2692
        %v2701 = vadd.f32 %v2699, %v2700
        %v2702 = vtanh.pop %v2701
        %v2703 = vmul.f32 %v2698, %v2702
        %s2704 = sadd.s32 %s1067, 7
        %v2705 = vstv %s2704
        %vm2706 = vcmp.gt.s32.totalorder %v1066, %v2705
        %v2707 = vsel %vm2706, %v2701, %v2585
        %2708 = vst [vmem:[#allocation3] sm:$0xff] %v2707
        %v2709 = vsel %vm2706, %v2703, %v2584
        %2710 = vst [vmem:[#allocation2] sm:$0xff] %v2709
        %v2711 = vsel %vm2706, %v2703, 0.0
        %v2713 = vcombine.high %v2711, %v2711
        %v2715 = vunpack.c.l.s4 1966171168
        %v2716 = vunpack.c.0.s8 %v2715
        %v2717 = vlaneseq
        %v2718 = vshrl.u32 %v2717, 7
        %v2719 = vsub.s32 %v2716, %v2718
        %v2720 = vrot.slane %v2711, %v2719
        %v2722 = vunpack.c.l.s4 1966171168
        %v2723 = vunpack.c.0.s8 %v2722
        %v2724 = vlaneseq
        %v2725 = vshrl.u32 %v2724, 7
        %v2726 = vsub.s32 %v2723, %v2725
        %v2727 = vrot.slane %v2713, %v2726
        %v2728 = vcombine.high %v2720, %v2720
        %v2729 = vcombine.high %v2727, %v2727
        %v2731 = vunpack.c.l.s4 1966171168
        %v2732 = vunpack.c.0.s8 %v2731
        %v2733 = vlaneseq
        %v2734 = vshrl.u32 %v2733, 7
        %v2735 = vsub.s32 %v2732, %v2734
        %v2736 = vrot.slane %v2720, %v2735
        %v2738 = vunpack.c.l.s4 1966171168
        %v2739 = vunpack.c.0.s8 %v2738
        %v2740 = vlaneseq
        %v2741 = vshrl.u32 %v2740, 7
        %v2742 = vsub.s32 %v2739, %v2741
        %v2743 = vrot.slane %v2727, %v2742
        %v2745 = vunpack.c.l.s4 1966171168
        %v2746 = vunpack.c.0.s8 %v2745
        %v2747 = vlaneseq
        %v2748 = vshrl.u32 %v2747, 7
        %v2749 = vsub.s32 %v2746, %v2748
        %v2750 = vrot.slane %v2728, %v2749
        %v2752 = vunpack.c.l.s4 1966171168
        %v2753 = vunpack.c.0.s8 %v2752
        %v2754 = vlaneseq
        %v2755 = vshrl.u32 %v2754, 7
        %v2756 = vsub.s32 %v2753, %v2755
        %v2757 = vrot.slane %v2729, %v2756
        %v2758 = vcombine.high %v2736, %v2736
        %v2759 = vcombine.high %v2743, %v2743
        %v2760 = vcombine.high %v2750, %v2750
        %v2761 = vcombine.high %v2757, %v2757
        %2770 = vst [vmem:[%s551 + $0x7] sm:$0x1] %v2736
        %2771 = vst [vmem:[%s551 + $0xf] sm:$0x1] %v2750
        %2772 = vst [vmem:[%s551 + $0x17] sm:$0x1] %v2758
        %2773 = vst [vmem:[%s551 + $0x1f] sm:$0x1] %v2760
        %2774 = vst [vmem:[%s551 + $0x27] sm:$0x1] %v2743
        %2775 = vst [vmem:[%s551 + $0x2f] sm:$0x1] %v2757
        %2776 = vst [vmem:[%s551 + $0x37] sm:$0x1] %v2759
        %2777 = vst [vmem:[%s551 + $0x3f] sm:$0x1] %v2761
        %v2778 = vld [vmem:[#allocation2] sm:$0xff]
        %2779 = vst [vmem:[%s558] sm:$0xff] %v2778
        %v2780 = vld [vmem:[#allocation3] sm:$0xff]
        %2781 = vst [vmem:[%s565] sm:$0xff] %v2780
        %v2782 = vld [vmem:[%s551] sm:$0xff]
        %v2783 = vld [vmem:[%s551 + $0x8] sm:$0xff]
        %v2784 = vld [vmem:[%s551 + $0x10] sm:$0xff]
        %v2785 = vld [vmem:[%s551 + $0x18] sm:$0xff]
        %v2786 = vld [vmem:[%s551 + $0x20] sm:$0xff]
        %v2787 = vld [vmem:[%s551 + $0x28] sm:$0xff]
        %v2788 = vld [vmem:[%s551 + $0x30] sm:$0xff]
        %v2789 = vld [vmem:[%s551 + $0x38] sm:$0xff]
        %v2790 = vpack.c.bf16 %v2783, %v2782
        %v2791 = vpack.c.bf16 %v2785, %v2784
        %v2792 = vpack.c.bf16 %v2787, %v2786
        %v2793 = vpack.c.bf16 %v2789, %v2788
        %v2794 = vld [vmem:[#allocation17] sm:$0xf]
        %v2795 = vld [vmem:[#allocation17 + $0x4] sm:$0xf]
        %v2796 = vld [vmem:[#allocation17 + $0x8] sm:$0xf]
        %v2797 = vld [vmem:[#allocation17 + $0xc] sm:$0xf]
        %v2798 = vld [vmem:[#allocation17 + $0x10] sm:$0xf]
        %v2799 = vld [vmem:[#allocation17 + $0x14] sm:$0xf]
        %v2800 = vld [vmem:[#allocation17 + $0x18] sm:$0xf]
        %v2801 = vld [vmem:[#allocation17 + $0x1c] sm:$0xf]
        %v2802 = vld [vmem:[#allocation17 + $0x20] sm:$0xf]
        %v2803 = vld [vmem:[#allocation17 + $0x24] sm:$0xf]
        %v2804 = vld [vmem:[#allocation17 + $0x28] sm:$0xf]
        %v2805 = vld [vmem:[#allocation17 + $0x2c] sm:$0xf]
        %v2806 = vld [vmem:[#allocation17 + $0x30] sm:$0xf]
        %v2807 = vld [vmem:[#allocation17 + $0x34] sm:$0xf]
        %v2808 = vld [vmem:[#allocation17 + $0x38] sm:$0xf]
        %v2809 = vld [vmem:[#allocation17 + $0x3c] sm:$0xf]
        %v2810 = vld [vmem:[%s8] sm:$0x1]
        %v2812 = vlaneseq
        %v2813 = vshrl.u32 %v2812, 7
        %v2814 = vsub.s32 0, %v2813
        %v2815 = vrot.slane %v2810, %v2814
        %v2833 = vunpack.c.l.b16 %v2794
        %v2834 = vunpack.c.l.b16 %v2795
        %v2835 = vunpack.c.l.b16 %v2796
        %v2836 = vunpack.c.l.b16 %v2797
        %v2837 = vunpack.c.l.b16 %v2798
        %v2838 = vunpack.c.l.b16 %v2799
        %v2839 = vunpack.c.l.b16 %v2800
        %v2840 = vunpack.c.l.b16 %v2801
        %v2841 = vunpack.c.l.b16 %v2802
        %v2842 = vunpack.c.l.b16 %v2803
        %v2843 = vunpack.c.l.b16 %v2804
        %v2844 = vunpack.c.l.b16 %v2805
        %v2845 = vunpack.c.l.b16 %v2806
        %v2846 = vunpack.c.l.b16 %v2807
        %v2847 = vunpack.c.l.b16 %v2808
        %v2848 = vunpack.c.l.b16 %v2809
        %v2849 = vpack.c.b16 %v2834, %v2833
        %v2850 = vpack.c.b16 %v2836, %v2835
        %v2851 = vpack.c.b16 %v2838, %v2837
        %v2852 = vpack.c.b16 %v2840, %v2839
        %v2853 = vpack.c.b16 %v2842, %v2841
        %v2854 = vpack.c.b16 %v2844, %v2843
        %v2855 = vpack.c.b16 %v2846, %v2845
        %v2856 = vpack.c.b16 %v2848, %v2847
        %2865 = vmatprep.subr.bf16.mxu0 0
        %2866 = vmatpush1.bf16.msra.mxu0 %v2856
        %2867 = vmatprep.subr.bf16.mxu0 0
        %2868 = vmatpush1.bf16.msra.mxu0 %v2855
        %2869 = vmatprep.subr.bf16.mxu0 0
        %2870 = vmatpush1.bf16.msra.mxu0 %v2854
        %2871 = vmatprep.subr.bf16.mxu0 0
        %2872 = vmatpush1.bf16.msra.mxu0 %v2853
        %2873 = vmatprep.subr.bf16.mxu0 0
        %2874 = vmatpush1.bf16.msra.mxu0 %v2852
        %2875 = vmatprep.subr.bf16.mxu0 0
        %2876 = vmatpush1.bf16.msra.mxu0 %v2851
        %2877 = vmatprep.subr.bf16.mxu0 0
        %2878 = vmatpush1.bf16.msra.mxu0 %v2850
        %2879 = vmatprep.subr.bf16.mxu0 0
        %2880 = vmatpush1.bf16.msra.mxu0 %v2849
        %2881 = vmatprep.subr.bf16.mxu0 0
        %2882 = vmatpush2.bf16.msra.mxu0 0
        %2883 = vmatprep.subr.bf16.mxu0 0
        %2884 = vmatpush2.bf16.msra.mxu0 0
        %2885 = vmatprep.subr.bf16.mxu0 0
        %2886 = vmatpush2.bf16.msra.mxu0 0
        %2887 = vmatprep.subr.bf16.mxu0 0
        %2888 = vmatpush2.bf16.msra.mxu0 0
        %2889 = vmatprep.subr.bf16.mxu0 0
        %2890 = vmatpush2.bf16.msra.mxu0 0
        %2891 = vmatprep.subr.bf16.mxu0 0
        %2892 = vmatpush2.bf16.msra.mxu0 0
        %2893 = vmatprep.subr.bf16.mxu0 0
        %2894 = vmatpush2.bf16.msra.mxu0 0
        %2895 = vmatprep.subr.bf16.mxu0 0
        %2896 = vmatpush2.bf16.msra.mxu0 0
        %2897 = vmatprep.mubr.bf16.mxu0 0
        %2898 = vmatmul.mubr.bf16.gmra.mxu0 %v2790
        %v2899 = vpop.f32.mrf.mxu0
        %v2900 = vadd.f32 %v2815, %v2899
        %v2901 = vpop.f32.mrf.mxu0
        %v2902 = vpop.f32.mrf.mxu0
        %v2903 = vadd.f32 %v2815, %v2902
        %v2904 = vpop.f32.mrf.mxu0
        %2905 = vmatprep.mubr.bf16.mxu0 0
        %2906 = vmatmul.mubr.bf16.gmra.mxu0 %v2791
        %v2907 = vpop.f32.mrf.mxu0
        %v2908 = vadd.f32 %v2815, %v2907
        %v2909 = vpop.f32.mrf.mxu0
        %v2910 = vpop.f32.mrf.mxu0
        %v2911 = vadd.f32 %v2815, %v2910
        %v2912 = vpop.f32.mrf.mxu0
        %2913 = vmatprep.mubr.bf16.mxu0 0
        %2914 = vmatmul.mubr.bf16.gmra.mxu0 %v2792
        %v2915 = vpop.f32.mrf.mxu0
        %v2916 = vadd.f32 %v2815, %v2915
        %v2917 = vpop.f32.mrf.mxu0
        %v2918 = vpop.f32.mrf.mxu0
        %v2919 = vadd.f32 %v2815, %v2918
        %v2920 = vpop.f32.mrf.mxu0
        %2921 = vmatprep.mubr.bf16.mxu0 0
        %2922 = vmatmul.mubr.bf16.gmra.mxu0 %v2793
        %v2923 = vpop.f32.mrf.mxu0
        %v2924 = vadd.f32 %v2815, %v2923
        %v2925 = vpop.f32.mrf.mxu0
        %v2926 = vpop.f32.mrf.mxu0
        %v2927 = vadd.f32 %v2815, %v2926
        %v2928 = vpop.f32.mrf.mxu0
        %2929 = vdwg.mxu0
        %2930 = vst [vmem:[%s572] sm:$0xff] %v2900
        %2931 = vst [vmem:[%s572 + $0x8] sm:$0xff] %v2903
        %2932 = vst [vmem:[%s572 + $0x10] sm:$0xff] %v2908
        %2933 = vst [vmem:[%s572 + $0x18] sm:$0xff] %v2911
        %2934 = vst [vmem:[%s572 + $0x20] sm:$0xff] %v2916
        %2935 = vst [vmem:[%s572 + $0x28] sm:$0xff] %v2919
        %2936 = vst [vmem:[%s572 + $0x30] sm:$0xff] %v2924
        %2937 = vst [vmem:[%s572 + $0x38] sm:$0xff] %v2927
        %s2938 = sand.u32 %s252, 1
        %s2939 = scalar_lea.sflag [#allocation10], %s2938
        %s2940 = sand.u32 %s252, 1
        %s2941 = smul.addr %s2940, 64
        %s2942 = scalar_lea.vmem [#allocation19], %s2941
        %s2943 = sand.u32 %s45, 1
        %s2944 = scalar_lea.sflag [#allocation21], %s2943
        %s2945 = sand.u32 %s278, 1
        %s2946 = smul.addr %s2945, 8
        %s2947 = scalar_lea.vmem [#allocation20], %s2946
        %s2948 = sand.u32 %s45, 1
        %s2949 = scalar_lea.sflag [#allocation21], %s2948
        %s2950 = sand.u32 %s304, 1
        %s2951 = smul.addr %s2950, 8
        %s2952 = scalar_lea.vmem [#allocation22], %s2951
        %s2953 = sand.u32 %s332, 1
        %s2954 = scalar_lea.sflag [#allocation24], %s2953
        %s2955 = sand.u32 %s332, 1
        %s2956 = smul.addr %s2955, 64
        %s2957 = scalar_lea.vmem [#allocation23], %s2956
        // Predicated region
        $region81: #{tpu_custom_call.1} parent=51 // pred_check
          %p2958 = pneg %p262
        $region82: #{tpu_custom_call.1} parent=51 // pred_check_branch
          %2960 = sbr.rel (%p2958) target = $region84
        $region83: #{tpu_custom_call.1} parent=51 // pred_region
          %s2961 = smul.u32 8, %s49
          %s2963 = ssub.s32 1024, 1024
          %2964 = vsyncadd %s2939, %s2963
          %s2965 = sadd.s32 %s50, %s2961
          %s2966 = smul.addr %s2965, 128
          %s2967 = scalar_lea.hbm %s9, %s2966
          %s2968 = sshll.u32 %s2942, 4
          %s2969 = int_to_ptr.vmem [resolvable:$true] %s2968
          %2974 = dma.vmem_to_hbm [thread:$0]  %s2969, 1024, %s2967, %s2939, 128, 128, 8
        $region84: #{tpu_custom_call.1} parent=51 // pred_fallthru
          _
        // Predicated region
        $region85: #{tpu_custom_call.1} parent=51 // pred_check
          %p2975 = pneg %p288
        $region86: #{tpu_custom_call.1} parent=51 // pred_check_branch
          %2977 = sbr.rel (%p2975) target = $region88
        $region87: #{tpu_custom_call.1} parent=51 // pred_region
          %s2979 = ssub.s32 128, 128
          %2980 = vsyncadd %s2944, %s2979
          %s2981 = smul.addr %s49, 128
          %s2982 = scalar_lea.hbm %s10, %s2981
          %s2984 = sshll.u32 %s2947, 4
          %s2985 = int_to_ptr.vmem [resolvable:$true] %s2984
          %2987 = dma.vmem_to_hbm [thread:$0]  %s2985, 128, %s2982, %s2944
        $region88: #{tpu_custom_call.1} parent=51 // pred_fallthru
          _
        // Predicated region
        $region89: #{tpu_custom_call.1} parent=51 // pred_check
          %p2988 = pneg %p314
        $region90: #{tpu_custom_call.1} parent=51 // pred_check_branch
          %2990 = sbr.rel (%p2988) target = $region92
        $region91: #{tpu_custom_call.1} parent=51 // pred_region
          %s2992 = ssub.s32 128, 128
          %2993 = vsyncadd %s2949, %s2992
          %s2994 = smul.addr %s49, 128
          %s2995 = scalar_lea.hbm %s11, %s2994
          %s2997 = sshll.u32 %s2952, 4
          %s2998 = int_to_ptr.vmem [resolvable:$true] %s2997
          %3000 = dma.vmem_to_hbm [thread:$0]  %s2998, 128, %s2995, %s2949
        $region92: #{tpu_custom_call.1} parent=51 // pred_fallthru
          _
        // Predicated region
        $region93: #{tpu_custom_call.1} parent=51 // pred_check
          %p3001 = pneg %p342
        $region94: #{tpu_custom_call.1} parent=51 // pred_check_branch
          %3003 = sbr.rel (%p3001) target = $region96
        $region95: #{tpu_custom_call.1} parent=51 // pred_region
          %s3004 = smul.u32 8, %s49
          %s3006 = ssub.s32 1024, 1024
          %3007 = vsyncadd %s2954, %s3006
          %s3008 = sadd.s32 %s50, %s3004
          %s3009 = smul.addr %s3008, 128
          %s3010 = scalar_lea.hbm %s12, %s3009
          %s3011 = sshll.u32 %s2957, 4
          %s3012 = int_to_ptr.vmem [resolvable:$true] %s3011
          %3017 = dma.vmem_to_hbm [thread:$0]  %s3012, 1024, %s3010, %s2954, 128, 128, 8
        $region96: #{tpu_custom_call.1} parent=51 // pred_fallthru
          _
      $region52: #{tpu_custom_call.1} parent=5 // pred_fallthru
        _
      %p3018 = scmp.le.s32.totalorder 2, %s40
      // Predicated region
      $region97: #{tpu_custom_call.1} parent=5 // pred_check
        %p3019 = pneg %p3018
      $region98: #{tpu_custom_call.1} parent=5 // pred_check_branch
        %3021 = sbr.rel (%p3019) target = $region100
      $region99: #{tpu_custom_call.1} parent=5 // pred_region
        %s3022 = ssub.s32 %s40, 2
        // Predicated region
        $region101: #{tpu_custom_call.1} parent=99 // pred_check
          %p3023 = pneg %p268
        $region102: #{tpu_custom_call.1} parent=99 // pred_check_branch
          %3025 = sbr.rel (%p3023) target = $region104
        $region103: #{tpu_custom_call.1} parent=99 // pred_region
          %s3026 = sand.u32 %s253, 1
          %s3027 = scalar_lea.sflag [#allocation10], %s3026
          %s3028 = sand.u32 %s253, 1
          %s3029 = smul.addr %s3028, 64
          %s3030 = scalar_lea.vmem [#allocation19], %s3029
          %3031 = dma.done %s3027, 1024
        $region104: #{tpu_custom_call.1} parent=99 // pred_fallthru
          _
        // Predicated region
        $region105: #{tpu_custom_call.1} parent=99 // pred_check
          %p3032 = pneg %p294
        $region106: #{tpu_custom_call.1} parent=99 // pred_check_branch
          %3034 = sbr.rel (%p3032) target = $region108
        $region107: #{tpu_custom_call.1} parent=99 // pred_region
          %s3035 = sand.u32 %s46, 1
          %s3036 = scalar_lea.sflag [#allocation21], %s3035
          %s3037 = sand.u32 %s279, 1
          %s3038 = smul.addr %s3037, 8
          %s3039 = scalar_lea.vmem [#allocation20], %s3038
          %3040 = dma.done %s3036, 128
        $region108: #{tpu_custom_call.1} parent=99 // pred_fallthru
          _
        // Predicated region
        $region109: #{tpu_custom_call.1} parent=99 // pred_check
          %p3041 = pneg %p320
        $region110: #{tpu_custom_call.1} parent=99 // pred_check_branch
          %3043 = sbr.rel (%p3041) target = $region112
        $region111: #{tpu_custom_call.1} parent=99 // pred_region
          %s3044 = sand.u32 %s46, 1
          %s3045 = scalar_lea.sflag [#allocation21], %s3044
          %s3046 = sand.u32 %s305, 1
          %s3047 = smul.addr %s3046, 8
          %s3048 = scalar_lea.vmem [#allocation22], %s3047
          %3049 = dma.done %s3045, 128
        $region112: #{tpu_custom_call.1} parent=99 // pred_fallthru
          _
        // Predicated region
        $region113: #{tpu_custom_call.1} parent=99 // pred_check
          %p3050 = pneg %p348
        $region114: #{tpu_custom_call.1} parent=99 // pred_check_branch
          %3052 = sbr.rel (%p3050) target = $region116
        $region115: #{tpu_custom_call.1} parent=99 // pred_region
          %s3053 = sand.u32 %s333, 1
          %s3054 = scalar_lea.sflag [#allocation24], %s3053
          %s3055 = sand.u32 %s333, 1
          %s3056 = smul.addr %s3055, 64
          %s3057 = scalar_lea.vmem [#allocation23], %s3056
          %3058 = dma.done %s3054, 1024
        $region116: #{tpu_custom_call.1} parent=99 // pred_fallthru
          _
      $region100: #{tpu_custom_call.1} parent=5 // pred_fallthru
        _
    $region6: #{tpu_custom_call.1} parent=1 // loop_footer
      %s44 = sadd.s32 1, %s40
    $region7: #{tpu_custom_call.1} parent=1 // loop_footer_branch
      %39 = sbr.rel target = $region3
    $region8: #{tpu_custom_call.1} parent=1 // loop_exit
      _
    %3059 = vsyncpa [#allocation9], 1
    %s3060 = scalar_lea.sflag [#allocation9], 1
    %3061 = vsyncpa %s3060, 1
    %3062 = vsyncpa [#allocation12], 1
    %3063 = vsyncpa [#allocation15], 1
    %s3064 = scalar_lea.sflag [#allocation15], 1
    %3065 = vsyncpa %s3064, 1
    %3066 = vsyncpa [#allocation18], 1
    %3067 = vsyncpa [#allocation10], 1
    %s3068 = scalar_lea.sflag [#allocation10], 1
    %3069 = vsyncpa %s3068, 1
    %3070 = vsyncpa [#allocation21], 1
    %s3071 = scalar_lea.sflag [#allocation21], 1
    %3072 = vsyncpa %s3071, 1
    %3073 = vsyncpa [#allocation24], 1
    %s3074 = scalar_lea.sflag [#allocation24], 1
    %3075 = vsyncpa %s3074, 1

// kernel: tpu_custom_call.1
$region0: #{tpu_custom_call.1}
  #allocation0 [shape = 'u32[]', space=smem, size = 0x4, offset = 0x4, fixed_abs, tag = 'smem constant byte address 0x4 - core index']
  #allocation1 [shape = 'u32[144,128]{1,0:T(1,128)}', space=vmem, size = 0x12000, scoped, tag = 'internal scratch']
  #allocation2 [shape = 'f32[8,128]{1,0:T(8,128)}', space=vmem, size = 0x1000, scoped, tag = 'scratch operand']
  #allocation3 [shape = 'f32[8,128]{1,0:T(8,128)}', space=vmem, size = 0x1000, scoped, tag = 'scratch operand']
  #allocation4 [shape = 's32[8,128]{1,0:T(8,128)}', space=vmem, size = 0x1000, scoped, tag = 'scratch operand']
  #allocation5 [shape = 'bf16[8,8,512]{2,1,0:T(8,128)(2,1)}', space=vmem, size = 0x10000, scoped, tag = 'scratch operand']
  #allocation6 [shape = 's32[1]{0}', space=sflag, size = 0x4, scoped, tag = 'scoped memory for tpu_custom_call.1']
  #allocation7 [shape = 'u8[512]{0}', space=smem, size = 0x200, scoped, tag = 'prefetched SMEM operand 0']
  %s0 = inlined_call_operand.hbm [shape: s32[16], index: 0, kind: input, shape index: {}]
  %s1 = inlined_call_operand.hbm [shape: bf16[8,16,64], index: 1, kind: input, shape index: {}]
  %s2 = inlined_call_operand.hbm [shape: bf16[64,512], index: 2, kind: input, shape index: {}]
  %s3 = inlined_call_operand.hbm [shape: bf16[128,512], index: 3, kind: input, shape index: {}]
  %s4 = inlined_call_operand.vmem [shape: f32[1,512], index: 4, kind: input, shape index: {}]
  %s5 = inlined_call_operand.hbm [shape: f32[16,128], index: 5, kind: input, shape index: {}]
  %s6 = inlined_call_operand.hbm [shape: f32[16,128], index: 6, kind: input, shape index: {}]
  %s7 = inlined_call_operand.hbm [shape: bf16[128,128], index: 7, kind: input, shape index: {}]
  %s8 = inlined_call_operand.vmem [shape: f32[1,128], index: 8, kind: input, shape index: {}]
  %s9 = inlined_call_operand.hbm [shape: f32[16,8,128], index: 9, kind: output, shape index: {0}]
  %s10 = inlined_call_operand.hbm [shape: f32[16,128], index: 10, kind: output, shape index: {1}]
  %s11 = inlined_call_operand.hbm [shape: f32[16,128], index: 11, kind: output, shape index: {2}]
  %s12 = inlined_call_operand.hbm [shape: f32[16,8,128], index: 12, kind: output, shape index: {3}]
  %13 = xla_tuple %s9, %s10, %s11, %s12
  %s14 = sld [smem:[#allocation0]]
  $region117: #{tpu_custom_call.1} parent=0
    _
  %s16 = ssub.s32 1, %s14
  %s17 = scalar_select 0, %s16, %s14
  %19 = dma.hbm_to_smem %s0, 16, [#allocation7], [#allocation6]
  %20 = dma.done [#allocation6], 16
  %21 = sfence
  $region1: #{tpu_custom_call.1} parent=0
    #allocation8 [shape = 'u8[32768]{0}', space=vmem, size = 0x8000, scoped, tag = 'input window, operand 1']
    #allocation9 [shape = 's32[2]{0}', space=sflag, size = 0x8, scoped, tag = 'scoped memory for tpu_custom_call.1']
    #allocation10 [shape = 's32[2]{0}', space=sflag, size = 0x8, scoped, tag = 'scoped memory for tpu_custom_call.1']
    #allocation11 [shape = 'u8[65536]{0}', space=vmem, size = 0x10000, scoped, tag = 'input window, operand 2, single buffered']
    #allocation12 [shape = 's32[1]{0}', space=sflag, size = 0x4, scoped, tag = 'scoped memory for tpu_custom_call.1']
    #allocation13 [shape = 'u8[131072]{0}', space=vmem, size = 0x20000, scoped, tag = 'input window, operand 3, single buffered']
    #allocation14 [shape = 'u8[8192]{0}', space=vmem, size = 0x2000, scoped, tag = 'input window, operand 5']
    #allocation15 [shape = 's32[2]{0}', space=sflag, size = 0x8, scoped, tag = 'scoped memory for tpu_custom_call.1']
    #allocation16 [shape = 'u8[8192]{0}', space=vmem, size = 0x2000, scoped, tag = 'input window, operand 6']
    #allocation17 [shape = 'u8[32768]{0}', space=vmem, size = 0x8000, scoped, tag = 'input window, operand 7, single buffered']
    #allocation18 [shape = 's32[1]{0}', space=sflag, size = 0x4, scoped, tag = 'scoped memory for tpu_custom_call.1']
    #allocation19 [shape = 'u8[65536]{0}', space=vmem, size = 0x10000, scoped, tag = 'output window, operand 0']
    #allocation20 [shape = 'u8[8192]{0}', space=vmem, size = 0x2000, scoped, tag = 'output window, operand 1']
    #allocation21 [shape = 's32[2]{0}', space=sflag, size = 0x8, scoped, tag = 'scoped memory for tpu_custom_call.1']
    #allocation22 [shape = 'u8[8192]{0}', space=vmem, size = 0x2000, scoped, tag = 'output window, operand 2']
    #allocation23 [shape = 'u8[65536]{0}', space=vmem, size = 0x10000, scoped, tag = 'output window, operand 3']
    #allocation24 [shape = 's32[2]{0}', space=sflag, size = 0x8, scoped, tag = 'scoped memory for tpu_custom_call.1']
    %22 = vsyncpa [#allocation9], 0
    %s23 = scalar_lea.sflag [#allocation9], 1
    %24 = vsyncpa %s23, 0
    %25 = vsyncpa [#allocation12], 0
    %26 = vsyncpa [#allocation15], 0
    %s27 = scalar_lea.sflag [#allocation15], 1
    %28 = vsyncpa %s27, 0
    %29 = vsyncpa [#allocation18], 0
    %30 = vsyncpa [#allocation10], 0
    %s31 = scalar_lea.sflag [#allocation10], 1
    %32 = vsyncpa %s31, 0
    %33 = vsyncpa [#allocation21], 0
    %s34 = scalar_lea.sflag [#allocation21], 1
    %35 = vsyncpa %s34, 0
    %36 = vsyncpa [#allocation24], 0
    %s37 = scalar_lea.sflag [#allocation24], 1
    %38 = vsyncpa %s37, 0
    loop: start=0, step=1, limit=4
    $region2: #{tpu_custom_call.1} parent=1 // loop_pre_header
      _
    $region3: #{tpu_custom_call.1} parent=1 // loop_header
      %s40 = sphi 0, %s44
      %p41 = scmp.ge.s32.totalorder %s40, 4
      %s47 = sphi 0, %s59
      %s48 = sphi 0, %s55
      %s49 = sphi 0, %s47
      %s50 = sphi 0, %s48
      %s51 = sphi 0, %s49
      %s52 = sphi 0, %s50
      %s64 = sphi 0, %s66
      %s67 = sphi 0, %s64
      %s68 = sphi 0, %s67
      %s84 = sphi 0, %s68
      %s88 = sphi 0, %s88
      %s90 = sphi 0, %s88
      %s91 = sphi 0, %s90
      %s105 = sphi 0, %s91
      %s109 = sphi 0, %s109
      %s111 = sphi 0, %s109
      %s112 = sphi 0, %s111
      %s126 = sphi 0, %s112
      %s130 = sphi 0, %s130
      %s132 = sphi 0, %s130
      %s133 = sphi 0, %s132
      %s147 = sphi 0, %s133
      %s153 = sphi 0, %s155
      %s156 = sphi 0, %s153
      %s157 = sphi 0, %s156
      %s173 = sphi 0, %s157
      %s179 = sphi 0, %s181
      %s182 = sphi 0, %s179
      %s183 = sphi 0, %s182
      %s199 = sphi 0, %s183
      %s203 = sphi 0, %s203
      %s205 = sphi 0, %s203
      %s206 = sphi 0, %s205
      %s220 = sphi 0, %s206
      %s224 = sphi 0, %s224
      %s226 = sphi 0, %s224
      %s227 = sphi 0, %s226
      %s241 = sphi 0, %s227
      %s249 = sphi 0, %s251
      %s252 = sphi 0, %s249
      %s253 = sphi 0, %s252
      %s269 = sphi 0, %s253
      %s275 = sphi 0, %s277
      %s278 = sphi 0, %s275
      %s279 = sphi 0, %s278
      %s295 = sphi 0, %s279
      %s301 = sphi 0, %s303
      %s304 = sphi 0, %s301
      %s305 = sphi 0, %s304
      %s321 = sphi 0, %s305
      %s329 = sphi 0, %s331
      %s332 = sphi 0, %s329
      %s333 = sphi 0, %s332
      %s349 = sphi 0, %s333
    $region4: #{tpu_custom_call.1} parent=1 // loop_header_branch
      %43 = sbr.rel (%p41) target = $region8
    $region5: #{tpu_custom_call.1} parent=1 // loop_body
      %s45 = ssub.s32 %s40, 1
      %s46 = ssub.s32 %s40, 2
      %s53 = sadd.s32 1, %s48
      %p54 = scmp.ge.s32.totalorder %s53, 1
      %s55 = scalar_select %p54, 0, %s53
      %s56 = sadd.s32 1, %s47
      %s57 = scalar_select %p54, %s56, %s47
      %p58 = scmp.ge.s32.totalorder %s57, 2
      %s59 = scalar_select %p58, 0, %s57
      %s60 = ssub.s32 %s48, %s55
      %s61 = ssub.s32 %s47, %s59
      %s62 = sor.u32 %s60, %s61
      %p63 = scmp.eq.s32.totalorder %s62, 0
      %s65 = sadd.s32 %s64, 1
      %s66 = scalar_select %p63, %s64, %s65
      %p69 = pneg %p63
      %p70 = scmp.eq.s32.totalorder %s40, 1
      %p71 = por %p69, %p70
      %p72 = scmp.ne.s32.totalorder %s64, %s67
      %p73 = scmp.eq.s32.totalorder %s40, 0
      %p74 = por %p72, %p73
      %p75 = scmp.ne.s32.totalorder %s64, %s67
      %p76 = scmp.eq.s32.totalorder %s45, 1
      %p77 = por %p75, %p76
      %p78 = scmp.ne.s32.totalorder %s67, %s68
      %p79 = scmp.eq.s32.totalorder %s45, 0
      %p80 = por %p78, %p79
      %p81 = scmp.ne.s32.totalorder %s67, %s68
      %p82 = scmp.eq.s32.totalorder %s46, 1
      %p83 = por %p81, %p82
      %p85 = scmp.ne.s32.totalorder %s68, %s84
      %p86 = scmp.eq.s32.totalorder %s46, 0
      %p87 = por %p85, %p86
      %s89 = sadd.s32 %s88, 1
      %p92 = scmp.eq.s32.totalorder %s40, 1
      %p93 = scmp.ne.s32.totalorder %s88, %s90
      %p94 = scmp.eq.s32.totalorder %s40, 0
      %p95 = por %p93, %p94
      %p96 = scmp.ne.s32.totalorder %s88, %s90
      %p97 = scmp.eq.s32.totalorder %s45, 1
      %p98 = por %p96, %p97
      %p99 = scmp.ne.s32.totalorder %s90, %s91
      %p100 = scmp.eq.s32.totalorder %s45, 0
      %p101 = por %p99, %p100
      %p102 = scmp.ne.s32.totalorder %s90, %s91
      %p103 = scmp.eq.s32.totalorder %s46, 1
      %p104 = por %p102, %p103
      %p106 = scmp.ne.s32.totalorder %s91, %s105
      %p107 = scmp.eq.s32.totalorder %s46, 0
      %p108 = por %p106, %p107
      %s110 = sadd.s32 %s109, 1
      %p113 = scmp.eq.s32.totalorder %s40, 1
      %p114 = scmp.ne.s32.totalorder %s109, %s111
      %p115 = scmp.eq.s32.totalorder %s40, 0
      %p116 = por %p114, %p115
      %p117 = scmp.ne.s32.totalorder %s109, %s111
      %p118 = scmp.eq.s32.totalorder %s45, 1
      %p119 = por %p117, %p118
      %p120 = scmp.ne.s32.totalorder %s111, %s112
      %p121 = scmp.eq.s32.totalorder %s45, 0
      %p122 = por %p120, %p121
      %p123 = scmp.ne.s32.totalorder %s111, %s112
      %p124 = scmp.eq.s32.totalorder %s46, 1
      %p125 = por %p123, %p124
      %p127 = scmp.ne.s32.totalorder %s112, %s126
      %p128 = scmp.eq.s32.totalorder %s46, 0
      %p129 = por %p127, %p128
      %s131 = sadd.s32 %s130, 1
      %p134 = scmp.eq.s32.totalorder %s40, 1
      %p135 = scmp.ne.s32.totalorder %s130, %s132
      %p136 = scmp.eq.s32.totalorder %s40, 0
      %p137 = por %p135, %p136
      %p138 = scmp.ne.s32.totalorder %s130, %s132
      %p139 = scmp.eq.s32.totalorder %s45, 1
      %p140 = por %p138, %p139
      %p141 = scmp.ne.s32.totalorder %s132, %s133
      %p142 = scmp.eq.s32.totalorder %s45, 0
      %p143 = por %p141, %p142
      %p144 = scmp.ne.s32.totalorder %s132, %s133
      %p145 = scmp.eq.s32.totalorder %s46, 1
      %p146 = por %p144, %p145
      %p148 = scmp.ne.s32.totalorder %s133, %s147
      %p149 = scmp.eq.s32.totalorder %s46, 0
      %p150 = por %p148, %p149
      %s151 = ssub.s32 %s47, %s59
      %p152 = scmp.eq.s32.totalorder %s151, 0
      %s154 = sadd.s32 %s153, 1
      %s155 = scalar_select %p152, %s153, %s154
      %p158 = pneg %p152
      %p159 = scmp.eq.s32.totalorder %s40, 1
      %p160 = por %p158, %p159
      %p161 = scmp.ne.s32.totalorder %s153, %s156
      %p162 = scmp.eq.s32.totalorder %s40, 0
      %p163 = por %p161, %p162
      %p164 = scmp.ne.s32.totalorder %s153, %s156
      %p165 = scmp.eq.s32.totalorder %s45, 1
      %p166 = por %p164, %p165
      %p167 = scmp.ne.s32.totalorder %s156, %s157
      %p168 = scmp.eq.s32.totalorder %s45, 0
      %p169 = por %p167, %p168
      %p170 = scmp.ne.s32.totalorder %s156, %s157
      %p171 = scmp.eq.s32.totalorder %s46, 1
      %p172 = por %p170, %p171
      %p174 = scmp.ne.s32.totalorder %s157, %s173
      %p175 = scmp.eq.s32.totalorder %s46, 0
      %p176 = por %p174, %p175
      %s177 = ssub.s32 %s47, %s59
      %p178 = scmp.eq.s32.totalorder %s177, 0
      %s180 = sadd.s32 %s179, 1
      %s181 = scalar_select %p178, %s179, %s180
      %p184 = pneg %p178
      %p185 = scmp.eq.s32.totalorder %s40, 1
      %p186 = por %p184, %p185
      %p187 = scmp.ne.s32.totalorder %s179, %s182
      %p188 = scmp.eq.s32.totalorder %s40, 0
      %p189 = por %p187, %p188
      %p190 = scmp.ne.s32.totalorder %s179, %s182
      %p191 = scmp.eq.s32.totalorder %s45, 1
      %p192 = por %p190, %p191
      %p193 = scmp.ne.s32.totalorder %s182, %s183
      %p194 = scmp.eq.s32.totalorder %s45, 0
      %p195 = por %p193, %p194
      %p196 = scmp.ne.s32.totalorder %s182, %s183
      %p197 = scmp.eq.s32.totalorder %s46, 1
      %p198 = por %p196, %p197
      %p200 = scmp.ne.s32.totalorder %s183, %s199
      %p201 = scmp.eq.s32.totalorder %s46, 0
      %p202 = por %p200, %p201
      %s204 = sadd.s32 %s203, 1
      %p207 = scmp.eq.s32.totalorder %s40, 1
      %p208 = scmp.ne.s32.totalorder %s203, %s205
      %p209 = scmp.eq.s32.totalorder %s40, 0
      %p210 = por %p208, %p209
      %p211 = scmp.ne.s32.totalorder %s203, %s205
      %p212 = scmp.eq.s32.totalorder %s45, 1
      %p213 = por %p211, %p212
      %p214 = scmp.ne.s32.totalorder %s205, %s206
      %p215 = scmp.eq.s32.totalorder %s45, 0
      %p216 = por %p214, %p215
      %p217 = scmp.ne.s32.totalorder %s205, %s206
      %p218 = scmp.eq.s32.totalorder %s46, 1
      %p219 = por %p217, %p218
      %p221 = scmp.ne.s32.totalorder %s206, %s220
      %p222 = scmp.eq.s32.totalorder %s46, 0
      %p223 = por %p221, %p222
      %s225 = sadd.s32 %s224, 1
      %p228 = scmp.eq.s32.totalorder %s40, 1
      %p229 = scmp.ne.s32.totalorder %s224, %s226
      %p230 = scmp.eq.s32.totalorder %s40, 0
      %p231 = por %p229, %p230
      %p232 = scmp.ne.s32.totalorder %s224, %s226
      %p233 = scmp.eq.s32.totalorder %s45, 1
      %p234 = por %p232, %p233
      %p235 = scmp.ne.s32.totalorder %s226, %s227
      %p236 = scmp.eq.s32.totalorder %s45, 0
      %p237 = por %p235, %p236
      %p238 = scmp.ne.s32.totalorder %s226, %s227
      %p239 = scmp.eq.s32.totalorder %s46, 1
      %p240 = por %p238, %p239
      %p242 = scmp.ne.s32.totalorder %s227, %s241
      %p243 = scmp.eq.s32.totalorder %s46, 0
      %p244 = por %p242, %p243
      %s245 = ssub.s32 %s47, %s59
      %s246 = ssub.s32 %s48, %s55
      %s247 = sor.u32 %s245, %s246
      %p248 = scmp.eq.s32.totalorder %s247, 0
      %s250 = sadd.s32 %s249, 1
      %s251 = scalar_select %p248, %s249, %s250
      %p254 = pneg %p248
      %p255 = scmp.eq.s32.totalorder %s40, 1
      %p256 = por %p254, %p255
      %p257 = scmp.ne.s32.totalorder %s249, %s252
      %p258 = scmp.eq.s32.totalorder %s40, 0
      %p259 = por %p257, %p258
      %p260 = scmp.ne.s32.totalorder %s249, %s252
      %p261 = scmp.eq.s32.totalorder %s45, 1
      %p262 = por %p260, %p261
      %p263 = scmp.ne.s32.totalorder %s252, %s253
      %p264 = scmp.eq.s32.totalorder %s45, 0
      %p265 = por %p263, %p264
      %p266 = scmp.ne.s32.totalorder %s252, %s253
      %p267 = scmp.eq.s32.totalorder %s46, 1
      %p268 = por %p266, %p267
      %p270 = scmp.ne.s32.totalorder %s253, %s269
      %p271 = scmp.eq.s32.totalorder %s46, 0
      %p272 = por %p270, %p271
      %s273 = ssub.s32 %s47, %s59
      %p274 = scmp.eq.s32.totalorder %s273, 0
      %s276 = sadd.s32 %s275, 1
      %s277 = scalar_select %p274, %s275, %s276
      %p280 = pneg %p274
      %p281 = scmp.eq.s32.totalorder %s40, 1
      %p282 = por %p280, %p281
      %p283 = scmp.ne.s32.totalorder %s275, %s278
      %p284 = scmp.eq.s32.totalorder %s40, 0
      %p285 = por %p283, %p284
      %p286 = scmp.ne.s32.totalorder %s275, %s278
      %p287 = scmp.eq.s32.totalorder %s45, 1
      %p288 = por %p286, %p287
      %p289 = scmp.ne.s32.totalorder %s278, %s279
      %p290 = scmp.eq.s32.totalorder %s45, 0
      %p291 = por %p289, %p290
      %p292 = scmp.ne.s32.totalorder %s278, %s279
      %p293 = scmp.eq.s32.totalorder %s46, 1
      %p294 = por %p292, %p293
      %p296 = scmp.ne.s32.totalorder %s279, %s295
      %p297 = scmp.eq.s32.totalorder %s46, 0
      %p298 = por %p296, %p297
      %s299 = ssub.s32 %s47, %s59
      %p300 = scmp.eq.s32.totalorder %s299, 0
      %s302 = sadd.s32 %s301, 1
      %s303 = scalar_select %p300, %s301, %s302
      %p306 = pneg %p300
      %p307 = scmp.eq.s32.totalorder %s40, 1
      %p308 = por %p306, %p307
      %p309 = scmp.ne.s32.totalorder %s301, %s304
      %p310 = scmp.eq.s32.totalorder %s40, 0
      %p311 = por %p309, %p310
      %p312 = scmp.ne.s32.totalorder %s301, %s304
      %p313 = scmp.eq.s32.totalorder %s45, 1
      %p314 = por %p312, %p313
      %p315 = scmp.ne.s32.totalorder %s304, %s305
      %p316 = scmp.eq.s32.totalorder %s45, 0
      %p317 = por %p315, %p316
      %p318 = scmp.ne.s32.totalorder %s304, %s305
      %p319 = scmp.eq.s32.totalorder %s46, 1
      %p320 = por %p318, %p319
      %p322 = scmp.ne.s32.totalorder %s305, %s321
      %p323 = scmp.eq.s32.totalorder %s46, 0
      %p324 = por %p322, %p323
      %s325 = ssub.s32 %s47, %s59
      %s326 = ssub.s32 %s48, %s55
      %s327 = sor.u32 %s325, %s326
      %p328 = scmp.eq.s32.totalorder %s327, 0
      %s330 = sadd.s32 %s329, 1
      %s331 = scalar_select %p328, %s329, %s330
      %p334 = pneg %p328
      %p335 = scmp.eq.s32.totalorder %s40, 1
      %p336 = por %p334, %p335
      %p337 = scmp.ne.s32.totalorder %s329, %s332
      %p338 = scmp.eq.s32.totalorder %s40, 0
      %p339 = por %p337, %p338
      %p340 = scmp.ne.s32.totalorder %s329, %s332
      %p341 = scmp.eq.s32.totalorder %s45, 1
      %p342 = por %p340, %p341
      %p343 = scmp.ne.s32.totalorder %s332, %s333
      %p344 = scmp.eq.s32.totalorder %s45, 0
      %p345 = por %p343, %p344
      %p346 = scmp.ne.s32.totalorder %s332, %s333
      %p347 = scmp.eq.s32.totalorder %s46, 1
      %p348 = por %p346, %p347
      %p350 = scmp.ne.s32.totalorder %s333, %s349
      %p351 = scmp.eq.s32.totalorder %s46, 0
      %p352 = por %p350, %p351
      %p353 = scmp.le.s32.totalorder 1, %s40
      %p354 = scmp.lt.s32.totalorder %s40, 3
      %p355 = pnand %p353, %p354
      %p356 = pneg %p355
      // Predicated region
      $region9: #{tpu_custom_call.1} parent=5 // pred_check
        _
      $region10: #{tpu_custom_call.1} parent=5 // pred_check_branch
        %358 = sbr.rel (%p355) target = $region12
      $region11: #{tpu_custom_call.1} parent=5 // pred_region
        %s359 = ssub.s32 %s40, 1
        // Predicated region
        $region13: #{tpu_custom_call.1} parent=11 // pred_check
          %p360 = pneg %p101
        $region14: #{tpu_custom_call.1} parent=11 // pred_check_branch
          %362 = sbr.rel (%p360) target = $region16
        $region15: #{tpu_custom_call.1} parent=11 // pred_region
          %s364 = ssub.s32 2048, 2048
          %365 = vsyncadd [#allocation12], %s364
          %s366 = sshll.u32 [#allocation11], 4
          %s367 = int_to_ptr.vmem [resolvable:$true] %s366
          %372 = dma.hbm_to_vmem [thread:$0]  %s2, 2048, %s367, [#allocation12], 256, 256, 16
        $region16: #{tpu_custom_call.1} parent=11 // pred_fallthru
          _
        // Predicated region
        $region17: #{tpu_custom_call.1} parent=11 // pred_check
          %p373 = pneg %p122
        $region18: #{tpu_custom_call.1} parent=11 // pred_check_branch
          %375 = sbr.rel (%p373) target = $region20
        $region19: #{tpu_custom_call.1} parent=11 // pred_region
          %s377 = ssub.s32 4096, 4096
          %378 = vsyncadd [#allocation12], %s377
          %s379 = sshll.u32 [#allocation13], 4
          %s380 = int_to_ptr.vmem [resolvable:$true] %s379
          %385 = dma.hbm_to_vmem [thread:$0]  %s3, 4096, %s380, [#allocation12], 256, 256, 16
        $region20: #{tpu_custom_call.1} parent=11 // pred_fallthru
          _
        // Predicated region
        $region21: #{tpu_custom_call.1} parent=11 // pred_check
          %p386 = pneg %p143
        $region22: #{tpu_custom_call.1} parent=11 // pred_check_branch
          %388 = sbr.rel (%p386) target = $region24
        $region23: #{tpu_custom_call.1} parent=11 // pred_region
          _
        $region24: #{tpu_custom_call.1} parent=11 // pred_fallthru
          _
        // Predicated region
        $region25: #{tpu_custom_call.1} parent=11 // pred_check
          %p389 = pneg %p216
        $region26: #{tpu_custom_call.1} parent=11 // pred_check_branch
          %391 = sbr.rel (%p389) target = $region28
        $region27: #{tpu_custom_call.1} parent=11 // pred_region
          %s393 = ssub.s32 1024, 1024
          %394 = vsyncadd [#allocation18], %s393
          %s395 = sshll.u32 [#allocation17], 4
          %s396 = int_to_ptr.vmem [resolvable:$true] %s395
          %401 = dma.hbm_to_vmem [thread:$0]  %s7, 1024, %s396, [#allocation18], 64, 64, 4
        $region28: #{tpu_custom_call.1} parent=11 // pred_fallthru
          _
        // Predicated region
        $region29: #{tpu_custom_call.1} parent=11 // pred_check
          %p402 = pneg %p237
        $region30: #{tpu_custom_call.1} parent=11 // pred_check_branch
          %404 = sbr.rel (%p402) target = $region32
        $region31: #{tpu_custom_call.1} parent=11 // pred_region
          _
        $region32: #{tpu_custom_call.1} parent=11 // pred_fallthru
          _
      $region12: #{tpu_custom_call.1} parent=5 // pred_fallthru
        _
      %p405 = scmp.lt.s32.totalorder %s40, 2
      // Predicated region
      $region33: #{tpu_custom_call.1} parent=5 // pred_check
        %p406 = pneg %p405
      $region34: #{tpu_custom_call.1} parent=5 // pred_check_branch
        %408 = sbr.rel (%p406) target = $region36
      $region35: #{tpu_custom_call.1} parent=5 // pred_region
        // Predicated region
        $region37: #{tpu_custom_call.1} parent=35 // pred_check
          %p409 = pneg %p74
        $region38: #{tpu_custom_call.1} parent=35 // pred_check_branch
          %411 = sbr.rel (%p409) target = $region40
        $region39: #{tpu_custom_call.1} parent=35 // pred_region
          %s412 = sand.u32 %s64, 1
          %s413 = scalar_lea.sflag [#allocation9], %s412
          %s414 = sand.u32 %s64, 1
          %s415 = smul.addr %s414, 32
          %s416 = scalar_lea.vmem [#allocation8], %s415
          %s417 = smul.u32 8, %s48
          %s419 = ssub.s32 512, 512
          %420 = vsyncadd %s413, %s419
          %s421 = smul.addr %s417, 2
          %s422 = sadd.s32 %s47, %s421
          %s423 = smul.addr %s422, 64
          %s424 = scalar_lea.hbm %s1, %s423
          %s425 = sshll.u32 %s416, 4
          %s426 = int_to_ptr.vmem [resolvable:$true] %s425
          %431 = dma.hbm_to_vmem [thread:$0]  %s424, 512, %s426, %s413, 128, 64, 4
        $region40: #{tpu_custom_call.1} parent=35 // pred_fallthru
          _
        // Predicated region
        $region41: #{tpu_custom_call.1} parent=35 // pred_check
          %p432 = pneg %p163
        $region42: #{tpu_custom_call.1} parent=35 // pred_check_branch
          %434 = sbr.rel (%p432) target = $region44
        $region43: #{tpu_custom_call.1} parent=35 // pred_region
          %s435 = sand.u32 %s40, 1
          %s436 = scalar_lea.sflag [#allocation15], %s435
          %s437 = sand.u32 %s153, 1
          %s438 = smul.addr %s437, 8
          %s439 = scalar_lea.vmem [#allocation14], %s438
          %s441 = ssub.s32 128, 128
          %442 = vsyncadd %s436, %s441
          %s443 = smul.addr %s47, 128
          %s444 = scalar_lea.hbm %s5, %s443
          %s446 = sshll.u32 %s439, 4
          %s447 = int_to_ptr.vmem [resolvable:$true] %s446
          %449 = dma.hbm_to_vmem [thread:$0]  %s444, 128, %s447, %s436
        $region44: #{tpu_custom_call.1} parent=35 // pred_fallthru
          _
        // Predicated region
        $region45: #{tpu_custom_call.1} parent=35 // pred_check
          %p450 = pneg %p189
        $region46: #{tpu_custom_call.1} parent=35 // pred_check_branch
          %452 = sbr.rel (%p450) target = $region48
        $region47: #{tpu_custom_call.1} parent=35 // pred_region
          %s453 = sand.u32 %s40, 1
          %s454 = scalar_lea.sflag [#allocation15], %s453
          %s455 = sand.u32 %s179, 1
          %s456 = smul.addr %s455, 8
          %s457 = scalar_lea.vmem [#allocation16], %s456
          %s459 = ssub.s32 128, 128
          %460 = vsyncadd %s454, %s459
          %s461 = smul.addr %s47, 128
          %s462 = scalar_lea.hbm %s6, %s461
          %s464 = sshll.u32 %s457, 4
          %s465 = int_to_ptr.vmem [resolvable:$true] %s464
          %467 = dma.hbm_to_vmem [thread:$0]  %s462, 128, %s465, %s454
        $region48: #{tpu_custom_call.1} parent=35 // pred_fallthru
          _
      $region36: #{tpu_custom_call.1} parent=5 // pred_fallthru
        _
      %p468 = scmp.le.s32.totalorder 1, %s40
      %p469 = scmp.lt.s32.totalorder %s40, 3
      %p470 = pnand %p468, %p469
      %p471 = pneg %p470
      // Predicated region
      $region49: #{tpu_custom_call.1} parent=5 // pred_check
        _
      $region50: #{tpu_custom_call.1} parent=5 // pred_check_branch
        %473 = sbr.rel (%p470) target = $region52
      $region51: #{tpu_custom_call.1} parent=5 // pred_region
        %s474 = ssub.s32 %s40, 1
        %s475 = sand.u32 %s67, 1
        %s476 = scalar_lea.sflag [#allocation9], %s475
        %s477 = sand.u32 %s67, 1
        %s478 = smul.addr %s477, 32
        %s479 = scalar_lea.vmem [#allocation8], %s478
        // Predicated region
        $region53: #{tpu_custom_call.1} parent=51 // pred_check
          %p480 = pneg %p80
        $region54: #{tpu_custom_call.1} parent=51 // pred_check_branch
          %482 = sbr.rel (%p480) target = $region56
        $region55: #{tpu_custom_call.1} parent=51 // pred_region
          %483 = dma.done %s476, 512
        $region56: #{tpu_custom_call.1} parent=51 // pred_fallthru
          _
        // Predicated region
        $region57: #{tpu_custom_call.1} parent=51 // pred_check
          %p484 = pneg %p101
        $region58: #{tpu_custom_call.1} parent=51 // pred_check_branch
          %486 = sbr.rel (%p484) target = $region60
        $region59: #{tpu_custom_call.1} parent=51 // pred_region
          %487 = dma.done [#allocation12], 2048
        $region60: #{tpu_custom_call.1} parent=51 // pred_fallthru
          _
        // Predicated region
        $region61: #{tpu_custom_call.1} parent=51 // pred_check
          %p488 = pneg %p122
        $region62: #{tpu_custom_call.1} parent=51 // pred_check_branch
          %490 = sbr.rel (%p488) target = $region64
        $region63: #{tpu_custom_call.1} parent=51 // pred_region
          %491 = dma.done [#allocation12], 4096
        $region64: #{tpu_custom_call.1} parent=51 // pred_fallthru
          _
        %s492 = sand.u32 %s45, 1
        %s493 = scalar_lea.sflag [#allocation15], %s492
        %s494 = sand.u32 %s156, 1
        %s495 = smul.addr %s494, 8
        %s496 = scalar_lea.vmem [#allocation14], %s495
        // Predicated region
        $region65: #{tpu_custom_call.1} parent=51 // pred_check
          %p497 = pneg %p169
        $region66: #{tpu_custom_call.1} parent=51 // pred_check_branch
          %499 = sbr.rel (%p497) target = $region68
        $region67: #{tpu_custom_call.1} parent=51 // pred_region
          %500 = dma.done %s493, 128
        $region68: #{tpu_custom_call.1} parent=51 // pred_fallthru
          _
        %s501 = sand.u32 %s45, 1
        %s502 = scalar_lea.sflag [#allocation15], %s501
        %s503 = sand.u32 %s182, 1
        %s504 = smul.addr %s503, 8
        %s505 = scalar_lea.vmem [#allocation16], %s504
        // Predicated region
        $region69: #{tpu_custom_call.1} parent=51 // pred_check
          %p506 = pneg %p195
        $region70: #{tpu_custom_call.1} parent=51 // pred_check_branch
          %508 = sbr.rel (%p506) target = $region72
        $region71: #{tpu_custom_call.1} parent=51 // pred_region
          %509 = dma.done %s502, 128
        $region72: #{tpu_custom_call.1} parent=51 // pred_fallthru
          _
        // Predicated region
        $region73: #{tpu_custom_call.1} parent=51 // pred_check
          %p510 = pneg %p216
        $region74: #{tpu_custom_call.1} parent=51 // pred_check_branch
          %512 = sbr.rel (%p510) target = $region76
        $region75: #{tpu_custom_call.1} parent=51 // pred_region
          %513 = dma.done [#allocation18], 1024
        $region76: #{tpu_custom_call.1} parent=51 // pred_fallthru
          _
        %s514 = sand.u32 %s67, 1
        %s515 = scalar_lea.sflag [#allocation9], %s514
        %s516 = sand.u32 %s67, 1
        %s517 = smul.addr %s516, 32
        %s518 = scalar_lea.vmem [#allocation8], %s517
        %p519 = pneg %p80
        %p520 = pneg %p77
        %p521 = pneg %p101
        %p522 = pneg %p98
        %p523 = pneg %p122
        %p524 = pneg %p119
        %p525 = pneg %p143
        %p526 = pneg %p140
        %s527 = sand.u32 %s45, 1
        %s528 = scalar_lea.sflag [#allocation15], %s527
        %s529 = sand.u32 %s156, 1
        %s530 = smul.addr %s529, 8
        %s531 = scalar_lea.vmem [#allocation14], %s530
        %p532 = pneg %p169
        %p533 = pneg %p166
        %s534 = sand.u32 %s45, 1
        %s535 = scalar_lea.sflag [#allocation15], %s534
        %s536 = sand.u32 %s182, 1
        %s537 = smul.addr %s536, 8
        %s538 = scalar_lea.vmem [#allocation16], %s537
        %p539 = pneg %p195
        %p540 = pneg %p192
        %p541 = pneg %p216
        %p542 = pneg %p213
        %p543 = pneg %p237
        %p544 = pneg %p234
        %p545 = pneg %p265
        %p546 = pneg %p262
        %s547 = sand.u32 %s252, 1
        %s548 = scalar_lea.sflag [#allocation10], %s547
        %s549 = sand.u32 %s252, 1
        %s550 = smul.addr %s549, 64
        %s551 = scalar_lea.vmem [#allocation19], %s550
        %p552 = pneg %p291
        %p553 = pneg %p288
        %s554 = sand.u32 %s45, 1
        %s555 = scalar_lea.sflag [#allocation21], %s554
        %s556 = sand.u32 %s278, 1
        %s557 = smul.addr %s556, 8
        %s558 = scalar_lea.vmem [#allocation20], %s557
        %p559 = pneg %p317
        %p560 = pneg %p314
        %s561 = sand.u32 %s45, 1
        %s562 = scalar_lea.sflag [#allocation21], %s561
        %s563 = sand.u32 %s304, 1
        %s564 = smul.addr %s563, 8
        %s565 = scalar_lea.vmem [#allocation22], %s564
        %p566 = pneg %p345
        %p567 = pneg %p342
        %s568 = sand.u32 %s332, 1
        %s569 = scalar_lea.sflag [#allocation24], %s568
        %s570 = sand.u32 %s332, 1
        %s571 = smul.addr %s570, 64
        %s572 = scalar_lea.vmem [#allocation23], %s571
        %s573 = smul.u32 8, %s50
        %s574 = smul.u32 8, %s49
        %s575 = smul.u32 8, %s49
        %p577 = scmp.eq.s32.totalorder %s50, 0
        // Predicated region
        $region77: #{tpu_custom_call.1} parent=51 // pred_check
          %p578 = pneg %p577
        $region78: #{tpu_custom_call.1} parent=51 // pred_check_branch
          %580 = sbr.rel (%p578) target = $region80
        $region79: #{tpu_custom_call.1} parent=51 // pred_region
          %v581 = vld [vmem:[%s496] sm:$0xff]
          %582 = vst [vmem:[#allocation2] sm:$0xff] %v581
          %v583 = vld [vmem:[%s505] sm:$0xff]
          %584 = vst [vmem:[#allocation3] sm:$0xff] %v583
          %s585 = smul.u32 %s49, 8
          %s586 = sld [smem:[#allocation7 + %s585]]
          %v587 = vstv %s586
          %588 = vst [vmem:[#allocation4] sm:$0x1] %v587
          %s589 = sadd.s32 %s585, 1
          %s590 = sld [smem:[#allocation7 + %s589]]
          %v591 = vstv %s590
          %592 = vst [vmem:[#allocation4 + $0x1] sm:$0x1] %v591
          %s593 = sadd.s32 %s585, 2
          %s594 = sld [smem:[#allocation7 + %s593]]
          %v595 = vstv %s594
          %596 = vst [vmem:[#allocation4 + $0x2] sm:$0x1] %v595
          %s597 = sadd.s32 %s585, 3
          %s598 = sld [smem:[#allocation7 + %s597]]
          %v599 = vstv %s598
          %600 = vst [vmem:[#allocation4 + $0x3] sm:$0x1] %v599
          %s601 = sadd.s32 %s585, 4
          %s602 = sld [smem:[#allocation7 + %s601]]
          %v603 = vstv %s602
          %604 = vst [vmem:[#allocation4 + $0x4] sm:$0x1] %v603
          %s605 = sadd.s32 %s585, 5
          %s606 = sld [smem:[#allocation7 + %s605]]
          %v607 = vstv %s606
          %608 = vst [vmem:[#allocation4 + $0x5] sm:$0x1] %v607
          %s609 = sadd.s32 %s585, 6
          %s610 = sld [smem:[#allocation7 + %s609]]
          %v611 = vstv %s610
          %612 = vst [vmem:[#allocation4 + $0x6] sm:$0x1] %v611
          %s613 = sadd.s32 %s585, 7
          %s614 = sld [smem:[#allocation7 + %s613]]
          %v615 = vstv %s614
          %616 = vst [vmem:[#allocation4 + $0x7] sm:$0x1] %v615
        $region80: #{tpu_custom_call.1} parent=51 // pred_fallthru
          _
        %v617 = vld [vmem:[%s479] sm:$0xf]
        %v618 = vld [vmem:[%s479 + $0x4] sm:$0xf]
        %v619 = vld [vmem:[%s479 + $0x8] sm:$0xf]
        %v620 = vld [vmem:[%s479 + $0xc] sm:$0xf]
        %v621 = vld [vmem:[%s479 + $0x10] sm:$0xf]
        %v622 = vld [vmem:[%s479 + $0x14] sm:$0xf]
        %v623 = vld [vmem:[%s479 + $0x18] sm:$0xf]
        %v624 = vld [vmem:[%s479 + $0x1c] sm:$0xf]
        %v625 = vld [vmem:[#allocation11] sm:$0xff]
        %v626 = vld [vmem:[#allocation11 + $0x8] sm:$0xff]
        %v627 = vld [vmem:[#allocation11 + $0x10] sm:$0xff]
        %v628 = vld [vmem:[#allocation11 + $0x18] sm:$0xff]
        %v629 = vld [vmem:[#allocation11 + $0x20] sm:$0xff]
        %v630 = vld [vmem:[#allocation11 + $0x28] sm:$0xff]
        %v631 = vld [vmem:[#allocation11 + $0x30] sm:$0xff]
        %v632 = vld [vmem:[#allocation11 + $0x38] sm:$0xff]
        %v633 = vld [vmem:[#allocation11 + $0x40] sm:$0xff]
        %v634 = vld [vmem:[#allocation11 + $0x48] sm:$0xff]
        %v635 = vld [vmem:[#allocation11 + $0x50] sm:$0xff]
        %v636 = vld [vmem:[#allocation11 + $0x58] sm:$0xff]
        %v637 = vld [vmem:[#allocation11 + $0x60] sm:$0xff]
        %v638 = vld [vmem:[#allocation11 + $0x68] sm:$0xff]
        %v639 = vld [vmem:[#allocation11 + $0x70] sm:$0xff]
        %v640 = vld [vmem:[#allocation11 + $0x78] sm:$0xff]
        %v641 = vld [vmem:[%s4] sm:$0xf]
        %v643 = vlaneseq
        %v644 = vshrl.u32 %v643, 7
        %v645 = vsub.s32 0, %v644
        %v646 = vrot.slane %v641, %v645
        %v647 = vlaneseq
        %v648 = vshrl.u32 %v647, 7
        %v649 = vsub.s32 1, %v648
        %v650 = vrot.slane %v641, %v649
        %v651 = vlaneseq
        %v652 = vshrl.u32 %v651, 7
        %v653 = vsub.s32 2, %v652
        %v654 = vrot.slane %v641, %v653
        %v655 = vlaneseq
        %v656 = vshrl.u32 %v655, 7
        %v657 = vsub.s32 3, %v656
        %v658 = vrot.slane %v641, %v657
        %v671 = vunpack.c.l.b16 %v617
        %v672 = vunpack.c.l.b16 %v618
        %v673 = vunpack.c.l.b16 %v619
        %v674 = vunpack.c.l.b16 %v620
        %v675 = vunpack.c.l.b16 %v621
        %v676 = vunpack.c.l.b16 %v622
        %v677 = vunpack.c.l.b16 %v623
        %v678 = vunpack.c.l.b16 %v624
        %v679 = vpack.c.b16 %v672, %v671
        %v680 = vpack.c.b16 %v674, %v673
        %v681 = vpack.c.b16 %v676, %v675
        %v682 = vpack.c.b16 %v678, %v677
        %v699 = vunpack.c.l.b16 %v625
        %v700 = vunpack.c.h.b16 %v625
        %v701 = vunpack.c.l.b16 %v626
        %v702 = vunpack.c.h.b16 %v626
        %v703 = vunpack.c.l.b16 %v627
        %v704 = vunpack.c.h.b16 %v627
        %v705 = vunpack.c.l.b16 %v628
        %v706 = vunpack.c.h.b16 %v628
        %v707 = vunpack.c.l.b16 %v629
        %v708 = vunpack.c.h.b16 %v629
        %v709 = vunpack.c.l.b16 %v630
        %v710 = vunpack.c.h.b16 %v630
        %v711 = vunpack.c.l.b16 %v631
        %v712 = vunpack.c.h.b16 %v631
        %v713 = vunpack.c.l.b16 %v632
        %v714 = vunpack.c.h.b16 %v632
        %v715 = vunpack.c.l.b16 %v633
        %v716 = vunpack.c.h.b16 %v633
        %v717 = vunpack.c.l.b16 %v634
        %v718 = vunpack.c.h.b16 %v634
        %v719 = vunpack.c.l.b16 %v635
        %v720 = vunpack.c.h.b16 %v635
        %v721 = vunpack.c.l.b16 %v636
        %v722 = vunpack.c.h.b16 %v636
        %v723 = vunpack.c.l.b16 %v637
        %v724 = vunpack.c.h.b16 %v637
        %v725 = vunpack.c.l.b16 %v638
        %v726 = vunpack.c.h.b16 %v638
        %v727 = vunpack.c.l.b16 %v639
        %v728 = vunpack.c.h.b16 %v639
        %v729 = vunpack.c.l.b16 %v640
        %v730 = vunpack.c.h.b16 %v640
        %v731 = vpack.c.b16 %v703, %v699
        %v732 = vpack.c.b16 %v704, %v700
        %v733 = vpack.c.b16 %v705, %v701
        %v734 = vpack.c.b16 %v706, %v702
        %v735 = vpack.c.b16 %v711, %v707
        %v736 = vpack.c.b16 %v712, %v708
        %v737 = vpack.c.b16 %v713, %v709
        %v738 = vpack.c.b16 %v714, %v710
        %v739 = vpack.c.b16 %v719, %v715
        %v740 = vpack.c.b16 %v720, %v716
        %v741 = vpack.c.b16 %v721, %v717
        %v742 = vpack.c.b16 %v722, %v718
        %v743 = vpack.c.b16 %v727, %v723
        %v744 = vpack.c.b16 %v728, %v724
        %v745 = vpack.c.b16 %v729, %v725
        %v746 = vpack.c.b16 %v730, %v726
        %vm763 = vcmask 523264
        %v765 = vsel %vm763, %v679, 0
        %v768 = vsel %vm763, %v680, 0
        %v771 = vsel %vm763, %v681, 0
        %v774 = vsel %vm763, %v682, 0
        %776 = vmatprep.subr.bf16.mxu0 0
        %777 = vmatpush1.bf16.msra.mxu0 0
        %778 = vmatprep.subr.bf16.mxu0 0
        %779 = vmatpush1.bf16.msra.mxu0 0
        %780 = vmatprep.subr.bf16.mxu0 0
        %781 = vmatpush1.bf16.msra.mxu0 0
        %782 = vmatprep.subr.bf16.mxu0 0
        %783 = vmatpush1.bf16.msra.mxu0 0
        %784 = vmatprep.subr.bf16.mxu0 %v744
        %785 = vmatpush1.bf16.msra.mxu0 %v743
        %786 = vmatprep.subr.bf16.mxu0 %v740
        %787 = vmatpush1.bf16.msra.mxu0 %v739
        %788 = vmatprep.subr.bf16.mxu0 %v736
        %789 = vmatpush1.bf16.msra.mxu0 %v735
        %790 = vmatprep.subr.bf16.mxu0 %v732
        %791 = vmatpush1.bf16.msra.mxu0 %v731
        %792 = vmatprep.subr.bf16.mxu0 0
        %793 = vmatpush2.bf16.msra.mxu0 0
        %794 = vmatprep.subr.bf16.mxu0 0
        %795 = vmatpush2.bf16.msra.mxu0 0
        %796 = vmatprep.subr.bf16.mxu0 0
        %797 = vmatpush2.bf16.msra.mxu0 0
        %798 = vmatprep.subr.bf16.mxu0 0
        %799 = vmatpush2.bf16.msra.mxu0 0
        %800 = vmatprep.subr.bf16.mxu0 0
        %801 = vmatpush2.bf16.msra.mxu0 0
        %802 = vmatprep.subr.bf16.mxu0 0
        %803 = vmatpush2.bf16.msra.mxu0 0
        %804 = vmatprep.subr.bf16.mxu0 0
        %805 = vmatpush2.bf16.msra.mxu0 0
        %806 = vmatprep.subr.bf16.mxu0 0
        %807 = vmatpush2.bf16.msra.mxu0 0
        %808 = vmatprep.mubr.bf16.mxu0 0
        %809 = vmatmul.mubr.bf16.gmra.mxu0 %v765
        %v810 = vpop.f32.mrf.mxu0
        %v811 = vadd.f32 %v646, %v810
        %v812 = vpop.f32.mrf.mxu0
        %v813 = vadd.f32 %v650, %v812
        %v814 = vpop.f32.mrf.mxu0
        %v815 = vadd.f32 %v646, %v814
        %v816 = vpop.f32.mrf.mxu0
        %v817 = vadd.f32 %v650, %v816
        %818 = vmatprep.mubr.bf16.mxu0 0
        %819 = vmatmul.mubr.bf16.gmra.mxu0 %v768
        %v820 = vpop.f32.mrf.mxu0
        %v821 = vadd.f32 %v646, %v820
        %v822 = vpop.f32.mrf.mxu0
        %v823 = vadd.f32 %v650, %v822
        %v824 = vpop.f32.mrf.mxu0
        %v825 = vadd.f32 %v646, %v824
        %v826 = vpop.f32.mrf.mxu0
        %v827 = vadd.f32 %v650, %v826
        %828 = vmatprep.mubr.bf16.mxu0 0
        %829 = vmatmul.mubr.bf16.gmra.mxu0 %v771
        %v830 = vpop.f32.mrf.mxu0
        %v831 = vadd.f32 %v646, %v830
        %v832 = vpop.f32.mrf.mxu0
        %v833 = vadd.f32 %v650, %v832
        %v834 = vpop.f32.mrf.mxu0
        %v835 = vadd.f32 %v646, %v834
        %v836 = vpop.f32.mrf.mxu0
        %v837 = vadd.f32 %v650, %v836
        %838 = vmatprep.mubr.bf16.mxu0 0
        %839 = vmatmul.mubr.bf16.gmra.mxu0 %v774
        %v840 = vpop.f32.mrf.mxu0
        %v841 = vadd.f32 %v646, %v840
        %v842 = vpop.f32.mrf.mxu0
        %v843 = vadd.f32 %v650, %v842
        %v844 = vpop.f32.mrf.mxu0
        %v845 = vadd.f32 %v646, %v844
        %v846 = vpop.f32.mrf.mxu0
        %v847 = vadd.f32 %v650, %v846
        %848 = vdwg.mxu0
        %849 = vmatprep.subr.bf16.mxu0 0
        %850 = vmatpush1.bf16.msra.mxu0 0
        %851 = vmatprep.subr.bf16.mxu0 0
        %852 = vmatpush1.bf16.msra.mxu0 0
        %853 = vmatprep.subr.bf16.mxu0 0
        %854 = vmatpush1.bf16.msra.mxu0 0
        %855 = vmatprep.subr.bf16.mxu0 0
        %856 = vmatpush1.bf16.msra.mxu0 0
        %857 = vmatprep.subr.bf16.mxu0 %v746
        %858 = vmatpush1.bf16.msra.mxu0 %v745
        %859 = vmatprep.subr.bf16.mxu0 %v742
        %860 = vmatpush1.bf16.msra.mxu0 %v741
        %861 = vmatprep.subr.bf16.mxu0 %v738
        %862 = vmatpush1.bf16.msra.mxu0 %v737
        %863 = vmatprep.subr.bf16.mxu0 %v734
        %864 = vmatpush1.bf16.msra.mxu0 %v733
        %865 = vmatprep.subr.bf16.mxu0 0
        %866 = vmatpush2.bf16.msra.mxu0 0
        %867 = vmatprep.subr.bf16.mxu0 0
        %868 = vmatpush2.bf16.msra.mxu0 0
        %869 = vmatprep.subr.bf16.mxu0 0
        %870 = vmatpush2.bf16.msra.mxu0 0
        %871 = vmatprep.subr.bf16.mxu0 0
        %872 = vmatpush2.bf16.msra.mxu0 0
        %873 = vmatprep.subr.bf16.mxu0 0
        %874 = vmatpush2.bf16.msra.mxu0 0
        %875 = vmatprep.subr.bf16.mxu0 0
        %876 = vmatpush2.bf16.msra.mxu0 0
        %877 = vmatprep.subr.bf16.mxu0 0
        %878 = vmatpush2.bf16.msra.mxu0 0
        %879 = vmatprep.subr.bf16.mxu0 0
        %880 = vmatpush2.bf16.msra.mxu0 0
        %881 = vmatprep.mubr.bf16.mxu0 0
        %882 = vmatmul.mubr.bf16.gmra.mxu0 %v765
        %v883 = vpop.f32.mrf.mxu0
        %v884 = vadd.f32 %v654, %v883
        %v885 = vpop.f32.mrf.mxu0
        %v886 = vadd.f32 %v658, %v885
        %v887 = vpop.f32.mrf.mxu0
        %v888 = vadd.f32 %v654, %v887
        %v889 = vpop.f32.mrf.mxu0
        %v890 = vadd.f32 %v658, %v889
        %891 = vmatprep.mubr.bf16.mxu0 0
        %892 = vmatmul.mubr.bf16.gmra.mxu0 %v768
        %v893 = vpop.f32.mrf.mxu0
        %v894 = vadd.f32 %v654, %v893
        %v895 = vpop.f32.mrf.mxu0
        %v896 = vadd.f32 %v658, %v895
        %v897 = vpop.f32.mrf.mxu0
        %v898 = vadd.f32 %v654, %v897
        %v899 = vpop.f32.mrf.mxu0
        %v900 = vadd.f32 %v658, %v899
        %901 = vmatprep.mubr.bf16.mxu0 0
        %902 = vmatmul.mubr.bf16.gmra.mxu0 %v771
        %v903 = vpop.f32.mrf.mxu0
        %v904 = vadd.f32 %v654, %v903
        %v905 = vpop.f32.mrf.mxu0
        %v906 = vadd.f32 %v658, %v905
        %v907 = vpop.f32.mrf.mxu0
        %v908 = vadd.f32 %v654, %v907
        %v909 = vpop.f32.mrf.mxu0
        %v910 = vadd.f32 %v658, %v909
        %911 = vmatprep.mubr.bf16.mxu0 0
        %912 = vmatmul.mubr.bf16.gmra.mxu0 %v774
        %v913 = vpop.f32.mrf.mxu0
        %v914 = vadd.f32 %v654, %v913
        %v915 = vpop.f32.mrf.mxu0
        %v916 = vadd.f32 %v658, %v915
        %v917 = vpop.f32.mrf.mxu0
        %v918 = vadd.f32 %v654, %v917
        %v919 = vpop.f32.mrf.mxu0
        %v920 = vadd.f32 %v658, %v919
        %921 = vdwg.mxu0
        %v922 = vpack.c.bf16 %v815, %v811
        %v923 = vpack.c.bf16 %v817, %v813
        %v924 = vpack.c.bf16 %v888, %v884
        %v925 = vpack.c.bf16 %v890, %v886
        %v926 = vpack.c.bf16 %v825, %v821
        %v927 = vpack.c.bf16 %v827, %v823
        %v928 = vpack.c.bf16 %v898, %v894
        %v929 = vpack.c.bf16 %v900, %v896
        %v930 = vpack.c.bf16 %v835, %v831
        %v931 = vpack.c.bf16 %v837, %v833
        %v932 = vpack.c.bf16 %v908, %v904
        %v933 = vpack.c.bf16 %v910, %v906
        %v934 = vpack.c.bf16 %v845, %v841
        %v935 = vpack.c.bf16 %v847, %v843
        %v936 = vpack.c.bf16 %v918, %v914
        %v937 = vpack.c.bf16 %v920, %v916
        %v954 = vunpack.c.l.b16 %v922
        %v955 = vunpack.c.l.b16 %v923
        %v956 = vunpack.c.l.b16 %v924
        %v957 = vunpack.c.l.b16 %v925
        %v958 = vunpack.c.h.b16 %v922
        %v959 = vunpack.c.h.b16 %v923
        %v960 = vunpack.c.h.b16 %v924
        %v961 = vunpack.c.h.b16 %v925
        %v962 = vunpack.c.l.b16 %v926
        %v963 = vunpack.c.l.b16 %v927
        %v964 = vunpack.c.l.b16 %v928
        %v965 = vunpack.c.l.b16 %v929
        %v966 = vunpack.c.h.b16 %v926
        %v967 = vunpack.c.h.b16 %v927
        %v968 = vunpack.c.h.b16 %v928
        %v969 = vunpack.c.h.b16 %v929
        %v970 = vunpack.c.l.b16 %v930
        %v971 = vunpack.c.l.b16 %v931
        %v972 = vunpack.c.l.b16 %v932
        %v973 = vunpack.c.l.b16 %v933
        %v974 = vunpack.c.h.b16 %v930
        %v975 = vunpack.c.h.b16 %v931
        %v976 = vunpack.c.h.b16 %v932
        %v977 = vunpack.c.h.b16 %v933
        %v978 = vunpack.c.l.b16 %v934
        %v979 = vunpack.c.l.b16 %v935
        %v980 = vunpack.c.l.b16 %v936
        %v981 = vunpack.c.l.b16 %v937
        %v982 = vunpack.c.h.b16 %v934
        %v983 = vunpack.c.h.b16 %v935
        %v984 = vunpack.c.h.b16 %v936
        %v985 = vunpack.c.h.b16 %v937
        %v986 = vpack.c.b16 %v955, %v954
        %v987 = vpack.c.b16 %v957, %v956
        %v988 = vpack.c.b16 %v959, %v958
        %v989 = vpack.c.b16 %v961, %v960
        %v990 = vpack.c.b16 %v963, %v962
        %v991 = vpack.c.b16 %v965, %v964
        %v992 = vpack.c.b16 %v967, %v966
        %v993 = vpack.c.b16 %v969, %v968
        %v994 = vpack.c.b16 %v971, %v970
        %v995 = vpack.c.b16 %v973, %v972
        %v996 = vpack.c.b16 %v975, %v974
        %v997 = vpack.c.b16 %v977, %v976
        %v998 = vpack.c.b16 %v979, %v978
        %v999 = vpack.c.b16 %v981, %v980
        %v1000 = vpack.c.b16 %v983, %v982
        %v1001 = vpack.c.b16 %v985, %v984
        %1018 = vst [vmem:[#allocation5] sm:$0xff] %v986
        %1019 = vst [vmem:[#allocation5 + $0x8] sm:$0xff] %v987
        %1020 = vst [vmem:[#allocation5 + $0x10] sm:$0xff] %v988
        %1021 = vst [vmem:[#allocation5 + $0x18] sm:$0xff] %v989
        %1022 = vst [vmem:[#allocation5 + $0x20] sm:$0xff] %v990
        %1023 = vst [vmem:[#allocation5 + $0x28] sm:$0xff] %v991
        %1024 = vst [vmem:[#allocation5 + $0x30] sm:$0xff] %v992
        %1025 = vst [vmem:[#allocation5 + $0x38] sm:$0xff] %v993
        %1026 = vst [vmem:[#allocation5 + $0x40] sm:$0xff] %v994
        %1027 = vst [vmem:[#allocation5 + $0x48] sm:$0xff] %v995
        %1028 = vst [vmem:[#allocation5 + $0x50] sm:$0xff] %v996
        %1029 = vst [vmem:[#allocation5 + $0x58] sm:$0xff] %v997
        %1030 = vst [vmem:[#allocation5 + $0x60] sm:$0xff] %v998
        %1031 = vst [vmem:[#allocation5 + $0x68] sm:$0xff] %v999
        %1032 = vst [vmem:[#allocation5 + $0x70] sm:$0xff] %v1000
        %1033 = vst [vmem:[#allocation5 + $0x78] sm:$0xff] %v1001
        %v1034 = vld [vmem:[#allocation13] sm:$0xff]
        %v1035 = vld [vmem:[#allocation13 + $0x8] sm:$0xff]
        %v1036 = vld [vmem:[#allocation13 + $0x10] sm:$0xff]
        %v1037 = vld [vmem:[#allocation13 + $0x18] sm:$0xff]
        %v1038 = vld [vmem:[#allocation13 + $0x20] sm:$0xff]
        %v1039 = vld [vmem:[#allocation13 + $0x28] sm:$0xff]
        %v1040 = vld [vmem:[#allocation13 + $0x30] sm:$0xff]
        %v1041 = vld [vmem:[#allocation13 + $0x38] sm:$0xff]
        %v1042 = vld [vmem:[#allocation13 + $0x40] sm:$0xff]
        %v1043 = vld [vmem:[#allocation13 + $0x48] sm:$0xff]
        %v1044 = vld [vmem:[#allocation13 + $0x50] sm:$0xff]
        %v1045 = vld [vmem:[#allocation13 + $0x58] sm:$0xff]
        %v1046 = vld [vmem:[#allocation13 + $0x60] sm:$0xff]
        %v1047 = vld [vmem:[#allocation13 + $0x68] sm:$0xff]
        %v1048 = vld [vmem:[#allocation13 + $0x70] sm:$0xff]
        %v1049 = vld [vmem:[#allocation13 + $0x78] sm:$0xff]
        %v1050 = vld [vmem:[#allocation13 + $0x80] sm:$0xff]
        %v1051 = vld [vmem:[#allocation13 + $0x88] sm:$0xff]
        %v1052 = vld [vmem:[#allocation13 + $0x90] sm:$0xff]
        %v1053 = vld [vmem:[#allocation13 + $0x98] sm:$0xff]
        %v1054 = vld [vmem:[#allocation13 + $0xa0] sm:$0xff]
        %v1055 = vld [vmem:[#allocation13 + $0xa8] sm:$0xff]
        %v1056 = vld [vmem:[#allocation13 + $0xb0] sm:$0xff]
        %v1057 = vld [vmem:[#allocation13 + $0xb8] sm:$0xff]
        %v1058 = vld [vmem:[#allocation13 + $0xc0] sm:$0xff]
        %v1059 = vld [vmem:[#allocation13 + $0xc8] sm:$0xff]
        %v1060 = vld [vmem:[#allocation13 + $0xd0] sm:$0xff]
        %v1061 = vld [vmem:[#allocation13 + $0xd8] sm:$0xff]
        %v1062 = vld [vmem:[#allocation13 + $0xe0] sm:$0xff]
        %v1063 = vld [vmem:[#allocation13 + $0xe8] sm:$0xff]
        %v1064 = vld [vmem:[#allocation13 + $0xf0] sm:$0xff]
        %v1065 = vld [vmem:[#allocation13 + $0xf8] sm:$0xff]
        %v1066 = vld [vmem:[#allocation4] sm:$0xff]
        %s1067 = smul.u32 %s50, 8
        %v1068 = vld [vmem:[#allocation2] sm:$0xff]
        %v1069 = vld [vmem:[#allocation3] sm:$0xff]
        %v1070 = vld [vmem:[#allocation5] sm:$0xff]
        %v1071 = vld [vmem:[#allocation5 + $0x8] sm:$0xff]
        %v1072 = vunpack.c.l.bf16 %v1070
        %v1073 = vunpack.c.h.bf16 %v1070
        %v1074 = vunpack.c.l.bf16 %v1071
        %v1075 = vunpack.c.h.bf16 %v1071
        %v1076 = vpack.c.bf16 %v1068, %v1068
        %v1109 = vunpack.c.l.b16 %v1034
        %v1110 = vunpack.c.h.b16 %v1034
        %v1111 = vunpack.c.l.b16 %v1035
        %v1112 = vunpack.c.h.b16 %v1035
        %v1113 = vunpack.c.l.b16 %v1036
        %v1114 = vunpack.c.h.b16 %v1036
        %v1115 = vunpack.c.l.b16 %v1037
        %v1116 = vunpack.c.h.b16 %v1037
        %v1117 = vunpack.c.l.b16 %v1038
        %v1118 = vunpack.c.h.b16 %v1038
        %v1119 = vunpack.c.l.b16 %v1039
        %v1120 = vunpack.c.h.b16 %v1039
        %v1121 = vunpack.c.l.b16 %v1040
        %v1122 = vunpack.c.h.b16 %v1040
        %v1123 = vunpack.c.l.b16 %v1041
        %v1124 = vunpack.c.h.b16 %v1041
        %v1125 = vunpack.c.l.b16 %v1042
        %v1126 = vunpack.c.h.b16 %v1042
        %v1127 = vunpack.c.l.b16 %v1043
        %v1128 = vunpack.c.h.b16 %v1043
        %v1129 = vunpack.c.l.b16 %v1044
        %v1130 = vunpack.c.h.b16 %v1044
        %v1131 = vunpack.c.l.b16 %v1045
        %v1132 = vunpack.c.h.b16 %v1045
        %v1133 = vunpack.c.l.b16 %v1046
        %v1134 = vunpack.c.h.b16 %v1046
        %v1135 = vunpack.c.l.b16 %v1047
        %v1136 = vunpack.c.h.b16 %v1047
        %v1137 = vunpack.c.l.b16 %v1048
        %v1138 = vunpack.c.h.b16 %v1048
        %v1139 = vunpack.c.l.b16 %v1049
        %v1140 = vunpack.c.h.b16 %v1049
        %v1141 = vunpack.c.l.b16 %v1050
        %v1142 = vunpack.c.h.b16 %v1050
        %v1143 = vunpack.c.l.b16 %v1051
        %v1144 = vunpack.c.h.b16 %v1051
        %v1145 = vunpack.c.l.b16 %v1052
        %v1146 = vunpack.c.h.b16 %v1052
        %v1147 = vunpack.c.l.b16 %v1053
        %v1148 = vunpack.c.h.b16 %v1053
        %v1149 = vunpack.c.l.b16 %v1054
        %v1150 = vunpack.c.h.b16 %v1054
        %v1151 = vunpack.c.l.b16 %v1055
        %v1152 = vunpack.c.h.b16 %v1055
        %v1153 = vunpack.c.l.b16 %v1056
        %v1154 = vunpack.c.h.b16 %v1056
        %v1155 = vunpack.c.l.b16 %v1057
        %v1156 = vunpack.c.h.b16 %v1057
        %v1157 = vunpack.c.l.b16 %v1058
        %v1158 = vunpack.c.h.b16 %v1058
        %v1159 = vunpack.c.l.b16 %v1059
        %v1160 = vunpack.c.h.b16 %v1059
        %v1161 = vunpack.c.l.b16 %v1060
        %v1162 = vunpack.c.h.b16 %v1060
        %v1163 = vunpack.c.l.b16 %v1061
        %v1164 = vunpack.c.h.b16 %v1061
        %v1165 = vunpack.c.l.b16 %v1062
        %v1166 = vunpack.c.h.b16 %v1062
        %v1167 = vunpack.c.l.b16 %v1063
        %v1168 = vunpack.c.h.b16 %v1063
        %v1169 = vunpack.c.l.b16 %v1064
        %v1170 = vunpack.c.h.b16 %v1064
        %v1171 = vunpack.c.l.b16 %v1065
        %v1172 = vunpack.c.h.b16 %v1065
        %v1173 = vpack.c.b16 %v1113, %v1109
        %v1174 = vpack.c.b16 %v1114, %v1110
        %v1175 = vpack.c.b16 %v1115, %v1111
        %v1176 = vpack.c.b16 %v1116, %v1112
        %v1177 = vpack.c.b16 %v1121, %v1117
        %v1178 = vpack.c.b16 %v1122, %v1118
        %v1179 = vpack.c.b16 %v1123, %v1119
        %v1180 = vpack.c.b16 %v1124, %v1120
        %v1181 = vpack.c.b16 %v1129, %v1125
        %v1182 = vpack.c.b16 %v1130, %v1126
        %v1183 = vpack.c.b16 %v1131, %v1127
        %v1184 = vpack.c.b16 %v1132, %v1128
        %v1185 = vpack.c.b16 %v1137, %v1133
        %v1186 = vpack.c.b16 %v1138, %v1134
        %v1187 = vpack.c.b16 %v1139, %v1135
        %v1188 = vpack.c.b16 %v1140, %v1136
        %v1189 = vpack.c.b16 %v1145, %v1141
        %v1190 = vpack.c.b16 %v1146, %v1142
        %v1191 = vpack.c.b16 %v1147, %v1143
        %v1192 = vpack.c.b16 %v1148, %v1144
        %v1193 = vpack.c.b16 %v1153, %v1149
        %v1194 = vpack.c.b16 %v1154, %v1150
        %v1195 = vpack.c.b16 %v1155, %v1151
        %v1196 = vpack.c.b16 %v1156, %v1152
        %v1197 = vpack.c.b16 %v1161, %v1157
        %v1198 = vpack.c.b16 %v1162, %v1158
        %v1199 = vpack.c.b16 %v1163, %v1159
        %v1200 = vpack.c.b16 %v1164, %v1160
        %v1201 = vpack.c.b16 %v1169, %v1165
        %v1202 = vpack.c.b16 %v1170, %v1166
        %v1203 = vpack.c.b16 %v1171, %v1167
        %v1204 = vpack.c.b16 %v1172, %v1168
        %1237 = vmatprep.subr.bf16.mxu0 %v1202
        %1238 = vmatpush1.bf16.msra.mxu0 %v1201
        %1239 = vmatprep.subr.bf16.mxu0 %v1198
        %1240 = vmatpush1.bf16.msra.mxu0 %v1197
        %1241 = vmatprep.subr.bf16.mxu0 %v1194
        %1242 = vmatpush1.bf16.msra.mxu0 %v1193
        %1243 = vmatprep.subr.bf16.mxu0 %v1190
        %1244 = vmatpush1.bf16.msra.mxu0 %v1189
        %1245 = vmatprep.subr.bf16.mxu0 %v1186
        %1246 = vmatpush1.bf16.msra.mxu0 %v1185
        %1247 = vmatprep.subr.bf16.mxu0 %v1182
        %1248 = vmatpush1.bf16.msra.mxu0 %v1181
        %1249 = vmatprep.subr.bf16.mxu0 %v1178
        %1250 = vmatpush1.bf16.msra.mxu0 %v1177
        %1251 = vmatprep.subr.bf16.mxu0 %v1174
        %1252 = vmatpush1.bf16.msra.mxu0 %v1173
        %1253 = vmatprep.subr.bf16.mxu0 0
        %1254 = vmatpush2.bf16.msra.mxu0 0
        %1255 = vmatprep.subr.bf16.mxu0 0
        %1256 = vmatpush2.bf16.msra.mxu0 0
        %1257 = vmatprep.subr.bf16.mxu0 0
        %1258 = vmatpush2.bf16.msra.mxu0 0
        %1259 = vmatprep.subr.bf16.mxu0 0
        %1260 = vmatpush2.bf16.msra.mxu0 0
        %1261 = vmatprep.subr.bf16.mxu0 0
        %1262 = vmatpush2.bf16.msra.mxu0 0
        %1263 = vmatprep.subr.bf16.mxu0 0
        %1264 = vmatpush2.bf16.msra.mxu0 0
        %1265 = vmatprep.subr.bf16.mxu0 0
        %1266 = vmatpush2.bf16.msra.mxu0 0
        %1267 = vmatprep.subr.bf16.mxu0 0
        %1268 = vmatpush2.bf16.msra.mxu0 0
        %1269 = vmatprep.mubr.bf16.mxu0 0
        %1270 = vmatmul.mubr.bf16.gmra.mxu0 %v1076
        %v1271 = vpop.f32.mrf.mxu0
        %v1272 = vadd.f32 0.0, %v1271
        %v1273 = vpop.f32.mrf.mxu0
        %v1274 = vadd.f32 0.0, %v1273
        %v1275 = vpop.f32.mrf.mxu0
        %v1276 = vpop.f32.mrf.mxu0
        %1277 = vdwg.mxu0
        %1278 = vmatprep.subr.bf16.mxu0 %v1204
        %1279 = vmatpush1.bf16.msra.mxu0 %v1203
        %1280 = vmatprep.subr.bf16.mxu0 %v1200
        %1281 = vmatpush1.bf16.msra.mxu0 %v1199
        %1282 = vmatprep.subr.bf16.mxu0 %v1196
        %1283 = vmatpush1.bf16.msra.mxu0 %v1195
        %1284 = vmatprep.subr.bf16.mxu0 %v1192
        %1285 = vmatpush1.bf16.msra.mxu0 %v1191
        %1286 = vmatprep.subr.bf16.mxu0 %v1188
        %1287 = vmatpush1.bf16.msra.mxu0 %v1187
        %1288 = vmatprep.subr.bf16.mxu0 %v1184
        %1289 = vmatpush1.bf16.msra.mxu0 %v1183
        %1290 = vmatprep.subr.bf16.mxu0 %v1180
        %1291 = vmatpush1.bf16.msra.mxu0 %v1179
        %1292 = vmatprep.subr.bf16.mxu0 %v1176
        %1293 = vmatpush1.bf16.msra.mxu0 %v1175
        %1294 = vmatprep.subr.bf16.mxu0 0
        %1295 = vmatpush2.bf16.msra.mxu0 0
        %1296 = vmatprep.subr.bf16.mxu0 0
        %1297 = vmatpush2.bf16.msra.mxu0 0
        %1298 = vmatprep.subr.bf16.mxu0 0
        %1299 = vmatpush2.bf16.msra.mxu0 0
        %1300 = vmatprep.subr.bf16.mxu0 0
        %1301 = vmatpush2.bf16.msra.mxu0 0
        %1302 = vmatprep.subr.bf16.mxu0 0
        %1303 = vmatpush2.bf16.msra.mxu0 0
        %1304 = vmatprep.subr.bf16.mxu0 0
        %1305 = vmatpush2.bf16.msra.mxu0 0
        %1306 = vmatprep.subr.bf16.mxu0 0
        %1307 = vmatpush2.bf16.msra.mxu0 0
        %1308 = vmatprep.subr.bf16.mxu0 0
        %1309 = vmatpush2.bf16.msra.mxu0 0
        %1310 = vmatprep.mubr.bf16.mxu0 0
        %1311 = vmatmul.mubr.bf16.gmra.mxu0 %v1076
        %v1312 = vpop.f32.mrf.mxu0
        %v1313 = vadd.f32 0.0, %v1312
        %v1314 = vpop.f32.mrf.mxu0
        %v1315 = vadd.f32 0.0, %v1314
        %v1316 = vpop.f32.mrf.mxu0
        %v1317 = vpop.f32.mrf.mxu0
        %1318 = vdwg.mxu0
        %v1319 = vadd.f32 %v1072, %v1272
        %v1320 = vadd.f32 %v1073, %v1274
        %v1321 = vadd.f32 %v1074, %v1313
        %v1322 = vadd.f32 %v1075, %v1315
        %v1323 = vxor.u32 %v1319, 2147483648
        %v1324 = vmul.f32 %v1323, 1.442695
        %v1325 = vpow.pop %v1324
        %v1326 = vadd.f32 %v1325, 1.0
        %v1327 = vrcp.pop %v1326
        %v1328 = vmul.f32 1.0, %v1327
        %v1329 = vxor.u32 %v1320, 2147483648
        %v1330 = vmul.f32 %v1329, 1.442695
        %v1331 = vpow.pop %v1330
        %v1332 = vadd.f32 %v1331, 1.0
        %v1333 = vrcp.pop %v1332
        %v1334 = vmul.f32 1.0, %v1333
        %v1335 = vtanh.pop %v1321
        %v1336 = vxor.u32 %v1322, 2147483648
        %v1337 = vmul.f32 %v1336, 1.442695
        %v1338 = vpow.pop %v1337
        %v1339 = vadd.f32 %v1338, 1.0
        %v1340 = vrcp.pop %v1339
        %v1341 = vmul.f32 1.0, %v1340
        %v1342 = vmul.f32 %v1334, %v1069
        %v1343 = vmul.f32 %v1328, %v1335
        %v1344 = vadd.f32 %v1342, %v1343
        %v1345 = vtanh.pop %v1344
        %v1346 = vmul.f32 %v1341, %v1345
        %v1347 = vstv %s1067
        %vm1348 = vcmp.gt.s32.totalorder %v1066, %v1347
        %v1349 = vsel %vm1348, %v1344, %v1069
        %1350 = vst [vmem:[#allocation3] sm:$0xff] %v1349
        %v1351 = vsel %vm1348, %v1346, %v1068
        %1352 = vst [vmem:[#allocation2] sm:$0xff] %v1351
        %v1353 = vsel %vm1348, %v1346, 0.0
        %v1355 = vcombine.high %v1353, %v1353
        %v1357 = vunpack.c.l.s4 1966171168
        %v1358 = vunpack.c.0.s8 %v1357
        %v1359 = vlaneseq
        %v1360 = vshrl.u32 %v1359, 7
        %v1361 = vsub.s32 %v1358, %v1360
        %v1362 = vrot.slane %v1353, %v1361
        %v1364 = vunpack.c.l.s4 1966171168
        %v1365 = vunpack.c.0.s8 %v1364
        %v1366 = vlaneseq
        %v1367 = vshrl.u32 %v1366, 7
        %v1368 = vsub.s32 %v1365, %v1367
        %v1369 = vrot.slane %v1355, %v1368
        %v1370 = vcombine.high %v1362, %v1362
        %v1371 = vcombine.high %v1369, %v1369
        %v1373 = vunpack.c.l.s4 1966171168
        %v1374 = vunpack.c.0.s8 %v1373
        %v1375 = vlaneseq
        %v1376 = vshrl.u32 %v1375, 7
        %v1377 = vsub.s32 %v1374, %v1376
        %v1378 = vrot.slane %v1362, %v1377
        %v1380 = vunpack.c.l.s4 1966171168
        %v1381 = vunpack.c.0.s8 %v1380
        %v1382 = vlaneseq
        %v1383 = vshrl.u32 %v1382, 7
        %v1384 = vsub.s32 %v1381, %v1383
        %v1385 = vrot.slane %v1369, %v1384
        %v1387 = vunpack.c.l.s4 1966171168
        %v1388 = vunpack.c.0.s8 %v1387
        %v1389 = vlaneseq
        %v1390 = vshrl.u32 %v1389, 7
        %v1391 = vsub.s32 %v1388, %v1390
        %v1392 = vrot.slane %v1370, %v1391
        %v1394 = vunpack.c.l.s4 1966171168
        %v1395 = vunpack.c.0.s8 %v1394
        %v1396 = vlaneseq
        %v1397 = vshrl.u32 %v1396, 7
        %v1398 = vsub.s32 %v1395, %v1397
        %v1399 = vrot.slane %v1371, %v1398
        %v1400 = vcombine.high %v1378, %v1378
        %v1401 = vcombine.high %v1385, %v1385
        %v1402 = vcombine.high %v1392, %v1392
        %v1403 = vcombine.high %v1399, %v1399
        %1412 = vst [vmem:[%s551] sm:$0x1] %v1378
        %1413 = vst [vmem:[%s551 + $0x8] sm:$0x1] %v1392
        %1414 = vst [vmem:[%s551 + $0x10] sm:$0x1] %v1400
        %1415 = vst [vmem:[%s551 + $0x18] sm:$0x1] %v1402
        %1416 = vst [vmem:[%s551 + $0x20] sm:$0x1] %v1385
        %1417 = vst [vmem:[%s551 + $0x28] sm:$0x1] %v1399
        %1418 = vst [vmem:[%s551 + $0x30] sm:$0x1] %v1401
        %1419 = vst [vmem:[%s551 + $0x38] sm:$0x1] %v1403
        %v1420 = vld [vmem:[#allocation2] sm:$0xff]
        %v1421 = vld [vmem:[#allocation3] sm:$0xff]
        %s1422 = scalar_lea.vmem [#allocation5], 16
        %v1423 = vld [vmem:[%s1422] sm:$0xff]
        %v1424 = vld [vmem:[%s1422 + $0x8] sm:$0xff]
        %v1425 = vunpack.c.l.bf16 %v1423
        %v1426 = vunpack.c.h.bf16 %v1423
        %v1427 = vunpack.c.l.bf16 %v1424
        %v1428 = vunpack.c.h.bf16 %v1424
        %v1429 = vpack.c.bf16 %v1420, %v1420
        %1430 = vmatprep.subr.bf16.mxu0 %v1202
        %1431 = vmatpush1.bf16.msra.mxu0 %v1201
        %1432 = vmatprep.subr.bf16.mxu0 %v1198
        %1433 = vmatpush1.bf16.msra.mxu0 %v1197
        %1434 = vmatprep.subr.bf16.mxu0 %v1194
        %1435 = vmatpush1.bf16.msra.mxu0 %v1193
        %1436 = vmatprep.subr.bf16.mxu0 %v1190
        %1437 = vmatpush1.bf16.msra.mxu0 %v1189
        %1438 = vmatprep.subr.bf16.mxu0 %v1186
        %1439 = vmatpush1.bf16.msra.mxu0 %v1185
        %1440 = vmatprep.subr.bf16.mxu0 %v1182
        %1441 = vmatpush1.bf16.msra.mxu0 %v1181
        %1442 = vmatprep.subr.bf16.mxu0 %v1178
        %1443 = vmatpush1.bf16.msra.mxu0 %v1177
        %1444 = vmatprep.subr.bf16.mxu0 %v1174
        %1445 = vmatpush1.bf16.msra.mxu0 %v1173
        %1446 = vmatprep.subr.bf16.mxu0 0
        %1447 = vmatpush2.bf16.msra.mxu0 0
        %1448 = vmatprep.subr.bf16.mxu0 0
        %1449 = vmatpush2.bf16.msra.mxu0 0
        %1450 = vmatprep.subr.bf16.mxu0 0
        %1451 = vmatpush2.bf16.msra.mxu0 0
        %1452 = vmatprep.subr.bf16.mxu0 0
        %1453 = vmatpush2.bf16.msra.mxu0 0
        %1454 = vmatprep.subr.bf16.mxu0 0
        %1455 = vmatpush2.bf16.msra.mxu0 0
        %1456 = vmatprep.subr.bf16.mxu0 0
        %1457 = vmatpush2.bf16.msra.mxu0 0
        %1458 = vmatprep.subr.bf16.mxu0 0
        %1459 = vmatpush2.bf16.msra.mxu0 0
        %1460 = vmatprep.subr.bf16.mxu0 0
        %1461 = vmatpush2.bf16.msra.mxu0 0
        %1462 = vmatprep.mubr.bf16.mxu0 0
        %1463 = vmatmul.mubr.bf16.gmra.mxu0 %v1429
        %v1464 = vpop.f32.mrf.mxu0
        %v1465 = vadd.f32 0.0, %v1464
        %v1466 = vpop.f32.mrf.mxu0
        %v1467 = vadd.f32 0.0, %v1466
        %v1468 = vpop.f32.mrf.mxu0
        %v1469 = vpop.f32.mrf.mxu0
        %1470 = vdwg.mxu0
        %1471 = vmatprep.subr.bf16.mxu0 %v1204
        %1472 = vmatpush1.bf16.msra.mxu0 %v1203
        %1473 = vmatprep.subr.bf16.mxu0 %v1200
        %1474 = vmatpush1.bf16.msra.mxu0 %v1199
        %1475 = vmatprep.subr.bf16.mxu0 %v1196
        %1476 = vmatpush1.bf16.msra.mxu0 %v1195
        %1477 = vmatprep.subr.bf16.mxu0 %v1192
        %1478 = vmatpush1.bf16.msra.mxu0 %v1191
        %1479 = vmatprep.subr.bf16.mxu0 %v1188
        %1480 = vmatpush1.bf16.msra.mxu0 %v1187
        %1481 = vmatprep.subr.bf16.mxu0 %v1184
        %1482 = vmatpush1.bf16.msra.mxu0 %v1183
        %1483 = vmatprep.subr.bf16.mxu0 %v1180
        %1484 = vmatpush1.bf16.msra.mxu0 %v1179
        %1485 = vmatprep.subr.bf16.mxu0 %v1176
        %1486 = vmatpush1.bf16.msra.mxu0 %v1175
        %1487 = vmatprep.subr.bf16.mxu0 0
        %1488 = vmatpush2.bf16.msra.mxu0 0
        %1489 = vmatprep.subr.bf16.mxu0 0
        %1490 = vmatpush2.bf16.msra.mxu0 0
        %1491 = vmatprep.subr.bf16.mxu0 0
        %1492 = vmatpush2.bf16.msra.mxu0 0
        %1493 = vmatprep.subr.bf16.mxu0 0
        %1494 = vmatpush2.bf16.msra.mxu0 0
        %1495 = vmatprep.subr.bf16.mxu0 0
        %1496 = vmatpush2.bf16.msra.mxu0 0
        %1497 = vmatprep.subr.bf16.mxu0 0
        %1498 = vmatpush2.bf16.msra.mxu0 0
        %1499 = vmatprep.subr.bf16.mxu0 0
        %1500 = vmatpush2.bf16.msra.mxu0 0
        %1501 = vmatprep.subr.bf16.mxu0 0
        %1502 = vmatpush2.bf16.msra.mxu0 0
        %1503 = vmatprep.mubr.bf16.mxu0 0
        %1504 = vmatmul.mubr.bf16.gmra.mxu0 %v1429
        %v1505 = vpop.f32.mrf.mxu0
        %v1506 = vadd.f32 0.0, %v1505
        %v1507 = vpop.f32.mrf.mxu0
        %v1508 = vadd.f32 0.0, %v1507
        %v1509 = vpop.f32.mrf.mxu0
        %v1510 = vpop.f32.mrf.mxu0
        %1511 = vdwg.mxu0
        %v1512 = vadd.f32 %v1425, %v1465
        %v1513 = vadd.f32 %v1426, %v1467
        %v1514 = vadd.f32 %v1427, %v1506
        %v1515 = vadd.f32 %v1428, %v1508
        %v1516 = vxor.u32 %v1512, 2147483648
        %v1517 = vmul.f32 %v1516, 1.442695
        %v1518 = vpow.pop %v1517
        %v1519 = vadd.f32 %v1518, 1.0
        %v1520 = vrcp.pop %v1519
        %v1521 = vmul.f32 1.0, %v1520
        %v1522 = vxor.u32 %v1513, 2147483648
        %v1523 = vmul.f32 %v1522, 1.442695
        %v1524 = vpow.pop %v1523
        %v1525 = vadd.f32 %v1524, 1.0
        %v1526 = vrcp.pop %v1525
        %v1527 = vmul.f32 1.0, %v1526
        %v1528 = vtanh.pop %v1514
        %v1529 = vxor.u32 %v1515, 2147483648
        %v1530 = vmul.f32 %v1529, 1.442695
        %v1531 = vpow.pop %v1530
        %v1532 = vadd.f32 %v1531, 1.0
        %v1533 = vrcp.pop %v1532
        %v1534 = vmul.f32 1.0, %v1533
        %v1535 = vmul.f32 %v1527, %v1421
        %v1536 = vmul.f32 %v1521, %v1528
        %v1537 = vadd.f32 %v1535, %v1536
        %v1538 = vtanh.pop %v1537
        %v1539 = vmul.f32 %v1534, %v1538
        %s1540 = sadd.s32 %s1067, 1
        %v1541 = vstv %s1540
        %vm1542 = vcmp.gt.s32.totalorder %v1066, %v1541
        %v1543 = vsel %vm1542, %v1537, %v1421
        %1544 = vst [vmem:[#allocation3] sm:$0xff] %v1543
        %v1545 = vsel %vm1542, %v1539, %v1420
        %1546 = vst [vmem:[#allocation2] sm:$0xff] %v1545
        %v1547 = vsel %vm1542, %v1539, 0.0
        %v1549 = vcombine.high %v1547, %v1547
        %v1551 = vunpack.c.l.s4 1966171168
        %v1552 = vunpack.c.0.s8 %v1551
        %v1553 = vlaneseq
        %v1554 = vshrl.u32 %v1553, 7
        %v1555 = vsub.s32 %v1552, %v1554
        %v1556 = vrot.slane %v1547, %v1555
        %v1558 = vunpack.c.l.s4 1966171168
        %v1559 = vunpack.c.0.s8 %v1558
        %v1560 = vlaneseq
        %v1561 = vshrl.u32 %v1560, 7
        %v1562 = vsub.s32 %v1559, %v1561
        %v1563 = vrot.slane %v1549, %v1562
        %v1564 = vcombine.high %v1556, %v1556
        %v1565 = vcombine.high %v1563, %v1563
        %v1567 = vunpack.c.l.s4 1966171168
        %v1568 = vunpack.c.0.s8 %v1567
        %v1569 = vlaneseq
        %v1570 = vshrl.u32 %v1569, 7
        %v1571 = vsub.s32 %v1568, %v1570
        %v1572 = vrot.slane %v1556, %v1571
        %v1574 = vunpack.c.l.s4 1966171168
        %v1575 = vunpack.c.0.s8 %v1574
        %v1576 = vlaneseq
        %v1577 = vshrl.u32 %v1576, 7
        %v1578 = vsub.s32 %v1575, %v1577
        %v1579 = vrot.slane %v1563, %v1578
        %v1581 = vunpack.c.l.s4 1966171168
        %v1582 = vunpack.c.0.s8 %v1581
        %v1583 = vlaneseq
        %v1584 = vshrl.u32 %v1583, 7
        %v1585 = vsub.s32 %v1582, %v1584
        %v1586 = vrot.slane %v1564, %v1585
        %v1588 = vunpack.c.l.s4 1966171168
        %v1589 = vunpack.c.0.s8 %v1588
        %v1590 = vlaneseq
        %v1591 = vshrl.u32 %v1590, 7
        %v1592 = vsub.s32 %v1589, %v1591
        %v1593 = vrot.slane %v1565, %v1592
        %v1594 = vcombine.high %v1572, %v1572
        %v1595 = vcombine.high %v1579, %v1579
        %v1596 = vcombine.high %v1586, %v1586
        %v1597 = vcombine.high %v1593, %v1593
        %1606 = vst [vmem:[%s551 + $0x1] sm:$0x1] %v1572
        %1607 = vst [vmem:[%s551 + $0x9] sm:$0x1] %v1586
        %1608 = vst [vmem:[%s551 + $0x11] sm:$0x1] %v1594
        %1609 = vst [vmem:[%s551 + $0x19] sm:$0x1] %v1596
        %1610 = vst [vmem:[%s551 + $0x21] sm:$0x1] %v1579
        %1611 = vst [vmem:[%s551 + $0x29] sm:$0x1] %v1593
        %1612 = vst [vmem:[%s551 + $0x31] sm:$0x1] %v1595
        %1613 = vst [vmem:[%s551 + $0x39] sm:$0x1] %v1597
        %v1614 = vld [vmem:[#allocation2] sm:$0xff]
        %v1615 = vld [vmem:[#allocation3] sm:$0xff]
        %s1616 = scalar_lea.vmem [#allocation5], 32
        %v1617 = vld [vmem:[%s1616] sm:$0xff]
        %v1618 = vld [vmem:[%s1616 + $0x8] sm:$0xff]
        %v1619 = vunpack.c.l.bf16 %v1617
        %v1620 = vunpack.c.h.bf16 %v1617
        %v1621 = vunpack.c.l.bf16 %v1618
        %v1622 = vunpack.c.h.bf16 %v1618
        %v1623 = vpack.c.bf16 %v1614, %v1614
        %1624 = vmatprep.subr.bf16.mxu0 %v1202
        %1625 = vmatpush1.bf16.msra.mxu0 %v1201
        %1626 = vmatprep.subr.bf16.mxu0 %v1198
        %1627 = vmatpush1.bf16.msra.mxu0 %v1197
        %1628 = vmatprep.subr.bf16.mxu0 %v1194
        %1629 = vmatpush1.bf16.msra.mxu0 %v1193
        %1630 = vmatprep.subr.bf16.mxu0 %v1190
        %1631 = vmatpush1.bf16.msra.mxu0 %v1189
        %1632 = vmatprep.subr.bf16.mxu0 %v1186
        %1633 = vmatpush1.bf16.msra.mxu0 %v1185
        %1634 = vmatprep.subr.bf16.mxu0 %v1182
        %1635 = vmatpush1.bf16.msra.mxu0 %v1181
        %1636 = vmatprep.subr.bf16.mxu0 %v1178
        %1637 = vmatpush1.bf16.msra.mxu0 %v1177
        %1638 = vmatprep.subr.bf16.mxu0 %v1174
        %1639 = vmatpush1.bf16.msra.mxu0 %v1173
        %1640 = vmatprep.subr.bf16.mxu0 0
        %1641 = vmatpush2.bf16.msra.mxu0 0
        %1642 = vmatprep.subr.bf16.mxu0 0
        %1643 = vmatpush2.bf16.msra.mxu0 0
        %1644 = vmatprep.subr.bf16.mxu0 0
        %1645 = vmatpush2.bf16.msra.mxu0 0
        %1646 = vmatprep.subr.bf16.mxu0 0
        %1647 = vmatpush2.bf16.msra.mxu0 0
        %1648 = vmatprep.subr.bf16.mxu0 0
        %1649 = vmatpush2.bf16.msra.mxu0 0
        %1650 = vmatprep.subr.bf16.mxu0 0
        %1651 = vmatpush2.bf16.msra.mxu0 0
        %1652 = vmatprep.subr.bf16.mxu0 0
        %1653 = vmatpush2.bf16.msra.mxu0 0
        %1654 = vmatprep.subr.bf16.mxu0 0
        %1655 = vmatpush2.bf16.msra.mxu0 0
        %1656 = vmatprep.mubr.bf16.mxu0 0
        %1657 = vmatmul.mubr.bf16.gmra.mxu0 %v1623
        %v1658 = vpop.f32.mrf.mxu0
        %v1659 = vadd.f32 0.0, %v1658
        %v1660 = vpop.f32.mrf.mxu0
        %v1661 = vadd.f32 0.0, %v1660
        %v1662 = vpop.f32.mrf.mxu0
        %v1663 = vpop.f32.mrf.mxu0
        %1664 = vdwg.mxu0
        %1665 = vmatprep.subr.bf16.mxu0 %v1204
        %1666 = vmatpush1.bf16.msra.mxu0 %v1203
        %1667 = vmatprep.subr.bf16.mxu0 %v1200
        %1668 = vmatpush1.bf16.msra.mxu0 %v1199
        %1669 = vmatprep.subr.bf16.mxu0 %v1196
        %1670 = vmatpush1.bf16.msra.mxu0 %v1195
        %1671 = vmatprep.subr.bf16.mxu0 %v1192
        %1672 = vmatpush1.bf16.msra.mxu0 %v1191
        %1673 = vmatprep.subr.bf16.mxu0 %v1188
        %1674 = vmatpush1.bf16.msra.mxu0 %v1187
        %1675 = vmatprep.subr.bf16.mxu0 %v1184
        %1676 = vmatpush1.bf16.msra.mxu0 %v1183
        %1677 = vmatprep.subr.bf16.mxu0 %v1180
        %1678 = vmatpush1.bf16.msra.mxu0 %v1179
        %1679 = vmatprep.subr.bf16.mxu0 %v1176
        %1680 = vmatpush1.bf16.msra.mxu0 %v1175
        %1681 = vmatprep.subr.bf16.mxu0 0
        %1682 = vmatpush2.bf16.msra.mxu0 0
        %1683 = vmatprep.subr.bf16.mxu0 0
        %1684 = vmatpush2.bf16.msra.mxu0 0
        %1685 = vmatprep.subr.bf16.mxu0 0
        %1686 = vmatpush2.bf16.msra.mxu0 0
        %1687 = vmatprep.subr.bf16.mxu0 0
        %1688 = vmatpush2.bf16.msra.mxu0 0
        %1689 = vmatprep.subr.bf16.mxu0 0
        %1690 = vmatpush2.bf16.msra.mxu0 0
        %1691 = vmatprep.subr.bf16.mxu0 0
        %1692 = vmatpush2.bf16.msra.mxu0 0
        %1693 = vmatprep.subr.bf16.mxu0 0
        %1694 = vmatpush2.bf16.msra.mxu0 0
        %1695 = vmatprep.subr.bf16.mxu0 0
        %1696 = vmatpush2.bf16.msra.mxu0 0
        %1697 = vmatprep.mubr.bf16.mxu0 0
        %1698 = vmatmul.mubr.bf16.gmra.mxu0 %v1623
        %v1699 = vpop.f32.mrf.mxu0
        %v1700 = vadd.f32 0.0, %v1699
        %v1701 = vpop.f32.mrf.mxu0
        %v1702 = vadd.f32 0.0, %v1701
        %v1703 = vpop.f32.mrf.mxu0
        %v1704 = vpop.f32.mrf.mxu0
        %1705 = vdwg.mxu0
        %v1706 = vadd.f32 %v1619, %v1659
        %v1707 = vadd.f32 %v1620, %v1661
        %v1708 = vadd.f32 %v1621, %v1700
        %v1709 = vadd.f32 %v1622, %v1702
        %v1710 = vxor.u32 %v1706, 2147483648
        %v1711 = vmul.f32 %v1710, 1.442695
        %v1712 = vpow.pop %v1711
        %v1713 = vadd.f32 %v1712, 1.0
        %v1714 = vrcp.pop %v1713
        %v1715 = vmul.f32 1.0, %v1714
        %v1716 = vxor.u32 %v1707, 2147483648
        %v1717 = vmul.f32 %v1716, 1.442695
        %v1718 = vpow.pop %v1717
        %v1719 = vadd.f32 %v1718, 1.0
        %v1720 = vrcp.pop %v1719
        %v1721 = vmul.f32 1.0, %v1720
        %v1722 = vtanh.pop %v1708
        %v1723 = vxor.u32 %v1709, 2147483648
        %v1724 = vmul.f32 %v1723, 1.442695
        %v1725 = vpow.pop %v1724
        %v1726 = vadd.f32 %v1725, 1.0
        %v1727 = vrcp.pop %v1726
        %v1728 = vmul.f32 1.0, %v1727
        %v1729 = vmul.f32 %v1721, %v1615
        %v1730 = vmul.f32 %v1715, %v1722
        %v1731 = vadd.f32 %v1729, %v1730
        %v1732 = vtanh.pop %v1731
        %v1733 = vmul.f32 %v1728, %v1732
        %s1734 = sadd.s32 %s1067, 2
        %v1735 = vstv %s1734
        %vm1736 = vcmp.gt.s32.totalorder %v1066, %v1735
        %v1737 = vsel %vm1736, %v1731, %v1615
        %1738 = vst [vmem:[#allocation3] sm:$0xff] %v1737
        %v1739 = vsel %vm1736, %v1733, %v1614
        %1740 = vst [vmem:[#allocation2] sm:$0xff] %v1739
        %v1741 = vsel %vm1736, %v1733, 0.0
        %v1743 = vcombine.high %v1741, %v1741
        %v1745 = vunpack.c.l.s4 1966171168
        %v1746 = vunpack.c.0.s8 %v1745
        %v1747 = vlaneseq
        %v1748 = vshrl.u32 %v1747, 7
        %v1749 = vsub.s32 %v1746, %v1748
        %v1750 = vrot.slane %v1741, %v1749
        %v1752 = vunpack.c.l.s4 1966171168
        %v1753 = vunpack.c.0.s8 %v1752
        %v1754 = vlaneseq
        %v1755 = vshrl.u32 %v1754, 7
        %v1756 = vsub.s32 %v1753, %v1755
        %v1757 = vrot.slane %v1743, %v1756
        %v1758 = vcombine.high %v1750, %v1750
        %v1759 = vcombine.high %v1757, %v1757
        %v1761 = vunpack.c.l.s4 1966171168
        %v1762 = vunpack.c.0.s8 %v1761
        %v1763 = vlaneseq
        %v1764 = vshrl.u32 %v1763, 7
        %v1765 = vsub.s32 %v1762, %v1764
        %v1766 = vrot.slane %v1750, %v1765
        %v1768 = vunpack.c.l.s4 1966171168
        %v1769 = vunpack.c.0.s8 %v1768
        %v1770 = vlaneseq
        %v1771 = vshrl.u32 %v1770, 7
        %v1772 = vsub.s32 %v1769, %v1771
        %v1773 = vrot.slane %v1757, %v1772
        %v1775 = vunpack.c.l.s4 1966171168
        %v1776 = vunpack.c.0.s8 %v1775
        %v1777 = vlaneseq
        %v1778 = vshrl.u32 %v1777, 7
        %v1779 = vsub.s32 %v1776, %v1778
        %v1780 = vrot.slane %v1758, %v1779
        %v1782 = vunpack.c.l.s4 1966171168
        %v1783 = vunpack.c.0.s8 %v1782
        %v1784 = vlaneseq
        %v1785 = vshrl.u32 %v1784, 7
        %v1786 = vsub.s32 %v1783, %v1785
        %v1787 = vrot.slane %v1759, %v1786
        %v1788 = vcombine.high %v1766, %v1766
        %v1789 = vcombine.high %v1773, %v1773
        %v1790 = vcombine.high %v1780, %v1780
        %v1791 = vcombine.high %v1787, %v1787
        %1800 = vst [vmem:[%s551 + $0x2] sm:$0x1] %v1766
        %1801 = vst [vmem:[%s551 + $0xa] sm:$0x1] %v1780
        %1802 = vst [vmem:[%s551 + $0x12] sm:$0x1] %v1788
        %1803 = vst [vmem:[%s551 + $0x1a] sm:$0x1] %v1790
        %1804 = vst [vmem:[%s551 + $0x22] sm:$0x1] %v1773
        %1805 = vst [vmem:[%s551 + $0x2a] sm:$0x1] %v1787
        %1806 = vst [vmem:[%s551 + $0x32] sm:$0x1] %v1789
        %1807 = vst [vmem:[%s551 + $0x3a] sm:$0x1] %v1791
        %v1808 = vld [vmem:[#allocation2] sm:$0xff]
        %v1809 = vld [vmem:[#allocation3] sm:$0xff]
        %s1810 = scalar_lea.vmem [#allocation5], 48
        %v1811 = vld [vmem:[%s1810] sm:$0xff]
        %v1812 = vld [vmem:[%s1810 + $0x8] sm:$0xff]
        %v1813 = vunpack.c.l.bf16 %v1811
        %v1814 = vunpack.c.h.bf16 %v1811
        %v1815 = vunpack.c.l.bf16 %v1812
        %v1816 = vunpack.c.h.bf16 %v1812
        %v1817 = vpack.c.bf16 %v1808, %v1808
        %1818 = vmatprep.subr.bf16.mxu0 %v1202
        %1819 = vmatpush1.bf16.msra.mxu0 %v1201
        %1820 = vmatprep.subr.bf16.mxu0 %v1198
        %1821 = vmatpush1.bf16.msra.mxu0 %v1197
        %1822 = vmatprep.subr.bf16.mxu0 %v1194
        %1823 = vmatpush1.bf16.msra.mxu0 %v1193
        %1824 = vmatprep.subr.bf16.mxu0 %v1190
        %1825 = vmatpush1.bf16.msra.mxu0 %v1189
        %1826 = vmatprep.subr.bf16.mxu0 %v1186
        %1827 = vmatpush1.bf16.msra.mxu0 %v1185
        %1828 = vmatprep.subr.bf16.mxu0 %v1182
        %1829 = vmatpush1.bf16.msra.mxu0 %v1181
        %1830 = vmatprep.subr.bf16.mxu0 %v1178
        %1831 = vmatpush1.bf16.msra.mxu0 %v1177
        %1832 = vmatprep.subr.bf16.mxu0 %v1174
        %1833 = vmatpush1.bf16.msra.mxu0 %v1173
        %1834 = vmatprep.subr.bf16.mxu0 0
        %1835 = vmatpush2.bf16.msra.mxu0 0
        %1836 = vmatprep.subr.bf16.mxu0 0
        %1837 = vmatpush2.bf16.msra.mxu0 0
        %1838 = vmatprep.subr.bf16.mxu0 0
        %1839 = vmatpush2.bf16.msra.mxu0 0
        %1840 = vmatprep.subr.bf16.mxu0 0
        %1841 = vmatpush2.bf16.msra.mxu0 0
        %1842 = vmatprep.subr.bf16.mxu0 0
        %1843 = vmatpush2.bf16.msra.mxu0 0
        %1844 = vmatprep.subr.bf16.mxu0 0
        %1845 = vmatpush2.bf16.msra.mxu0 0
        %1846 = vmatprep.subr.bf16.mxu0 0
        %1847 = vmatpush2.bf16.msra.mxu0 0
        %1848 = vmatprep.subr.bf16.mxu0 0
        %1849 = vmatpush2.bf16.msra.mxu0 0
        %1850 = vmatprep.mubr.bf16.mxu0 0
        %1851 = vmatmul.mubr.bf16.gmra.mxu0 %v1817
        %v1852 = vpop.f32.mrf.mxu0
        %v1853 = vadd.f32 0.0, %v1852
        %v1854 = vpop.f32.mrf.mxu0
        %v1855 = vadd.f32 0.0, %v1854
        %v1856 = vpop.f32.mrf.mxu0
        %v1857 = vpop.f32.mrf.mxu0
        %1858 = vdwg.mxu0
        %1859 = vmatprep.subr.bf16.mxu0 %v1204
        %1860 = vmatpush1.bf16.msra.mxu0 %v1203
        %1861 = vmatprep.subr.bf16.mxu0 %v1200
        %1862 = vmatpush1.bf16.msra.mxu0 %v1199
        %1863 = vmatprep.subr.bf16.mxu0 %v1196
        %1864 = vmatpush1.bf16.msra.mxu0 %v1195
        %1865 = vmatprep.subr.bf16.mxu0 %v1192
        %1866 = vmatpush1.bf16.msra.mxu0 %v1191
        %1867 = vmatprep.subr.bf16.mxu0 %v1188
        %1868 = vmatpush1.bf16.msra.mxu0 %v1187
        %1869 = vmatprep.subr.bf16.mxu0 %v1184
        %1870 = vmatpush1.bf16.msra.mxu0 %v1183
        %1871 = vmatprep.subr.bf16.mxu0 %v1180
        %1872 = vmatpush1.bf16.msra.mxu0 %v1179
        %1873 = vmatprep.subr.bf16.mxu0 %v1176
        %1874 = vmatpush1.bf16.msra.mxu0 %v1175
        %1875 = vmatprep.subr.bf16.mxu0 0
        %1876 = vmatpush2.bf16.msra.mxu0 0
        %1877 = vmatprep.subr.bf16.mxu0 0
        %1878 = vmatpush2.bf16.msra.mxu0 0
        %1879 = vmatprep.subr.bf16.mxu0 0
        %1880 = vmatpush2.bf16.msra.mxu0 0
        %1881 = vmatprep.subr.bf16.mxu0 0
        %1882 = vmatpush2.bf16.msra.mxu0 0
        %1883 = vmatprep.subr.bf16.mxu0 0
        %1884 = vmatpush2.bf16.msra.mxu0 0
        %1885 = vmatprep.subr.bf16.mxu0 0
        %1886 = vmatpush2.bf16.msra.mxu0 0
        %1887 = vmatprep.subr.bf16.mxu0 0
        %1888 = vmatpush2.bf16.msra.mxu0 0
        %1889 = vmatprep.subr.bf16.mxu0 0
        %1890 = vmatpush2.bf16.msra.mxu0 0
        %1891 = vmatprep.mubr.bf16.mxu0 0
        %1892 = vmatmul.mubr.bf16.gmra.mxu0 %v1817
        %v1893 = vpop.f32.mrf.mxu0
        %v1894 = vadd.f32 0.0, %v1893
        %v1895 = vpop.f32.mrf.mxu0
        %v1896 = vadd.f32 0.0, %v1895
        %v1897 = vpop.f32.mrf.mxu0
        %v1898 = vpop.f32.mrf.mxu0
        %1899 = vdwg.mxu0
        %v1900 = vadd.f32 %v1813, %v1853
        %v1901 = vadd.f32 %v1814, %v1855
        %v1902 = vadd.f32 %v1815, %v1894
        %v1903 = vadd.f32 %v1816, %v1896
        %v1904 = vxor.u32 %v1900, 2147483648
        %v1905 = vmul.f32 %v1904, 1.442695
        %v1906 = vpow.pop %v1905
        %v1907 = vadd.f32 %v1906, 1.0
        %v1908 = vrcp.pop %v1907
        %v1909 = vmul.f32 1.0, %v1908
        %v1910 = vxor.u32 %v1901, 2147483648
        %v1911 = vmul.f32 %v1910, 1.442695
        %v1912 = vpow.pop %v1911
        %v1913 = vadd.f32 %v1912, 1.0
        %v1914 = vrcp.pop %v1913
        %v1915 = vmul.f32 1.0, %v1914
        %v1916 = vtanh.pop %v1902
        %v1917 = vxor.u32 %v1903, 2147483648
        %v1918 = vmul.f32 %v1917, 1.442695
        %v1919 = vpow.pop %v1918
        %v1920 = vadd.f32 %v1919, 1.0
        %v1921 = vrcp.pop %v1920
        %v1922 = vmul.f32 1.0, %v1921
        %v1923 = vmul.f32 %v1915, %v1809
        %v1924 = vmul.f32 %v1909, %v1916
        %v1925 = vadd.f32 %v1923, %v1924
        %v1926 = vtanh.pop %v1925
        %v1927 = vmul.f32 %v1922, %v1926
        %s1928 = sadd.s32 %s1067, 3
        %v1929 = vstv %s1928
        %vm1930 = vcmp.gt.s32.totalorder %v1066, %v1929
        %v1931 = vsel %vm1930, %v1925, %v1809
        %1932 = vst [vmem:[#allocation3] sm:$0xff] %v1931
        %v1933 = vsel %vm1930, %v1927, %v1808
        %1934 = vst [vmem:[#allocation2] sm:$0xff] %v1933
        %v1935 = vsel %vm1930, %v1927, 0.0
        %v1937 = vcombine.high %v1935, %v1935
        %v1939 = vunpack.c.l.s4 1966171168
        %v1940 = vunpack.c.0.s8 %v1939
        %v1941 = vlaneseq
        %v1942 = vshrl.u32 %v1941, 7
        %v1943 = vsub.s32 %v1940, %v1942
        %v1944 = vrot.slane %v1935, %v1943
        %v1946 = vunpack.c.l.s4 1966171168
        %v1947 = vunpack.c.0.s8 %v1946
        %v1948 = vlaneseq
        %v1949 = vshrl.u32 %v1948, 7
        %v1950 = vsub.s32 %v1947, %v1949
        %v1951 = vrot.slane %v1937, %v1950
        %v1952 = vcombine.high %v1944, %v1944
        %v1953 = vcombine.high %v1951, %v1951
        %v1955 = vunpack.c.l.s4 1966171168
        %v1956 = vunpack.c.0.s8 %v1955
        %v1957 = vlaneseq
        %v1958 = vshrl.u32 %v1957, 7
        %v1959 = vsub.s32 %v1956, %v1958
        %v1960 = vrot.slane %v1944, %v1959
        %v1962 = vunpack.c.l.s4 1966171168
        %v1963 = vunpack.c.0.s8 %v1962
        %v1964 = vlaneseq
        %v1965 = vshrl.u32 %v1964, 7
        %v1966 = vsub.s32 %v1963, %v1965
        %v1967 = vrot.slane %v1951, %v1966
        %v1969 = vunpack.c.l.s4 1966171168
        %v1970 = vunpack.c.0.s8 %v1969
        %v1971 = vlaneseq
        %v1972 = vshrl.u32 %v1971, 7
        %v1973 = vsub.s32 %v1970, %v1972
        %v1974 = vrot.slane %v1952, %v1973
        %v1976 = vunpack.c.l.s4 1966171168
        %v1977 = vunpack.c.0.s8 %v1976
        %v1978 = vlaneseq
        %v1979 = vshrl.u32 %v1978, 7
        %v1980 = vsub.s32 %v1977, %v1979
        %v1981 = vrot.slane %v1953, %v1980
        %v1982 = vcombine.high %v1960, %v1960
        %v1983 = vcombine.high %v1967, %v1967
        %v1984 = vcombine.high %v1974, %v1974
        %v1985 = vcombine.high %v1981, %v1981
        %1994 = vst [vmem:[%s551 + $0x3] sm:$0x1] %v1960
        %1995 = vst [vmem:[%s551 + $0xb] sm:$0x1] %v1974
        %1996 = vst [vmem:[%s551 + $0x13] sm:$0x1] %v1982
        %1997 = vst [vmem:[%s551 + $0x1b] sm:$0x1] %v1984
        %1998 = vst [vmem:[%s551 + $0x23] sm:$0x1] %v1967
        %1999 = vst [vmem:[%s551 + $0x2b] sm:$0x1] %v1981
        %2000 = vst [vmem:[%s551 + $0x33] sm:$0x1] %v1983
        %2001 = vst [vmem:[%s551 + $0x3b] sm:$0x1] %v1985
        %v2002 = vld [vmem:[#allocation2] sm:$0xff]
        %v2003 = vld [vmem:[#allocation3] sm:$0xff]
        %s2004 = scalar_lea.vmem [#allocation5], 64
        %v2005 = vld [vmem:[%s2004] sm:$0xff]
        %v2006 = vld [vmem:[%s2004 + $0x8] sm:$0xff]
        %v2007 = vunpack.c.l.bf16 %v2005
        %v2008 = vunpack.c.h.bf16 %v2005
        %v2009 = vunpack.c.l.bf16 %v2006
        %v2010 = vunpack.c.h.bf16 %v2006
        %v2011 = vpack.c.bf16 %v2002, %v2002
        %2012 = vmatprep.subr.bf16.mxu0 %v1202
        %2013 = vmatpush1.bf16.msra.mxu0 %v1201
        %2014 = vmatprep.subr.bf16.mxu0 %v1198
        %2015 = vmatpush1.bf16.msra.mxu0 %v1197
        %2016 = vmatprep.subr.bf16.mxu0 %v1194
        %2017 = vmatpush1.bf16.msra.mxu0 %v1193
        %2018 = vmatprep.subr.bf16.mxu0 %v1190
        %2019 = vmatpush1.bf16.msra.mxu0 %v1189
        %2020 = vmatprep.subr.bf16.mxu0 %v1186
        %2021 = vmatpush1.bf16.msra.mxu0 %v1185
        %2022 = vmatprep.subr.bf16.mxu0 %v1182
        %2023 = vmatpush1.bf16.msra.mxu0 %v1181
        %2024 = vmatprep.subr.bf16.mxu0 %v1178
        %2025 = vmatpush1.bf16.msra.mxu0 %v1177
        %2026 = vmatprep.subr.bf16.mxu0 %v1174
        %2027 = vmatpush1.bf16.msra.mxu0 %v1173
        %2028 = vmatprep.subr.bf16.mxu0 0
        %2029 = vmatpush2.bf16.msra.mxu0 0
        %2030 = vmatprep.subr.bf16.mxu0 0
        %2031 = vmatpush2.bf16.msra.mxu0 0
        %2032 = vmatprep.subr.bf16.mxu0 0
        %2033 = vmatpush2.bf16.msra.mxu0 0
        %2034 = vmatprep.subr.bf16.mxu0 0
        %2035 = vmatpush2.bf16.msra.mxu0 0
        %2036 = vmatprep.subr.bf16.mxu0 0
        %2037 = vmatpush2.bf16.msra.mxu0 0
        %2038 = vmatprep.subr.bf16.mxu0 0
        %2039 = vmatpush2.bf16.msra.mxu0 0
        %2040 = vmatprep.subr.bf16.mxu0 0
        %2041 = vmatpush2.bf16.msra.mxu0 0
        %2042 = vmatprep.subr.bf16.mxu0 0
        %2043 = vmatpush2.bf16.msra.mxu0 0
        %2044 = vmatprep.mubr.bf16.mxu0 0
        %2045 = vmatmul.mubr.bf16.gmra.mxu0 %v2011
        %v2046 = vpop.f32.mrf.mxu0
        %v2047 = vadd.f32 0.0, %v2046
        %v2048 = vpop.f32.mrf.mxu0
        %v2049 = vadd.f32 0.0, %v2048
        %v2050 = vpop.f32.mrf.mxu0
        %v2051 = vpop.f32.mrf.mxu0
        %2052 = vdwg.mxu0
        %2053 = vmatprep.subr.bf16.mxu0 %v1204
        %2054 = vmatpush1.bf16.msra.mxu0 %v1203
        %2055 = vmatprep.subr.bf16.mxu0 %v1200
        %2056 = vmatpush1.bf16.msra.mxu0 %v1199
        %2057 = vmatprep.subr.bf16.mxu0 %v1196
        %2058 = vmatpush1.bf16.msra.mxu0 %v1195
        %2059 = vmatprep.subr.bf16.mxu0 %v1192
        %2060 = vmatpush1.bf16.msra.mxu0 %v1191
        %2061 = vmatprep.subr.bf16.mxu0 %v1188
        %2062 = vmatpush1.bf16.msra.mxu0 %v1187
        %2063 = vmatprep.subr.bf16.mxu0 %v1184
        %2064 = vmatpush1.bf16.msra.mxu0 %v1183
        %2065 = vmatprep.subr.bf16.mxu0 %v1180
        %2066 = vmatpush1.bf16.msra.mxu0 %v1179
        %2067 = vmatprep.subr.bf16.mxu0 %v1176
        %2068 = vmatpush1.bf16.msra.mxu0 %v1175
        %2069 = vmatprep.subr.bf16.mxu0 0
        %2070 = vmatpush2.bf16.msra.mxu0 0
        %2071 = vmatprep.subr.bf16.mxu0 0
        %2072 = vmatpush2.bf16.msra.mxu0 0
        %2073 = vmatprep.subr.bf16.mxu0 0
        %2074 = vmatpush2.bf16.msra.mxu0 0
        %2075 = vmatprep.subr.bf16.mxu0 0
        %2076 = vmatpush2.bf16.msra.mxu0 0
        %2077 = vmatprep.subr.bf16.mxu0 0
        %2078 = vmatpush2.bf16.msra.mxu0 0
        %2079 = vmatprep.subr.bf16.mxu0 0
        %2080 = vmatpush2.bf16.msra.mxu0 0
        %2081 = vmatprep.subr.bf16.mxu0 0
        %2082 = vmatpush2.bf16.msra.mxu0 0
        %2083 = vmatprep.subr.bf16.mxu0 0
        %2084 = vmatpush2.bf16.msra.mxu0 0
        %2085 = vmatprep.mubr.bf16.mxu0 0
        %2086 = vmatmul.mubr.bf16.gmra.mxu0 %v2011
        %v2087 = vpop.f32.mrf.mxu0
        %v2088 = vadd.f32 0.0, %v2087
        %v2089 = vpop.f32.mrf.mxu0
        %v2090 = vadd.f32 0.0, %v2089
        %v2091 = vpop.f32.mrf.mxu0
        %v2092 = vpop.f32.mrf.mxu0
        %2093 = vdwg.mxu0
        %v2094 = vadd.f32 %v2007, %v2047
        %v2095 = vadd.f32 %v2008, %v2049
        %v2096 = vadd.f32 %v2009, %v2088
        %v2097 = vadd.f32 %v2010, %v2090
        %v2098 = vxor.u32 %v2094, 2147483648
        %v2099 = vmul.f32 %v2098, 1.442695
        %v2100 = vpow.pop %v2099
        %v2101 = vadd.f32 %v2100, 1.0
        %v2102 = vrcp.pop %v2101
        %v2103 = vmul.f32 1.0, %v2102
        %v2104 = vxor.u32 %v2095, 2147483648
        %v2105 = vmul.f32 %v2104, 1.442695
        %v2106 = vpow.pop %v2105
        %v2107 = vadd.f32 %v2106, 1.0
        %v2108 = vrcp.pop %v2107
        %v2109 = vmul.f32 1.0, %v2108
        %v2110 = vtanh.pop %v2096
        %v2111 = vxor.u32 %v2097, 2147483648
        %v2112 = vmul.f32 %v2111, 1.442695
        %v2113 = vpow.pop %v2112
        %v2114 = vadd.f32 %v2113, 1.0
        %v2115 = vrcp.pop %v2114
        %v2116 = vmul.f32 1.0, %v2115
        %v2117 = vmul.f32 %v2109, %v2003
        %v2118 = vmul.f32 %v2103, %v2110
        %v2119 = vadd.f32 %v2117, %v2118
        %v2120 = vtanh.pop %v2119
        %v2121 = vmul.f32 %v2116, %v2120
        %s2122 = sadd.s32 %s1067, 4
        %v2123 = vstv %s2122
        %vm2124 = vcmp.gt.s32.totalorder %v1066, %v2123
        %v2125 = vsel %vm2124, %v2119, %v2003
        %2126 = vst [vmem:[#allocation3] sm:$0xff] %v2125
        %v2127 = vsel %vm2124, %v2121, %v2002
        %2128 = vst [vmem:[#allocation2] sm:$0xff] %v2127
        %v2129 = vsel %vm2124, %v2121, 0.0
        %v2131 = vcombine.high %v2129, %v2129
        %v2133 = vunpack.c.l.s4 1966171168
        %v2134 = vunpack.c.0.s8 %v2133
        %v2135 = vlaneseq
        %v2136 = vshrl.u32 %v2135, 7
        %v2137 = vsub.s32 %v2134, %v2136
        %v2138 = vrot.slane %v2129, %v2137
        %v2140 = vunpack.c.l.s4 1966171168
        %v2141 = vunpack.c.0.s8 %v2140
        %v2142 = vlaneseq
        %v2143 = vshrl.u32 %v2142, 7
        %v2144 = vsub.s32 %v2141, %v2143
        %v2145 = vrot.slane %v2131, %v2144
        %v2146 = vcombine.high %v2138, %v2138
        %v2147 = vcombine.high %v2145, %v2145
        %v2149 = vunpack.c.l.s4 1966171168
        %v2150 = vunpack.c.0.s8 %v2149
        %v2151 = vlaneseq
        %v2152 = vshrl.u32 %v2151, 7
        %v2153 = vsub.s32 %v2150, %v2152
        %v2154 = vrot.slane %v2138, %v2153
        %v2156 = vunpack.c.l.s4 1966171168
        %v2157 = vunpack.c.0.s8 %v2156
        %v2158 = vlaneseq
        %v2159 = vshrl.u32 %v2158, 7
        %v2160 = vsub.s32 %v2157, %v2159
        %v2161 = vrot.slane %v2145, %v2160
        %v2163 = vunpack.c.l.s4 1966171168
        %v2164 = vunpack.c.0.s8 %v2163
        %v2165 = vlaneseq
        %v2166 = vshrl.u32 %v2165, 7
        %v2167 = vsub.s32 %v2164, %v2166
        %v2168 = vrot.slane %v2146, %v2167
        %v2170 = vunpack.c.l.s4 1966171168
        %v2171 = vunpack.c.0.s8 %v2170
        %v2172 = vlaneseq
        %v2173 = vshrl.u32 %v2172, 7
        %v2174 = vsub.s32 %v2171, %v2173
        %v2175 = vrot.slane %v2147, %v2174
        %v2176 = vcombine.high %v2154, %v2154
        %v2177 = vcombine.high %v2161, %v2161
        %v2178 = vcombine.high %v2168, %v2168
        %v2179 = vcombine.high %v2175, %v2175
        %2188 = vst [vmem:[%s551 + $0x4] sm:$0x1] %v2154
        %2189 = vst [vmem:[%s551 + $0xc] sm:$0x1] %v2168
        %2190 = vst [vmem:[%s551 + $0x14] sm:$0x1] %v2176
        %2191 = vst [vmem:[%s551 + $0x1c] sm:$0x1] %v2178
        %2192 = vst [vmem:[%s551 + $0x24] sm:$0x1] %v2161
        %2193 = vst [vmem:[%s551 + $0x2c] sm:$0x1] %v2175
        %2194 = vst [vmem:[%s551 + $0x34] sm:$0x1] %v2177
        %2195 = vst [vmem:[%s551 + $0x3c] sm:$0x1] %v2179
        %v2196 = vld [vmem:[#allocation2] sm:$0xff]
        %v2197 = vld [vmem:[#allocation3] sm:$0xff]
        %s2198 = scalar_lea.vmem [#allocation5], 80
        %v2199 = vld [vmem:[%s2198] sm:$0xff]
        %v2200 = vld [vmem:[%s2198 + $0x8] sm:$0xff]
        %v2201 = vunpack.c.l.bf16 %v2199
        %v2202 = vunpack.c.h.bf16 %v2199
        %v2203 = vunpack.c.l.bf16 %v2200
        %v2204 = vunpack.c.h.bf16 %v2200
        %v2205 = vpack.c.bf16 %v2196, %v2196
        %2206 = vmatprep.subr.bf16.mxu0 %v1202
        %2207 = vmatpush1.bf16.msra.mxu0 %v1201
        %2208 = vmatprep.subr.bf16.mxu0 %v1198
        %2209 = vmatpush1.bf16.msra.mxu0 %v1197
        %2210 = vmatprep.subr.bf16.mxu0 %v1194
        %2211 = vmatpush1.bf16.msra.mxu0 %v1193
        %2212 = vmatprep.subr.bf16.mxu0 %v1190
        %2213 = vmatpush1.bf16.msra.mxu0 %v1189
        %2214 = vmatprep.subr.bf16.mxu0 %v1186
        %2215 = vmatpush1.bf16.msra.mxu0 %v1185
        %2216 = vmatprep.subr.bf16.mxu0 %v1182
        %2217 = vmatpush1.bf16.msra.mxu0 %v1181
        %2218 = vmatprep.subr.bf16.mxu0 %v1178
        %2219 = vmatpush1.bf16.msra.mxu0 %v1177
        %2220 = vmatprep.subr.bf16.mxu0 %v1174
        %2221 = vmatpush1.bf16.msra.mxu0 %v1173
        %2222 = vmatprep.subr.bf16.mxu0 0
        %2223 = vmatpush2.bf16.msra.mxu0 0
        %2224 = vmatprep.subr.bf16.mxu0 0
        %2225 = vmatpush2.bf16.msra.mxu0 0
        %2226 = vmatprep.subr.bf16.mxu0 0
        %2227 = vmatpush2.bf16.msra.mxu0 0
        %2228 = vmatprep.subr.bf16.mxu0 0
        %2229 = vmatpush2.bf16.msra.mxu0 0
        %2230 = vmatprep.subr.bf16.mxu0 0
        %2231 = vmatpush2.bf16.msra.mxu0 0
        %2232 = vmatprep.subr.bf16.mxu0 0
        %2233 = vmatpush2.bf16.msra.mxu0 0
        %2234 = vmatprep.subr.bf16.mxu0 0
        %2235 = vmatpush2.bf16.msra.mxu0 0
        %2236 = vmatprep.subr.bf16.mxu0 0
        %2237 = vmatpush2.bf16.msra.mxu0 0
        %2238 = vmatprep.mubr.bf16.mxu0 0
        %2239 = vmatmul.mubr.bf16.gmra.mxu0 %v2205
        %v2240 = vpop.f32.mrf.mxu0
        %v2241 = vadd.f32 0.0, %v2240
        %v2242 = vpop.f32.mrf.mxu0
        %v2243 = vadd.f32 0.0, %v2242
        %v2244 = vpop.f32.mrf.mxu0
        %v2245 = vpop.f32.mrf.mxu0
        %2246 = vdwg.mxu0
        %2247 = vmatprep.subr.bf16.mxu0 %v1204
        %2248 = vmatpush1.bf16.msra.mxu0 %v1203
        %2249 = vmatprep.subr.bf16.mxu0 %v1200
        %2250 = vmatpush1.bf16.msra.mxu0 %v1199
        %2251 = vmatprep.subr.bf16.mxu0 %v1196
        %2252 = vmatpush1.bf16.msra.mxu0 %v1195
        %2253 = vmatprep.subr.bf16.mxu0 %v1192
        %2254 = vmatpush1.bf16.msra.mxu0 %v1191
        %2255 = vmatprep.subr.bf16.mxu0 %v1188
        %2256 = vmatpush1.bf16.msra.mxu0 %v1187
        %2257 = vmatprep.subr.bf16.mxu0 %v1184
        %2258 = vmatpush1.bf16.msra.mxu0 %v1183
        %2259 = vmatprep.subr.bf16.mxu0 %v1180
        %2260 = vmatpush1.bf16.msra.mxu0 %v1179
        %2261 = vmatprep.subr.bf16.mxu0 %v1176
        %2262 = vmatpush1.bf16.msra.mxu0 %v1175
        %2263 = vmatprep.subr.bf16.mxu0 0
        %2264 = vmatpush2.bf16.msra.mxu0 0
        %2265 = vmatprep.subr.bf16.mxu0 0
        %2266 = vmatpush2.bf16.msra.mxu0 0
        %2267 = vmatprep.subr.bf16.mxu0 0
        %2268 = vmatpush2.bf16.msra.mxu0 0
        %2269 = vmatprep.subr.bf16.mxu0 0
        %2270 = vmatpush2.bf16.msra.mxu0 0
        %2271 = vmatprep.subr.bf16.mxu0 0
        %2272 = vmatpush2.bf16.msra.mxu0 0
        %2273 = vmatprep.subr.bf16.mxu0 0
        %2274 = vmatpush2.bf16.msra.mxu0 0
        %2275 = vmatprep.subr.bf16.mxu0 0
        %2276 = vmatpush2.bf16.msra.mxu0 0
        %2277 = vmatprep.subr.bf16.mxu0 0
        %2278 = vmatpush2.bf16.msra.mxu0 0
        %2279 = vmatprep.mubr.bf16.mxu0 0
        %2280 = vmatmul.mubr.bf16.gmra.mxu0 %v2205
        %v2281 = vpop.f32.mrf.mxu0
        %v2282 = vadd.f32 0.0, %v2281
        %v2283 = vpop.f32.mrf.mxu0
        %v2284 = vadd.f32 0.0, %v2283
        %v2285 = vpop.f32.mrf.mxu0
        %v2286 = vpop.f32.mrf.mxu0
        %2287 = vdwg.mxu0
        %v2288 = vadd.f32 %v2201, %v2241
        %v2289 = vadd.f32 %v2202, %v2243
        %v2290 = vadd.f32 %v2203, %v2282
        %v2291 = vadd.f32 %v2204, %v2284
        %v2292 = vxor.u32 %v2288, 2147483648
        %v2293 = vmul.f32 %v2292, 1.442695
        %v2294 = vpow.pop %v2293
        %v2295 = vadd.f32 %v2294, 1.0
        %v2296 = vrcp.pop %v2295
        %v2297 = vmul.f32 1.0, %v2296
        %v2298 = vxor.u32 %v2289, 2147483648
        %v2299 = vmul.f32 %v2298, 1.442695
        %v2300 = vpow.pop %v2299
        %v2301 = vadd.f32 %v2300, 1.0
        %v2302 = vrcp.pop %v2301
        %v2303 = vmul.f32 1.0, %v2302
        %v2304 = vtanh.pop %v2290
        %v2305 = vxor.u32 %v2291, 2147483648
        %v2306 = vmul.f32 %v2305, 1.442695
        %v2307 = vpow.pop %v2306
        %v2308 = vadd.f32 %v2307, 1.0
        %v2309 = vrcp.pop %v2308
        %v2310 = vmul.f32 1.0, %v2309
        %v2311 = vmul.f32 %v2303, %v2197
        %v2312 = vmul.f32 %v2297, %v2304
        %v2313 = vadd.f32 %v2311, %v2312
        %v2314 = vtanh.pop %v2313
        %v2315 = vmul.f32 %v2310, %v2314
        %s2316 = sadd.s32 %s1067, 5
        %v2317 = vstv %s2316
        %vm2318 = vcmp.gt.s32.totalorder %v1066, %v2317
        %v2319 = vsel %vm2318, %v2313, %v2197
        %2320 = vst [vmem:[#allocation3] sm:$0xff] %v2319
        %v2321 = vsel %vm2318, %v2315, %v2196
        %2322 = vst [vmem:[#allocation2] sm:$0xff] %v2321
        %v2323 = vsel %vm2318, %v2315, 0.0
        %v2325 = vcombine.high %v2323, %v2323
        %v2327 = vunpack.c.l.s4 1966171168
        %v2328 = vunpack.c.0.s8 %v2327
        %v2329 = vlaneseq
        %v2330 = vshrl.u32 %v2329, 7
        %v2331 = vsub.s32 %v2328, %v2330
        %v2332 = vrot.slane %v2323, %v2331
        %v2334 = vunpack.c.l.s4 1966171168
        %v2335 = vunpack.c.0.s8 %v2334
        %v2336 = vlaneseq
        %v2337 = vshrl.u32 %v2336, 7
        %v2338 = vsub.s32 %v2335, %v2337
        %v2339 = vrot.slane %v2325, %v2338
        %v2340 = vcombine.high %v2332, %v2332
        %v2341 = vcombine.high %v2339, %v2339
        %v2343 = vunpack.c.l.s4 1966171168
        %v2344 = vunpack.c.0.s8 %v2343
        %v2345 = vlaneseq
        %v2346 = vshrl.u32 %v2345, 7
        %v2347 = vsub.s32 %v2344, %v2346
        %v2348 = vrot.slane %v2332, %v2347
        %v2350 = vunpack.c.l.s4 1966171168
        %v2351 = vunpack.c.0.s8 %v2350
        %v2352 = vlaneseq
        %v2353 = vshrl.u32 %v2352, 7
        %v2354 = vsub.s32 %v2351, %v2353
        %v2355 = vrot.slane %v2339, %v2354
        %v2357 = vunpack.c.l.s4 1966171168
        %v2358 = vunpack.c.0.s8 %v2357
        %v2359 = vlaneseq
        %v2360 = vshrl.u32 %v2359, 7
        %v2361 = vsub.s32 %v2358, %v2360
        %v2362 = vrot.slane %v2340, %v2361
        %v2364 = vunpack.c.l.s4 1966171168
        %v2365 = vunpack.c.0.s8 %v2364
        %v2366 = vlaneseq
        %v2367 = vshrl.u32 %v2366, 7
        %v2368 = vsub.s32 %v2365, %v2367
        %v2369 = vrot.slane %v2341, %v2368
        %v2370 = vcombine.high %v2348, %v2348
        %v2371 = vcombine.high %v2355, %v2355
        %v2372 = vcombine.high %v2362, %v2362
        %v2373 = vcombine.high %v2369, %v2369
        %2382 = vst [vmem:[%s551 + $0x5] sm:$0x1] %v2348
        %2383 = vst [vmem:[%s551 + $0xd] sm:$0x1] %v2362
        %2384 = vst [vmem:[%s551 + $0x15] sm:$0x1] %v2370
        %2385 = vst [vmem:[%s551 + $0x1d] sm:$0x1] %v2372
        %2386 = vst [vmem:[%s551 + $0x25] sm:$0x1] %v2355
        %2387 = vst [vmem:[%s551 + $0x2d] sm:$0x1] %v2369
        %2388 = vst [vmem:[%s551 + $0x35] sm:$0x1] %v2371
        %2389 = vst [vmem:[%s551 + $0x3d] sm:$0x1] %v2373
        %v2390 = vld [vmem:[#allocation2] sm:$0xff]
        %v2391 = vld [vmem:[#allocation3] sm:$0xff]
        %s2392 = scalar_lea.vmem [#allocation5], 96
        %v2393 = vld [vmem:[%s2392] sm:$0xff]
        %v2394 = vld [vmem:[%s2392 + $0x8] sm:$0xff]
        %v2395 = vunpack.c.l.bf16 %v2393
        %v2396 = vunpack.c.h.bf16 %v2393
        %v2397 = vunpack.c.l.bf16 %v2394
        %v2398 = vunpack.c.h.bf16 %v2394
        %v2399 = vpack.c.bf16 %v2390, %v2390
        %2400 = vmatprep.subr.bf16.mxu0 %v1202
        %2401 = vmatpush1.bf16.msra.mxu0 %v1201
        %2402 = vmatprep.subr.bf16.mxu0 %v1198
        %2403 = vmatpush1.bf16.msra.mxu0 %v1197
        %2404 = vmatprep.subr.bf16.mxu0 %v1194
        %2405 = vmatpush1.bf16.msra.mxu0 %v1193
        %2406 = vmatprep.subr.bf16.mxu0 %v1190
        %2407 = vmatpush1.bf16.msra.mxu0 %v1189
        %2408 = vmatprep.subr.bf16.mxu0 %v1186
        %2409 = vmatpush1.bf16.msra.mxu0 %v1185
        %2410 = vmatprep.subr.bf16.mxu0 %v1182
        %2411 = vmatpush1.bf16.msra.mxu0 %v1181
        %2412 = vmatprep.subr.bf16.mxu0 %v1178
        %2413 = vmatpush1.bf16.msra.mxu0 %v1177
        %2414 = vmatprep.subr.bf16.mxu0 %v1174
        %2415 = vmatpush1.bf16.msra.mxu0 %v1173
        %2416 = vmatprep.subr.bf16.mxu0 0
        %2417 = vmatpush2.bf16.msra.mxu0 0
        %2418 = vmatprep.subr.bf16.mxu0 0
        %2419 = vmatpush2.bf16.msra.mxu0 0
        %2420 = vmatprep.subr.bf16.mxu0 0
        %2421 = vmatpush2.bf16.msra.mxu0 0
        %2422 = vmatprep.subr.bf16.mxu0 0
        %2423 = vmatpush2.bf16.msra.mxu0 0
        %2424 = vmatprep.subr.bf16.mxu0 0
        %2425 = vmatpush2.bf16.msra.mxu0 0
        %2426 = vmatprep.subr.bf16.mxu0 0
        %2427 = vmatpush2.bf16.msra.mxu0 0
        %2428 = vmatprep.subr.bf16.mxu0 0
        %2429 = vmatpush2.bf16.msra.mxu0 0
        %2430 = vmatprep.subr.bf16.mxu0 0
        %2431 = vmatpush2.bf16.msra.mxu0 0
        %2432 = vmatprep.mubr.bf16.mxu0 0
        %2433 = vmatmul.mubr.bf16.gmra.mxu0 %v2399
        %v2434 = vpop.f32.mrf.mxu0
        %v2435 = vadd.f32 0.0, %v2434
        %v2436 = vpop.f32.mrf.mxu0
        %v2437 = vadd.f32 0.0, %v2436
        %v2438 = vpop.f32.mrf.mxu0
        %v2439 = vpop.f32.mrf.mxu0
        %2440 = vdwg.mxu0
        %2441 = vmatprep.subr.bf16.mxu0 %v1204
        %2442 = vmatpush1.bf16.msra.mxu0 %v1203
        %2443 = vmatprep.subr.bf16.mxu0 %v1200
        %2444 = vmatpush1.bf16.msra.mxu0 %v1199
        %2445 = vmatprep.subr.bf16.mxu0 %v1196
        %2446 = vmatpush1.bf16.msra.mxu0 %v1195
        %2447 = vmatprep.subr.bf16.mxu0 %v1192
        %2448 = vmatpush1.bf16.msra.mxu0 %v1191
        %2449 = vmatprep.subr.bf16.mxu0 %v1188
        %2450 = vmatpush1.bf16.msra.mxu0 %v1187
        %2451 = vmatprep.subr.bf16.mxu0 %v1184
        %2452 = vmatpush1.bf16.msra.mxu0 %v1183
        %2453 = vmatprep.subr.bf16.mxu0 %v1180
        %2454 = vmatpush1.bf16.msra.mxu0 %v1179
        %2455 = vmatprep.subr.bf16.mxu0 %v1176
        %2456 = vmatpush1.bf16.msra.mxu0 %v1175
        %2457 = vmatprep.subr.bf16.mxu0 0
        %2458 = vmatpush2.bf16.msra.mxu0 0
        %2459 = vmatprep.subr.bf16.mxu0 0
        %2460 = vmatpush2.bf16.msra.mxu0 0
        %2461 = vmatprep.subr.bf16.mxu0 0
        %2462 = vmatpush2.bf16.msra.mxu0 0
        %2463 = vmatprep.subr.bf16.mxu0 0
        %2464 = vmatpush2.bf16.msra.mxu0 0
        %2465 = vmatprep.subr.bf16.mxu0 0
        %2466 = vmatpush2.bf16.msra.mxu0 0
        %2467 = vmatprep.subr.bf16.mxu0 0
        %2468 = vmatpush2.bf16.msra.mxu0 0
        %2469 = vmatprep.subr.bf16.mxu0 0
        %2470 = vmatpush2.bf16.msra.mxu0 0
        %2471 = vmatprep.subr.bf16.mxu0 0
        %2472 = vmatpush2.bf16.msra.mxu0 0
        %2473 = vmatprep.mubr.bf16.mxu0 0
        %2474 = vmatmul.mubr.bf16.gmra.mxu0 %v2399
        %v2475 = vpop.f32.mrf.mxu0
        %v2476 = vadd.f32 0.0, %v2475
        %v2477 = vpop.f32.mrf.mxu0
        %v2478 = vadd.f32 0.0, %v2477
        %v2479 = vpop.f32.mrf.mxu0
        %v2480 = vpop.f32.mrf.mxu0
        %2481 = vdwg.mxu0
        %v2482 = vadd.f32 %v2395, %v2435
        %v2483 = vadd.f32 %v2396, %v2437
        %v2484 = vadd.f32 %v2397, %v2476
        %v2485 = vadd.f32 %v2398, %v2478
        %v2486 = vxor.u32 %v2482, 2147483648
        %v2487 = vmul.f32 %v2486, 1.442695
        %v2488 = vpow.pop %v2487
        %v2489 = vadd.f32 %v2488, 1.0
        %v2490 = vrcp.pop %v2489
        %v2491 = vmul.f32 1.0, %v2490
        %v2492 = vxor.u32 %v2483, 2147483648
        %v2493 = vmul.f32 %v2492, 1.442695
        %v2494 = vpow.pop %v2493
        %v2495 = vadd.f32 %v2494, 1.0
        %v2496 = vrcp.pop %v2495
        %v2497 = vmul.f32 1.0, %v2496
        %v2498 = vtanh.pop %v2484
        %v2499 = vxor.u32 %v2485, 2147483648
        %v2500 = vmul.f32 %v2499, 1.442695
        %v2501 = vpow.pop %v2500
        %v2502 = vadd.f32 %v2501, 1.0
        %v2503 = vrcp.pop %v2502
        %v2504 = vmul.f32 1.0, %v2503
        %v2505 = vmul.f32 %v2497, %v2391
        %v2506 = vmul.f32 %v2491, %v2498
        %v2507 = vadd.f32 %v2505, %v2506
        %v2508 = vtanh.pop %v2507
        %v2509 = vmul.f32 %v2504, %v2508
        %s2510 = sadd.s32 %s1067, 6
        %v2511 = vstv %s2510
        %vm2512 = vcmp.gt.s32.totalorder %v1066, %v2511
        %v2513 = vsel %vm2512, %v2507, %v2391
        %2514 = vst [vmem:[#allocation3] sm:$0xff] %v2513
        %v2515 = vsel %vm2512, %v2509, %v2390
        %2516 = vst [vmem:[#allocation2] sm:$0xff] %v2515
        %v2517 = vsel %vm2512, %v2509, 0.0
        %v2519 = vcombine.high %v2517, %v2517
        %v2521 = vunpack.c.l.s4 1966171168
        %v2522 = vunpack.c.0.s8 %v2521
        %v2523 = vlaneseq
        %v2524 = vshrl.u32 %v2523, 7
        %v2525 = vsub.s32 %v2522, %v2524
        %v2526 = vrot.slane %v2517, %v2525
        %v2528 = vunpack.c.l.s4 1966171168
        %v2529 = vunpack.c.0.s8 %v2528
        %v2530 = vlaneseq
        %v2531 = vshrl.u32 %v2530, 7
        %v2532 = vsub.s32 %v2529, %v2531
        %v2533 = vrot.slane %v2519, %v2532
        %v2534 = vcombine.high %v2526, %v2526
        %v2535 = vcombine.high %v2533, %v2533
        %v2537 = vunpack.c.l.s4 1966171168
        %v2538 = vunpack.c.0.s8 %v2537
        %v2539 = vlaneseq
        %v2540 = vshrl.u32 %v2539, 7
        %v2541 = vsub.s32 %v2538, %v2540
        %v2542 = vrot.slane %v2526, %v2541
        %v2544 = vunpack.c.l.s4 1966171168
        %v2545 = vunpack.c.0.s8 %v2544
        %v2546 = vlaneseq
        %v2547 = vshrl.u32 %v2546, 7
        %v2548 = vsub.s32 %v2545, %v2547
        %v2549 = vrot.slane %v2533, %v2548
        %v2551 = vunpack.c.l.s4 1966171168
        %v2552 = vunpack.c.0.s8 %v2551
        %v2553 = vlaneseq
        %v2554 = vshrl.u32 %v2553, 7
        %v2555 = vsub.s32 %v2552, %v2554
        %v2556 = vrot.slane %v2534, %v2555
        %v2558 = vunpack.c.l.s4 1966171168
        %v2559 = vunpack.c.0.s8 %v2558
        %v2560 = vlaneseq
        %v2561 = vshrl.u32 %v2560, 7
        %v2562 = vsub.s32 %v2559, %v2561
        %v2563 = vrot.slane %v2535, %v2562
        %v2564 = vcombine.high %v2542, %v2542
        %v2565 = vcombine.high %v2549, %v2549
        %v2566 = vcombine.high %v2556, %v2556
        %v2567 = vcombine.high %v2563, %v2563
        %2576 = vst [vmem:[%s551 + $0x6] sm:$0x1] %v2542
        %2577 = vst [vmem:[%s551 + $0xe] sm:$0x1] %v2556
        %2578 = vst [vmem:[%s551 + $0x16] sm:$0x1] %v2564
        %2579 = vst [vmem:[%s551 + $0x1e] sm:$0x1] %v2566
        %2580 = vst [vmem:[%s551 + $0x26] sm:$0x1] %v2549
        %2581 = vst [vmem:[%s551 + $0x2e] sm:$0x1] %v2563
        %2582 = vst [vmem:[%s551 + $0x36] sm:$0x1] %v2565
        %2583 = vst [vmem:[%s551 + $0x3e] sm:$0x1] %v2567
        %v2584 = vld [vmem:[#allocation2] sm:$0xff]
        %v2585 = vld [vmem:[#allocation3] sm:$0xff]
        %s2586 = scalar_lea.vmem [#allocation5], 112
        %v2587 = vld [vmem:[%s2586] sm:$0xff]
        %v2588 = vld [vmem:[%s2586 + $0x8] sm:$0xff]
        %v2589 = vunpack.c.l.bf16 %v2587
        %v2590 = vunpack.c.h.bf16 %v2587
        %v2591 = vunpack.c.l.bf16 %v2588
        %v2592 = vunpack.c.h.bf16 %v2588
        %v2593 = vpack.c.bf16 %v2584, %v2584
        %2594 = vmatprep.subr.bf16.mxu0 %v1202
        %2595 = vmatpush1.bf16.msra.mxu0 %v1201
        %2596 = vmatprep.subr.bf16.mxu0 %v1198
        %2597 = vmatpush1.bf16.msra.mxu0 %v1197
        %2598 = vmatprep.subr.bf16.mxu0 %v1194
        %2599 = vmatpush1.bf16.msra.mxu0 %v1193
        %2600 = vmatprep.subr.bf16.mxu0 %v1190
        %2601 = vmatpush1.bf16.msra.mxu0 %v1189
        %2602 = vmatprep.subr.bf16.mxu0 %v1186
        %2603 = vmatpush1.bf16.msra.mxu0 %v1185
        %2604 = vmatprep.subr.bf16.mxu0 %v1182
        %2605 = vmatpush1.bf16.msra.mxu0 %v1181
        %2606 = vmatprep.subr.bf16.mxu0 %v1178
        %2607 = vmatpush1.bf16.msra.mxu0 %v1177
        %2608 = vmatprep.subr.bf16.mxu0 %v1174
        %2609 = vmatpush1.bf16.msra.mxu0 %v1173
        %2610 = vmatprep.subr.bf16.mxu0 0
        %2611 = vmatpush2.bf16.msra.mxu0 0
        %2612 = vmatprep.subr.bf16.mxu0 0
        %2613 = vmatpush2.bf16.msra.mxu0 0
        %2614 = vmatprep.subr.bf16.mxu0 0
        %2615 = vmatpush2.bf16.msra.mxu0 0
        %2616 = vmatprep.subr.bf16.mxu0 0
        %2617 = vmatpush2.bf16.msra.mxu0 0
        %2618 = vmatprep.subr.bf16.mxu0 0
        %2619 = vmatpush2.bf16.msra.mxu0 0
        %2620 = vmatprep.subr.bf16.mxu0 0
        %2621 = vmatpush2.bf16.msra.mxu0 0
        %2622 = vmatprep.subr.bf16.mxu0 0
        %2623 = vmatpush2.bf16.msra.mxu0 0
        %2624 = vmatprep.subr.bf16.mxu0 0
        %2625 = vmatpush2.bf16.msra.mxu0 0
        %2626 = vmatprep.mubr.bf16.mxu0 0
        %2627 = vmatmul.mubr.bf16.gmra.mxu0 %v2593
        %v2628 = vpop.f32.mrf.mxu0
        %v2629 = vadd.f32 0.0, %v2628
        %v2630 = vpop.f32.mrf.mxu0
        %v2631 = vadd.f32 0.0, %v2630
        %v2632 = vpop.f32.mrf.mxu0
        %v2633 = vpop.f32.mrf.mxu0
        %2634 = vdwg.mxu0
        %2635 = vmatprep.subr.bf16.mxu0 %v1204
        %2636 = vmatpush1.bf16.msra.mxu0 %v1203
        %2637 = vmatprep.subr.bf16.mxu0 %v1200
        %2638 = vmatpush1.bf16.msra.mxu0 %v1199
        %2639 = vmatprep.subr.bf16.mxu0 %v1196
        %2640 = vmatpush1.bf16.msra.mxu0 %v1195
        %2641 = vmatprep.subr.bf16.mxu0 %v1192
        %2642 = vmatpush1.bf16.msra.mxu0 %v1191
        %2643 = vmatprep.subr.bf16.mxu0 %v1188
        %2644 = vmatpush1.bf16.msra.mxu0 %v1187
        %2645 = vmatprep.subr.bf16.mxu0 %v1184
        %2646 = vmatpush1.bf16.msra.mxu0 %v1183
        %2647 = vmatprep.subr.bf16.mxu0 %v1180
        %2648 = vmatpush1.bf16.msra.mxu0 %v1179
        %2649 = vmatprep.subr.bf16.mxu0 %v1176
        %2650 = vmatpush1.bf16.msra.mxu0 %v1175
        %2651 = vmatprep.subr.bf16.mxu0 0
        %2652 = vmatpush2.bf16.msra.mxu0 0
        %2653 = vmatprep.subr.bf16.mxu0 0
        %2654 = vmatpush2.bf16.msra.mxu0 0
        %2655 = vmatprep.subr.bf16.mxu0 0
        %2656 = vmatpush2.bf16.msra.mxu0 0
        %2657 = vmatprep.subr.bf16.mxu0 0
        %2658 = vmatpush2.bf16.msra.mxu0 0
        %2659 = vmatprep.subr.bf16.mxu0 0
        %2660 = vmatpush2.bf16.msra.mxu0 0
        %2661 = vmatprep.subr.bf16.mxu0 0
        %2662 = vmatpush2.bf16.msra.mxu0 0
        %2663 = vmatprep.subr.bf16.mxu0 0
        %2664 = vmatpush2.bf16.msra.mxu0 0
        %2665 = vmatprep.subr.bf16.mxu0 0
        %2666 = vmatpush2.bf16.msra.mxu0 0
        %2667 = vmatprep.mubr.bf16.mxu0 0
        %2668 = vmatmul.mubr.bf16.gmra.mxu0 %v2593
        %v2669 = vpop.f32.mrf.mxu0
        %v2670 = vadd.f32 0.0, %v2669
        %v2671 = vpop.f32.mrf.mxu0
        %v2672 = vadd.f32 0.0, %v2671
        %v2673 = vpop.f32.mrf.mxu0
        %v2674 = vpop.f32.mrf.mxu0
        %2675 = vdwg.mxu0
        %v2676 = vadd.f32 %v2589, %v2629
        %v2677 = vadd.f32 %v2590, %v2631
        %v2678 = vadd.f32 %v2591, %v2670
        %v2679 = vadd.f32 %v2592, %v2672
        %v2680 = vxor.u32 %v2676, 2147483648
        %v2681 = vmul.f32 %v2680, 1.442695
        %v2682 = vpow.pop %v2681
        %v2683 = vadd.f32 %v2682, 1.0
        %v2684 = vrcp.pop %v2683
        %v2685 = vmul.f32 1.0, %v2684
        %v2686 = vxor.u32 %v2677, 2147483648
        %v2687 = vmul.f32 %v2686, 1.442695
        %v2688 = vpow.pop %v2687
        %v2689 = vadd.f32 %v2688, 1.0
        %v2690 = vrcp.pop %v2689
        %v2691 = vmul.f32 1.0, %v2690
        %v2692 = vtanh.pop %v2678
        %v2693 = vxor.u32 %v2679, 2147483648
        %v2694 = vmul.f32 %v2693, 1.442695
        %v2695 = vpow.pop %v2694
        %v2696 = vadd.f32 %v2695, 1.0
        %v2697 = vrcp.pop %v2696
        %v2698 = vmul.f32 1.0, %v2697
        %v2699 = vmul.f32 %v2691, %v2585
        %v2700 = vmul.f32 %v2685, %v2692
        %v2701 = vadd.f32 %v2699, %v2700
        %v2702 = vtanh.pop %v2701
        %v2703 = vmul.f32 %v2698, %v2702
        %s2704 = sadd.s32 %s1067, 7
        %v2705 = vstv %s2704
        %vm2706 = vcmp.gt.s32.totalorder %v1066, %v2705
        %v2707 = vsel %vm2706, %v2701, %v2585
        %2708 = vst [vmem:[#allocation3] sm:$0xff] %v2707
        %v2709 = vsel %vm2706, %v2703, %v2584
        %2710 = vst [vmem:[#allocation2] sm:$0xff] %v2709
        %v2711 = vsel %vm2706, %v2703, 0.0
        %v2713 = vcombine.high %v2711, %v2711
        %v2715 = vunpack.c.l.s4 1966171168
        %v2716 = vunpack.c.0.s8 %v2715
        %v2717 = vlaneseq
        %v2718 = vshrl.u32 %v2717, 7
        %v2719 = vsub.s32 %v2716, %v2718
        %v2720 = vrot.slane %v2711, %v2719
        %v2722 = vunpack.c.l.s4 1966171168
        %v2723 = vunpack.c.0.s8 %v2722
        %v2724 = vlaneseq
        %v2725 = vshrl.u32 %v2724, 7
        %v2726 = vsub.s32 %v2723, %v2725
        %v2727 = vrot.slane %v2713, %v2726
        %v2728 = vcombine.high %v2720, %v2720
        %v2729 = vcombine.high %v2727, %v2727
        %v2731 = vunpack.c.l.s4 1966171168
        %v2732 = vunpack.c.0.s8 %v2731
        %v2733 = vlaneseq
        %v2734 = vshrl.u32 %v2733, 7
        %v2735 = vsub.s32 %v2732, %v2734
        %v2736 = vrot.slane %v2720, %v2735
        %v2738 = vunpack.c.l.s4 1966171168
        %v2739 = vunpack.c.0.s8 %v2738
        %v2740 = vlaneseq
        %v2741 = vshrl.u32 %v2740, 7
        %v2742 = vsub.s32 %v2739, %v2741
        %v2743 = vrot.slane %v2727, %v2742
        %v2745 = vunpack.c.l.s4 1966171168
        %v2746 = vunpack.c.0.s8 %v2745
        %v2747 = vlaneseq
        %v2748 = vshrl.u32 %v2747, 7
        %v2749 = vsub.s32 %v2746, %v2748
        %v2750 = vrot.slane %v2728, %v2749
        %v2752 = vunpack.c.l.s4 1966171168
        %v2753 = vunpack.c.0.s8 %v2752
        %v2754 = vlaneseq
        %v2755 = vshrl.u32 %v2754, 7
        %v2756 = vsub.s32 %v2753, %v2755
        %v2757 = vrot.slane %v2729, %v2756
        %v2758 = vcombine.high %v2736, %v2736
        %v2759 = vcombine.high %v2743, %v2743
        %v2760 = vcombine.high %v2750, %v2750
        %v2761 = vcombine.high %v2757, %v2757
        %2770 = vst [vmem:[%s551 + $0x7] sm:$0x1] %v2736
        %2771 = vst [vmem:[%s551 + $0xf] sm:$0x1] %v2750
        %2772 = vst [vmem:[%s551 + $0x17] sm:$0x1] %v2758
        %2773 = vst [vmem:[%s551 + $0x1f] sm:$0x1] %v2760
        %2774 = vst [vmem:[%s551 + $0x27] sm:$0x1] %v2743
        %2775 = vst [vmem:[%s551 + $0x2f] sm:$0x1] %v2757
        %2776 = vst [vmem:[%s551 + $0x37] sm:$0x1] %v2759
        %2777 = vst [vmem:[%s551 + $0x3f] sm:$0x1] %v2761
        %v2778 = vld [vmem:[#allocation2] sm:$0xff]
        %2779 = vst [vmem:[%s558] sm:$0xff] %v2778
        %v2780 = vld [vmem:[#allocation3] sm:$0xff]
        %2781 = vst [vmem:[%s565] sm:$0xff] %v2780
        %v2782 = vld [vmem:[%s551] sm:$0xff]
        %v2783 = vld [vmem:[%s551 + $0x8] sm:$0xff]
        %v2784 = vld [vmem:[%s551 + $0x10] sm:$0xff]
        %v2785 = vld [vmem:[%s551 + $0x18] sm:$0xff]
        %v2786 = vld [vmem:[%s551 + $0x20] sm:$0xff]
        %v2787 = vld [vmem:[%s551 + $0x28] sm:$0xff]
        %v2788 = vld [vmem:[%s551 + $0x30] sm:$0xff]
        %v2789 = vld [vmem:[%s551 + $0x38] sm:$0xff]
        %v2790 = vpack.c.bf16 %v2783, %v2782
        %v2791 = vpack.c.bf16 %v2785, %v2784
        %v2792 = vpack.c.bf16 %v2787, %v2786
        %v2793 = vpack.c.bf16 %v2789, %v2788
        %v2794 = vld [vmem:[#allocation17] sm:$0xf]
        %v2795 = vld [vmem:[#allocation17 + $0x4] sm:$0xf]
        %v2796 = vld [vmem:[#allocation17 + $0x8] sm:$0xf]
        %v2797 = vld [vmem:[#allocation17 + $0xc] sm:$0xf]
        %v2798 = vld [vmem:[#allocation17 + $0x10] sm:$0xf]
        %v2799 = vld [vmem:[#allocation17 + $0x14] sm:$0xf]
        %v2800 = vld [vmem:[#allocation17 + $0x18] sm:$0xf]
        %v2801 = vld [vmem:[#allocation17 + $0x1c] sm:$0xf]
        %v2802 = vld [vmem:[#allocation17 + $0x20] sm:$0xf]
        %v2803 = vld [vmem:[#allocation17 + $0x24] sm:$0xf]
        %v2804 = vld [vmem:[#allocation17 + $0x28] sm:$0xf]
        %v2805 = vld [vmem:[#allocation17 + $0x2c] sm:$0xf]
        %v2806 = vld [vmem:[#allocation17 + $0x30] sm:$0xf]
        %v2807 = vld [vmem:[#allocation17 + $0x34] sm:$0xf]
        %v2808 = vld [vmem:[#allocation17 + $0x38] sm:$0xf]
        %v2809 = vld [vmem:[#allocation17 + $0x3c] sm:$0xf]
        %v2810 = vld [vmem:[%s8] sm:$0x1]
        %v2812 = vlaneseq
        %v2813 = vshrl.u32 %v2812, 7
        %v2814 = vsub.s32 0, %v2813
        %v2815 = vrot.slane %v2810, %v2814
        %v2833 = vunpack.c.l.b16 %v2794
        %v2834 = vunpack.c.l.b16 %v2795
        %v2835 = vunpack.c.l.b16 %v2796
        %v2836 = vunpack.c.l.b16 %v2797
        %v2837 = vunpack.c.l.b16 %v2798
        %v2838 = vunpack.c.l.b16 %v2799
        %v2839 = vunpack.c.l.b16 %v2800
        %v2840 = vunpack.c.l.b16 %v2801
        %v2841 = vunpack.c.l.b16 %v2802
        %v2842 = vunpack.c.l.b16 %v2803
        %v2843 = vunpack.c.l.b16 %v2804
        %v2844 = vunpack.c.l.b16 %v2805
        %v2845 = vunpack.c.l.b16 %v2806
        %v2846 = vunpack.c.l.b16 %v2807
        %v2847 = vunpack.c.l.b16 %v2808
        %v2848 = vunpack.c.l.b16 %v2809
        %v2849 = vpack.c.b16 %v2834, %v2833
        %v2850 = vpack.c.b16 %v2836, %v2835
        %v2851 = vpack.c.b16 %v2838, %v2837
        %v2852 = vpack.c.b16 %v2840, %v2839
        %v2853 = vpack.c.b16 %v2842, %v2841
        %v2854 = vpack.c.b16 %v2844, %v2843
        %v2855 = vpack.c.b16 %v2846, %v2845
        %v2856 = vpack.c.b16 %v2848, %v2847
        %2865 = vmatprep.subr.bf16.mxu0 0
        %2866 = vmatpush1.bf16.msra.mxu0 %v2856
        %2867 = vmatprep.subr.bf16.mxu0 0
        %2868 = vmatpush1.bf16.msra.mxu0 %v2855
        %2869 = vmatprep.subr.bf16.mxu0 0
        %2870 = vmatpush1.bf16.msra.mxu0 %v2854
        %2871 = vmatprep.subr.bf16.mxu0 0
        %2872 = vmatpush1.bf16.msra.mxu0 %v2853
        %2873 = vmatprep.subr.bf16.mxu0 0
        %2874 = vmatpush1.bf16.msra.mxu0 %v2852
        %2875 = vmatprep.subr.bf16.mxu0 0
        %2876 = vmatpush1.bf16.msra.mxu0 %v2851
        %2877 = vmatprep.subr.bf16.mxu0 0
        %2878 = vmatpush1.bf16.msra.mxu0 %v2850
        %2879 = vmatprep.subr.bf16.mxu0 0
        %2880 = vmatpush1.bf16.msra.mxu0 %v2849
        %2881 = vmatprep.subr.bf16.mxu0 0
        %2882 = vmatpush2.bf16.msra.mxu0 0
        %2883 = vmatprep.subr.bf16.mxu0 0
        %2884 = vmatpush2.bf16.msra.mxu0 0
        %2885 = vmatprep.subr.bf16.mxu0 0
        %2886 = vmatpush2.bf16.msra.mxu0 0
        %2887 = vmatprep.subr.bf16.mxu0 0
        %2888 = vmatpush2.bf16.msra.mxu0 0
        %2889 = vmatprep.subr.bf16.mxu0 0
        %2890 = vmatpush2.bf16.msra.mxu0 0
        %2891 = vmatprep.subr.bf16.mxu0 0
        %2892 = vmatpush2.bf16.msra.mxu0 0
        %2893 = vmatprep.subr.bf16.mxu0 0
        %2894 = vmatpush2.bf16.msra.mxu0 0
        %2895 = vmatprep.subr.bf16.mxu0 0
        %2896 = vmatpush2.bf16.msra.mxu0 0
        %2897 = vmatprep.mubr.bf16.mxu0 0
        %2898 = vmatmul.mubr.bf16.gmra.mxu0 %v2790
        %v2899 = vpop.f32.mrf.mxu0
        %v2900 = vadd.f32 %v2815, %v2899
        %v2901 = vpop.f32.mrf.mxu0
        %v2902 = vpop.f32.mrf.mxu0
        %v2903 = vadd.f32 %v2815, %v2902
        %v2904 = vpop.f32.mrf.mxu0
        %2905 = vmatprep.mubr.bf16.mxu0 0
        %2906 = vmatmul.mubr.bf16.gmra.mxu0 %v2791
        %v2907 = vpop.f32.mrf.mxu0
        %v2908 = vadd.f32 %v2815, %v2907
        %v2909 = vpop.f32.mrf.mxu0
        %v2910 = vpop.f32.mrf.mxu0
        %v2911 = vadd.f32 %v2815, %v2910
        %v2912 = vpop.f32.mrf.mxu0
        %2913 = vmatprep.mubr.bf16.mxu0 0
        %2914 = vmatmul.mubr.bf16.gmra.mxu0 %v2792
        %v2915 = vpop.f32.mrf.mxu0
        %v2916 = vadd.f32 %v2815, %v2915
        %v2917 = vpop.f32.mrf.mxu0
        %v2918 = vpop.f32.mrf.mxu0
        %v2919 = vadd.f32 %v2815, %v2918
        %v2920 = vpop.f32.mrf.mxu0
        %2921 = vmatprep.mubr.bf16.mxu0 0
        %2922 = vmatmul.mubr.bf16.gmra.mxu0 %v2793
        %v2923 = vpop.f32.mrf.mxu0
        %v2924 = vadd.f32 %v2815, %v2923
        %v2925 = vpop.f32.mrf.mxu0
        %v2926 = vpop.f32.mrf.mxu0
        %v2927 = vadd.f32 %v2815, %v2926
        %v2928 = vpop.f32.mrf.mxu0
        %2929 = vdwg.mxu0
        %2930 = vst [vmem:[%s572] sm:$0xff] %v2900
        %2931 = vst [vmem:[%s572 + $0x8] sm:$0xff] %v2903
        %2932 = vst [vmem:[%s572 + $0x10] sm:$0xff] %v2908
        %2933 = vst [vmem:[%s572 + $0x18] sm:$0xff] %v2911
        %2934 = vst [vmem:[%s572 + $0x20] sm:$0xff] %v2916
        %2935 = vst [vmem:[%s572 + $0x28] sm:$0xff] %v2919
        %2936 = vst [vmem:[%s572 + $0x30] sm:$0xff] %v2924
        %2937 = vst [vmem:[%s572 + $0x38] sm:$0xff] %v2927
        %s2938 = sand.u32 %s252, 1
        %s2939 = scalar_lea.sflag [#allocation10], %s2938
        %s2940 = sand.u32 %s252, 1
        %s2941 = smul.addr %s2940, 64
        %s2942 = scalar_lea.vmem [#allocation19], %s2941
        %s2943 = sand.u32 %s45, 1
        %s2944 = scalar_lea.sflag [#allocation21], %s2943
        %s2945 = sand.u32 %s278, 1
        %s2946 = smul.addr %s2945, 8
        %s2947 = scalar_lea.vmem [#allocation20], %s2946
        %s2948 = sand.u32 %s45, 1
        %s2949 = scalar_lea.sflag [#allocation21], %s2948
        %s2950 = sand.u32 %s304, 1
        %s2951 = smul.addr %s2950, 8
        %s2952 = scalar_lea.vmem [#allocation22], %s2951
        %s2953 = sand.u32 %s332, 1
        %s2954 = scalar_lea.sflag [#allocation24], %s2953
        %s2955 = sand.u32 %s332, 1
        %s2956 = smul.addr %s2955, 64
        %s2957 = scalar_lea.vmem [#allocation23], %s2956
        // Predicated region
        $region81: #{tpu_custom_call.1} parent=51 // pred_check
          %p2958 = pneg %p262
        $region82: #{tpu_custom_call.1} parent=51 // pred_check_branch
          %2960 = sbr.rel (%p2958) target = $region84
        $region83: #{tpu_custom_call.1} parent=51 // pred_region
          %s2961 = smul.u32 8, %s49
          %s2963 = ssub.s32 1024, 1024
          %2964 = vsyncadd %s2939, %s2963
          %s2965 = sadd.s32 %s50, %s2961
          %s2966 = smul.addr %s2965, 128
          %s2967 = scalar_lea.hbm %s9, %s2966
          %s2968 = sshll.u32 %s2942, 4
          %s2969 = int_to_ptr.vmem [resolvable:$true] %s2968
          %2974 = dma.vmem_to_hbm [thread:$0]  %s2969, 1024, %s2967, %s2939, 128, 128, 8
        $region84: #{tpu_custom_call.1} parent=51 // pred_fallthru
          _
        // Predicated region
        $region85: #{tpu_custom_call.1} parent=51 // pred_check
          %p2975 = pneg %p288
        $region86: #{tpu_custom_call.1} parent=51 // pred_check_branch
          %2977 = sbr.rel (%p2975) target = $region88
        $region87: #{tpu_custom_call.1} parent=51 // pred_region
          %s2979 = ssub.s32 128, 128
          %2980 = vsyncadd %s2944, %s2979
          %s2981 = smul.addr %s49, 128
          %s2982 = scalar_lea.hbm %s10, %s2981
          %s2984 = sshll.u32 %s2947, 4
          %s2985 = int_to_ptr.vmem [resolvable:$true] %s2984
          %2987 = dma.vmem_to_hbm [thread:$0]  %s2985, 128, %s2982, %s2944
        $region88: #{tpu_custom_call.1} parent=51 // pred_fallthru
          _
        // Predicated region
        $region89: #{tpu_custom_call.1} parent=51 // pred_check
          %p2988 = pneg %p314
        $region90: #{tpu_custom_call.1} parent=51 // pred_check_branch
          %2990 = sbr.rel (%p2988) target = $region92
        $region91: #{tpu_custom_call.1} parent=51 // pred_region
          %s2992 = ssub.s32 128, 128
          %2993 = vsyncadd %s2949, %s2992
          %s2994 = smul.addr %s49, 128
          %s2995 = scalar_lea.hbm %s11, %s2994
          %s2997 = sshll.u32 %s2952, 4
          %s2998 = int_to_ptr.vmem [resolvable:$true] %s2997
          %3000 = dma.vmem_to_hbm [thread:$0]  %s2998, 128, %s2995, %s2949
        $region92: #{tpu_custom_call.1} parent=51 // pred_fallthru
          _
        // Predicated region
        $region93: #{tpu_custom_call.1} parent=51 // pred_check
          %p3001 = pneg %p342
        $region94: #{tpu_custom_call.1} parent=51 // pred_check_branch
          %3003 = sbr.rel (%p3001) target = $region96
        $region95: #{tpu_custom_call.1} parent=51 // pred_region
          %s3004 = smul.u32 8, %s49
          %s3006 = ssub.s32 1024, 1024
          %3007 = vsyncadd %s2954, %s3006
          %s3008 = sadd.s32 %s50, %s3004
          %s3009 = smul.addr %s3008, 128
          %s3010 = scalar_lea.hbm %s12, %s3009
          %s3011 = sshll.u32 %s2957, 4
          %s3012 = int_to_ptr.vmem [resolvable:$true] %s3011
          %3017 = dma.vmem_to_hbm [thread:$0]  %s3012, 1024, %s3010, %s2954, 128, 128, 8
        $region96: #{tpu_custom_call.1} parent=51 // pred_fallthru
          _
      $region52: #{tpu_custom_call.1} parent=5 // pred_fallthru
        _
      %p3018 = scmp.le.s32.totalorder 2, %s40
      // Predicated region
      $region97: #{tpu_custom_call.1} parent=5 // pred_check
        %p3019 = pneg %p3018
      $region98: #{tpu_custom_call.1} parent=5 // pred_check_branch
        %3021 = sbr.rel (%p3019) target = $region100
      $region99: #{tpu_custom_call.1} parent=5 // pred_region
        %s3022 = ssub.s32 %s40, 2
        // Predicated region
        $region101: #{tpu_custom_call.1} parent=99 // pred_check
          %p3023 = pneg %p268
        $region102: #{tpu_custom_call.1} parent=99 // pred_check_branch
          %3025 = sbr.rel (%p3023) target = $region104
        $region103: #{tpu_custom_call.1} parent=99 // pred_region
          %s3026 = sand.u32 %s253, 1
          %s3027 = scalar_lea.sflag [#allocation10], %s3026
          %s3028 = sand.u32 %s253, 1
          %s3029 = smul.addr %s3028, 64
          %s3030 = scalar_lea.vmem [#allocation19], %s3029
          %3031 = dma.done %s3027, 1024
        $region104: #{tpu_custom_call.1} parent=99 // pred_fallthru
          _
        // Predicated region
        $region105: #{tpu_custom_call.1} parent=99 // pred_check
          %p3032 = pneg %p294
        $region106: #{tpu_custom_call.1} parent=99 // pred_check_branch
          %3034 = sbr.rel (%p3032) target = $region108
        $region107: #{tpu_custom_call.1} parent=99 // pred_region
          %s3035 = sand.u32 %s46, 1
          %s3036 = scalar_lea.sflag [#allocation21], %s3035
          %s3037 = sand.u32 %s279, 1
          %s3038 = smul.addr %s3037, 8
          %s3039 = scalar_lea.vmem [#allocation20], %s3038
          %3040 = dma.done %s3036, 128
        $region108: #{tpu_custom_call.1} parent=99 // pred_fallthru
          _
        // Predicated region
        $region109: #{tpu_custom_call.1} parent=99 // pred_check
          %p3041 = pneg %p320
        $region110: #{tpu_custom_call.1} parent=99 // pred_check_branch
          %3043 = sbr.rel (%p3041) target = $region112
        $region111: #{tpu_custom_call.1} parent=99 // pred_region
          %s3044 = sand.u32 %s46, 1
          %s3045 = scalar_lea.sflag [#allocation21], %s3044
          %s3046 = sand.u32 %s305, 1
          %s3047 = smul.addr %s3046, 8
          %s3048 = scalar_lea.vmem [#allocation22], %s3047
          %3049 = dma.done %s3045, 128
        $region112: #{tpu_custom_call.1} parent=99 // pred_fallthru
          _
        // Predicated region
        $region113: #{tpu_custom_call.1} parent=99 // pred_check
          %p3050 = pneg %p348
        $region114: #{tpu_custom_call.1} parent=99 // pred_check_branch
          %3052 = sbr.rel (%p3050) target = $region116
        $region115: #{tpu_custom_call.1} parent=99 // pred_region
          %s3053 = sand.u32 %s333, 1
          %s3054 = scalar_lea.sflag [#allocation24], %s3053
          %s3055 = sand.u32 %s333, 1
          %s3056 = smul.addr %s3055, 64
          %s3057 = scalar_lea.vmem [#allocation23], %s3056
          %3058 = dma.done %s3054, 1024
        $region116: #{tpu_custom_call.1} parent=99 // pred_fallthru
          _
      $region100: #{tpu_custom_call.1} parent=5 // pred_fallthru
        _
    $region6: #{tpu_custom_call.1} parent=1 // loop_footer
      %s44 = sadd.s32 1, %s40
    $region7: #{tpu_custom_call.1} parent=1 // loop_footer_branch
      %39 = sbr.rel target = $region3
    $region8: #{tpu_custom_call.1} parent=1 // loop_exit
      _
    %3059 = vsyncpa [#allocation9], 1
    %s3060 = scalar_lea.sflag [#allocation9], 1
    %3061 = vsyncpa %s3060, 1
    %3062 = vsyncpa [#allocation12], 1
    %3063 = vsyncpa [#allocation15], 1
    %s3064 = scalar_lea.sflag [#allocation15], 1
    %3065 = vsyncpa %s3064, 1
    %3066 = vsyncpa [#allocation18], 1
    %3067 = vsyncpa [#allocation10], 1
    %s3068 = scalar_lea.sflag [#allocation10], 1
    %3069 = vsyncpa %s3068, 1
    %3070 = vsyncpa [#allocation21], 1
    %s3071 = scalar_lea.sflag [#allocation21], 1
    %3072 = vsyncpa %s3071, 1
    %3073 = vsyncpa [#allocation24], 1
    %s3074 = scalar_lea.sflag [#allocation24], 1
    %3075 = vsyncpa %s3074, 1

</llo_original>
